<compile_context>
chip_gen: v7x
topology: tpu7x:2x2x1
jax: 0.10.0
libtpu: 0.0.40
codegen_flags: <defaults>
</compile_context>

<pallas_src>
import jax
import jax.numpy as jnp
from jax.experimental import pallas as pl
from jax.experimental.pallas import tpu as pltpu


def _se_conv1x1_kernel(gate_ref, x_ref, w_ref, o_ref):
    # gate_ref: (C, 1)   f32  pre-sigmoid SE gate (per input channel), resident
    # x_ref:    (C, M)   f32  activations in native NCHW order (M = H*W), resident
    # w_ref:    (Tn, C)  f32  streamed tile of the conv weight (native (Cout, Cin))
    # o_ref:    (Tn, M)  f32  output tile
    #
    # sigmoid -> EUP slot, broadcast multiply -> VPU slot: both are free filler
    # under the weight-DMA bottleneck, so recompute per grid step (also keeps
    # the "parallel" grid axis safe for megacore sharding on v7x).
    g = jax.nn.sigmoid(gate_ref[...])                      # (C, 1)
    xg = x_ref[...] * g                                    # (C, M) f32
    o_ref[...] = jnp.dot(
        w_ref[...], xg, preferred_element_type=jnp.float32
    )                                                      # (Tn, M) MXU


def se_gate_conv1x1(x_nchw, gate_nc11, weight_oi11, *, cout_tile=320):
    """sigmoid(gate) * x followed by a 1x1 conv (no bias), NCHW in/out."""
    N, C, H, W = x_nchw.shape
    Cout = weight_oi11.shape[0]
    assert N == 1, "SE-gate layout assumes batch size 1 (as in the module)"
    M = H * W

    # Pure reshapes -- no transpose / cast traffic in the wrapper.
    x = x_nchw.reshape(C, M)                               # (C, M) f32
    g = gate_nc11.reshape(C, 1)                            # (C, 1) f32
    w = weight_oi11.reshape(Cout, C)                       # (Cout, C) f32

    # Tile Cout; fall back to a single full tile if it doesn't divide cleanly.
    if Cout % cout_tile == 0 and cout_tile % 8 == 0:
        tn = cout_tile
    else:
        tn = Cout
    grid = (Cout // tn,)

    out = pl.pallas_call(
        _se_conv1x1_kernel,
        out_shape=jax.ShapeDtypeStruct((Cout, M), jnp.float32),
        grid_spec=pltpu.PrefetchScalarGridSpec(
            num_scalar_prefetch=0,
            grid=grid,
            in_specs=[
                pl.BlockSpec((C, 1), lambda i: (0, 0)),    # gate: resident
                pl.BlockSpec((C, M), lambda i: (0, 0)),    # activations: resident
                pl.BlockSpec((tn, C), lambda i: (i, 0)),   # weight: streamed
            ],
            out_specs=pl.BlockSpec((tn, M), lambda i: (i, 0)),
        ),
        compiler_params=pltpu.CompilerParams(
            dimension_semantics=("parallel",),             # shards Cout tiles over TCs (v7x)
        ),
    )(g, x, w)

    # (Cout, M) is already in NCHW element order for N == 1.
    return out.reshape(N, Cout, H, W)


if __name__ == "__main__":
    key = jax.random.PRNGKey(0)
    k_x, k_gate, k_w = jax.random.split(key, 3)

    # Shapes implied by the module: x760 (1, 2304, 7, 7), x764 (1, 2304, 1, 1),
    # Conv2d(2304, 640, kernel_size=1, bias=False).  (Small: 7x7 spatial.)
    N, C, H, W, Cout = 1, 2304, 7, 7, 640

    x760 = jax.random.normal(k_x, (N, C, H, W), dtype=jnp.float32)
    x764 = jax.random.normal(k_gate, (N, C, 1, 1), dtype=jnp.float32)
    weight = jax.random.normal(k_w, (Cout, C, 1, 1), dtype=jnp.float32) * 0.02

    out = jax.block_until_ready(se_gate_conv1x1(x760, x764, weight))
    assert out.shape == (N, Cout, H, W)

    # f32 reference for sigmoid-gate + 1x1 conv.
    gated = x760.reshape(C, H * W) * jax.nn.sigmoid(x764.reshape(C, 1))
    ref = jnp.dot(
        weight.reshape(Cout, C), gated, preferred_element_type=jnp.float32
    ).reshape(N, Cout, H, W)
    assert jnp.allclose(out, ref, atol=3e-2, rtol=3e-2), float(
        jnp.max(jnp.abs(out - ref))
    )

    print("KERNEL_OK")
</pallas_src>

<mosaic_0001>
module attributes {stable_mosaic.version = 11 : i64} {
  func.func @_se_conv1x1_kernel(%arg0: i32, %arg1: memref<2304x1xf32, #tpu.memory_space<vmem>>, %arg2: memref<2304x49xf32, #tpu.memory_space<vmem>>, %arg3: memref<320x2304xf32, #tpu.memory_space<vmem>>, %arg4: memref<320x49xf32, #tpu.memory_space<vmem>>) attributes {dimension_semantics = [#tpu.dimension_semantics<parallel>], iteration_bounds = array<i64: 2>, scalar_prefetch = 0 : i64, scratch_operands = 0 : i64, tpu.core_type = #tpu.core_type<tc>, window_params = [{pipeline_mode = #tpu.pipeline_mode<synchronous>, transform_indices = @transform_0, window_bounds = array<i64: 2304, 1>}, {pipeline_mode = #tpu.pipeline_mode<synchronous>, transform_indices = @transform_1, window_bounds = array<i64: 2304, 49>}, {transform_indices = @transform_2, window_bounds = array<i64: 320, 2304>}, {transform_indices = @transform_3, window_bounds = array<i64: 320, 49>}]} {
    %c0 = arith.constant 0 : index
    %c0_0 = arith.constant 0 : index
    %0 = vector.load %arg1[%c0, %c0_0] : memref<2304x1xf32, #tpu.memory_space<vmem>>, vector<2304x1xf32>
    %1 = arith.negf %0 : vector<2304x1xf32>
    %2 = math.exp %1 : vector<2304x1xf32>
    %cst = arith.constant 1.000000e+00 : f32
    %3 = vector.broadcast %cst : f32 to vector<2304x1xf32>
    %4 = arith.addf %3, %2 : vector<2304x1xf32>
    %5 = arith.divf %3, %4 : vector<2304x1xf32>
    %c0_1 = arith.constant 0 : index
    %c0_2 = arith.constant 0 : index
    %6 = vector.load %arg2[%c0_1, %c0_2] : memref<2304x49xf32, #tpu.memory_space<vmem>>, vector<2304x49xf32>
    %7 = vector.broadcast %5 : vector<2304x1xf32> to vector<2304x49xf32>
    %8 = arith.mulf %6, %7 : vector<2304x49xf32>
    %c0_3 = arith.constant 0 : index
    %c0_4 = arith.constant 0 : index
    %9 = vector.load %arg3[%c0_3, %c0_4] : memref<320x2304xf32, #tpu.memory_space<vmem>>, vector<320x2304xf32>
    %cst_5 = arith.constant dense<0.000000e+00> : vector<320x49xf32>
    %10 = tpu.matmul %9, %8, %cst_5 {dimension_numbers = #tpu.dot_dimension_numbers<[1], [0], [0], [1], [0, 0, 1, 1], [], []>} : vector<320x2304xf32>, vector<2304x49xf32>, vector<320x49xf32> -> vector<320x49xf32>
    %c0_6 = arith.constant 0 : index
    %c0_7 = arith.constant 0 : index
    %11 = vector.load %arg4[%c0_6, %c0_7] : memref<320x49xf32, #tpu.memory_space<vmem>>, vector<320x49xf32>
    tpu.vector_store %arg4[%c0_6, %c0_7], %10 {strides = array<i32>} : memref<320x49xf32, #tpu.memory_space<vmem>>, vector<320x49xf32>,
    return
  }
  func.func @transform_0(%arg0: i32) -> (i32, i32) {
    %c0_i32 = arith.constant 0 : i32
    %c0_i32_0 = arith.constant 0 : i32
    %c0_i32_1 = arith.constant 0 : i32
    return %c0_i32, %c0_i32_0 : i32, i32
  }
  func.func @transform_1(%arg0: i32) -> (i32, i32) {
    %c0_i32 = arith.constant 0 : i32
    %c0_i32_0 = arith.constant 0 : i32
    %c0_i32_1 = arith.constant 0 : i32
    return %c0_i32, %c0_i32_0 : i32, i32
  }
  func.func @transform_2(%arg0: i32) -> (i32, i32) {
    %c0_i32 = arith.constant 0 : i32
    %c0_i32_0 = arith.constant 0 : i32
    return %arg0, %c0_i32 : i32, i32
  }
  func.func @transform_3(%arg0: i32) -> (i32, i32) {
    %c0_i32 = arith.constant 0 : i32
    %c0_i32_0 = arith.constant 0 : i32
    return %arg0, %c0_i32 : i32, i32
  }
}

</mosaic_0001>

<llo_original>
// kernel: tpu_custom_call.1
$region0: #{tpu_custom_call.1}
  #allocation0 [shape = 'u32[]', space=smem, size = 0x4, offset = 0x4, fixed_abs, tag = 'smem constant byte address 0x4 - core index']
  #allocation1 [shape = 'u32[144,128]{1,0:T(1,128)}', space=vmem, size = 0x12000, scoped, tag = 'internal scratch']
  %s0 = inlined_call_operand.vmem [shape: f32[2304,1], index: 0, kind: input, shape index: {}]
  %s1 = inlined_call_operand.vmem [shape: f32[2304,49], index: 1, kind: input, shape index: {}]
  %s2 = inlined_call_operand.hbm [shape: f32[640,2304], index: 2, kind: input, shape index: {}]
  %s3 = inlined_call_operand.vmem [shape: f32[640,49], index: 3, kind: output, shape index: {}]
  %s4 = sld [smem:[#allocation0]]
  $region49: #{tpu_custom_call.1} parent=0
    _
  %s6 = ssub.s32 1, %s4
  %s7 = scalar_select 0, %s6, %s4
  $region1: #{tpu_custom_call.1} parent=0
    #allocation2 [shape = 'u8[5898240]{0}', space=vmem, size = 0x5a0000, scoped, tag = 'input window, operand 2']
    #allocation3 [shape = 's32[2]{0}', space=sflag, size = 0x8, scoped, tag = 'scoped memory for tpu_custom_call.1']
    %8 = vsyncpa [#allocation3], 0
    %s9 = scalar_lea.sflag [#allocation3], 1
    %10 = vsyncpa %s9, 0
    loop: start=0, step=1, limit=4
    $region2: #{tpu_custom_call.1} parent=1 // loop_pre_header
      _
    $region3: #{tpu_custom_call.1} parent=1 // loop_header
      %s12 = sphi 0, %s16
      %p13 = scmp.ge.s32.totalorder %s12, 4
      %s20 = sphi 0, %s20
      %s22 = sphi 0, %s20
      %s23 = sphi 0, %s22
      %s37 = sphi 0, %s23
      %s41 = sphi 0, %s41
      %s43 = sphi 0, %s41
      %s44 = sphi 0, %s43
      %s58 = sphi 0, %s44
      %s64 = sphi 0, %s66
      %s67 = sphi 0, %s64
      %s68 = sphi 0, %s67
      %s84 = sphi 0, %s68
      %s90 = sphi 0, %s92
      %s93 = sphi 0, %s90
      %s94 = sphi 0, %s93
      %s110 = sphi 0, %s94
    $region4: #{tpu_custom_call.1} parent=1 // loop_header_branch
      %15 = sbr.rel (%p13) target = $region8
    $region5: #{tpu_custom_call.1} parent=1 // loop_body
      %s17 = ssub.s32 %s12, 1
      %s18 = ssub.s32 %s12, 2
      %s19 = sadd.s32 %s12, 1
      %s21 = sadd.s32 %s20, 1
      %p24 = scmp.eq.s32.totalorder %s12, 1
      %p25 = scmp.ne.s32.totalorder %s20, %s22
      %p26 = scmp.eq.s32.totalorder %s12, 0
      %p27 = por %p25, %p26
      %p28 = scmp.ne.s32.totalorder %s20, %s22
      %p29 = scmp.eq.s32.totalorder %s17, 1
      %p30 = por %p28, %p29
      %p31 = scmp.ne.s32.totalorder %s22, %s23
      %p32 = scmp.eq.s32.totalorder %s17, 0
      %p33 = por %p31, %p32
      %p34 = scmp.ne.s32.totalorder %s22, %s23
      %p35 = scmp.eq.s32.totalorder %s18, 1
      %p36 = por %p34, %p35
      %p38 = scmp.ne.s32.totalorder %s23, %s37
      %p39 = scmp.eq.s32.totalorder %s18, 0
      %p40 = por %p38, %p39
      %s42 = sadd.s32 %s41, 1
      %p45 = scmp.eq.s32.totalorder %s12, 1
      %p46 = scmp.ne.s32.totalorder %s41, %s43
      %p47 = scmp.eq.s32.totalorder %s12, 0
      %p48 = por %p46, %p47
      %p49 = scmp.ne.s32.totalorder %s41, %s43
      %p50 = scmp.eq.s32.totalorder %s17, 1
      %p51 = por %p49, %p50
      %p52 = scmp.ne.s32.totalorder %s43, %s44
      %p53 = scmp.eq.s32.totalorder %s17, 0
      %p54 = por %p52, %p53
      %p55 = scmp.ne.s32.totalorder %s43, %s44
      %p56 = scmp.eq.s32.totalorder %s18, 1
      %p57 = por %p55, %p56
      %p59 = scmp.ne.s32.totalorder %s44, %s58
      %p60 = scmp.eq.s32.totalorder %s18, 0
      %p61 = por %p59, %p60
      %s62 = ssub.s32 %s12, %s19
      %p63 = scmp.eq.s32.totalorder %s62, 0
      %s65 = sadd.s32 %s64, 1
      %s66 = scalar_select %p63, %s64, %s65
      %p69 = pneg %p63
      %p70 = scmp.eq.s32.totalorder %s12, 1
      %p71 = por %p69, %p70
      %p72 = scmp.ne.s32.totalorder %s64, %s67
      %p73 = scmp.eq.s32.totalorder %s12, 0
      %p74 = por %p72, %p73
      %p75 = scmp.ne.s32.totalorder %s64, %s67
      %p76 = scmp.eq.s32.totalorder %s17, 1
      %p77 = por %p75, %p76
      %p78 = scmp.ne.s32.totalorder %s67, %s68
      %p79 = scmp.eq.s32.totalorder %s17, 0
      %p80 = por %p78, %p79
      %p81 = scmp.ne.s32.totalorder %s67, %s68
      %p82 = scmp.eq.s32.totalorder %s18, 1
      %p83 = por %p81, %p82
      %p85 = scmp.ne.s32.totalorder %s68, %s84
      %p86 = scmp.eq.s32.totalorder %s18, 0
      %p87 = por %p85, %p86
      %s88 = ssub.s32 %s12, %s19
      %p89 = scmp.eq.s32.totalorder %s88, 0
      %s91 = sadd.s32 %s90, 1
      %s92 = scalar_select %p89, %s90, %s91
      %p95 = pneg %p89
      %p96 = scmp.eq.s32.totalorder %s12, 1
      %p97 = por %p95, %p96
      %p98 = scmp.ne.s32.totalorder %s90, %s93
      %p99 = scmp.eq.s32.totalorder %s12, 0
      %p100 = por %p98, %p99
      %p101 = scmp.ne.s32.totalorder %s90, %s93
      %p102 = scmp.eq.s32.totalorder %s17, 1
      %p103 = por %p101, %p102
      %p104 = scmp.ne.s32.totalorder %s93, %s94
      %p105 = scmp.eq.s32.totalorder %s17, 0
      %p106 = por %p104, %p105
      %p107 = scmp.ne.s32.totalorder %s93, %s94
      %p108 = scmp.eq.s32.totalorder %s18, 1
      %p109 = por %p107, %p108
      %p111 = scmp.ne.s32.totalorder %s94, %s110
      %p112 = scmp.eq.s32.totalorder %s18, 0
      %p113 = por %p111, %p112
      %p114 = scmp.le.s32.totalorder 1, %s12
      %p115 = scmp.lt.s32.totalorder %s12, 3
      %p116 = pnand %p114, %p115
      %p117 = pneg %p116
      // Predicated region
      $region9: #{tpu_custom_call.1} parent=5 // pred_check
        _
      $region10: #{tpu_custom_call.1} parent=5 // pred_check_branch
        %119 = sbr.rel (%p116) target = $region12
      $region11: #{tpu_custom_call.1} parent=5 // pred_region
        %s120 = ssub.s32 %s12, 1
        // Predicated region
        $region13: #{tpu_custom_call.1} parent=11 // pred_check
          %p121 = pneg %p33
        $region14: #{tpu_custom_call.1} parent=11 // pred_check_branch
          %123 = sbr.rel (%p121) target = $region16
        $region15: #{tpu_custom_call.1} parent=11 // pred_region
          _
        $region16: #{tpu_custom_call.1} parent=11 // pred_fallthru
          _
        // Predicated region
        $region17: #{tpu_custom_call.1} parent=11 // pred_check
          %p124 = pneg %p54
        $region18: #{tpu_custom_call.1} parent=11 // pred_check_branch
          %126 = sbr.rel (%p124) target = $region20
        $region19: #{tpu_custom_call.1} parent=11 // pred_region
          _
        $region20: #{tpu_custom_call.1} parent=11 // pred_fallthru
          _
      $region12: #{tpu_custom_call.1} parent=5 // pred_fallthru
        _
      %p127 = scmp.lt.s32.totalorder %s12, 2
      // Predicated region
      $region21: #{tpu_custom_call.1} parent=5 // pred_check
        %p128 = pneg %p127
      $region22: #{tpu_custom_call.1} parent=5 // pred_check_branch
        %130 = sbr.rel (%p128) target = $region24
      $region23: #{tpu_custom_call.1} parent=5 // pred_region
        // Predicated region
        $region25: #{tpu_custom_call.1} parent=23 // pred_check
          %p131 = pneg %p74
        $region26: #{tpu_custom_call.1} parent=23 // pred_check_branch
          %133 = sbr.rel (%p131) target = $region28
        $region27: #{tpu_custom_call.1} parent=23 // pred_region
          %s134 = sand.u32 %s64, 1
          %s135 = scalar_lea.sflag [#allocation3], %s134
          %s136 = sand.u32 %s64, 1
          %s137 = smul.addr %s136, 5760
          %s138 = scalar_lea.vmem [#allocation2], %s137
          %s139 = smul.u32 40, %s12
          %s141 = ssub.s32 92160, 92160
          %142 = vsyncadd %s135, %s141
          %s143 = smul.addr %s139, 18
          %s144 = smul.addr %s143, 128
          %s145 = scalar_lea.hbm %s2, %s144
          %s146 = sshll.u32 %s138, 4
          %s147 = int_to_ptr.vmem [resolvable:$true] %s146
          %152 = dma.hbm_to_vmem [thread:$0]  %s145, 92160, %s147, %s135, 2304, 2304, 144
        $region28: #{tpu_custom_call.1} parent=23 // pred_fallthru
          _
      $region24: #{tpu_custom_call.1} parent=5 // pred_fallthru
        _
      %p153 = scmp.le.s32.totalorder 1, %s12
      %p154 = scmp.lt.s32.totalorder %s12, 3
      %p155 = pnand %p153, %p154
      %p156 = pneg %p155
      // Predicated region
      $region29: #{tpu_custom_call.1} parent=5 // pred_check
        _
      $region30: #{tpu_custom_call.1} parent=5 // pred_check_branch
        %158 = sbr.rel (%p155) target = $region32
      $region31: #{tpu_custom_call.1} parent=5 // pred_region
        %s159 = ssub.s32 %s12, 1
        %s160 = sand.u32 %s67, 1
        %s161 = scalar_lea.sflag [#allocation3], %s160
        %s162 = sand.u32 %s67, 1
        %s163 = smul.addr %s162, 5760
        %s164 = scalar_lea.vmem [#allocation2], %s163
        // Predicated region
        $region33: #{tpu_custom_call.1} parent=31 // pred_check
          %p165 = pneg %p80
        $region34: #{tpu_custom_call.1} parent=31 // pred_check_branch
          %167 = sbr.rel (%p165) target = $region36
        $region35: #{tpu_custom_call.1} parent=31 // pred_region
          %168 = dma.done %s161, 92160
        $region36: #{tpu_custom_call.1} parent=31 // pred_fallthru
          _
        %p169 = pneg %p33
        %p170 = pneg %p30
        %p171 = pneg %p54
        %p172 = pneg %p51
        %s173 = sand.u32 %s67, 1
        %s174 = scalar_lea.sflag [#allocation3], %s173
        %s175 = sand.u32 %s67, 1
        %s176 = smul.addr %s175, 5760
        %s177 = scalar_lea.vmem [#allocation2], %s176
        %p178 = pneg %p80
        %p179 = pneg %p77
        %p180 = pneg %p106
        %p181 = pneg %p103
        %s182 = smul.u32 40, %s17
        %p183 = scmp.lt.s32.totalorder %s182, 79
        %s184 = scalar_select %p183, %s182, 79
        %s185 = smul.addr %s184, 8
        %s186 = scalar_lea.vmem %s3, %s185
        %s187 = smul.u32 40, %s17
        %s188 = smul.u32 40, %s17
        %p189 = scmp.lt.s32.totalorder %s188, 79
        %s190 = scalar_select %p189, %s188, 79
        %s191 = smul.addr %s190, 8
        %s192 = scalar_lea.vmem %s3, %s191
        %s193 = smul.u32 40, %s17
        %v194 = vld [vmem:[%s0] sm:$0xff]
        %v195 = vld [vmem:[%s0 + $0x8] sm:$0xff]
        %v196 = vld [vmem:[%s0 + $0x10] sm:$0xff]
        %v197 = vld [vmem:[%s0 + $0x18] sm:$0xff]
        %v198 = vld [vmem:[%s0 + $0x20] sm:$0xff]
        %v199 = vld [vmem:[%s0 + $0x28] sm:$0xff]
        %v200 = vld [vmem:[%s0 + $0x30] sm:$0xff]
        %v201 = vld [vmem:[%s0 + $0x38] sm:$0xff]
        %v202 = vld [vmem:[%s0 + $0x40] sm:$0xff]
        %v203 = vld [vmem:[%s0 + $0x48] sm:$0xff]
        %v204 = vld [vmem:[%s0 + $0x50] sm:$0xff]
        %v205 = vld [vmem:[%s0 + $0x58] sm:$0xff]
        %v206 = vld [vmem:[%s0 + $0x60] sm:$0xff]
        %v207 = vld [vmem:[%s0 + $0x68] sm:$0xff]
        %v208 = vld [vmem:[%s0 + $0x70] sm:$0xff]
        %v209 = vld [vmem:[%s0 + $0x78] sm:$0xff]
        %v210 = vld [vmem:[%s0 + $0x80] sm:$0xff]
        %v211 = vld [vmem:[%s0 + $0x88] sm:$0xff]
        %v212 = vld [vmem:[%s0 + $0x90] sm:$0xff]
        %v213 = vld [vmem:[%s0 + $0x98] sm:$0xff]
        %v214 = vld [vmem:[%s0 + $0xa0] sm:$0xff]
        %v215 = vld [vmem:[%s0 + $0xa8] sm:$0xff]
        %v216 = vld [vmem:[%s0 + $0xb0] sm:$0xff]
        %v217 = vld [vmem:[%s0 + $0xb8] sm:$0xff]
        %v218 = vld [vmem:[%s0 + $0xc0] sm:$0xff]
        %v219 = vld [vmem:[%s0 + $0xc8] sm:$0xff]
        %v220 = vld [vmem:[%s0 + $0xd0] sm:$0xff]
        %v221 = vld [vmem:[%s0 + $0xd8] sm:$0xff]
        %v222 = vld [vmem:[%s0 + $0xe0] sm:$0xff]
        %v223 = vld [vmem:[%s0 + $0xe8] sm:$0xff]
        %v224 = vld [vmem:[%s0 + $0xf0] sm:$0xff]
        %v225 = vld [vmem:[%s0 + $0xf8] sm:$0xff]
        %v226 = vld [vmem:[%s0 + $0x100] sm:$0xff]
        %v227 = vld [vmem:[%s0 + $0x108] sm:$0xff]
        %v228 = vld [vmem:[%s0 + $0x110] sm:$0xff]
        %v229 = vld [vmem:[%s0 + $0x118] sm:$0xff]
        %v230 = vld [vmem:[%s0 + $0x120] sm:$0xff]
        %v231 = vld [vmem:[%s0 + $0x128] sm:$0xff]
        %v232 = vld [vmem:[%s0 + $0x130] sm:$0xff]
        %v233 = vld [vmem:[%s0 + $0x138] sm:$0xff]
        %v234 = vld [vmem:[%s0 + $0x140] sm:$0xff]
        %v235 = vld [vmem:[%s0 + $0x148] sm:$0xff]
        %v236 = vld [vmem:[%s0 + $0x150] sm:$0xff]
        %v237 = vld [vmem:[%s0 + $0x158] sm:$0xff]
        %v238 = vld [vmem:[%s0 + $0x160] sm:$0xff]
        %v239 = vld [vmem:[%s0 + $0x168] sm:$0xff]
        %v240 = vld [vmem:[%s0 + $0x170] sm:$0xff]
        %v241 = vld [vmem:[%s0 + $0x178] sm:$0xff]
        %v242 = vld [vmem:[%s0 + $0x180] sm:$0xff]
        %v243 = vld [vmem:[%s0 + $0x188] sm:$0xff]
        %v244 = vld [vmem:[%s0 + $0x190] sm:$0xff]
        %v245 = vld [vmem:[%s0 + $0x198] sm:$0xff]
        %v246 = vld [vmem:[%s0 + $0x1a0] sm:$0xff]
        %v247 = vld [vmem:[%s0 + $0x1a8] sm:$0xff]
        %v248 = vld [vmem:[%s0 + $0x1b0] sm:$0xff]
        %v249 = vld [vmem:[%s0 + $0x1b8] sm:$0xff]
        %v250 = vld [vmem:[%s0 + $0x1c0] sm:$0xff]
        %v251 = vld [vmem:[%s0 + $0x1c8] sm:$0xff]
        %v252 = vld [vmem:[%s0 + $0x1d0] sm:$0xff]
        %v253 = vld [vmem:[%s0 + $0x1d8] sm:$0xff]
        %v254 = vld [vmem:[%s0 + $0x1e0] sm:$0xff]
        %v255 = vld [vmem:[%s0 + $0x1e8] sm:$0xff]
        %v256 = vld [vmem:[%s0 + $0x1f0] sm:$0xff]
        %v257 = vld [vmem:[%s0 + $0x1f8] sm:$0xff]
        %v258 = vld [vmem:[%s0 + $0x200] sm:$0xff]
        %v259 = vld [vmem:[%s0 + $0x208] sm:$0xff]
        %v260 = vld [vmem:[%s0 + $0x210] sm:$0xff]
        %v261 = vld [vmem:[%s0 + $0x218] sm:$0xff]
        %v262 = vld [vmem:[%s0 + $0x220] sm:$0xff]
        %v263 = vld [vmem:[%s0 + $0x228] sm:$0xff]
        %v264 = vld [vmem:[%s0 + $0x230] sm:$0xff]
        %v265 = vld [vmem:[%s0 + $0x238] sm:$0xff]
        %v266 = vld [vmem:[%s0 + $0x240] sm:$0xff]
        %v267 = vld [vmem:[%s0 + $0x248] sm:$0xff]
        %v268 = vld [vmem:[%s0 + $0x250] sm:$0xff]
        %v269 = vld [vmem:[%s0 + $0x258] sm:$0xff]
        %v270 = vld [vmem:[%s0 + $0x260] sm:$0xff]
        %v271 = vld [vmem:[%s0 + $0x268] sm:$0xff]
        %v272 = vld [vmem:[%s0 + $0x270] sm:$0xff]
        %v273 = vld [vmem:[%s0 + $0x278] sm:$0xff]
        %v274 = vld [vmem:[%s0 + $0x280] sm:$0xff]
        %v275 = vld [vmem:[%s0 + $0x288] sm:$0xff]
        %v276 = vld [vmem:[%s0 + $0x290] sm:$0xff]
        %v277 = vld [vmem:[%s0 + $0x298] sm:$0xff]
        %v278 = vld [vmem:[%s0 + $0x2a0] sm:$0xff]
        %v279 = vld [vmem:[%s0 + $0x2a8] sm:$0xff]
        %v280 = vld [vmem:[%s0 + $0x2b0] sm:$0xff]
        %v281 = vld [vmem:[%s0 + $0x2b8] sm:$0xff]
        %v282 = vld [vmem:[%s0 + $0x2c0] sm:$0xff]
        %v283 = vld [vmem:[%s0 + $0x2c8] sm:$0xff]
        %v284 = vld [vmem:[%s0 + $0x2d0] sm:$0xff]
        %v285 = vld [vmem:[%s0 + $0x2d8] sm:$0xff]
        %v286 = vld [vmem:[%s0 + $0x2e0] sm:$0xff]
        %v287 = vld [vmem:[%s0 + $0x2e8] sm:$0xff]
        %v288 = vld [vmem:[%s0 + $0x2f0] sm:$0xff]
        %v289 = vld [vmem:[%s0 + $0x2f8] sm:$0xff]
        %v290 = vld [vmem:[%s0 + $0x300] sm:$0xff]
        %v291 = vld [vmem:[%s0 + $0x308] sm:$0xff]
        %v292 = vld [vmem:[%s0 + $0x310] sm:$0xff]
        %v293 = vld [vmem:[%s0 + $0x318] sm:$0xff]
        %v294 = vld [vmem:[%s0 + $0x320] sm:$0xff]
        %v295 = vld [vmem:[%s0 + $0x328] sm:$0xff]
        %v296 = vld [vmem:[%s0 + $0x330] sm:$0xff]
        %v297 = vld [vmem:[%s0 + $0x338] sm:$0xff]
        %v298 = vld [vmem:[%s0 + $0x340] sm:$0xff]
        %v299 = vld [vmem:[%s0 + $0x348] sm:$0xff]
        %v300 = vld [vmem:[%s0 + $0x350] sm:$0xff]
        %v301 = vld [vmem:[%s0 + $0x358] sm:$0xff]
        %v302 = vld [vmem:[%s0 + $0x360] sm:$0xff]
        %v303 = vld [vmem:[%s0 + $0x368] sm:$0xff]
        %v304 = vld [vmem:[%s0 + $0x370] sm:$0xff]
        %v305 = vld [vmem:[%s0 + $0x378] sm:$0xff]
        %v306 = vld [vmem:[%s0 + $0x380] sm:$0xff]
        %v307 = vld [vmem:[%s0 + $0x388] sm:$0xff]
        %v308 = vld [vmem:[%s0 + $0x390] sm:$0xff]
        %v309 = vld [vmem:[%s0 + $0x398] sm:$0xff]
        %v310 = vld [vmem:[%s0 + $0x3a0] sm:$0xff]
        %v311 = vld [vmem:[%s0 + $0x3a8] sm:$0xff]
        %v312 = vld [vmem:[%s0 + $0x3b0] sm:$0xff]
        %v313 = vld [vmem:[%s0 + $0x3b8] sm:$0xff]
        %v314 = vld [vmem:[%s0 + $0x3c0] sm:$0xff]
        %v315 = vld [vmem:[%s0 + $0x3c8] sm:$0xff]
        %v316 = vld [vmem:[%s0 + $0x3d0] sm:$0xff]
        %v317 = vld [vmem:[%s0 + $0x3d8] sm:$0xff]
        %v318 = vld [vmem:[%s0 + $0x3e0] sm:$0xff]
        %v319 = vld [vmem:[%s0 + $0x3e8] sm:$0xff]
        %v320 = vld [vmem:[%s0 + $0x3f0] sm:$0xff]
        %v321 = vld [vmem:[%s0 + $0x3f8] sm:$0xff]
        %v322 = vld [vmem:[%s0 + $0x400] sm:$0xff]
        %v323 = vld [vmem:[%s0 + $0x408] sm:$0xff]
        %v324 = vld [vmem:[%s0 + $0x410] sm:$0xff]
        %v325 = vld [vmem:[%s0 + $0x418] sm:$0xff]
        %v326 = vld [vmem:[%s0 + $0x420] sm:$0xff]
        %v327 = vld [vmem:[%s0 + $0x428] sm:$0xff]
        %v328 = vld [vmem:[%s0 + $0x430] sm:$0xff]
        %v329 = vld [vmem:[%s0 + $0x438] sm:$0xff]
        %v330 = vld [vmem:[%s0 + $0x440] sm:$0xff]
        %v331 = vld [vmem:[%s0 + $0x448] sm:$0xff]
        %v332 = vld [vmem:[%s0 + $0x450] sm:$0xff]
        %v333 = vld [vmem:[%s0 + $0x458] sm:$0xff]
        %v334 = vld [vmem:[%s0 + $0x460] sm:$0xff]
        %v335 = vld [vmem:[%s0 + $0x468] sm:$0xff]
        %v336 = vld [vmem:[%s0 + $0x470] sm:$0xff]
        %v337 = vld [vmem:[%s0 + $0x478] sm:$0xff]
        %v338 = vld [vmem:[%s0 + $0x480] sm:$0xff]
        %v339 = vld [vmem:[%s0 + $0x488] sm:$0xff]
        %v340 = vld [vmem:[%s0 + $0x490] sm:$0xff]
        %v341 = vld [vmem:[%s0 + $0x498] sm:$0xff]
        %v342 = vld [vmem:[%s0 + $0x4a0] sm:$0xff]
        %v343 = vld [vmem:[%s0 + $0x4a8] sm:$0xff]
        %v344 = vld [vmem:[%s0 + $0x4b0] sm:$0xff]
        %v345 = vld [vmem:[%s0 + $0x4b8] sm:$0xff]
        %v346 = vld [vmem:[%s0 + $0x4c0] sm:$0xff]
        %v347 = vld [vmem:[%s0 + $0x4c8] sm:$0xff]
        %v348 = vld [vmem:[%s0 + $0x4d0] sm:$0xff]
        %v349 = vld [vmem:[%s0 + $0x4d8] sm:$0xff]
        %v350 = vld [vmem:[%s0 + $0x4e0] sm:$0xff]
        %v351 = vld [vmem:[%s0 + $0x4e8] sm:$0xff]
        %v352 = vld [vmem:[%s0 + $0x4f0] sm:$0xff]
        %v353 = vld [vmem:[%s0 + $0x4f8] sm:$0xff]
        %v354 = vld [vmem:[%s0 + $0x500] sm:$0xff]
        %v355 = vld [vmem:[%s0 + $0x508] sm:$0xff]
        %v356 = vld [vmem:[%s0 + $0x510] sm:$0xff]
        %v357 = vld [vmem:[%s0 + $0x518] sm:$0xff]
        %v358 = vld [vmem:[%s0 + $0x520] sm:$0xff]
        %v359 = vld [vmem:[%s0 + $0x528] sm:$0xff]
        %v360 = vld [vmem:[%s0 + $0x530] sm:$0xff]
        %v361 = vld [vmem:[%s0 + $0x538] sm:$0xff]
        %v362 = vld [vmem:[%s0 + $0x540] sm:$0xff]
        %v363 = vld [vmem:[%s0 + $0x548] sm:$0xff]
        %v364 = vld [vmem:[%s0 + $0x550] sm:$0xff]
        %v365 = vld [vmem:[%s0 + $0x558] sm:$0xff]
        %v366 = vld [vmem:[%s0 + $0x560] sm:$0xff]
        %v367 = vld [vmem:[%s0 + $0x568] sm:$0xff]
        %v368 = vld [vmem:[%s0 + $0x570] sm:$0xff]
        %v369 = vld [vmem:[%s0 + $0x578] sm:$0xff]
        %v370 = vld [vmem:[%s0 + $0x580] sm:$0xff]
        %v371 = vld [vmem:[%s0 + $0x588] sm:$0xff]
        %v372 = vld [vmem:[%s0 + $0x590] sm:$0xff]
        %v373 = vld [vmem:[%s0 + $0x598] sm:$0xff]
        %v374 = vld [vmem:[%s0 + $0x5a0] sm:$0xff]
        %v375 = vld [vmem:[%s0 + $0x5a8] sm:$0xff]
        %v376 = vld [vmem:[%s0 + $0x5b0] sm:$0xff]
        %v377 = vld [vmem:[%s0 + $0x5b8] sm:$0xff]
        %v378 = vld [vmem:[%s0 + $0x5c0] sm:$0xff]
        %v379 = vld [vmem:[%s0 + $0x5c8] sm:$0xff]
        %v380 = vld [vmem:[%s0 + $0x5d0] sm:$0xff]
        %v381 = vld [vmem:[%s0 + $0x5d8] sm:$0xff]
        %v382 = vld [vmem:[%s0 + $0x5e0] sm:$0xff]
        %v383 = vld [vmem:[%s0 + $0x5e8] sm:$0xff]
        %v384 = vld [vmem:[%s0 + $0x5f0] sm:$0xff]
        %v385 = vld [vmem:[%s0 + $0x5f8] sm:$0xff]
        %v386 = vld [vmem:[%s0 + $0x600] sm:$0xff]
        %v387 = vld [vmem:[%s0 + $0x608] sm:$0xff]
        %v388 = vld [vmem:[%s0 + $0x610] sm:$0xff]
        %v389 = vld [vmem:[%s0 + $0x618] sm:$0xff]
        %v390 = vld [vmem:[%s0 + $0x620] sm:$0xff]
        %v391 = vld [vmem:[%s0 + $0x628] sm:$0xff]
        %v392 = vld [vmem:[%s0 + $0x630] sm:$0xff]
        %v393 = vld [vmem:[%s0 + $0x638] sm:$0xff]
        %v394 = vld [vmem:[%s0 + $0x640] sm:$0xff]
        %v395 = vld [vmem:[%s0 + $0x648] sm:$0xff]
        %v396 = vld [vmem:[%s0 + $0x650] sm:$0xff]
        %v397 = vld [vmem:[%s0 + $0x658] sm:$0xff]
        %v398 = vld [vmem:[%s0 + $0x660] sm:$0xff]
        %v399 = vld [vmem:[%s0 + $0x668] sm:$0xff]
        %v400 = vld [vmem:[%s0 + $0x670] sm:$0xff]
        %v401 = vld [vmem:[%s0 + $0x678] sm:$0xff]
        %v402 = vld [vmem:[%s0 + $0x680] sm:$0xff]
        %v403 = vld [vmem:[%s0 + $0x688] sm:$0xff]
        %v404 = vld [vmem:[%s0 + $0x690] sm:$0xff]
        %v405 = vld [vmem:[%s0 + $0x698] sm:$0xff]
        %v406 = vld [vmem:[%s0 + $0x6a0] sm:$0xff]
        %v407 = vld [vmem:[%s0 + $0x6a8] sm:$0xff]
        %v408 = vld [vmem:[%s0 + $0x6b0] sm:$0xff]
        %v409 = vld [vmem:[%s0 + $0x6b8] sm:$0xff]
        %v410 = vld [vmem:[%s0 + $0x6c0] sm:$0xff]
        %v411 = vld [vmem:[%s0 + $0x6c8] sm:$0xff]
        %v412 = vld [vmem:[%s0 + $0x6d0] sm:$0xff]
        %v413 = vld [vmem:[%s0 + $0x6d8] sm:$0xff]
        %v414 = vld [vmem:[%s0 + $0x6e0] sm:$0xff]
        %v415 = vld [vmem:[%s0 + $0x6e8] sm:$0xff]
        %v416 = vld [vmem:[%s0 + $0x6f0] sm:$0xff]
        %v417 = vld [vmem:[%s0 + $0x6f8] sm:$0xff]
        %v418 = vld [vmem:[%s0 + $0x700] sm:$0xff]
        %v419 = vld [vmem:[%s0 + $0x708] sm:$0xff]
        %v420 = vld [vmem:[%s0 + $0x710] sm:$0xff]
        %v421 = vld [vmem:[%s0 + $0x718] sm:$0xff]
        %v422 = vld [vmem:[%s0 + $0x720] sm:$0xff]
        %v423 = vld [vmem:[%s0 + $0x728] sm:$0xff]
        %v424 = vld [vmem:[%s0 + $0x730] sm:$0xff]
        %v425 = vld [vmem:[%s0 + $0x738] sm:$0xff]
        %v426 = vld [vmem:[%s0 + $0x740] sm:$0xff]
        %v427 = vld [vmem:[%s0 + $0x748] sm:$0xff]
        %v428 = vld [vmem:[%s0 + $0x750] sm:$0xff]
        %v429 = vld [vmem:[%s0 + $0x758] sm:$0xff]
        %v430 = vld [vmem:[%s0 + $0x760] sm:$0xff]
        %v431 = vld [vmem:[%s0 + $0x768] sm:$0xff]
        %v432 = vld [vmem:[%s0 + $0x770] sm:$0xff]
        %v433 = vld [vmem:[%s0 + $0x778] sm:$0xff]
        %v434 = vld [vmem:[%s0 + $0x780] sm:$0xff]
        %v435 = vld [vmem:[%s0 + $0x788] sm:$0xff]
        %v436 = vld [vmem:[%s0 + $0x790] sm:$0xff]
        %v437 = vld [vmem:[%s0 + $0x798] sm:$0xff]
        %v438 = vld [vmem:[%s0 + $0x7a0] sm:$0xff]
        %v439 = vld [vmem:[%s0 + $0x7a8] sm:$0xff]
        %v440 = vld [vmem:[%s0 + $0x7b0] sm:$0xff]
        %v441 = vld [vmem:[%s0 + $0x7b8] sm:$0xff]
        %v442 = vld [vmem:[%s0 + $0x7c0] sm:$0xff]
        %v443 = vld [vmem:[%s0 + $0x7c8] sm:$0xff]
        %v444 = vld [vmem:[%s0 + $0x7d0] sm:$0xff]
        %v445 = vld [vmem:[%s0 + $0x7d8] sm:$0xff]
        %v446 = vld [vmem:[%s0 + $0x7e0] sm:$0xff]
        %v447 = vld [vmem:[%s0 + $0x7e8] sm:$0xff]
        %v448 = vld [vmem:[%s0 + $0x7f0] sm:$0xff]
        %v449 = vld [vmem:[%s0 + $0x7f8] sm:$0xff]
        %v450 = vld [vmem:[%s0 + $0x800] sm:$0xff]
        %v451 = vld [vmem:[%s0 + $0x808] sm:$0xff]
        %v452 = vld [vmem:[%s0 + $0x810] sm:$0xff]
        %v453 = vld [vmem:[%s0 + $0x818] sm:$0xff]
        %v454 = vld [vmem:[%s0 + $0x820] sm:$0xff]
        %v455 = vld [vmem:[%s0 + $0x828] sm:$0xff]
        %v456 = vld [vmem:[%s0 + $0x830] sm:$0xff]
        %v457 = vld [vmem:[%s0 + $0x838] sm:$0xff]
        %v458 = vld [vmem:[%s0 + $0x840] sm:$0xff]
        %v459 = vld [vmem:[%s0 + $0x848] sm:$0xff]
        %v460 = vld [vmem:[%s0 + $0x850] sm:$0xff]
        %v461 = vld [vmem:[%s0 + $0x858] sm:$0xff]
        %v462 = vld [vmem:[%s0 + $0x860] sm:$0xff]
        %v463 = vld [vmem:[%s0 + $0x868] sm:$0xff]
        %v464 = vld [vmem:[%s0 + $0x870] sm:$0xff]
        %v465 = vld [vmem:[%s0 + $0x878] sm:$0xff]
        %v466 = vld [vmem:[%s0 + $0x880] sm:$0xff]
        %v467 = vld [vmem:[%s0 + $0x888] sm:$0xff]
        %v468 = vld [vmem:[%s0 + $0x890] sm:$0xff]
        %v469 = vld [vmem:[%s0 + $0x898] sm:$0xff]
        %v470 = vld [vmem:[%s0 + $0x8a0] sm:$0xff]
        %v471 = vld [vmem:[%s0 + $0x8a8] sm:$0xff]
        %v472 = vld [vmem:[%s0 + $0x8b0] sm:$0xff]
        %v473 = vld [vmem:[%s0 + $0x8b8] sm:$0xff]
        %v474 = vld [vmem:[%s0 + $0x8c0] sm:$0xff]
        %v475 = vld [vmem:[%s0 + $0x8c8] sm:$0xff]
        %v476 = vld [vmem:[%s0 + $0x8d0] sm:$0xff]
        %v477 = vld [vmem:[%s0 + $0x8d8] sm:$0xff]
        %v478 = vld [vmem:[%s0 + $0x8e0] sm:$0xff]
        %v479 = vld [vmem:[%s0 + $0x8e8] sm:$0xff]
        %v480 = vld [vmem:[%s0 + $0x8f0] sm:$0xff]
        %v481 = vld [vmem:[%s0 + $0x8f8] sm:$0xff]
        %v482 = vxor.u32 %v194, 2147483648
        %v483 = vxor.u32 %v195, 2147483648
        %v484 = vxor.u32 %v196, 2147483648
        %v485 = vxor.u32 %v197, 2147483648
        %v486 = vxor.u32 %v198, 2147483648
        %v487 = vxor.u32 %v199, 2147483648
        %v488 = vxor.u32 %v200, 2147483648
        %v489 = vxor.u32 %v201, 2147483648
        %v490 = vxor.u32 %v202, 2147483648
        %v491 = vxor.u32 %v203, 2147483648
        %v492 = vxor.u32 %v204, 2147483648
        %v493 = vxor.u32 %v205, 2147483648
        %v494 = vxor.u32 %v206, 2147483648
        %v495 = vxor.u32 %v207, 2147483648
        %v496 = vxor.u32 %v208, 2147483648
        %v497 = vxor.u32 %v209, 2147483648
        %v498 = vxor.u32 %v210, 2147483648
        %v499 = vxor.u32 %v211, 2147483648
        %v500 = vxor.u32 %v212, 2147483648
        %v501 = vxor.u32 %v213, 2147483648
        %v502 = vxor.u32 %v214, 2147483648
        %v503 = vxor.u32 %v215, 2147483648
        %v504 = vxor.u32 %v216, 2147483648
        %v505 = vxor.u32 %v217, 2147483648
        %v506 = vxor.u32 %v218, 2147483648
        %v507 = vxor.u32 %v219, 2147483648
        %v508 = vxor.u32 %v220, 2147483648
        %v509 = vxor.u32 %v221, 2147483648
        %v510 = vxor.u32 %v222, 2147483648
        %v511 = vxor.u32 %v223, 2147483648
        %v512 = vxor.u32 %v224, 2147483648
        %v513 = vxor.u32 %v225, 2147483648
        %v514 = vxor.u32 %v226, 2147483648
        %v515 = vxor.u32 %v227, 2147483648
        %v516 = vxor.u32 %v228, 2147483648
        %v517 = vxor.u32 %v229, 2147483648
        %v518 = vxor.u32 %v230, 2147483648
        %v519 = vxor.u32 %v231, 2147483648
        %v520 = vxor.u32 %v232, 2147483648
        %v521 = vxor.u32 %v233, 2147483648
        %v522 = vxor.u32 %v234, 2147483648
        %v523 = vxor.u32 %v235, 2147483648
        %v524 = vxor.u32 %v236, 2147483648
        %v525 = vxor.u32 %v237, 2147483648
        %v526 = vxor.u32 %v238, 2147483648
        %v527 = vxor.u32 %v239, 2147483648
        %v528 = vxor.u32 %v240, 2147483648
        %v529 = vxor.u32 %v241, 2147483648
        %v530 = vxor.u32 %v242, 2147483648
        %v531 = vxor.u32 %v243, 2147483648
        %v532 = vxor.u32 %v244, 2147483648
        %v533 = vxor.u32 %v245, 2147483648
        %v534 = vxor.u32 %v246, 2147483648
        %v535 = vxor.u32 %v247, 2147483648
        %v536 = vxor.u32 %v248, 2147483648
        %v537 = vxor.u32 %v249, 2147483648
        %v538 = vxor.u32 %v250, 2147483648
        %v539 = vxor.u32 %v251, 2147483648
        %v540 = vxor.u32 %v252, 2147483648
        %v541 = vxor.u32 %v253, 2147483648
        %v542 = vxor.u32 %v254, 2147483648
        %v543 = vxor.u32 %v255, 2147483648
        %v544 = vxor.u32 %v256, 2147483648
        %v545 = vxor.u32 %v257, 2147483648
        %v546 = vxor.u32 %v258, 2147483648
        %v547 = vxor.u32 %v259, 2147483648
        %v548 = vxor.u32 %v260, 2147483648
        %v549 = vxor.u32 %v261, 2147483648
        %v550 = vxor.u32 %v262, 2147483648
        %v551 = vxor.u32 %v263, 2147483648
        %v552 = vxor.u32 %v264, 2147483648
        %v553 = vxor.u32 %v265, 2147483648
        %v554 = vxor.u32 %v266, 2147483648
        %v555 = vxor.u32 %v267, 2147483648
        %v556 = vxor.u32 %v268, 2147483648
        %v557 = vxor.u32 %v269, 2147483648
        %v558 = vxor.u32 %v270, 2147483648
        %v559 = vxor.u32 %v271, 2147483648
        %v560 = vxor.u32 %v272, 2147483648
        %v561 = vxor.u32 %v273, 2147483648
        %v562 = vxor.u32 %v274, 2147483648
        %v563 = vxor.u32 %v275, 2147483648
        %v564 = vxor.u32 %v276, 2147483648
        %v565 = vxor.u32 %v277, 2147483648
        %v566 = vxor.u32 %v278, 2147483648
        %v567 = vxor.u32 %v279, 2147483648
        %v568 = vxor.u32 %v280, 2147483648
        %v569 = vxor.u32 %v281, 2147483648
        %v570 = vxor.u32 %v282, 2147483648
        %v571 = vxor.u32 %v283, 2147483648
        %v572 = vxor.u32 %v284, 2147483648
        %v573 = vxor.u32 %v285, 2147483648
        %v574 = vxor.u32 %v286, 2147483648
        %v575 = vxor.u32 %v287, 2147483648
        %v576 = vxor.u32 %v288, 2147483648
        %v577 = vxor.u32 %v289, 2147483648
        %v578 = vxor.u32 %v290, 2147483648
        %v579 = vxor.u32 %v291, 2147483648
        %v580 = vxor.u32 %v292, 2147483648
        %v581 = vxor.u32 %v293, 2147483648
        %v582 = vxor.u32 %v294, 2147483648
        %v583 = vxor.u32 %v295, 2147483648
        %v584 = vxor.u32 %v296, 2147483648
        %v585 = vxor.u32 %v297, 2147483648
        %v586 = vxor.u32 %v298, 2147483648
        %v587 = vxor.u32 %v299, 2147483648
        %v588 = vxor.u32 %v300, 2147483648
        %v589 = vxor.u32 %v301, 2147483648
        %v590 = vxor.u32 %v302, 2147483648
        %v591 = vxor.u32 %v303, 2147483648
        %v592 = vxor.u32 %v304, 2147483648
        %v593 = vxor.u32 %v305, 2147483648
        %v594 = vxor.u32 %v306, 2147483648
        %v595 = vxor.u32 %v307, 2147483648
        %v596 = vxor.u32 %v308, 2147483648
        %v597 = vxor.u32 %v309, 2147483648
        %v598 = vxor.u32 %v310, 2147483648
        %v599 = vxor.u32 %v311, 2147483648
        %v600 = vxor.u32 %v312, 2147483648
        %v601 = vxor.u32 %v313, 2147483648
        %v602 = vxor.u32 %v314, 2147483648
        %v603 = vxor.u32 %v315, 2147483648
        %v604 = vxor.u32 %v316, 2147483648
        %v605 = vxor.u32 %v317, 2147483648
        %v606 = vxor.u32 %v318, 2147483648
        %v607 = vxor.u32 %v319, 2147483648
        %v608 = vxor.u32 %v320, 2147483648
        %v609 = vxor.u32 %v321, 2147483648
        %v610 = vxor.u32 %v322, 2147483648
        %v611 = vxor.u32 %v323, 2147483648
        %v612 = vxor.u32 %v324, 2147483648
        %v613 = vxor.u32 %v325, 2147483648
        %v614 = vxor.u32 %v326, 2147483648
        %v615 = vxor.u32 %v327, 2147483648
        %v616 = vxor.u32 %v328, 2147483648
        %v617 = vxor.u32 %v329, 2147483648
        %v618 = vxor.u32 %v330, 2147483648
        %v619 = vxor.u32 %v331, 2147483648
        %v620 = vxor.u32 %v332, 2147483648
        %v621 = vxor.u32 %v333, 2147483648
        %v622 = vxor.u32 %v334, 2147483648
        %v623 = vxor.u32 %v335, 2147483648
        %v624 = vxor.u32 %v336, 2147483648
        %v625 = vxor.u32 %v337, 2147483648
        %v626 = vxor.u32 %v338, 2147483648
        %v627 = vxor.u32 %v339, 2147483648
        %v628 = vxor.u32 %v340, 2147483648
        %v629 = vxor.u32 %v341, 2147483648
        %v630 = vxor.u32 %v342, 2147483648
        %v631 = vxor.u32 %v343, 2147483648
        %v632 = vxor.u32 %v344, 2147483648
        %v633 = vxor.u32 %v345, 2147483648
        %v634 = vxor.u32 %v346, 2147483648
        %v635 = vxor.u32 %v347, 2147483648
        %v636 = vxor.u32 %v348, 2147483648
        %v637 = vxor.u32 %v349, 2147483648
        %v638 = vxor.u32 %v350, 2147483648
        %v639 = vxor.u32 %v351, 2147483648
        %v640 = vxor.u32 %v352, 2147483648
        %v641 = vxor.u32 %v353, 2147483648
        %v642 = vxor.u32 %v354, 2147483648
        %v643 = vxor.u32 %v355, 2147483648
        %v644 = vxor.u32 %v356, 2147483648
        %v645 = vxor.u32 %v357, 2147483648
        %v646 = vxor.u32 %v358, 2147483648
        %v647 = vxor.u32 %v359, 2147483648
        %v648 = vxor.u32 %v360, 2147483648
        %v649 = vxor.u32 %v361, 2147483648
        %v650 = vxor.u32 %v362, 2147483648
        %v651 = vxor.u32 %v363, 2147483648
        %v652 = vxor.u32 %v364, 2147483648
        %v653 = vxor.u32 %v365, 2147483648
        %v654 = vxor.u32 %v366, 2147483648
        %v655 = vxor.u32 %v367, 2147483648
        %v656 = vxor.u32 %v368, 2147483648
        %v657 = vxor.u32 %v369, 2147483648
        %v658 = vxor.u32 %v370, 2147483648
        %v659 = vxor.u32 %v371, 2147483648
        %v660 = vxor.u32 %v372, 2147483648
        %v661 = vxor.u32 %v373, 2147483648
        %v662 = vxor.u32 %v374, 2147483648
        %v663 = vxor.u32 %v375, 2147483648
        %v664 = vxor.u32 %v376, 2147483648
        %v665 = vxor.u32 %v377, 2147483648
        %v666 = vxor.u32 %v378, 2147483648
        %v667 = vxor.u32 %v379, 2147483648
        %v668 = vxor.u32 %v380, 2147483648
        %v669 = vxor.u32 %v381, 2147483648
        %v670 = vxor.u32 %v382, 2147483648
        %v671 = vxor.u32 %v383, 2147483648
        %v672 = vxor.u32 %v384, 2147483648
        %v673 = vxor.u32 %v385, 2147483648
        %v674 = vxor.u32 %v386, 2147483648
        %v675 = vxor.u32 %v387, 2147483648
        %v676 = vxor.u32 %v388, 2147483648
        %v677 = vxor.u32 %v389, 2147483648
        %v678 = vxor.u32 %v390, 2147483648
        %v679 = vxor.u32 %v391, 2147483648
        %v680 = vxor.u32 %v392, 2147483648
        %v681 = vxor.u32 %v393, 2147483648
        %v682 = vxor.u32 %v394, 2147483648
        %v683 = vxor.u32 %v395, 2147483648
        %v684 = vxor.u32 %v396, 2147483648
        %v685 = vxor.u32 %v397, 2147483648
        %v686 = vxor.u32 %v398, 2147483648
        %v687 = vxor.u32 %v399, 2147483648
        %v688 = vxor.u32 %v400, 2147483648
        %v689 = vxor.u32 %v401, 2147483648
        %v690 = vxor.u32 %v402, 2147483648
        %v691 = vxor.u32 %v403, 2147483648
        %v692 = vxor.u32 %v404, 2147483648
        %v693 = vxor.u32 %v405, 2147483648
        %v694 = vxor.u32 %v406, 2147483648
        %v695 = vxor.u32 %v407, 2147483648
        %v696 = vxor.u32 %v408, 2147483648
        %v697 = vxor.u32 %v409, 2147483648
        %v698 = vxor.u32 %v410, 2147483648
        %v699 = vxor.u32 %v411, 2147483648
        %v700 = vxor.u32 %v412, 2147483648
        %v701 = vxor.u32 %v413, 2147483648
        %v702 = vxor.u32 %v414, 2147483648
        %v703 = vxor.u32 %v415, 2147483648
        %v704 = vxor.u32 %v416, 2147483648
        %v705 = vxor.u32 %v417, 2147483648
        %v706 = vxor.u32 %v418, 2147483648
        %v707 = vxor.u32 %v419, 2147483648
        %v708 = vxor.u32 %v420, 2147483648
        %v709 = vxor.u32 %v421, 2147483648
        %v710 = vxor.u32 %v422, 2147483648
        %v711 = vxor.u32 %v423, 2147483648
        %v712 = vxor.u32 %v424, 2147483648
        %v713 = vxor.u32 %v425, 2147483648
        %v714 = vxor.u32 %v426, 2147483648
        %v715 = vxor.u32 %v427, 2147483648
        %v716 = vxor.u32 %v428, 2147483648
        %v717 = vxor.u32 %v429, 2147483648
        %v718 = vxor.u32 %v430, 2147483648
        %v719 = vxor.u32 %v431, 2147483648
        %v720 = vxor.u32 %v432, 2147483648
        %v721 = vxor.u32 %v433, 2147483648
        %v722 = vxor.u32 %v434, 2147483648
        %v723 = vxor.u32 %v435, 2147483648
        %v724 = vxor.u32 %v436, 2147483648
        %v725 = vxor.u32 %v437, 2147483648
        %v726 = vxor.u32 %v438, 2147483648
        %v727 = vxor.u32 %v439, 2147483648
        %v728 = vxor.u32 %v440, 2147483648
        %v729 = vxor.u32 %v441, 2147483648
        %v730 = vxor.u32 %v442, 2147483648
        %v731 = vxor.u32 %v443, 2147483648
        %v732 = vxor.u32 %v444, 2147483648
        %v733 = vxor.u32 %v445, 2147483648
        %v734 = vxor.u32 %v446, 2147483648
        %v735 = vxor.u32 %v447, 2147483648
        %v736 = vxor.u32 %v448, 2147483648
        %v737 = vxor.u32 %v449, 2147483648
        %v738 = vxor.u32 %v450, 2147483648
        %v739 = vxor.u32 %v451, 2147483648
        %v740 = vxor.u32 %v452, 2147483648
        %v741 = vxor.u32 %v453, 2147483648
        %v742 = vxor.u32 %v454, 2147483648
        %v743 = vxor.u32 %v455, 2147483648
        %v744 = vxor.u32 %v456, 2147483648
        %v745 = vxor.u32 %v457, 2147483648
        %v746 = vxor.u32 %v458, 2147483648
        %v747 = vxor.u32 %v459, 2147483648
        %v748 = vxor.u32 %v460, 2147483648
        %v749 = vxor.u32 %v461, 2147483648
        %v750 = vxor.u32 %v462, 2147483648
        %v751 = vxor.u32 %v463, 2147483648
        %v752 = vxor.u32 %v464, 2147483648
        %v753 = vxor.u32 %v465, 2147483648
        %v754 = vxor.u32 %v466, 2147483648
        %v755 = vxor.u32 %v467, 2147483648
        %v756 = vxor.u32 %v468, 2147483648
        %v757 = vxor.u32 %v469, 2147483648
        %v758 = vxor.u32 %v470, 2147483648
        %v759 = vxor.u32 %v471, 2147483648
        %v760 = vxor.u32 %v472, 2147483648
        %v761 = vxor.u32 %v473, 2147483648
        %v762 = vxor.u32 %v474, 2147483648
        %v763 = vxor.u32 %v475, 2147483648
        %v764 = vxor.u32 %v476, 2147483648
        %v765 = vxor.u32 %v477, 2147483648
        %v766 = vxor.u32 %v478, 2147483648
        %v767 = vxor.u32 %v479, 2147483648
        %v768 = vxor.u32 %v480, 2147483648
        %v769 = vxor.u32 %v481, 2147483648
        %v770 = vmul.f32 %v482, 1.442695
        %v771 = vpow.pop %v770
        %v772 = vmul.f32 %v483, 1.442695
        %v773 = vpow.pop %v772
        %v774 = vmul.f32 %v484, 1.442695
        %v775 = vpow.pop %v774
        %v776 = vmul.f32 %v485, 1.442695
        %v777 = vpow.pop %v776
        %v778 = vmul.f32 %v486, 1.442695
        %v779 = vpow.pop %v778
        %v780 = vmul.f32 %v487, 1.442695
        %v781 = vpow.pop %v780
        %v782 = vmul.f32 %v488, 1.442695
        %v783 = vpow.pop %v782
        %v784 = vmul.f32 %v489, 1.442695
        %v785 = vpow.pop %v784
        %v786 = vmul.f32 %v490, 1.442695
        %v787 = vpow.pop %v786
        %v788 = vmul.f32 %v491, 1.442695
        %v789 = vpow.pop %v788
        %v790 = vmul.f32 %v492, 1.442695
        %v791 = vpow.pop %v790
        %v792 = vmul.f32 %v493, 1.442695
        %v793 = vpow.pop %v792
        %v794 = vmul.f32 %v494, 1.442695
        %v795 = vpow.pop %v794
        %v796 = vmul.f32 %v495, 1.442695
        %v797 = vpow.pop %v796
        %v798 = vmul.f32 %v496, 1.442695
        %v799 = vpow.pop %v798
        %v800 = vmul.f32 %v497, 1.442695
        %v801 = vpow.pop %v800
        %v802 = vmul.f32 %v498, 1.442695
        %v803 = vpow.pop %v802
        %v804 = vmul.f32 %v499, 1.442695
        %v805 = vpow.pop %v804
        %v806 = vmul.f32 %v500, 1.442695
        %v807 = vpow.pop %v806
        %v808 = vmul.f32 %v501, 1.442695
        %v809 = vpow.pop %v808
        %v810 = vmul.f32 %v502, 1.442695
        %v811 = vpow.pop %v810
        %v812 = vmul.f32 %v503, 1.442695
        %v813 = vpow.pop %v812
        %v814 = vmul.f32 %v504, 1.442695
        %v815 = vpow.pop %v814
        %v816 = vmul.f32 %v505, 1.442695
        %v817 = vpow.pop %v816
        %v818 = vmul.f32 %v506, 1.442695
        %v819 = vpow.pop %v818
        %v820 = vmul.f32 %v507, 1.442695
        %v821 = vpow.pop %v820
        %v822 = vmul.f32 %v508, 1.442695
        %v823 = vpow.pop %v822
        %v824 = vmul.f32 %v509, 1.442695
        %v825 = vpow.pop %v824
        %v826 = vmul.f32 %v510, 1.442695
        %v827 = vpow.pop %v826
        %v828 = vmul.f32 %v511, 1.442695
        %v829 = vpow.pop %v828
        %v830 = vmul.f32 %v512, 1.442695
        %v831 = vpow.pop %v830
        %v832 = vmul.f32 %v513, 1.442695
        %v833 = vpow.pop %v832
        %v834 = vmul.f32 %v514, 1.442695
        %v835 = vpow.pop %v834
        %v836 = vmul.f32 %v515, 1.442695
        %v837 = vpow.pop %v836
        %v838 = vmul.f32 %v516, 1.442695
        %v839 = vpow.pop %v838
        %v840 = vmul.f32 %v517, 1.442695
        %v841 = vpow.pop %v840
        %v842 = vmul.f32 %v518, 1.442695
        %v843 = vpow.pop %v842
        %v844 = vmul.f32 %v519, 1.442695
        %v845 = vpow.pop %v844
        %v846 = vmul.f32 %v520, 1.442695
        %v847 = vpow.pop %v846
        %v848 = vmul.f32 %v521, 1.442695
        %v849 = vpow.pop %v848
        %v850 = vmul.f32 %v522, 1.442695
        %v851 = vpow.pop %v850
        %v852 = vmul.f32 %v523, 1.442695
        %v853 = vpow.pop %v852
        %v854 = vmul.f32 %v524, 1.442695
        %v855 = vpow.pop %v854
        %v856 = vmul.f32 %v525, 1.442695
        %v857 = vpow.pop %v856
        %v858 = vmul.f32 %v526, 1.442695
        %v859 = vpow.pop %v858
        %v860 = vmul.f32 %v527, 1.442695
        %v861 = vpow.pop %v860
        %v862 = vmul.f32 %v528, 1.442695
        %v863 = vpow.pop %v862
        %v864 = vmul.f32 %v529, 1.442695
        %v865 = vpow.pop %v864
        %v866 = vmul.f32 %v530, 1.442695
        %v867 = vpow.pop %v866
        %v868 = vmul.f32 %v531, 1.442695
        %v869 = vpow.pop %v868
        %v870 = vmul.f32 %v532, 1.442695
        %v871 = vpow.pop %v870
        %v872 = vmul.f32 %v533, 1.442695
        %v873 = vpow.pop %v872
        %v874 = vmul.f32 %v534, 1.442695
        %v875 = vpow.pop %v874
        %v876 = vmul.f32 %v535, 1.442695
        %v877 = vpow.pop %v876
        %v878 = vmul.f32 %v536, 1.442695
        %v879 = vpow.pop %v878
        %v880 = vmul.f32 %v537, 1.442695
        %v881 = vpow.pop %v880
        %v882 = vmul.f32 %v538, 1.442695
        %v883 = vpow.pop %v882
        %v884 = vmul.f32 %v539, 1.442695
        %v885 = vpow.pop %v884
        %v886 = vmul.f32 %v540, 1.442695
        %v887 = vpow.pop %v886
        %v888 = vmul.f32 %v541, 1.442695
        %v889 = vpow.pop %v888
        %v890 = vmul.f32 %v542, 1.442695
        %v891 = vpow.pop %v890
        %v892 = vmul.f32 %v543, 1.442695
        %v893 = vpow.pop %v892
        %v894 = vmul.f32 %v544, 1.442695
        %v895 = vpow.pop %v894
        %v896 = vmul.f32 %v545, 1.442695
        %v897 = vpow.pop %v896
        %v898 = vmul.f32 %v546, 1.442695
        %v899 = vpow.pop %v898
        %v900 = vmul.f32 %v547, 1.442695
        %v901 = vpow.pop %v900
        %v902 = vmul.f32 %v548, 1.442695
        %v903 = vpow.pop %v902
        %v904 = vmul.f32 %v549, 1.442695
        %v905 = vpow.pop %v904
        %v906 = vmul.f32 %v550, 1.442695
        %v907 = vpow.pop %v906
        %v908 = vmul.f32 %v551, 1.442695
        %v909 = vpow.pop %v908
        %v910 = vmul.f32 %v552, 1.442695
        %v911 = vpow.pop %v910
        %v912 = vmul.f32 %v553, 1.442695
        %v913 = vpow.pop %v912
        %v914 = vmul.f32 %v554, 1.442695
        %v915 = vpow.pop %v914
        %v916 = vmul.f32 %v555, 1.442695
        %v917 = vpow.pop %v916
        %v918 = vmul.f32 %v556, 1.442695
        %v919 = vpow.pop %v918
        %v920 = vmul.f32 %v557, 1.442695
        %v921 = vpow.pop %v920
        %v922 = vmul.f32 %v558, 1.442695
        %v923 = vpow.pop %v922
        %v924 = vmul.f32 %v559, 1.442695
        %v925 = vpow.pop %v924
        %v926 = vmul.f32 %v560, 1.442695
        %v927 = vpow.pop %v926
        %v928 = vmul.f32 %v561, 1.442695
        %v929 = vpow.pop %v928
        %v930 = vmul.f32 %v562, 1.442695
        %v931 = vpow.pop %v930
        %v932 = vmul.f32 %v563, 1.442695
        %v933 = vpow.pop %v932
        %v934 = vmul.f32 %v564, 1.442695
        %v935 = vpow.pop %v934
        %v936 = vmul.f32 %v565, 1.442695
        %v937 = vpow.pop %v936
        %v938 = vmul.f32 %v566, 1.442695
        %v939 = vpow.pop %v938
        %v940 = vmul.f32 %v567, 1.442695
        %v941 = vpow.pop %v940
        %v942 = vmul.f32 %v568, 1.442695
        %v943 = vpow.pop %v942
        %v944 = vmul.f32 %v569, 1.442695
        %v945 = vpow.pop %v944
        %v946 = vmul.f32 %v570, 1.442695
        %v947 = vpow.pop %v946
        %v948 = vmul.f32 %v571, 1.442695
        %v949 = vpow.pop %v948
        %v950 = vmul.f32 %v572, 1.442695
        %v951 = vpow.pop %v950
        %v952 = vmul.f32 %v573, 1.442695
        %v953 = vpow.pop %v952
        %v954 = vmul.f32 %v574, 1.442695
        %v955 = vpow.pop %v954
        %v956 = vmul.f32 %v575, 1.442695
        %v957 = vpow.pop %v956
        %v958 = vmul.f32 %v576, 1.442695
        %v959 = vpow.pop %v958
        %v960 = vmul.f32 %v577, 1.442695
        %v961 = vpow.pop %v960
        %v962 = vmul.f32 %v578, 1.442695
        %v963 = vpow.pop %v962
        %v964 = vmul.f32 %v579, 1.442695
        %v965 = vpow.pop %v964
        %v966 = vmul.f32 %v580, 1.442695
        %v967 = vpow.pop %v966
        %v968 = vmul.f32 %v581, 1.442695
        %v969 = vpow.pop %v968
        %v970 = vmul.f32 %v582, 1.442695
        %v971 = vpow.pop %v970
        %v972 = vmul.f32 %v583, 1.442695
        %v973 = vpow.pop %v972
        %v974 = vmul.f32 %v584, 1.442695
        %v975 = vpow.pop %v974
        %v976 = vmul.f32 %v585, 1.442695
        %v977 = vpow.pop %v976
        %v978 = vmul.f32 %v586, 1.442695
        %v979 = vpow.pop %v978
        %v980 = vmul.f32 %v587, 1.442695
        %v981 = vpow.pop %v980
        %v982 = vmul.f32 %v588, 1.442695
        %v983 = vpow.pop %v982
        %v984 = vmul.f32 %v589, 1.442695
        %v985 = vpow.pop %v984
        %v986 = vmul.f32 %v590, 1.442695
        %v987 = vpow.pop %v986
        %v988 = vmul.f32 %v591, 1.442695
        %v989 = vpow.pop %v988
        %v990 = vmul.f32 %v592, 1.442695
        %v991 = vpow.pop %v990
        %v992 = vmul.f32 %v593, 1.442695
        %v993 = vpow.pop %v992
        %v994 = vmul.f32 %v594, 1.442695
        %v995 = vpow.pop %v994
        %v996 = vmul.f32 %v595, 1.442695
        %v997 = vpow.pop %v996
        %v998 = vmul.f32 %v596, 1.442695
        %v999 = vpow.pop %v998
        %v1000 = vmul.f32 %v597, 1.442695
        %v1001 = vpow.pop %v1000
        %v1002 = vmul.f32 %v598, 1.442695
        %v1003 = vpow.pop %v1002
        %v1004 = vmul.f32 %v599, 1.442695
        %v1005 = vpow.pop %v1004
        %v1006 = vmul.f32 %v600, 1.442695
        %v1007 = vpow.pop %v1006
        %v1008 = vmul.f32 %v601, 1.442695
        %v1009 = vpow.pop %v1008
        %v1010 = vmul.f32 %v602, 1.442695
        %v1011 = vpow.pop %v1010
        %v1012 = vmul.f32 %v603, 1.442695
        %v1013 = vpow.pop %v1012
        %v1014 = vmul.f32 %v604, 1.442695
        %v1015 = vpow.pop %v1014
        %v1016 = vmul.f32 %v605, 1.442695
        %v1017 = vpow.pop %v1016
        %v1018 = vmul.f32 %v606, 1.442695
        %v1019 = vpow.pop %v1018
        %v1020 = vmul.f32 %v607, 1.442695
        %v1021 = vpow.pop %v1020
        %v1022 = vmul.f32 %v608, 1.442695
        %v1023 = vpow.pop %v1022
        %v1024 = vmul.f32 %v609, 1.442695
        %v1025 = vpow.pop %v1024
        %v1026 = vmul.f32 %v610, 1.442695
        %v1027 = vpow.pop %v1026
        %v1028 = vmul.f32 %v611, 1.442695
        %v1029 = vpow.pop %v1028
        %v1030 = vmul.f32 %v612, 1.442695
        %v1031 = vpow.pop %v1030
        %v1032 = vmul.f32 %v613, 1.442695
        %v1033 = vpow.pop %v1032
        %v1034 = vmul.f32 %v614, 1.442695
        %v1035 = vpow.pop %v1034
        %v1036 = vmul.f32 %v615, 1.442695
        %v1037 = vpow.pop %v1036
        %v1038 = vmul.f32 %v616, 1.442695
        %v1039 = vpow.pop %v1038
        %v1040 = vmul.f32 %v617, 1.442695
        %v1041 = vpow.pop %v1040
        %v1042 = vmul.f32 %v618, 1.442695
        %v1043 = vpow.pop %v1042
        %v1044 = vmul.f32 %v619, 1.442695
        %v1045 = vpow.pop %v1044
        %v1046 = vmul.f32 %v620, 1.442695
        %v1047 = vpow.pop %v1046
        %v1048 = vmul.f32 %v621, 1.442695
        %v1049 = vpow.pop %v1048
        %v1050 = vmul.f32 %v622, 1.442695
        %v1051 = vpow.pop %v1050
        %v1052 = vmul.f32 %v623, 1.442695
        %v1053 = vpow.pop %v1052
        %v1054 = vmul.f32 %v624, 1.442695
        %v1055 = vpow.pop %v1054
        %v1056 = vmul.f32 %v625, 1.442695
        %v1057 = vpow.pop %v1056
        %v1058 = vmul.f32 %v626, 1.442695
        %v1059 = vpow.pop %v1058
        %v1060 = vmul.f32 %v627, 1.442695
        %v1061 = vpow.pop %v1060
        %v1062 = vmul.f32 %v628, 1.442695
        %v1063 = vpow.pop %v1062
        %v1064 = vmul.f32 %v629, 1.442695
        %v1065 = vpow.pop %v1064
        %v1066 = vmul.f32 %v630, 1.442695
        %v1067 = vpow.pop %v1066
        %v1068 = vmul.f32 %v631, 1.442695
        %v1069 = vpow.pop %v1068
        %v1070 = vmul.f32 %v632, 1.442695
        %v1071 = vpow.pop %v1070
        %v1072 = vmul.f32 %v633, 1.442695
        %v1073 = vpow.pop %v1072
        %v1074 = vmul.f32 %v634, 1.442695
        %v1075 = vpow.pop %v1074
        %v1076 = vmul.f32 %v635, 1.442695
        %v1077 = vpow.pop %v1076
        %v1078 = vmul.f32 %v636, 1.442695
        %v1079 = vpow.pop %v1078
        %v1080 = vmul.f32 %v637, 1.442695
        %v1081 = vpow.pop %v1080
        %v1082 = vmul.f32 %v638, 1.442695
        %v1083 = vpow.pop %v1082
        %v1084 = vmul.f32 %v639, 1.442695
        %v1085 = vpow.pop %v1084
        %v1086 = vmul.f32 %v640, 1.442695
        %v1087 = vpow.pop %v1086
        %v1088 = vmul.f32 %v641, 1.442695
        %v1089 = vpow.pop %v1088
        %v1090 = vmul.f32 %v642, 1.442695
        %v1091 = vpow.pop %v1090
        %v1092 = vmul.f32 %v643, 1.442695
        %v1093 = vpow.pop %v1092
        %v1094 = vmul.f32 %v644, 1.442695
        %v1095 = vpow.pop %v1094
        %v1096 = vmul.f32 %v645, 1.442695
        %v1097 = vpow.pop %v1096
        %v1098 = vmul.f32 %v646, 1.442695
        %v1099 = vpow.pop %v1098
        %v1100 = vmul.f32 %v647, 1.442695
        %v1101 = vpow.pop %v1100
        %v1102 = vmul.f32 %v648, 1.442695
        %v1103 = vpow.pop %v1102
        %v1104 = vmul.f32 %v649, 1.442695
        %v1105 = vpow.pop %v1104
        %v1106 = vmul.f32 %v650, 1.442695
        %v1107 = vpow.pop %v1106
        %v1108 = vmul.f32 %v651, 1.442695
        %v1109 = vpow.pop %v1108
        %v1110 = vmul.f32 %v652, 1.442695
        %v1111 = vpow.pop %v1110
        %v1112 = vmul.f32 %v653, 1.442695
        %v1113 = vpow.pop %v1112
        %v1114 = vmul.f32 %v654, 1.442695
        %v1115 = vpow.pop %v1114
        %v1116 = vmul.f32 %v655, 1.442695
        %v1117 = vpow.pop %v1116
        %v1118 = vmul.f32 %v656, 1.442695
        %v1119 = vpow.pop %v1118
        %v1120 = vmul.f32 %v657, 1.442695
        %v1121 = vpow.pop %v1120
        %v1122 = vmul.f32 %v658, 1.442695
        %v1123 = vpow.pop %v1122
        %v1124 = vmul.f32 %v659, 1.442695
        %v1125 = vpow.pop %v1124
        %v1126 = vmul.f32 %v660, 1.442695
        %v1127 = vpow.pop %v1126
        %v1128 = vmul.f32 %v661, 1.442695
        %v1129 = vpow.pop %v1128
        %v1130 = vmul.f32 %v662, 1.442695
        %v1131 = vpow.pop %v1130
        %v1132 = vmul.f32 %v663, 1.442695
        %v1133 = vpow.pop %v1132
        %v1134 = vmul.f32 %v664, 1.442695
        %v1135 = vpow.pop %v1134
        %v1136 = vmul.f32 %v665, 1.442695
        %v1137 = vpow.pop %v1136
        %v1138 = vmul.f32 %v666, 1.442695
        %v1139 = vpow.pop %v1138
        %v1140 = vmul.f32 %v667, 1.442695
        %v1141 = vpow.pop %v1140
        %v1142 = vmul.f32 %v668, 1.442695
        %v1143 = vpow.pop %v1142
        %v1144 = vmul.f32 %v669, 1.442695
        %v1145 = vpow.pop %v1144
        %v1146 = vmul.f32 %v670, 1.442695
        %v1147 = vpow.pop %v1146
        %v1148 = vmul.f32 %v671, 1.442695
        %v1149 = vpow.pop %v1148
        %v1150 = vmul.f32 %v672, 1.442695
        %v1151 = vpow.pop %v1150
        %v1152 = vmul.f32 %v673, 1.442695
        %v1153 = vpow.pop %v1152
        %v1154 = vmul.f32 %v674, 1.442695
        %v1155 = vpow.pop %v1154
        %v1156 = vmul.f32 %v675, 1.442695
        %v1157 = vpow.pop %v1156
        %v1158 = vmul.f32 %v676, 1.442695
        %v1159 = vpow.pop %v1158
        %v1160 = vmul.f32 %v677, 1.442695
        %v1161 = vpow.pop %v1160
        %v1162 = vmul.f32 %v678, 1.442695
        %v1163 = vpow.pop %v1162
        %v1164 = vmul.f32 %v679, 1.442695
        %v1165 = vpow.pop %v1164
        %v1166 = vmul.f32 %v680, 1.442695
        %v1167 = vpow.pop %v1166
        %v1168 = vmul.f32 %v681, 1.442695
        %v1169 = vpow.pop %v1168
        %v1170 = vmul.f32 %v682, 1.442695
        %v1171 = vpow.pop %v1170
        %v1172 = vmul.f32 %v683, 1.442695
        %v1173 = vpow.pop %v1172
        %v1174 = vmul.f32 %v684, 1.442695
        %v1175 = vpow.pop %v1174
        %v1176 = vmul.f32 %v685, 1.442695
        %v1177 = vpow.pop %v1176
        %v1178 = vmul.f32 %v686, 1.442695
        %v1179 = vpow.pop %v1178
        %v1180 = vmul.f32 %v687, 1.442695
        %v1181 = vpow.pop %v1180
        %v1182 = vmul.f32 %v688, 1.442695
        %v1183 = vpow.pop %v1182
        %v1184 = vmul.f32 %v689, 1.442695
        %v1185 = vpow.pop %v1184
        %v1186 = vmul.f32 %v690, 1.442695
        %v1187 = vpow.pop %v1186
        %v1188 = vmul.f32 %v691, 1.442695
        %v1189 = vpow.pop %v1188
        %v1190 = vmul.f32 %v692, 1.442695
        %v1191 = vpow.pop %v1190
        %v1192 = vmul.f32 %v693, 1.442695
        %v1193 = vpow.pop %v1192
        %v1194 = vmul.f32 %v694, 1.442695
        %v1195 = vpow.pop %v1194
        %v1196 = vmul.f32 %v695, 1.442695
        %v1197 = vpow.pop %v1196
        %v1198 = vmul.f32 %v696, 1.442695
        %v1199 = vpow.pop %v1198
        %v1200 = vmul.f32 %v697, 1.442695
        %v1201 = vpow.pop %v1200
        %v1202 = vmul.f32 %v698, 1.442695
        %v1203 = vpow.pop %v1202
        %v1204 = vmul.f32 %v699, 1.442695
        %v1205 = vpow.pop %v1204
        %v1206 = vmul.f32 %v700, 1.442695
        %v1207 = vpow.pop %v1206
        %v1208 = vmul.f32 %v701, 1.442695
        %v1209 = vpow.pop %v1208
        %v1210 = vmul.f32 %v702, 1.442695
        %v1211 = vpow.pop %v1210
        %v1212 = vmul.f32 %v703, 1.442695
        %v1213 = vpow.pop %v1212
        %v1214 = vmul.f32 %v704, 1.442695
        %v1215 = vpow.pop %v1214
        %v1216 = vmul.f32 %v705, 1.442695
        %v1217 = vpow.pop %v1216
        %v1218 = vmul.f32 %v706, 1.442695
        %v1219 = vpow.pop %v1218
        %v1220 = vmul.f32 %v707, 1.442695
        %v1221 = vpow.pop %v1220
        %v1222 = vmul.f32 %v708, 1.442695
        %v1223 = vpow.pop %v1222
        %v1224 = vmul.f32 %v709, 1.442695
        %v1225 = vpow.pop %v1224
        %v1226 = vmul.f32 %v710, 1.442695
        %v1227 = vpow.pop %v1226
        %v1228 = vmul.f32 %v711, 1.442695
        %v1229 = vpow.pop %v1228
        %v1230 = vmul.f32 %v712, 1.442695
        %v1231 = vpow.pop %v1230
        %v1232 = vmul.f32 %v713, 1.442695
        %v1233 = vpow.pop %v1232
        %v1234 = vmul.f32 %v714, 1.442695
        %v1235 = vpow.pop %v1234
        %v1236 = vmul.f32 %v715, 1.442695
        %v1237 = vpow.pop %v1236
        %v1238 = vmul.f32 %v716, 1.442695
        %v1239 = vpow.pop %v1238
        %v1240 = vmul.f32 %v717, 1.442695
        %v1241 = vpow.pop %v1240
        %v1242 = vmul.f32 %v718, 1.442695
        %v1243 = vpow.pop %v1242
        %v1244 = vmul.f32 %v719, 1.442695
        %v1245 = vpow.pop %v1244
        %v1246 = vmul.f32 %v720, 1.442695
        %v1247 = vpow.pop %v1246
        %v1248 = vmul.f32 %v721, 1.442695
        %v1249 = vpow.pop %v1248
        %v1250 = vmul.f32 %v722, 1.442695
        %v1251 = vpow.pop %v1250
        %v1252 = vmul.f32 %v723, 1.442695
        %v1253 = vpow.pop %v1252
        %v1254 = vmul.f32 %v724, 1.442695
        %v1255 = vpow.pop %v1254
        %v1256 = vmul.f32 %v725, 1.442695
        %v1257 = vpow.pop %v1256
        %v1258 = vmul.f32 %v726, 1.442695
        %v1259 = vpow.pop %v1258
        %v1260 = vmul.f32 %v727, 1.442695
        %v1261 = vpow.pop %v1260
        %v1262 = vmul.f32 %v728, 1.442695
        %v1263 = vpow.pop %v1262
        %v1264 = vmul.f32 %v729, 1.442695
        %v1265 = vpow.pop %v1264
        %v1266 = vmul.f32 %v730, 1.442695
        %v1267 = vpow.pop %v1266
        %v1268 = vmul.f32 %v731, 1.442695
        %v1269 = vpow.pop %v1268
        %v1270 = vmul.f32 %v732, 1.442695
        %v1271 = vpow.pop %v1270
        %v1272 = vmul.f32 %v733, 1.442695
        %v1273 = vpow.pop %v1272
        %v1274 = vmul.f32 %v734, 1.442695
        %v1275 = vpow.pop %v1274
        %v1276 = vmul.f32 %v735, 1.442695
        %v1277 = vpow.pop %v1276
        %v1278 = vmul.f32 %v736, 1.442695
        %v1279 = vpow.pop %v1278
        %v1280 = vmul.f32 %v737, 1.442695
        %v1281 = vpow.pop %v1280
        %v1282 = vmul.f32 %v738, 1.442695
        %v1283 = vpow.pop %v1282
        %v1284 = vmul.f32 %v739, 1.442695
        %v1285 = vpow.pop %v1284
        %v1286 = vmul.f32 %v740, 1.442695
        %v1287 = vpow.pop %v1286
        %v1288 = vmul.f32 %v741, 1.442695
        %v1289 = vpow.pop %v1288
        %v1290 = vmul.f32 %v742, 1.442695
        %v1291 = vpow.pop %v1290
        %v1292 = vmul.f32 %v743, 1.442695
        %v1293 = vpow.pop %v1292
        %v1294 = vmul.f32 %v744, 1.442695
        %v1295 = vpow.pop %v1294
        %v1296 = vmul.f32 %v745, 1.442695
        %v1297 = vpow.pop %v1296
        %v1298 = vmul.f32 %v746, 1.442695
        %v1299 = vpow.pop %v1298
        %v1300 = vmul.f32 %v747, 1.442695
        %v1301 = vpow.pop %v1300
        %v1302 = vmul.f32 %v748, 1.442695
        %v1303 = vpow.pop %v1302
        %v1304 = vmul.f32 %v749, 1.442695
        %v1305 = vpow.pop %v1304
        %v1306 = vmul.f32 %v750, 1.442695
        %v1307 = vpow.pop %v1306
        %v1308 = vmul.f32 %v751, 1.442695
        %v1309 = vpow.pop %v1308
        %v1310 = vmul.f32 %v752, 1.442695
        %v1311 = vpow.pop %v1310
        %v1312 = vmul.f32 %v753, 1.442695
        %v1313 = vpow.pop %v1312
        %v1314 = vmul.f32 %v754, 1.442695
        %v1315 = vpow.pop %v1314
        %v1316 = vmul.f32 %v755, 1.442695
        %v1317 = vpow.pop %v1316
        %v1318 = vmul.f32 %v756, 1.442695
        %v1319 = vpow.pop %v1318
        %v1320 = vmul.f32 %v757, 1.442695
        %v1321 = vpow.pop %v1320
        %v1322 = vmul.f32 %v758, 1.442695
        %v1323 = vpow.pop %v1322
        %v1324 = vmul.f32 %v759, 1.442695
        %v1325 = vpow.pop %v1324
        %v1326 = vmul.f32 %v760, 1.442695
        %v1327 = vpow.pop %v1326
        %v1328 = vmul.f32 %v761, 1.442695
        %v1329 = vpow.pop %v1328
        %v1330 = vmul.f32 %v762, 1.442695
        %v1331 = vpow.pop %v1330
        %v1332 = vmul.f32 %v763, 1.442695
        %v1333 = vpow.pop %v1332
        %v1334 = vmul.f32 %v764, 1.442695
        %v1335 = vpow.pop %v1334
        %v1336 = vmul.f32 %v765, 1.442695
        %v1337 = vpow.pop %v1336
        %v1338 = vmul.f32 %v766, 1.442695
        %v1339 = vpow.pop %v1338
        %v1340 = vmul.f32 %v767, 1.442695
        %v1341 = vpow.pop %v1340
        %v1342 = vmul.f32 %v768, 1.442695
        %v1343 = vpow.pop %v1342
        %v1344 = vmul.f32 %v769, 1.442695
        %v1345 = vpow.pop %v1344
        %v1346 = vadd.f32 %v771, 1.0
        %v1347 = vadd.f32 %v773, 1.0
        %v1348 = vadd.f32 %v775, 1.0
        %v1349 = vadd.f32 %v777, 1.0
        %v1350 = vadd.f32 %v779, 1.0
        %v1351 = vadd.f32 %v781, 1.0
        %v1352 = vadd.f32 %v783, 1.0
        %v1353 = vadd.f32 %v785, 1.0
        %v1354 = vadd.f32 %v787, 1.0
        %v1355 = vadd.f32 %v789, 1.0
        %v1356 = vadd.f32 %v791, 1.0
        %v1357 = vadd.f32 %v793, 1.0
        %v1358 = vadd.f32 %v795, 1.0
        %v1359 = vadd.f32 %v797, 1.0
        %v1360 = vadd.f32 %v799, 1.0
        %v1361 = vadd.f32 %v801, 1.0
        %v1362 = vadd.f32 %v803, 1.0
        %v1363 = vadd.f32 %v805, 1.0
        %v1364 = vadd.f32 %v807, 1.0
        %v1365 = vadd.f32 %v809, 1.0
        %v1366 = vadd.f32 %v811, 1.0
        %v1367 = vadd.f32 %v813, 1.0
        %v1368 = vadd.f32 %v815, 1.0
        %v1369 = vadd.f32 %v817, 1.0
        %v1370 = vadd.f32 %v819, 1.0
        %v1371 = vadd.f32 %v821, 1.0
        %v1372 = vadd.f32 %v823, 1.0
        %v1373 = vadd.f32 %v825, 1.0
        %v1374 = vadd.f32 %v827, 1.0
        %v1375 = vadd.f32 %v829, 1.0
        %v1376 = vadd.f32 %v831, 1.0
        %v1377 = vadd.f32 %v833, 1.0
        %v1378 = vadd.f32 %v835, 1.0
        %v1379 = vadd.f32 %v837, 1.0
        %v1380 = vadd.f32 %v839, 1.0
        %v1381 = vadd.f32 %v841, 1.0
        %v1382 = vadd.f32 %v843, 1.0
        %v1383 = vadd.f32 %v845, 1.0
        %v1384 = vadd.f32 %v847, 1.0
        %v1385 = vadd.f32 %v849, 1.0
        %v1386 = vadd.f32 %v851, 1.0
        %v1387 = vadd.f32 %v853, 1.0
        %v1388 = vadd.f32 %v855, 1.0
        %v1389 = vadd.f32 %v857, 1.0
        %v1390 = vadd.f32 %v859, 1.0
        %v1391 = vadd.f32 %v861, 1.0
        %v1392 = vadd.f32 %v863, 1.0
        %v1393 = vadd.f32 %v865, 1.0
        %v1394 = vadd.f32 %v867, 1.0
        %v1395 = vadd.f32 %v869, 1.0
        %v1396 = vadd.f32 %v871, 1.0
        %v1397 = vadd.f32 %v873, 1.0
        %v1398 = vadd.f32 %v875, 1.0
        %v1399 = vadd.f32 %v877, 1.0
        %v1400 = vadd.f32 %v879, 1.0
        %v1401 = vadd.f32 %v881, 1.0
        %v1402 = vadd.f32 %v883, 1.0
        %v1403 = vadd.f32 %v885, 1.0
        %v1404 = vadd.f32 %v887, 1.0
        %v1405 = vadd.f32 %v889, 1.0
        %v1406 = vadd.f32 %v891, 1.0
        %v1407 = vadd.f32 %v893, 1.0
        %v1408 = vadd.f32 %v895, 1.0
        %v1409 = vadd.f32 %v897, 1.0
        %v1410 = vadd.f32 %v899, 1.0
        %v1411 = vadd.f32 %v901, 1.0
        %v1412 = vadd.f32 %v903, 1.0
        %v1413 = vadd.f32 %v905, 1.0
        %v1414 = vadd.f32 %v907, 1.0
        %v1415 = vadd.f32 %v909, 1.0
        %v1416 = vadd.f32 %v911, 1.0
        %v1417 = vadd.f32 %v913, 1.0
        %v1418 = vadd.f32 %v915, 1.0
        %v1419 = vadd.f32 %v917, 1.0
        %v1420 = vadd.f32 %v919, 1.0
        %v1421 = vadd.f32 %v921, 1.0
        %v1422 = vadd.f32 %v923, 1.0
        %v1423 = vadd.f32 %v925, 1.0
        %v1424 = vadd.f32 %v927, 1.0
        %v1425 = vadd.f32 %v929, 1.0
        %v1426 = vadd.f32 %v931, 1.0
        %v1427 = vadd.f32 %v933, 1.0
        %v1428 = vadd.f32 %v935, 1.0
        %v1429 = vadd.f32 %v937, 1.0
        %v1430 = vadd.f32 %v939, 1.0
        %v1431 = vadd.f32 %v941, 1.0
        %v1432 = vadd.f32 %v943, 1.0
        %v1433 = vadd.f32 %v945, 1.0
        %v1434 = vadd.f32 %v947, 1.0
        %v1435 = vadd.f32 %v949, 1.0
        %v1436 = vadd.f32 %v951, 1.0
        %v1437 = vadd.f32 %v953, 1.0
        %v1438 = vadd.f32 %v955, 1.0
        %v1439 = vadd.f32 %v957, 1.0
        %v1440 = vadd.f32 %v959, 1.0
        %v1441 = vadd.f32 %v961, 1.0
        %v1442 = vadd.f32 %v963, 1.0
        %v1443 = vadd.f32 %v965, 1.0
        %v1444 = vadd.f32 %v967, 1.0
        %v1445 = vadd.f32 %v969, 1.0
        %v1446 = vadd.f32 %v971, 1.0
        %v1447 = vadd.f32 %v973, 1.0
        %v1448 = vadd.f32 %v975, 1.0
        %v1449 = vadd.f32 %v977, 1.0
        %v1450 = vadd.f32 %v979, 1.0
        %v1451 = vadd.f32 %v981, 1.0
        %v1452 = vadd.f32 %v983, 1.0
        %v1453 = vadd.f32 %v985, 1.0
        %v1454 = vadd.f32 %v987, 1.0
        %v1455 = vadd.f32 %v989, 1.0
        %v1456 = vadd.f32 %v991, 1.0
        %v1457 = vadd.f32 %v993, 1.0
        %v1458 = vadd.f32 %v995, 1.0
        %v1459 = vadd.f32 %v997, 1.0
        %v1460 = vadd.f32 %v999, 1.0
        %v1461 = vadd.f32 %v1001, 1.0
        %v1462 = vadd.f32 %v1003, 1.0
        %v1463 = vadd.f32 %v1005, 1.0
        %v1464 = vadd.f32 %v1007, 1.0
        %v1465 = vadd.f32 %v1009, 1.0
        %v1466 = vadd.f32 %v1011, 1.0
        %v1467 = vadd.f32 %v1013, 1.0
        %v1468 = vadd.f32 %v1015, 1.0
        %v1469 = vadd.f32 %v1017, 1.0
        %v1470 = vadd.f32 %v1019, 1.0
        %v1471 = vadd.f32 %v1021, 1.0
        %v1472 = vadd.f32 %v1023, 1.0
        %v1473 = vadd.f32 %v1025, 1.0
        %v1474 = vadd.f32 %v1027, 1.0
        %v1475 = vadd.f32 %v1029, 1.0
        %v1476 = vadd.f32 %v1031, 1.0
        %v1477 = vadd.f32 %v1033, 1.0
        %v1478 = vadd.f32 %v1035, 1.0
        %v1479 = vadd.f32 %v1037, 1.0
        %v1480 = vadd.f32 %v1039, 1.0
        %v1481 = vadd.f32 %v1041, 1.0
        %v1482 = vadd.f32 %v1043, 1.0
        %v1483 = vadd.f32 %v1045, 1.0
        %v1484 = vadd.f32 %v1047, 1.0
        %v1485 = vadd.f32 %v1049, 1.0
        %v1486 = vadd.f32 %v1051, 1.0
        %v1487 = vadd.f32 %v1053, 1.0
        %v1488 = vadd.f32 %v1055, 1.0
        %v1489 = vadd.f32 %v1057, 1.0
        %v1490 = vadd.f32 %v1059, 1.0
        %v1491 = vadd.f32 %v1061, 1.0
        %v1492 = vadd.f32 %v1063, 1.0
        %v1493 = vadd.f32 %v1065, 1.0
        %v1494 = vadd.f32 %v1067, 1.0
        %v1495 = vadd.f32 %v1069, 1.0
        %v1496 = vadd.f32 %v1071, 1.0
        %v1497 = vadd.f32 %v1073, 1.0
        %v1498 = vadd.f32 %v1075, 1.0
        %v1499 = vadd.f32 %v1077, 1.0
        %v1500 = vadd.f32 %v1079, 1.0
        %v1501 = vadd.f32 %v1081, 1.0
        %v1502 = vadd.f32 %v1083, 1.0
        %v1503 = vadd.f32 %v1085, 1.0
        %v1504 = vadd.f32 %v1087, 1.0
        %v1505 = vadd.f32 %v1089, 1.0
        %v1506 = vadd.f32 %v1091, 1.0
        %v1507 = vadd.f32 %v1093, 1.0
        %v1508 = vadd.f32 %v1095, 1.0
        %v1509 = vadd.f32 %v1097, 1.0
        %v1510 = vadd.f32 %v1099, 1.0
        %v1511 = vadd.f32 %v1101, 1.0
        %v1512 = vadd.f32 %v1103, 1.0
        %v1513 = vadd.f32 %v1105, 1.0
        %v1514 = vadd.f32 %v1107, 1.0
        %v1515 = vadd.f32 %v1109, 1.0
        %v1516 = vadd.f32 %v1111, 1.0
        %v1517 = vadd.f32 %v1113, 1.0
        %v1518 = vadd.f32 %v1115, 1.0
        %v1519 = vadd.f32 %v1117, 1.0
        %v1520 = vadd.f32 %v1119, 1.0
        %v1521 = vadd.f32 %v1121, 1.0
        %v1522 = vadd.f32 %v1123, 1.0
        %v1523 = vadd.f32 %v1125, 1.0
        %v1524 = vadd.f32 %v1127, 1.0
        %v1525 = vadd.f32 %v1129, 1.0
        %v1526 = vadd.f32 %v1131, 1.0
        %v1527 = vadd.f32 %v1133, 1.0
        %v1528 = vadd.f32 %v1135, 1.0
        %v1529 = vadd.f32 %v1137, 1.0
        %v1530 = vadd.f32 %v1139, 1.0
        %v1531 = vadd.f32 %v1141, 1.0
        %v1532 = vadd.f32 %v1143, 1.0
        %v1533 = vadd.f32 %v1145, 1.0
        %v1534 = vadd.f32 %v1147, 1.0
        %v1535 = vadd.f32 %v1149, 1.0
        %v1536 = vadd.f32 %v1151, 1.0
        %v1537 = vadd.f32 %v1153, 1.0
        %v1538 = vadd.f32 %v1155, 1.0
        %v1539 = vadd.f32 %v1157, 1.0
        %v1540 = vadd.f32 %v1159, 1.0
        %v1541 = vadd.f32 %v1161, 1.0
        %v1542 = vadd.f32 %v1163, 1.0
        %v1543 = vadd.f32 %v1165, 1.0
        %v1544 = vadd.f32 %v1167, 1.0
        %v1545 = vadd.f32 %v1169, 1.0
        %v1546 = vadd.f32 %v1171, 1.0
        %v1547 = vadd.f32 %v1173, 1.0
        %v1548 = vadd.f32 %v1175, 1.0
        %v1549 = vadd.f32 %v1177, 1.0
        %v1550 = vadd.f32 %v1179, 1.0
        %v1551 = vadd.f32 %v1181, 1.0
        %v1552 = vadd.f32 %v1183, 1.0
        %v1553 = vadd.f32 %v1185, 1.0
        %v1554 = vadd.f32 %v1187, 1.0
        %v1555 = vadd.f32 %v1189, 1.0
        %v1556 = vadd.f32 %v1191, 1.0
        %v1557 = vadd.f32 %v1193, 1.0
        %v1558 = vadd.f32 %v1195, 1.0
        %v1559 = vadd.f32 %v1197, 1.0
        %v1560 = vadd.f32 %v1199, 1.0
        %v1561 = vadd.f32 %v1201, 1.0
        %v1562 = vadd.f32 %v1203, 1.0
        %v1563 = vadd.f32 %v1205, 1.0
        %v1564 = vadd.f32 %v1207, 1.0
        %v1565 = vadd.f32 %v1209, 1.0
        %v1566 = vadd.f32 %v1211, 1.0
        %v1567 = vadd.f32 %v1213, 1.0
        %v1568 = vadd.f32 %v1215, 1.0
        %v1569 = vadd.f32 %v1217, 1.0
        %v1570 = vadd.f32 %v1219, 1.0
        %v1571 = vadd.f32 %v1221, 1.0
        %v1572 = vadd.f32 %v1223, 1.0
        %v1573 = vadd.f32 %v1225, 1.0
        %v1574 = vadd.f32 %v1227, 1.0
        %v1575 = vadd.f32 %v1229, 1.0
        %v1576 = vadd.f32 %v1231, 1.0
        %v1577 = vadd.f32 %v1233, 1.0
        %v1578 = vadd.f32 %v1235, 1.0
        %v1579 = vadd.f32 %v1237, 1.0
        %v1580 = vadd.f32 %v1239, 1.0
        %v1581 = vadd.f32 %v1241, 1.0
        %v1582 = vadd.f32 %v1243, 1.0
        %v1583 = vadd.f32 %v1245, 1.0
        %v1584 = vadd.f32 %v1247, 1.0
        %v1585 = vadd.f32 %v1249, 1.0
        %v1586 = vadd.f32 %v1251, 1.0
        %v1587 = vadd.f32 %v1253, 1.0
        %v1588 = vadd.f32 %v1255, 1.0
        %v1589 = vadd.f32 %v1257, 1.0
        %v1590 = vadd.f32 %v1259, 1.0
        %v1591 = vadd.f32 %v1261, 1.0
        %v1592 = vadd.f32 %v1263, 1.0
        %v1593 = vadd.f32 %v1265, 1.0
        %v1594 = vadd.f32 %v1267, 1.0
        %v1595 = vadd.f32 %v1269, 1.0
        %v1596 = vadd.f32 %v1271, 1.0
        %v1597 = vadd.f32 %v1273, 1.0
        %v1598 = vadd.f32 %v1275, 1.0
        %v1599 = vadd.f32 %v1277, 1.0
        %v1600 = vadd.f32 %v1279, 1.0
        %v1601 = vadd.f32 %v1281, 1.0
        %v1602 = vadd.f32 %v1283, 1.0
        %v1603 = vadd.f32 %v1285, 1.0
        %v1604 = vadd.f32 %v1287, 1.0
        %v1605 = vadd.f32 %v1289, 1.0
        %v1606 = vadd.f32 %v1291, 1.0
        %v1607 = vadd.f32 %v1293, 1.0
        %v1608 = vadd.f32 %v1295, 1.0
        %v1609 = vadd.f32 %v1297, 1.0
        %v1610 = vadd.f32 %v1299, 1.0
        %v1611 = vadd.f32 %v1301, 1.0
        %v1612 = vadd.f32 %v1303, 1.0
        %v1613 = vadd.f32 %v1305, 1.0
        %v1614 = vadd.f32 %v1307, 1.0
        %v1615 = vadd.f32 %v1309, 1.0
        %v1616 = vadd.f32 %v1311, 1.0
        %v1617 = vadd.f32 %v1313, 1.0
        %v1618 = vadd.f32 %v1315, 1.0
        %v1619 = vadd.f32 %v1317, 1.0
        %v1620 = vadd.f32 %v1319, 1.0
        %v1621 = vadd.f32 %v1321, 1.0
        %v1622 = vadd.f32 %v1323, 1.0
        %v1623 = vadd.f32 %v1325, 1.0
        %v1624 = vadd.f32 %v1327, 1.0
        %v1625 = vadd.f32 %v1329, 1.0
        %v1626 = vadd.f32 %v1331, 1.0
        %v1627 = vadd.f32 %v1333, 1.0
        %v1628 = vadd.f32 %v1335, 1.0
        %v1629 = vadd.f32 %v1337, 1.0
        %v1630 = vadd.f32 %v1339, 1.0
        %v1631 = vadd.f32 %v1341, 1.0
        %v1632 = vadd.f32 %v1343, 1.0
        %v1633 = vadd.f32 %v1345, 1.0
        %v1634 = vrcp.pop %v1346
        %v1635 = vmul.f32 1.0, %v1634
        %v1636 = vrcp.pop %v1347
        %v1637 = vmul.f32 1.0, %v1636
        %v1638 = vrcp.pop %v1348
        %v1639 = vmul.f32 1.0, %v1638
        %v1640 = vrcp.pop %v1349
        %v1641 = vmul.f32 1.0, %v1640
        %v1642 = vrcp.pop %v1350
        %v1643 = vmul.f32 1.0, %v1642
        %v1644 = vrcp.pop %v1351
        %v1645 = vmul.f32 1.0, %v1644
        %v1646 = vrcp.pop %v1352
        %v1647 = vmul.f32 1.0, %v1646
        %v1648 = vrcp.pop %v1353
        %v1649 = vmul.f32 1.0, %v1648
        %v1650 = vrcp.pop %v1354
        %v1651 = vmul.f32 1.0, %v1650
        %v1652 = vrcp.pop %v1355
        %v1653 = vmul.f32 1.0, %v1652
        %v1654 = vrcp.pop %v1356
        %v1655 = vmul.f32 1.0, %v1654
        %v1656 = vrcp.pop %v1357
        %v1657 = vmul.f32 1.0, %v1656
        %v1658 = vrcp.pop %v1358
        %v1659 = vmul.f32 1.0, %v1658
        %v1660 = vrcp.pop %v1359
        %v1661 = vmul.f32 1.0, %v1660
        %v1662 = vrcp.pop %v1360
        %v1663 = vmul.f32 1.0, %v1662
        %v1664 = vrcp.pop %v1361
        %v1665 = vmul.f32 1.0, %v1664
        %v1666 = vrcp.pop %v1362
        %v1667 = vmul.f32 1.0, %v1666
        %v1668 = vrcp.pop %v1363
        %v1669 = vmul.f32 1.0, %v1668
        %v1670 = vrcp.pop %v1364
        %v1671 = vmul.f32 1.0, %v1670
        %v1672 = vrcp.pop %v1365
        %v1673 = vmul.f32 1.0, %v1672
        %v1674 = vrcp.pop %v1366
        %v1675 = vmul.f32 1.0, %v1674
        %v1676 = vrcp.pop %v1367
        %v1677 = vmul.f32 1.0, %v1676
        %v1678 = vrcp.pop %v1368
        %v1679 = vmul.f32 1.0, %v1678
        %v1680 = vrcp.pop %v1369
        %v1681 = vmul.f32 1.0, %v1680
        %v1682 = vrcp.pop %v1370
        %v1683 = vmul.f32 1.0, %v1682
        %v1684 = vrcp.pop %v1371
        %v1685 = vmul.f32 1.0, %v1684
        %v1686 = vrcp.pop %v1372
        %v1687 = vmul.f32 1.0, %v1686
        %v1688 = vrcp.pop %v1373
        %v1689 = vmul.f32 1.0, %v1688
        %v1690 = vrcp.pop %v1374
        %v1691 = vmul.f32 1.0, %v1690
        %v1692 = vrcp.pop %v1375
        %v1693 = vmul.f32 1.0, %v1692
        %v1694 = vrcp.pop %v1376
        %v1695 = vmul.f32 1.0, %v1694
        %v1696 = vrcp.pop %v1377
        %v1697 = vmul.f32 1.0, %v1696
        %v1698 = vrcp.pop %v1378
        %v1699 = vmul.f32 1.0, %v1698
        %v1700 = vrcp.pop %v1379
        %v1701 = vmul.f32 1.0, %v1700
        %v1702 = vrcp.pop %v1380
        %v1703 = vmul.f32 1.0, %v1702
        %v1704 = vrcp.pop %v1381
        %v1705 = vmul.f32 1.0, %v1704
        %v1706 = vrcp.pop %v1382
        %v1707 = vmul.f32 1.0, %v1706
        %v1708 = vrcp.pop %v1383
        %v1709 = vmul.f32 1.0, %v1708
        %v1710 = vrcp.pop %v1384
        %v1711 = vmul.f32 1.0, %v1710
        %v1712 = vrcp.pop %v1385
        %v1713 = vmul.f32 1.0, %v1712
        %v1714 = vrcp.pop %v1386
        %v1715 = vmul.f32 1.0, %v1714
        %v1716 = vrcp.pop %v1387
        %v1717 = vmul.f32 1.0, %v1716
        %v1718 = vrcp.pop %v1388
        %v1719 = vmul.f32 1.0, %v1718
        %v1720 = vrcp.pop %v1389
        %v1721 = vmul.f32 1.0, %v1720
        %v1722 = vrcp.pop %v1390
        %v1723 = vmul.f32 1.0, %v1722
        %v1724 = vrcp.pop %v1391
        %v1725 = vmul.f32 1.0, %v1724
        %v1726 = vrcp.pop %v1392
        %v1727 = vmul.f32 1.0, %v1726
        %v1728 = vrcp.pop %v1393
        %v1729 = vmul.f32 1.0, %v1728
        %v1730 = vrcp.pop %v1394
        %v1731 = vmul.f32 1.0, %v1730
        %v1732 = vrcp.pop %v1395
        %v1733 = vmul.f32 1.0, %v1732
        %v1734 = vrcp.pop %v1396
        %v1735 = vmul.f32 1.0, %v1734
        %v1736 = vrcp.pop %v1397
        %v1737 = vmul.f32 1.0, %v1736
        %v1738 = vrcp.pop %v1398
        %v1739 = vmul.f32 1.0, %v1738
        %v1740 = vrcp.pop %v1399
        %v1741 = vmul.f32 1.0, %v1740
        %v1742 = vrcp.pop %v1400
        %v1743 = vmul.f32 1.0, %v1742
        %v1744 = vrcp.pop %v1401
        %v1745 = vmul.f32 1.0, %v1744
        %v1746 = vrcp.pop %v1402
        %v1747 = vmul.f32 1.0, %v1746
        %v1748 = vrcp.pop %v1403
        %v1749 = vmul.f32 1.0, %v1748
        %v1750 = vrcp.pop %v1404
        %v1751 = vmul.f32 1.0, %v1750
        %v1752 = vrcp.pop %v1405
        %v1753 = vmul.f32 1.0, %v1752
        %v1754 = vrcp.pop %v1406
        %v1755 = vmul.f32 1.0, %v1754
        %v1756 = vrcp.pop %v1407
        %v1757 = vmul.f32 1.0, %v1756
        %v1758 = vrcp.pop %v1408
        %v1759 = vmul.f32 1.0, %v1758
        %v1760 = vrcp.pop %v1409
        %v1761 = vmul.f32 1.0, %v1760
        %v1762 = vrcp.pop %v1410
        %v1763 = vmul.f32 1.0, %v1762
        %v1764 = vrcp.pop %v1411
        %v1765 = vmul.f32 1.0, %v1764
        %v1766 = vrcp.pop %v1412
        %v1767 = vmul.f32 1.0, %v1766
        %v1768 = vrcp.pop %v1413
        %v1769 = vmul.f32 1.0, %v1768
        %v1770 = vrcp.pop %v1414
        %v1771 = vmul.f32 1.0, %v1770
        %v1772 = vrcp.pop %v1415
        %v1773 = vmul.f32 1.0, %v1772
        %v1774 = vrcp.pop %v1416
        %v1775 = vmul.f32 1.0, %v1774
        %v1776 = vrcp.pop %v1417
        %v1777 = vmul.f32 1.0, %v1776
        %v1778 = vrcp.pop %v1418
        %v1779 = vmul.f32 1.0, %v1778
        %v1780 = vrcp.pop %v1419
        %v1781 = vmul.f32 1.0, %v1780
        %v1782 = vrcp.pop %v1420
        %v1783 = vmul.f32 1.0, %v1782
        %v1784 = vrcp.pop %v1421
        %v1785 = vmul.f32 1.0, %v1784
        %v1786 = vrcp.pop %v1422
        %v1787 = vmul.f32 1.0, %v1786
        %v1788 = vrcp.pop %v1423
        %v1789 = vmul.f32 1.0, %v1788
        %v1790 = vrcp.pop %v1424
        %v1791 = vmul.f32 1.0, %v1790
        %v1792 = vrcp.pop %v1425
        %v1793 = vmul.f32 1.0, %v1792
        %v1794 = vrcp.pop %v1426
        %v1795 = vmul.f32 1.0, %v1794
        %v1796 = vrcp.pop %v1427
        %v1797 = vmul.f32 1.0, %v1796
        %v1798 = vrcp.pop %v1428
        %v1799 = vmul.f32 1.0, %v1798
        %v1800 = vrcp.pop %v1429
        %v1801 = vmul.f32 1.0, %v1800
        %v1802 = vrcp.pop %v1430
        %v1803 = vmul.f32 1.0, %v1802
        %v1804 = vrcp.pop %v1431
        %v1805 = vmul.f32 1.0, %v1804
        %v1806 = vrcp.pop %v1432
        %v1807 = vmul.f32 1.0, %v1806
        %v1808 = vrcp.pop %v1433
        %v1809 = vmul.f32 1.0, %v1808
        %v1810 = vrcp.pop %v1434
        %v1811 = vmul.f32 1.0, %v1810
        %v1812 = vrcp.pop %v1435
        %v1813 = vmul.f32 1.0, %v1812
        %v1814 = vrcp.pop %v1436
        %v1815 = vmul.f32 1.0, %v1814
        %v1816 = vrcp.pop %v1437
        %v1817 = vmul.f32 1.0, %v1816
        %v1818 = vrcp.pop %v1438
        %v1819 = vmul.f32 1.0, %v1818
        %v1820 = vrcp.pop %v1439
        %v1821 = vmul.f32 1.0, %v1820
        %v1822 = vrcp.pop %v1440
        %v1823 = vmul.f32 1.0, %v1822
        %v1824 = vrcp.pop %v1441
        %v1825 = vmul.f32 1.0, %v1824
        %v1826 = vrcp.pop %v1442
        %v1827 = vmul.f32 1.0, %v1826
        %v1828 = vrcp.pop %v1443
        %v1829 = vmul.f32 1.0, %v1828
        %v1830 = vrcp.pop %v1444
        %v1831 = vmul.f32 1.0, %v1830
        %v1832 = vrcp.pop %v1445
        %v1833 = vmul.f32 1.0, %v1832
        %v1834 = vrcp.pop %v1446
        %v1835 = vmul.f32 1.0, %v1834
        %v1836 = vrcp.pop %v1447
        %v1837 = vmul.f32 1.0, %v1836
        %v1838 = vrcp.pop %v1448
        %v1839 = vmul.f32 1.0, %v1838
        %v1840 = vrcp.pop %v1449
        %v1841 = vmul.f32 1.0, %v1840
        %v1842 = vrcp.pop %v1450
        %v1843 = vmul.f32 1.0, %v1842
        %v1844 = vrcp.pop %v1451
        %v1845 = vmul.f32 1.0, %v1844
        %v1846 = vrcp.pop %v1452
        %v1847 = vmul.f32 1.0, %v1846
        %v1848 = vrcp.pop %v1453
        %v1849 = vmul.f32 1.0, %v1848
        %v1850 = vrcp.pop %v1454
        %v1851 = vmul.f32 1.0, %v1850
        %v1852 = vrcp.pop %v1455
        %v1853 = vmul.f32 1.0, %v1852
        %v1854 = vrcp.pop %v1456
        %v1855 = vmul.f32 1.0, %v1854
        %v1856 = vrcp.pop %v1457
        %v1857 = vmul.f32 1.0, %v1856
        %v1858 = vrcp.pop %v1458
        %v1859 = vmul.f32 1.0, %v1858
        %v1860 = vrcp.pop %v1459
        %v1861 = vmul.f32 1.0, %v1860
        %v1862 = vrcp.pop %v1460
        %v1863 = vmul.f32 1.0, %v1862
        %v1864 = vrcp.pop %v1461
        %v1865 = vmul.f32 1.0, %v1864
        %v1866 = vrcp.pop %v1462
        %v1867 = vmul.f32 1.0, %v1866
        %v1868 = vrcp.pop %v1463
        %v1869 = vmul.f32 1.0, %v1868
        %v1870 = vrcp.pop %v1464
        %v1871 = vmul.f32 1.0, %v1870
        %v1872 = vrcp.pop %v1465
        %v1873 = vmul.f32 1.0, %v1872
        %v1874 = vrcp.pop %v1466
        %v1875 = vmul.f32 1.0, %v1874
        %v1876 = vrcp.pop %v1467
        %v1877 = vmul.f32 1.0, %v1876
        %v1878 = vrcp.pop %v1468
        %v1879 = vmul.f32 1.0, %v1878
        %v1880 = vrcp.pop %v1469
        %v1881 = vmul.f32 1.0, %v1880
        %v1882 = vrcp.pop %v1470
        %v1883 = vmul.f32 1.0, %v1882
        %v1884 = vrcp.pop %v1471
        %v1885 = vmul.f32 1.0, %v1884
        %v1886 = vrcp.pop %v1472
        %v1887 = vmul.f32 1.0, %v1886
        %v1888 = vrcp.pop %v1473
        %v1889 = vmul.f32 1.0, %v1888
        %v1890 = vrcp.pop %v1474
        %v1891 = vmul.f32 1.0, %v1890
        %v1892 = vrcp.pop %v1475
        %v1893 = vmul.f32 1.0, %v1892
        %v1894 = vrcp.pop %v1476
        %v1895 = vmul.f32 1.0, %v1894
        %v1896 = vrcp.pop %v1477
        %v1897 = vmul.f32 1.0, %v1896
        %v1898 = vrcp.pop %v1478
        %v1899 = vmul.f32 1.0, %v1898
        %v1900 = vrcp.pop %v1479
        %v1901 = vmul.f32 1.0, %v1900
        %v1902 = vrcp.pop %v1480
        %v1903 = vmul.f32 1.0, %v1902
        %v1904 = vrcp.pop %v1481
        %v1905 = vmul.f32 1.0, %v1904
        %v1906 = vrcp.pop %v1482
        %v1907 = vmul.f32 1.0, %v1906
        %v1908 = vrcp.pop %v1483
        %v1909 = vmul.f32 1.0, %v1908
        %v1910 = vrcp.pop %v1484
        %v1911 = vmul.f32 1.0, %v1910
        %v1912 = vrcp.pop %v1485
        %v1913 = vmul.f32 1.0, %v1912
        %v1914 = vrcp.pop %v1486
        %v1915 = vmul.f32 1.0, %v1914
        %v1916 = vrcp.pop %v1487
        %v1917 = vmul.f32 1.0, %v1916
        %v1918 = vrcp.pop %v1488
        %v1919 = vmul.f32 1.0, %v1918
        %v1920 = vrcp.pop %v1489
        %v1921 = vmul.f32 1.0, %v1920
        %v1922 = vrcp.pop %v1490
        %v1923 = vmul.f32 1.0, %v1922
        %v1924 = vrcp.pop %v1491
        %v1925 = vmul.f32 1.0, %v1924
        %v1926 = vrcp.pop %v1492
        %v1927 = vmul.f32 1.0, %v1926
        %v1928 = vrcp.pop %v1493
        %v1929 = vmul.f32 1.0, %v1928
        %v1930 = vrcp.pop %v1494
        %v1931 = vmul.f32 1.0, %v1930
        %v1932 = vrcp.pop %v1495
        %v1933 = vmul.f32 1.0, %v1932
        %v1934 = vrcp.pop %v1496
        %v1935 = vmul.f32 1.0, %v1934
        %v1936 = vrcp.pop %v1497
        %v1937 = vmul.f32 1.0, %v1936
        %v1938 = vrcp.pop %v1498
        %v1939 = vmul.f32 1.0, %v1938
        %v1940 = vrcp.pop %v1499
        %v1941 = vmul.f32 1.0, %v1940
        %v1942 = vrcp.pop %v1500
        %v1943 = vmul.f32 1.0, %v1942
        %v1944 = vrcp.pop %v1501
        %v1945 = vmul.f32 1.0, %v1944
        %v1946 = vrcp.pop %v1502
        %v1947 = vmul.f32 1.0, %v1946
        %v1948 = vrcp.pop %v1503
        %v1949 = vmul.f32 1.0, %v1948
        %v1950 = vrcp.pop %v1504
        %v1951 = vmul.f32 1.0, %v1950
        %v1952 = vrcp.pop %v1505
        %v1953 = vmul.f32 1.0, %v1952
        %v1954 = vrcp.pop %v1506
        %v1955 = vmul.f32 1.0, %v1954
        %v1956 = vrcp.pop %v1507
        %v1957 = vmul.f32 1.0, %v1956
        %v1958 = vrcp.pop %v1508
        %v1959 = vmul.f32 1.0, %v1958
        %v1960 = vrcp.pop %v1509
        %v1961 = vmul.f32 1.0, %v1960
        %v1962 = vrcp.pop %v1510
        %v1963 = vmul.f32 1.0, %v1962
        %v1964 = vrcp.pop %v1511
        %v1965 = vmul.f32 1.0, %v1964
        %v1966 = vrcp.pop %v1512
        %v1967 = vmul.f32 1.0, %v1966
        %v1968 = vrcp.pop %v1513
        %v1969 = vmul.f32 1.0, %v1968
        %v1970 = vrcp.pop %v1514
        %v1971 = vmul.f32 1.0, %v1970
        %v1972 = vrcp.pop %v1515
        %v1973 = vmul.f32 1.0, %v1972
        %v1974 = vrcp.pop %v1516
        %v1975 = vmul.f32 1.0, %v1974
        %v1976 = vrcp.pop %v1517
        %v1977 = vmul.f32 1.0, %v1976
        %v1978 = vrcp.pop %v1518
        %v1979 = vmul.f32 1.0, %v1978
        %v1980 = vrcp.pop %v1519
        %v1981 = vmul.f32 1.0, %v1980
        %v1982 = vrcp.pop %v1520
        %v1983 = vmul.f32 1.0, %v1982
        %v1984 = vrcp.pop %v1521
        %v1985 = vmul.f32 1.0, %v1984
        %v1986 = vrcp.pop %v1522
        %v1987 = vmul.f32 1.0, %v1986
        %v1988 = vrcp.pop %v1523
        %v1989 = vmul.f32 1.0, %v1988
        %v1990 = vrcp.pop %v1524
        %v1991 = vmul.f32 1.0, %v1990
        %v1992 = vrcp.pop %v1525
        %v1993 = vmul.f32 1.0, %v1992
        %v1994 = vrcp.pop %v1526
        %v1995 = vmul.f32 1.0, %v1994
        %v1996 = vrcp.pop %v1527
        %v1997 = vmul.f32 1.0, %v1996
        %v1998 = vrcp.pop %v1528
        %v1999 = vmul.f32 1.0, %v1998
        %v2000 = vrcp.pop %v1529
        %v2001 = vmul.f32 1.0, %v2000
        %v2002 = vrcp.pop %v1530
        %v2003 = vmul.f32 1.0, %v2002
        %v2004 = vrcp.pop %v1531
        %v2005 = vmul.f32 1.0, %v2004
        %v2006 = vrcp.pop %v1532
        %v2007 = vmul.f32 1.0, %v2006
        %v2008 = vrcp.pop %v1533
        %v2009 = vmul.f32 1.0, %v2008
        %v2010 = vrcp.pop %v1534
        %v2011 = vmul.f32 1.0, %v2010
        %v2012 = vrcp.pop %v1535
        %v2013 = vmul.f32 1.0, %v2012
        %v2014 = vrcp.pop %v1536
        %v2015 = vmul.f32 1.0, %v2014
        %v2016 = vrcp.pop %v1537
        %v2017 = vmul.f32 1.0, %v2016
        %v2018 = vrcp.pop %v1538
        %v2019 = vmul.f32 1.0, %v2018
        %v2020 = vrcp.pop %v1539
        %v2021 = vmul.f32 1.0, %v2020
        %v2022 = vrcp.pop %v1540
        %v2023 = vmul.f32 1.0, %v2022
        %v2024 = vrcp.pop %v1541
        %v2025 = vmul.f32 1.0, %v2024
        %v2026 = vrcp.pop %v1542
        %v2027 = vmul.f32 1.0, %v2026
        %v2028 = vrcp.pop %v1543
        %v2029 = vmul.f32 1.0, %v2028
        %v2030 = vrcp.pop %v1544
        %v2031 = vmul.f32 1.0, %v2030
        %v2032 = vrcp.pop %v1545
        %v2033 = vmul.f32 1.0, %v2032
        %v2034 = vrcp.pop %v1546
        %v2035 = vmul.f32 1.0, %v2034
        %v2036 = vrcp.pop %v1547
        %v2037 = vmul.f32 1.0, %v2036
        %v2038 = vrcp.pop %v1548
        %v2039 = vmul.f32 1.0, %v2038
        %v2040 = vrcp.pop %v1549
        %v2041 = vmul.f32 1.0, %v2040
        %v2042 = vrcp.pop %v1550
        %v2043 = vmul.f32 1.0, %v2042
        %v2044 = vrcp.pop %v1551
        %v2045 = vmul.f32 1.0, %v2044
        %v2046 = vrcp.pop %v1552
        %v2047 = vmul.f32 1.0, %v2046
        %v2048 = vrcp.pop %v1553
        %v2049 = vmul.f32 1.0, %v2048
        %v2050 = vrcp.pop %v1554
        %v2051 = vmul.f32 1.0, %v2050
        %v2052 = vrcp.pop %v1555
        %v2053 = vmul.f32 1.0, %v2052
        %v2054 = vrcp.pop %v1556
        %v2055 = vmul.f32 1.0, %v2054
        %v2056 = vrcp.pop %v1557
        %v2057 = vmul.f32 1.0, %v2056
        %v2058 = vrcp.pop %v1558
        %v2059 = vmul.f32 1.0, %v2058
        %v2060 = vrcp.pop %v1559
        %v2061 = vmul.f32 1.0, %v2060
        %v2062 = vrcp.pop %v1560
        %v2063 = vmul.f32 1.0, %v2062
        %v2064 = vrcp.pop %v1561
        %v2065 = vmul.f32 1.0, %v2064
        %v2066 = vrcp.pop %v1562
        %v2067 = vmul.f32 1.0, %v2066
        %v2068 = vrcp.pop %v1563
        %v2069 = vmul.f32 1.0, %v2068
        %v2070 = vrcp.pop %v1564
        %v2071 = vmul.f32 1.0, %v2070
        %v2072 = vrcp.pop %v1565
        %v2073 = vmul.f32 1.0, %v2072
        %v2074 = vrcp.pop %v1566
        %v2075 = vmul.f32 1.0, %v2074
        %v2076 = vrcp.pop %v1567
        %v2077 = vmul.f32 1.0, %v2076
        %v2078 = vrcp.pop %v1568
        %v2079 = vmul.f32 1.0, %v2078
        %v2080 = vrcp.pop %v1569
        %v2081 = vmul.f32 1.0, %v2080
        %v2082 = vrcp.pop %v1570
        %v2083 = vmul.f32 1.0, %v2082
        %v2084 = vrcp.pop %v1571
        %v2085 = vmul.f32 1.0, %v2084
        %v2086 = vrcp.pop %v1572
        %v2087 = vmul.f32 1.0, %v2086
        %v2088 = vrcp.pop %v1573
        %v2089 = vmul.f32 1.0, %v2088
        %v2090 = vrcp.pop %v1574
        %v2091 = vmul.f32 1.0, %v2090
        %v2092 = vrcp.pop %v1575
        %v2093 = vmul.f32 1.0, %v2092
        %v2094 = vrcp.pop %v1576
        %v2095 = vmul.f32 1.0, %v2094
        %v2096 = vrcp.pop %v1577
        %v2097 = vmul.f32 1.0, %v2096
        %v2098 = vrcp.pop %v1578
        %v2099 = vmul.f32 1.0, %v2098
        %v2100 = vrcp.pop %v1579
        %v2101 = vmul.f32 1.0, %v2100
        %v2102 = vrcp.pop %v1580
        %v2103 = vmul.f32 1.0, %v2102
        %v2104 = vrcp.pop %v1581
        %v2105 = vmul.f32 1.0, %v2104
        %v2106 = vrcp.pop %v1582
        %v2107 = vmul.f32 1.0, %v2106
        %v2108 = vrcp.pop %v1583
        %v2109 = vmul.f32 1.0, %v2108
        %v2110 = vrcp.pop %v1584
        %v2111 = vmul.f32 1.0, %v2110
        %v2112 = vrcp.pop %v1585
        %v2113 = vmul.f32 1.0, %v2112
        %v2114 = vrcp.pop %v1586
        %v2115 = vmul.f32 1.0, %v2114
        %v2116 = vrcp.pop %v1587
        %v2117 = vmul.f32 1.0, %v2116
        %v2118 = vrcp.pop %v1588
        %v2119 = vmul.f32 1.0, %v2118
        %v2120 = vrcp.pop %v1589
        %v2121 = vmul.f32 1.0, %v2120
        %v2122 = vrcp.pop %v1590
        %v2123 = vmul.f32 1.0, %v2122
        %v2124 = vrcp.pop %v1591
        %v2125 = vmul.f32 1.0, %v2124
        %v2126 = vrcp.pop %v1592
        %v2127 = vmul.f32 1.0, %v2126
        %v2128 = vrcp.pop %v1593
        %v2129 = vmul.f32 1.0, %v2128
        %v2130 = vrcp.pop %v1594
        %v2131 = vmul.f32 1.0, %v2130
        %v2132 = vrcp.pop %v1595
        %v2133 = vmul.f32 1.0, %v2132
        %v2134 = vrcp.pop %v1596
        %v2135 = vmul.f32 1.0, %v2134
        %v2136 = vrcp.pop %v1597
        %v2137 = vmul.f32 1.0, %v2136
        %v2138 = vrcp.pop %v1598
        %v2139 = vmul.f32 1.0, %v2138
        %v2140 = vrcp.pop %v1599
        %v2141 = vmul.f32 1.0, %v2140
        %v2142 = vrcp.pop %v1600
        %v2143 = vmul.f32 1.0, %v2142
        %v2144 = vrcp.pop %v1601
        %v2145 = vmul.f32 1.0, %v2144
        %v2146 = vrcp.pop %v1602
        %v2147 = vmul.f32 1.0, %v2146
        %v2148 = vrcp.pop %v1603
        %v2149 = vmul.f32 1.0, %v2148
        %v2150 = vrcp.pop %v1604
        %v2151 = vmul.f32 1.0, %v2150
        %v2152 = vrcp.pop %v1605
        %v2153 = vmul.f32 1.0, %v2152
        %v2154 = vrcp.pop %v1606
        %v2155 = vmul.f32 1.0, %v2154
        %v2156 = vrcp.pop %v1607
        %v2157 = vmul.f32 1.0, %v2156
        %v2158 = vrcp.pop %v1608
        %v2159 = vmul.f32 1.0, %v2158
        %v2160 = vrcp.pop %v1609
        %v2161 = vmul.f32 1.0, %v2160
        %v2162 = vrcp.pop %v1610
        %v2163 = vmul.f32 1.0, %v2162
        %v2164 = vrcp.pop %v1611
        %v2165 = vmul.f32 1.0, %v2164
        %v2166 = vrcp.pop %v1612
        %v2167 = vmul.f32 1.0, %v2166
        %v2168 = vrcp.pop %v1613
        %v2169 = vmul.f32 1.0, %v2168
        %v2170 = vrcp.pop %v1614
        %v2171 = vmul.f32 1.0, %v2170
        %v2172 = vrcp.pop %v1615
        %v2173 = vmul.f32 1.0, %v2172
        %v2174 = vrcp.pop %v1616
        %v2175 = vmul.f32 1.0, %v2174
        %v2176 = vrcp.pop %v1617
        %v2177 = vmul.f32 1.0, %v2176
        %v2178 = vrcp.pop %v1618
        %v2179 = vmul.f32 1.0, %v2178
        %v2180 = vrcp.pop %v1619
        %v2181 = vmul.f32 1.0, %v2180
        %v2182 = vrcp.pop %v1620
        %v2183 = vmul.f32 1.0, %v2182
        %v2184 = vrcp.pop %v1621
        %v2185 = vmul.f32 1.0, %v2184
        %v2186 = vrcp.pop %v1622
        %v2187 = vmul.f32 1.0, %v2186
        %v2188 = vrcp.pop %v1623
        %v2189 = vmul.f32 1.0, %v2188
        %v2190 = vrcp.pop %v1624
        %v2191 = vmul.f32 1.0, %v2190
        %v2192 = vrcp.pop %v1625
        %v2193 = vmul.f32 1.0, %v2192
        %v2194 = vrcp.pop %v1626
        %v2195 = vmul.f32 1.0, %v2194
        %v2196 = vrcp.pop %v1627
        %v2197 = vmul.f32 1.0, %v2196
        %v2198 = vrcp.pop %v1628
        %v2199 = vmul.f32 1.0, %v2198
        %v2200 = vrcp.pop %v1629
        %v2201 = vmul.f32 1.0, %v2200
        %v2202 = vrcp.pop %v1630
        %v2203 = vmul.f32 1.0, %v2202
        %v2204 = vrcp.pop %v1631
        %v2205 = vmul.f32 1.0, %v2204
        %v2206 = vrcp.pop %v1632
        %v2207 = vmul.f32 1.0, %v2206
        %v2208 = vrcp.pop %v1633
        %v2209 = vmul.f32 1.0, %v2208
        %v2210 = vld [vmem:[%s1] sm:$0xff]
        %v2211 = vld [vmem:[%s1 + $0x8] sm:$0xff]
        %v2212 = vld [vmem:[%s1 + $0x10] sm:$0xff]
        %v2213 = vld [vmem:[%s1 + $0x18] sm:$0xff]
        %v2214 = vld [vmem:[%s1 + $0x20] sm:$0xff]
        %v2215 = vld [vmem:[%s1 + $0x28] sm:$0xff]
        %v2216 = vld [vmem:[%s1 + $0x30] sm:$0xff]
        %v2217 = vld [vmem:[%s1 + $0x38] sm:$0xff]
        %v2218 = vld [vmem:[%s1 + $0x40] sm:$0xff]
        %v2219 = vld [vmem:[%s1 + $0x48] sm:$0xff]
        %v2220 = vld [vmem:[%s1 + $0x50] sm:$0xff]
        %v2221 = vld [vmem:[%s1 + $0x58] sm:$0xff]
        %v2222 = vld [vmem:[%s1 + $0x60] sm:$0xff]
        %v2223 = vld [vmem:[%s1 + $0x68] sm:$0xff]
        %v2224 = vld [vmem:[%s1 + $0x70] sm:$0xff]
        %v2225 = vld [vmem:[%s1 + $0x78] sm:$0xff]
        %v2226 = vld [vmem:[%s1 + $0x80] sm:$0xff]
        %v2227 = vld [vmem:[%s1 + $0x88] sm:$0xff]
        %v2228 = vld [vmem:[%s1 + $0x90] sm:$0xff]
        %v2229 = vld [vmem:[%s1 + $0x98] sm:$0xff]
        %v2230 = vld [vmem:[%s1 + $0xa0] sm:$0xff]
        %v2231 = vld [vmem:[%s1 + $0xa8] sm:$0xff]
        %v2232 = vld [vmem:[%s1 + $0xb0] sm:$0xff]
        %v2233 = vld [vmem:[%s1 + $0xb8] sm:$0xff]
        %v2234 = vld [vmem:[%s1 + $0xc0] sm:$0xff]
        %v2235 = vld [vmem:[%s1 + $0xc8] sm:$0xff]
        %v2236 = vld [vmem:[%s1 + $0xd0] sm:$0xff]
        %v2237 = vld [vmem:[%s1 + $0xd8] sm:$0xff]
        %v2238 = vld [vmem:[%s1 + $0xe0] sm:$0xff]
        %v2239 = vld [vmem:[%s1 + $0xe8] sm:$0xff]
        %v2240 = vld [vmem:[%s1 + $0xf0] sm:$0xff]
        %v2241 = vld [vmem:[%s1 + $0xf8] sm:$0xff]
        %v2242 = vld [vmem:[%s1 + $0x100] sm:$0xff]
        %v2243 = vld [vmem:[%s1 + $0x108] sm:$0xff]
        %v2244 = vld [vmem:[%s1 + $0x110] sm:$0xff]
        %v2245 = vld [vmem:[%s1 + $0x118] sm:$0xff]
        %v2246 = vld [vmem:[%s1 + $0x120] sm:$0xff]
        %v2247 = vld [vmem:[%s1 + $0x128] sm:$0xff]
        %v2248 = vld [vmem:[%s1 + $0x130] sm:$0xff]
        %v2249 = vld [vmem:[%s1 + $0x138] sm:$0xff]
        %v2250 = vld [vmem:[%s1 + $0x140] sm:$0xff]
        %v2251 = vld [vmem:[%s1 + $0x148] sm:$0xff]
        %v2252 = vld [vmem:[%s1 + $0x150] sm:$0xff]
        %v2253 = vld [vmem:[%s1 + $0x158] sm:$0xff]
        %v2254 = vld [vmem:[%s1 + $0x160] sm:$0xff]
        %v2255 = vld [vmem:[%s1 + $0x168] sm:$0xff]
        %v2256 = vld [vmem:[%s1 + $0x170] sm:$0xff]
        %v2257 = vld [vmem:[%s1 + $0x178] sm:$0xff]
        %v2258 = vld [vmem:[%s1 + $0x180] sm:$0xff]
        %v2259 = vld [vmem:[%s1 + $0x188] sm:$0xff]
        %v2260 = vld [vmem:[%s1 + $0x190] sm:$0xff]
        %v2261 = vld [vmem:[%s1 + $0x198] sm:$0xff]
        %v2262 = vld [vmem:[%s1 + $0x1a0] sm:$0xff]
        %v2263 = vld [vmem:[%s1 + $0x1a8] sm:$0xff]
        %v2264 = vld [vmem:[%s1 + $0x1b0] sm:$0xff]
        %v2265 = vld [vmem:[%s1 + $0x1b8] sm:$0xff]
        %v2266 = vld [vmem:[%s1 + $0x1c0] sm:$0xff]
        %v2267 = vld [vmem:[%s1 + $0x1c8] sm:$0xff]
        %v2268 = vld [vmem:[%s1 + $0x1d0] sm:$0xff]
        %v2269 = vld [vmem:[%s1 + $0x1d8] sm:$0xff]
        %v2270 = vld [vmem:[%s1 + $0x1e0] sm:$0xff]
        %v2271 = vld [vmem:[%s1 + $0x1e8] sm:$0xff]
        %v2272 = vld [vmem:[%s1 + $0x1f0] sm:$0xff]
        %v2273 = vld [vmem:[%s1 + $0x1f8] sm:$0xff]
        %v2274 = vld [vmem:[%s1 + $0x200] sm:$0xff]
        %v2275 = vld [vmem:[%s1 + $0x208] sm:$0xff]
        %v2276 = vld [vmem:[%s1 + $0x210] sm:$0xff]
        %v2277 = vld [vmem:[%s1 + $0x218] sm:$0xff]
        %v2278 = vld [vmem:[%s1 + $0x220] sm:$0xff]
        %v2279 = vld [vmem:[%s1 + $0x228] sm:$0xff]
        %v2280 = vld [vmem:[%s1 + $0x230] sm:$0xff]
        %v2281 = vld [vmem:[%s1 + $0x238] sm:$0xff]
        %v2282 = vld [vmem:[%s1 + $0x240] sm:$0xff]
        %v2283 = vld [vmem:[%s1 + $0x248] sm:$0xff]
        %v2284 = vld [vmem:[%s1 + $0x250] sm:$0xff]
        %v2285 = vld [vmem:[%s1 + $0x258] sm:$0xff]
        %v2286 = vld [vmem:[%s1 + $0x260] sm:$0xff]
        %v2287 = vld [vmem:[%s1 + $0x268] sm:$0xff]
        %v2288 = vld [vmem:[%s1 + $0x270] sm:$0xff]
        %v2289 = vld [vmem:[%s1 + $0x278] sm:$0xff]
        %v2290 = vld [vmem:[%s1 + $0x280] sm:$0xff]
        %v2291 = vld [vmem:[%s1 + $0x288] sm:$0xff]
        %v2292 = vld [vmem:[%s1 + $0x290] sm:$0xff]
        %v2293 = vld [vmem:[%s1 + $0x298] sm:$0xff]
        %v2294 = vld [vmem:[%s1 + $0x2a0] sm:$0xff]
        %v2295 = vld [vmem:[%s1 + $0x2a8] sm:$0xff]
        %v2296 = vld [vmem:[%s1 + $0x2b0] sm:$0xff]
        %v2297 = vld [vmem:[%s1 + $0x2b8] sm:$0xff]
        %v2298 = vld [vmem:[%s1 + $0x2c0] sm:$0xff]
        %v2299 = vld [vmem:[%s1 + $0x2c8] sm:$0xff]
        %v2300 = vld [vmem:[%s1 + $0x2d0] sm:$0xff]
        %v2301 = vld [vmem:[%s1 + $0x2d8] sm:$0xff]
        %v2302 = vld [vmem:[%s1 + $0x2e0] sm:$0xff]
        %v2303 = vld [vmem:[%s1 + $0x2e8] sm:$0xff]
        %v2304 = vld [vmem:[%s1 + $0x2f0] sm:$0xff]
        %v2305 = vld [vmem:[%s1 + $0x2f8] sm:$0xff]
        %v2306 = vld [vmem:[%s1 + $0x300] sm:$0xff]
        %v2307 = vld [vmem:[%s1 + $0x308] sm:$0xff]
        %v2308 = vld [vmem:[%s1 + $0x310] sm:$0xff]
        %v2309 = vld [vmem:[%s1 + $0x318] sm:$0xff]
        %v2310 = vld [vmem:[%s1 + $0x320] sm:$0xff]
        %v2311 = vld [vmem:[%s1 + $0x328] sm:$0xff]
        %v2312 = vld [vmem:[%s1 + $0x330] sm:$0xff]
        %v2313 = vld [vmem:[%s1 + $0x338] sm:$0xff]
        %v2314 = vld [vmem:[%s1 + $0x340] sm:$0xff]
        %v2315 = vld [vmem:[%s1 + $0x348] sm:$0xff]
        %v2316 = vld [vmem:[%s1 + $0x350] sm:$0xff]
        %v2317 = vld [vmem:[%s1 + $0x358] sm:$0xff]
        %v2318 = vld [vmem:[%s1 + $0x360] sm:$0xff]
        %v2319 = vld [vmem:[%s1 + $0x368] sm:$0xff]
        %v2320 = vld [vmem:[%s1 + $0x370] sm:$0xff]
        %v2321 = vld [vmem:[%s1 + $0x378] sm:$0xff]
        %v2322 = vld [vmem:[%s1 + $0x380] sm:$0xff]
        %v2323 = vld [vmem:[%s1 + $0x388] sm:$0xff]
        %v2324 = vld [vmem:[%s1 + $0x390] sm:$0xff]
        %v2325 = vld [vmem:[%s1 + $0x398] sm:$0xff]
        %v2326 = vld [vmem:[%s1 + $0x3a0] sm:$0xff]
        %v2327 = vld [vmem:[%s1 + $0x3a8] sm:$0xff]
        %v2328 = vld [vmem:[%s1 + $0x3b0] sm:$0xff]
        %v2329 = vld [vmem:[%s1 + $0x3b8] sm:$0xff]
        %v2330 = vld [vmem:[%s1 + $0x3c0] sm:$0xff]
        %v2331 = vld [vmem:[%s1 + $0x3c8] sm:$0xff]
        %v2332 = vld [vmem:[%s1 + $0x3d0] sm:$0xff]
        %v2333 = vld [vmem:[%s1 + $0x3d8] sm:$0xff]
        %v2334 = vld [vmem:[%s1 + $0x3e0] sm:$0xff]
        %v2335 = vld [vmem:[%s1 + $0x3e8] sm:$0xff]
        %v2336 = vld [vmem:[%s1 + $0x3f0] sm:$0xff]
        %v2337 = vld [vmem:[%s1 + $0x3f8] sm:$0xff]
        %v2338 = vld [vmem:[%s1 + $0x400] sm:$0xff]
        %v2339 = vld [vmem:[%s1 + $0x408] sm:$0xff]
        %v2340 = vld [vmem:[%s1 + $0x410] sm:$0xff]
        %v2341 = vld [vmem:[%s1 + $0x418] sm:$0xff]
        %v2342 = vld [vmem:[%s1 + $0x420] sm:$0xff]
        %v2343 = vld [vmem:[%s1 + $0x428] sm:$0xff]
        %v2344 = vld [vmem:[%s1 + $0x430] sm:$0xff]
        %v2345 = vld [vmem:[%s1 + $0x438] sm:$0xff]
        %v2346 = vld [vmem:[%s1 + $0x440] sm:$0xff]
        %v2347 = vld [vmem:[%s1 + $0x448] sm:$0xff]
        %v2348 = vld [vmem:[%s1 + $0x450] sm:$0xff]
        %v2349 = vld [vmem:[%s1 + $0x458] sm:$0xff]
        %v2350 = vld [vmem:[%s1 + $0x460] sm:$0xff]
        %v2351 = vld [vmem:[%s1 + $0x468] sm:$0xff]
        %v2352 = vld [vmem:[%s1 + $0x470] sm:$0xff]
        %v2353 = vld [vmem:[%s1 + $0x478] sm:$0xff]
        %v2354 = vld [vmem:[%s1 + $0x480] sm:$0xff]
        %v2355 = vld [vmem:[%s1 + $0x488] sm:$0xff]
        %v2356 = vld [vmem:[%s1 + $0x490] sm:$0xff]
        %v2357 = vld [vmem:[%s1 + $0x498] sm:$0xff]
        %v2358 = vld [vmem:[%s1 + $0x4a0] sm:$0xff]
        %v2359 = vld [vmem:[%s1 + $0x4a8] sm:$0xff]
        %v2360 = vld [vmem:[%s1 + $0x4b0] sm:$0xff]
        %v2361 = vld [vmem:[%s1 + $0x4b8] sm:$0xff]
        %v2362 = vld [vmem:[%s1 + $0x4c0] sm:$0xff]
        %v2363 = vld [vmem:[%s1 + $0x4c8] sm:$0xff]
        %v2364 = vld [vmem:[%s1 + $0x4d0] sm:$0xff]
        %v2365 = vld [vmem:[%s1 + $0x4d8] sm:$0xff]
        %v2366 = vld [vmem:[%s1 + $0x4e0] sm:$0xff]
        %v2367 = vld [vmem:[%s1 + $0x4e8] sm:$0xff]
        %v2368 = vld [vmem:[%s1 + $0x4f0] sm:$0xff]
        %v2369 = vld [vmem:[%s1 + $0x4f8] sm:$0xff]
        %v2370 = vld [vmem:[%s1 + $0x500] sm:$0xff]
        %v2371 = vld [vmem:[%s1 + $0x508] sm:$0xff]
        %v2372 = vld [vmem:[%s1 + $0x510] sm:$0xff]
        %v2373 = vld [vmem:[%s1 + $0x518] sm:$0xff]
        %v2374 = vld [vmem:[%s1 + $0x520] sm:$0xff]
        %v2375 = vld [vmem:[%s1 + $0x528] sm:$0xff]
        %v2376 = vld [vmem:[%s1 + $0x530] sm:$0xff]
        %v2377 = vld [vmem:[%s1 + $0x538] sm:$0xff]
        %v2378 = vld [vmem:[%s1 + $0x540] sm:$0xff]
        %v2379 = vld [vmem:[%s1 + $0x548] sm:$0xff]
        %v2380 = vld [vmem:[%s1 + $0x550] sm:$0xff]
        %v2381 = vld [vmem:[%s1 + $0x558] sm:$0xff]
        %v2382 = vld [vmem:[%s1 + $0x560] sm:$0xff]
        %v2383 = vld [vmem:[%s1 + $0x568] sm:$0xff]
        %v2384 = vld [vmem:[%s1 + $0x570] sm:$0xff]
        %v2385 = vld [vmem:[%s1 + $0x578] sm:$0xff]
        %v2386 = vld [vmem:[%s1 + $0x580] sm:$0xff]
        %v2387 = vld [vmem:[%s1 + $0x588] sm:$0xff]
        %v2388 = vld [vmem:[%s1 + $0x590] sm:$0xff]
        %v2389 = vld [vmem:[%s1 + $0x598] sm:$0xff]
        %v2390 = vld [vmem:[%s1 + $0x5a0] sm:$0xff]
        %v2391 = vld [vmem:[%s1 + $0x5a8] sm:$0xff]
        %v2392 = vld [vmem:[%s1 + $0x5b0] sm:$0xff]
        %v2393 = vld [vmem:[%s1 + $0x5b8] sm:$0xff]
        %v2394 = vld [vmem:[%s1 + $0x5c0] sm:$0xff]
        %v2395 = vld [vmem:[%s1 + $0x5c8] sm:$0xff]
        %v2396 = vld [vmem:[%s1 + $0x5d0] sm:$0xff]
        %v2397 = vld [vmem:[%s1 + $0x5d8] sm:$0xff]
        %v2398 = vld [vmem:[%s1 + $0x5e0] sm:$0xff]
        %v2399 = vld [vmem:[%s1 + $0x5e8] sm:$0xff]
        %v2400 = vld [vmem:[%s1 + $0x5f0] sm:$0xff]
        %v2401 = vld [vmem:[%s1 + $0x5f8] sm:$0xff]
        %v2402 = vld [vmem:[%s1 + $0x600] sm:$0xff]
        %v2403 = vld [vmem:[%s1 + $0x608] sm:$0xff]
        %v2404 = vld [vmem:[%s1 + $0x610] sm:$0xff]
        %v2405 = vld [vmem:[%s1 + $0x618] sm:$0xff]
        %v2406 = vld [vmem:[%s1 + $0x620] sm:$0xff]
        %v2407 = vld [vmem:[%s1 + $0x628] sm:$0xff]
        %v2408 = vld [vmem:[%s1 + $0x630] sm:$0xff]
        %v2409 = vld [vmem:[%s1 + $0x638] sm:$0xff]
        %v2410 = vld [vmem:[%s1 + $0x640] sm:$0xff]
        %v2411 = vld [vmem:[%s1 + $0x648] sm:$0xff]
        %v2412 = vld [vmem:[%s1 + $0x650] sm:$0xff]
        %v2413 = vld [vmem:[%s1 + $0x658] sm:$0xff]
        %v2414 = vld [vmem:[%s1 + $0x660] sm:$0xff]
        %v2415 = vld [vmem:[%s1 + $0x668] sm:$0xff]
        %v2416 = vld [vmem:[%s1 + $0x670] sm:$0xff]
        %v2417 = vld [vmem:[%s1 + $0x678] sm:$0xff]
        %v2418 = vld [vmem:[%s1 + $0x680] sm:$0xff]
        %v2419 = vld [vmem:[%s1 + $0x688] sm:$0xff]
        %v2420 = vld [vmem:[%s1 + $0x690] sm:$0xff]
        %v2421 = vld [vmem:[%s1 + $0x698] sm:$0xff]
        %v2422 = vld [vmem:[%s1 + $0x6a0] sm:$0xff]
        %v2423 = vld [vmem:[%s1 + $0x6a8] sm:$0xff]
        %v2424 = vld [vmem:[%s1 + $0x6b0] sm:$0xff]
        %v2425 = vld [vmem:[%s1 + $0x6b8] sm:$0xff]
        %v2426 = vld [vmem:[%s1 + $0x6c0] sm:$0xff]
        %v2427 = vld [vmem:[%s1 + $0x6c8] sm:$0xff]
        %v2428 = vld [vmem:[%s1 + $0x6d0] sm:$0xff]
        %v2429 = vld [vmem:[%s1 + $0x6d8] sm:$0xff]
        %v2430 = vld [vmem:[%s1 + $0x6e0] sm:$0xff]
        %v2431 = vld [vmem:[%s1 + $0x6e8] sm:$0xff]
        %v2432 = vld [vmem:[%s1 + $0x6f0] sm:$0xff]
        %v2433 = vld [vmem:[%s1 + $0x6f8] sm:$0xff]
        %v2434 = vld [vmem:[%s1 + $0x700] sm:$0xff]
        %v2435 = vld [vmem:[%s1 + $0x708] sm:$0xff]
        %v2436 = vld [vmem:[%s1 + $0x710] sm:$0xff]
        %v2437 = vld [vmem:[%s1 + $0x718] sm:$0xff]
        %v2438 = vld [vmem:[%s1 + $0x720] sm:$0xff]
        %v2439 = vld [vmem:[%s1 + $0x728] sm:$0xff]
        %v2440 = vld [vmem:[%s1 + $0x730] sm:$0xff]
        %v2441 = vld [vmem:[%s1 + $0x738] sm:$0xff]
        %v2442 = vld [vmem:[%s1 + $0x740] sm:$0xff]
        %v2443 = vld [vmem:[%s1 + $0x748] sm:$0xff]
        %v2444 = vld [vmem:[%s1 + $0x750] sm:$0xff]
        %v2445 = vld [vmem:[%s1 + $0x758] sm:$0xff]
        %v2446 = vld [vmem:[%s1 + $0x760] sm:$0xff]
        %v2447 = vld [vmem:[%s1 + $0x768] sm:$0xff]
        %v2448 = vld [vmem:[%s1 + $0x770] sm:$0xff]
        %v2449 = vld [vmem:[%s1 + $0x778] sm:$0xff]
        %v2450 = vld [vmem:[%s1 + $0x780] sm:$0xff]
        %v2451 = vld [vmem:[%s1 + $0x788] sm:$0xff]
        %v2452 = vld [vmem:[%s1 + $0x790] sm:$0xff]
        %v2453 = vld [vmem:[%s1 + $0x798] sm:$0xff]
        %v2454 = vld [vmem:[%s1 + $0x7a0] sm:$0xff]
        %v2455 = vld [vmem:[%s1 + $0x7a8] sm:$0xff]
        %v2456 = vld [vmem:[%s1 + $0x7b0] sm:$0xff]
        %v2457 = vld [vmem:[%s1 + $0x7b8] sm:$0xff]
        %v2458 = vld [vmem:[%s1 + $0x7c0] sm:$0xff]
        %v2459 = vld [vmem:[%s1 + $0x7c8] sm:$0xff]
        %v2460 = vld [vmem:[%s1 + $0x7d0] sm:$0xff]
        %v2461 = vld [vmem:[%s1 + $0x7d8] sm:$0xff]
        %v2462 = vld [vmem:[%s1 + $0x7e0] sm:$0xff]
        %v2463 = vld [vmem:[%s1 + $0x7e8] sm:$0xff]
        %v2464 = vld [vmem:[%s1 + $0x7f0] sm:$0xff]
        %v2465 = vld [vmem:[%s1 + $0x7f8] sm:$0xff]
        %v2466 = vld [vmem:[%s1 + $0x800] sm:$0xff]
        %v2467 = vld [vmem:[%s1 + $0x808] sm:$0xff]
        %v2468 = vld [vmem:[%s1 + $0x810] sm:$0xff]
        %v2469 = vld [vmem:[%s1 + $0x818] sm:$0xff]
        %v2470 = vld [vmem:[%s1 + $0x820] sm:$0xff]
        %v2471 = vld [vmem:[%s1 + $0x828] sm:$0xff]
        %v2472 = vld [vmem:[%s1 + $0x830] sm:$0xff]
        %v2473 = vld [vmem:[%s1 + $0x838] sm:$0xff]
        %v2474 = vld [vmem:[%s1 + $0x840] sm:$0xff]
        %v2475 = vld [vmem:[%s1 + $0x848] sm:$0xff]
        %v2476 = vld [vmem:[%s1 + $0x850] sm:$0xff]
        %v2477 = vld [vmem:[%s1 + $0x858] sm:$0xff]
        %v2478 = vld [vmem:[%s1 + $0x860] sm:$0xff]
        %v2479 = vld [vmem:[%s1 + $0x868] sm:$0xff]
        %v2480 = vld [vmem:[%s1 + $0x870] sm:$0xff]
        %v2481 = vld [vmem:[%s1 + $0x878] sm:$0xff]
        %v2482 = vld [vmem:[%s1 + $0x880] sm:$0xff]
        %v2483 = vld [vmem:[%s1 + $0x888] sm:$0xff]
        %v2484 = vld [vmem:[%s1 + $0x890] sm:$0xff]
        %v2485 = vld [vmem:[%s1 + $0x898] sm:$0xff]
        %v2486 = vld [vmem:[%s1 + $0x8a0] sm:$0xff]
        %v2487 = vld [vmem:[%s1 + $0x8a8] sm:$0xff]
        %v2488 = vld [vmem:[%s1 + $0x8b0] sm:$0xff]
        %v2489 = vld [vmem:[%s1 + $0x8b8] sm:$0xff]
        %v2490 = vld [vmem:[%s1 + $0x8c0] sm:$0xff]
        %v2491 = vld [vmem:[%s1 + $0x8c8] sm:$0xff]
        %v2492 = vld [vmem:[%s1 + $0x8d0] sm:$0xff]
        %v2493 = vld [vmem:[%s1 + $0x8d8] sm:$0xff]
        %v2494 = vld [vmem:[%s1 + $0x8e0] sm:$0xff]
        %v2495 = vld [vmem:[%s1 + $0x8e8] sm:$0xff]
        %v2496 = vld [vmem:[%s1 + $0x8f0] sm:$0xff]
        %v2497 = vld [vmem:[%s1 + $0x8f8] sm:$0xff]
        %2499 = vset.pattern.permute.xlu0 0
        %2500 = vperm.xlu0 %2499, %v1635
        %v2501 = vpop.permute.xlu0 %2500
        %2504 = vset.pattern.permute.xlu0 0
        %2505 = vperm.xlu0 %2504, %v1637
        %v2506 = vpop.permute.xlu0 %2505
        %2509 = vset.pattern.permute.xlu0 0
        %2510 = vperm.xlu0 %2509, %v1639
        %v2511 = vpop.permute.xlu0 %2510
        %2514 = vset.pattern.permute.xlu0 0
        %2515 = vperm.xlu0 %2514, %v1641
        %v2516 = vpop.permute.xlu0 %2515
        %2519 = vset.pattern.permute.xlu0 0
        %2520 = vperm.xlu0 %2519, %v1643
        %v2521 = vpop.permute.xlu0 %2520
        %2524 = vset.pattern.permute.xlu0 0
        %2525 = vperm.xlu0 %2524, %v1645
        %v2526 = vpop.permute.xlu0 %2525
        %2529 = vset.pattern.permute.xlu0 0
        %2530 = vperm.xlu0 %2529, %v1647
        %v2531 = vpop.permute.xlu0 %2530
        %2534 = vset.pattern.permute.xlu0 0
        %2535 = vperm.xlu0 %2534, %v1649
        %v2536 = vpop.permute.xlu0 %2535
        %2539 = vset.pattern.permute.xlu0 0
        %2540 = vperm.xlu0 %2539, %v1651
        %v2541 = vpop.permute.xlu0 %2540
        %2544 = vset.pattern.permute.xlu0 0
        %2545 = vperm.xlu0 %2544, %v1653
        %v2546 = vpop.permute.xlu0 %2545
        %2549 = vset.pattern.permute.xlu0 0
        %2550 = vperm.xlu0 %2549, %v1655
        %v2551 = vpop.permute.xlu0 %2550
        %2554 = vset.pattern.permute.xlu0 0
        %2555 = vperm.xlu0 %2554, %v1657
        %v2556 = vpop.permute.xlu0 %2555
        %2559 = vset.pattern.permute.xlu0 0
        %2560 = vperm.xlu0 %2559, %v1659
        %v2561 = vpop.permute.xlu0 %2560
        %2564 = vset.pattern.permute.xlu0 0
        %2565 = vperm.xlu0 %2564, %v1661
        %v2566 = vpop.permute.xlu0 %2565
        %2569 = vset.pattern.permute.xlu0 0
        %2570 = vperm.xlu0 %2569, %v1663
        %v2571 = vpop.permute.xlu0 %2570
        %2574 = vset.pattern.permute.xlu0 0
        %2575 = vperm.xlu0 %2574, %v1665
        %v2576 = vpop.permute.xlu0 %2575
        %2579 = vset.pattern.permute.xlu0 0
        %2580 = vperm.xlu0 %2579, %v1667
        %v2581 = vpop.permute.xlu0 %2580
        %2584 = vset.pattern.permute.xlu0 0
        %2585 = vperm.xlu0 %2584, %v1669
        %v2586 = vpop.permute.xlu0 %2585
        %2589 = vset.pattern.permute.xlu0 0
        %2590 = vperm.xlu0 %2589, %v1671
        %v2591 = vpop.permute.xlu0 %2590
        %2594 = vset.pattern.permute.xlu0 0
        %2595 = vperm.xlu0 %2594, %v1673
        %v2596 = vpop.permute.xlu0 %2595
        %2599 = vset.pattern.permute.xlu0 0
        %2600 = vperm.xlu0 %2599, %v1675
        %v2601 = vpop.permute.xlu0 %2600
        %2604 = vset.pattern.permute.xlu0 0
        %2605 = vperm.xlu0 %2604, %v1677
        %v2606 = vpop.permute.xlu0 %2605
        %2609 = vset.pattern.permute.xlu0 0
        %2610 = vperm.xlu0 %2609, %v1679
        %v2611 = vpop.permute.xlu0 %2610
        %2614 = vset.pattern.permute.xlu0 0
        %2615 = vperm.xlu0 %2614, %v1681
        %v2616 = vpop.permute.xlu0 %2615
        %2619 = vset.pattern.permute.xlu0 0
        %2620 = vperm.xlu0 %2619, %v1683
        %v2621 = vpop.permute.xlu0 %2620
        %2624 = vset.pattern.permute.xlu0 0
        %2625 = vperm.xlu0 %2624, %v1685
        %v2626 = vpop.permute.xlu0 %2625
        %2629 = vset.pattern.permute.xlu0 0
        %2630 = vperm.xlu0 %2629, %v1687
        %v2631 = vpop.permute.xlu0 %2630
        %2634 = vset.pattern.permute.xlu0 0
        %2635 = vperm.xlu0 %2634, %v1689
        %v2636 = vpop.permute.xlu0 %2635
        %2639 = vset.pattern.permute.xlu0 0
        %2640 = vperm.xlu0 %2639, %v1691
        %v2641 = vpop.permute.xlu0 %2640
        %2644 = vset.pattern.permute.xlu0 0
        %2645 = vperm.xlu0 %2644, %v1693
        %v2646 = vpop.permute.xlu0 %2645
        %2649 = vset.pattern.permute.xlu0 0
        %2650 = vperm.xlu0 %2649, %v1695
        %v2651 = vpop.permute.xlu0 %2650
        %2654 = vset.pattern.permute.xlu0 0
        %2655 = vperm.xlu0 %2654, %v1697
        %v2656 = vpop.permute.xlu0 %2655
        %2659 = vset.pattern.permute.xlu0 0
        %2660 = vperm.xlu0 %2659, %v1699
        %v2661 = vpop.permute.xlu0 %2660
        %2664 = vset.pattern.permute.xlu0 0
        %2665 = vperm.xlu0 %2664, %v1701
        %v2666 = vpop.permute.xlu0 %2665
        %2669 = vset.pattern.permute.xlu0 0
        %2670 = vperm.xlu0 %2669, %v1703
        %v2671 = vpop.permute.xlu0 %2670
        %2674 = vset.pattern.permute.xlu0 0
        %2675 = vperm.xlu0 %2674, %v1705
        %v2676 = vpop.permute.xlu0 %2675
        %2679 = vset.pattern.permute.xlu0 0
        %2680 = vperm.xlu0 %2679, %v1707
        %v2681 = vpop.permute.xlu0 %2680
        %2684 = vset.pattern.permute.xlu0 0
        %2685 = vperm.xlu0 %2684, %v1709
        %v2686 = vpop.permute.xlu0 %2685
        %2689 = vset.pattern.permute.xlu0 0
        %2690 = vperm.xlu0 %2689, %v1711
        %v2691 = vpop.permute.xlu0 %2690
        %2694 = vset.pattern.permute.xlu0 0
        %2695 = vperm.xlu0 %2694, %v1713
        %v2696 = vpop.permute.xlu0 %2695
        %2699 = vset.pattern.permute.xlu0 0
        %2700 = vperm.xlu0 %2699, %v1715
        %v2701 = vpop.permute.xlu0 %2700
        %2704 = vset.pattern.permute.xlu0 0
        %2705 = vperm.xlu0 %2704, %v1717
        %v2706 = vpop.permute.xlu0 %2705
        %2709 = vset.pattern.permute.xlu0 0
        %2710 = vperm.xlu0 %2709, %v1719
        %v2711 = vpop.permute.xlu0 %2710
        %2714 = vset.pattern.permute.xlu0 0
        %2715 = vperm.xlu0 %2714, %v1721
        %v2716 = vpop.permute.xlu0 %2715
        %2719 = vset.pattern.permute.xlu0 0
        %2720 = vperm.xlu0 %2719, %v1723
        %v2721 = vpop.permute.xlu0 %2720
        %2724 = vset.pattern.permute.xlu0 0
        %2725 = vperm.xlu0 %2724, %v1725
        %v2726 = vpop.permute.xlu0 %2725
        %2729 = vset.pattern.permute.xlu0 0
        %2730 = vperm.xlu0 %2729, %v1727
        %v2731 = vpop.permute.xlu0 %2730
        %2734 = vset.pattern.permute.xlu0 0
        %2735 = vperm.xlu0 %2734, %v1729
        %v2736 = vpop.permute.xlu0 %2735
        %2739 = vset.pattern.permute.xlu0 0
        %2740 = vperm.xlu0 %2739, %v1731
        %v2741 = vpop.permute.xlu0 %2740
        %2744 = vset.pattern.permute.xlu0 0
        %2745 = vperm.xlu0 %2744, %v1733
        %v2746 = vpop.permute.xlu0 %2745
        %2749 = vset.pattern.permute.xlu0 0
        %2750 = vperm.xlu0 %2749, %v1735
        %v2751 = vpop.permute.xlu0 %2750
        %2754 = vset.pattern.permute.xlu0 0
        %2755 = vperm.xlu0 %2754, %v1737
        %v2756 = vpop.permute.xlu0 %2755
        %2759 = vset.pattern.permute.xlu0 0
        %2760 = vperm.xlu0 %2759, %v1739
        %v2761 = vpop.permute.xlu0 %2760
        %2764 = vset.pattern.permute.xlu0 0
        %2765 = vperm.xlu0 %2764, %v1741
        %v2766 = vpop.permute.xlu0 %2765
        %2769 = vset.pattern.permute.xlu0 0
        %2770 = vperm.xlu0 %2769, %v1743
        %v2771 = vpop.permute.xlu0 %2770
        %2774 = vset.pattern.permute.xlu0 0
        %2775 = vperm.xlu0 %2774, %v1745
        %v2776 = vpop.permute.xlu0 %2775
        %2779 = vset.pattern.permute.xlu0 0
        %2780 = vperm.xlu0 %2779, %v1747
        %v2781 = vpop.permute.xlu0 %2780
        %2784 = vset.pattern.permute.xlu0 0
        %2785 = vperm.xlu0 %2784, %v1749
        %v2786 = vpop.permute.xlu0 %2785
        %2789 = vset.pattern.permute.xlu0 0
        %2790 = vperm.xlu0 %2789, %v1751
        %v2791 = vpop.permute.xlu0 %2790
        %2794 = vset.pattern.permute.xlu0 0
        %2795 = vperm.xlu0 %2794, %v1753
        %v2796 = vpop.permute.xlu0 %2795
        %2799 = vset.pattern.permute.xlu0 0
        %2800 = vperm.xlu0 %2799, %v1755
        %v2801 = vpop.permute.xlu0 %2800
        %2804 = vset.pattern.permute.xlu0 0
        %2805 = vperm.xlu0 %2804, %v1757
        %v2806 = vpop.permute.xlu0 %2805
        %2809 = vset.pattern.permute.xlu0 0
        %2810 = vperm.xlu0 %2809, %v1759
        %v2811 = vpop.permute.xlu0 %2810
        %2814 = vset.pattern.permute.xlu0 0
        %2815 = vperm.xlu0 %2814, %v1761
        %v2816 = vpop.permute.xlu0 %2815
        %2819 = vset.pattern.permute.xlu0 0
        %2820 = vperm.xlu0 %2819, %v1763
        %v2821 = vpop.permute.xlu0 %2820
        %2824 = vset.pattern.permute.xlu0 0
        %2825 = vperm.xlu0 %2824, %v1765
        %v2826 = vpop.permute.xlu0 %2825
        %2829 = vset.pattern.permute.xlu0 0
        %2830 = vperm.xlu0 %2829, %v1767
        %v2831 = vpop.permute.xlu0 %2830
        %2834 = vset.pattern.permute.xlu0 0
        %2835 = vperm.xlu0 %2834, %v1769
        %v2836 = vpop.permute.xlu0 %2835
        %2839 = vset.pattern.permute.xlu0 0
        %2840 = vperm.xlu0 %2839, %v1771
        %v2841 = vpop.permute.xlu0 %2840
        %2844 = vset.pattern.permute.xlu0 0
        %2845 = vperm.xlu0 %2844, %v1773
        %v2846 = vpop.permute.xlu0 %2845
        %2849 = vset.pattern.permute.xlu0 0
        %2850 = vperm.xlu0 %2849, %v1775
        %v2851 = vpop.permute.xlu0 %2850
        %2854 = vset.pattern.permute.xlu0 0
        %2855 = vperm.xlu0 %2854, %v1777
        %v2856 = vpop.permute.xlu0 %2855
        %2859 = vset.pattern.permute.xlu0 0
        %2860 = vperm.xlu0 %2859, %v1779
        %v2861 = vpop.permute.xlu0 %2860
        %2864 = vset.pattern.permute.xlu0 0
        %2865 = vperm.xlu0 %2864, %v1781
        %v2866 = vpop.permute.xlu0 %2865
        %2869 = vset.pattern.permute.xlu0 0
        %2870 = vperm.xlu0 %2869, %v1783
        %v2871 = vpop.permute.xlu0 %2870
        %2874 = vset.pattern.permute.xlu0 0
        %2875 = vperm.xlu0 %2874, %v1785
        %v2876 = vpop.permute.xlu0 %2875
        %2879 = vset.pattern.permute.xlu0 0
        %2880 = vperm.xlu0 %2879, %v1787
        %v2881 = vpop.permute.xlu0 %2880
        %2884 = vset.pattern.permute.xlu0 0
        %2885 = vperm.xlu0 %2884, %v1789
        %v2886 = vpop.permute.xlu0 %2885
        %2889 = vset.pattern.permute.xlu0 0
        %2890 = vperm.xlu0 %2889, %v1791
        %v2891 = vpop.permute.xlu0 %2890
        %2894 = vset.pattern.permute.xlu0 0
        %2895 = vperm.xlu0 %2894, %v1793
        %v2896 = vpop.permute.xlu0 %2895
        %2899 = vset.pattern.permute.xlu0 0
        %2900 = vperm.xlu0 %2899, %v1795
        %v2901 = vpop.permute.xlu0 %2900
        %2904 = vset.pattern.permute.xlu0 0
        %2905 = vperm.xlu0 %2904, %v1797
        %v2906 = vpop.permute.xlu0 %2905
        %2909 = vset.pattern.permute.xlu0 0
        %2910 = vperm.xlu0 %2909, %v1799
        %v2911 = vpop.permute.xlu0 %2910
        %2914 = vset.pattern.permute.xlu0 0
        %2915 = vperm.xlu0 %2914, %v1801
        %v2916 = vpop.permute.xlu0 %2915
        %2919 = vset.pattern.permute.xlu0 0
        %2920 = vperm.xlu0 %2919, %v1803
        %v2921 = vpop.permute.xlu0 %2920
        %2924 = vset.pattern.permute.xlu0 0
        %2925 = vperm.xlu0 %2924, %v1805
        %v2926 = vpop.permute.xlu0 %2925
        %2929 = vset.pattern.permute.xlu0 0
        %2930 = vperm.xlu0 %2929, %v1807
        %v2931 = vpop.permute.xlu0 %2930
        %2934 = vset.pattern.permute.xlu0 0
        %2935 = vperm.xlu0 %2934, %v1809
        %v2936 = vpop.permute.xlu0 %2935
        %2939 = vset.pattern.permute.xlu0 0
        %2940 = vperm.xlu0 %2939, %v1811
        %v2941 = vpop.permute.xlu0 %2940
        %2944 = vset.pattern.permute.xlu0 0
        %2945 = vperm.xlu0 %2944, %v1813
        %v2946 = vpop.permute.xlu0 %2945
        %2949 = vset.pattern.permute.xlu0 0
        %2950 = vperm.xlu0 %2949, %v1815
        %v2951 = vpop.permute.xlu0 %2950
        %2954 = vset.pattern.permute.xlu0 0
        %2955 = vperm.xlu0 %2954, %v1817
        %v2956 = vpop.permute.xlu0 %2955
        %2959 = vset.pattern.permute.xlu0 0
        %2960 = vperm.xlu0 %2959, %v1819
        %v2961 = vpop.permute.xlu0 %2960
        %2964 = vset.pattern.permute.xlu0 0
        %2965 = vperm.xlu0 %2964, %v1821
        %v2966 = vpop.permute.xlu0 %2965
        %2969 = vset.pattern.permute.xlu0 0
        %2970 = vperm.xlu0 %2969, %v1823
        %v2971 = vpop.permute.xlu0 %2970
        %2974 = vset.pattern.permute.xlu0 0
        %2975 = vperm.xlu0 %2974, %v1825
        %v2976 = vpop.permute.xlu0 %2975
        %2979 = vset.pattern.permute.xlu0 0
        %2980 = vperm.xlu0 %2979, %v1827
        %v2981 = vpop.permute.xlu0 %2980
        %2984 = vset.pattern.permute.xlu0 0
        %2985 = vperm.xlu0 %2984, %v1829
        %v2986 = vpop.permute.xlu0 %2985
        %2989 = vset.pattern.permute.xlu0 0
        %2990 = vperm.xlu0 %2989, %v1831
        %v2991 = vpop.permute.xlu0 %2990
        %2994 = vset.pattern.permute.xlu0 0
        %2995 = vperm.xlu0 %2994, %v1833
        %v2996 = vpop.permute.xlu0 %2995
        %2999 = vset.pattern.permute.xlu0 0
        %3000 = vperm.xlu0 %2999, %v1835
        %v3001 = vpop.permute.xlu0 %3000
        %3004 = vset.pattern.permute.xlu0 0
        %3005 = vperm.xlu0 %3004, %v1837
        %v3006 = vpop.permute.xlu0 %3005
        %3009 = vset.pattern.permute.xlu0 0
        %3010 = vperm.xlu0 %3009, %v1839
        %v3011 = vpop.permute.xlu0 %3010
        %3014 = vset.pattern.permute.xlu0 0
        %3015 = vperm.xlu0 %3014, %v1841
        %v3016 = vpop.permute.xlu0 %3015
        %3019 = vset.pattern.permute.xlu0 0
        %3020 = vperm.xlu0 %3019, %v1843
        %v3021 = vpop.permute.xlu0 %3020
        %3024 = vset.pattern.permute.xlu0 0
        %3025 = vperm.xlu0 %3024, %v1845
        %v3026 = vpop.permute.xlu0 %3025
        %3029 = vset.pattern.permute.xlu0 0
        %3030 = vperm.xlu0 %3029, %v1847
        %v3031 = vpop.permute.xlu0 %3030
        %3034 = vset.pattern.permute.xlu0 0
        %3035 = vperm.xlu0 %3034, %v1849
        %v3036 = vpop.permute.xlu0 %3035
        %3039 = vset.pattern.permute.xlu0 0
        %3040 = vperm.xlu0 %3039, %v1851
        %v3041 = vpop.permute.xlu0 %3040
        %3044 = vset.pattern.permute.xlu0 0
        %3045 = vperm.xlu0 %3044, %v1853
        %v3046 = vpop.permute.xlu0 %3045
        %3049 = vset.pattern.permute.xlu0 0
        %3050 = vperm.xlu0 %3049, %v1855
        %v3051 = vpop.permute.xlu0 %3050
        %3054 = vset.pattern.permute.xlu0 0
        %3055 = vperm.xlu0 %3054, %v1857
        %v3056 = vpop.permute.xlu0 %3055
        %3059 = vset.pattern.permute.xlu0 0
        %3060 = vperm.xlu0 %3059, %v1859
        %v3061 = vpop.permute.xlu0 %3060
        %3064 = vset.pattern.permute.xlu0 0
        %3065 = vperm.xlu0 %3064, %v1861
        %v3066 = vpop.permute.xlu0 %3065
        %3069 = vset.pattern.permute.xlu0 0
        %3070 = vperm.xlu0 %3069, %v1863
        %v3071 = vpop.permute.xlu0 %3070
        %3074 = vset.pattern.permute.xlu0 0
        %3075 = vperm.xlu0 %3074, %v1865
        %v3076 = vpop.permute.xlu0 %3075
        %3079 = vset.pattern.permute.xlu0 0
        %3080 = vperm.xlu0 %3079, %v1867
        %v3081 = vpop.permute.xlu0 %3080
        %3084 = vset.pattern.permute.xlu0 0
        %3085 = vperm.xlu0 %3084, %v1869
        %v3086 = vpop.permute.xlu0 %3085
        %3089 = vset.pattern.permute.xlu0 0
        %3090 = vperm.xlu0 %3089, %v1871
        %v3091 = vpop.permute.xlu0 %3090
        %3094 = vset.pattern.permute.xlu0 0
        %3095 = vperm.xlu0 %3094, %v1873
        %v3096 = vpop.permute.xlu0 %3095
        %3099 = vset.pattern.permute.xlu0 0
        %3100 = vperm.xlu0 %3099, %v1875
        %v3101 = vpop.permute.xlu0 %3100
        %3104 = vset.pattern.permute.xlu0 0
        %3105 = vperm.xlu0 %3104, %v1877
        %v3106 = vpop.permute.xlu0 %3105
        %3109 = vset.pattern.permute.xlu0 0
        %3110 = vperm.xlu0 %3109, %v1879
        %v3111 = vpop.permute.xlu0 %3110
        %3114 = vset.pattern.permute.xlu0 0
        %3115 = vperm.xlu0 %3114, %v1881
        %v3116 = vpop.permute.xlu0 %3115
        %3119 = vset.pattern.permute.xlu0 0
        %3120 = vperm.xlu0 %3119, %v1883
        %v3121 = vpop.permute.xlu0 %3120
        %3124 = vset.pattern.permute.xlu0 0
        %3125 = vperm.xlu0 %3124, %v1885
        %v3126 = vpop.permute.xlu0 %3125
        %3129 = vset.pattern.permute.xlu0 0
        %3130 = vperm.xlu0 %3129, %v1887
        %v3131 = vpop.permute.xlu0 %3130
        %3134 = vset.pattern.permute.xlu0 0
        %3135 = vperm.xlu0 %3134, %v1889
        %v3136 = vpop.permute.xlu0 %3135
        %3139 = vset.pattern.permute.xlu0 0
        %3140 = vperm.xlu0 %3139, %v1891
        %v3141 = vpop.permute.xlu0 %3140
        %3144 = vset.pattern.permute.xlu0 0
        %3145 = vperm.xlu0 %3144, %v1893
        %v3146 = vpop.permute.xlu0 %3145
        %3149 = vset.pattern.permute.xlu0 0
        %3150 = vperm.xlu0 %3149, %v1895
        %v3151 = vpop.permute.xlu0 %3150
        %3154 = vset.pattern.permute.xlu0 0
        %3155 = vperm.xlu0 %3154, %v1897
        %v3156 = vpop.permute.xlu0 %3155
        %3159 = vset.pattern.permute.xlu0 0
        %3160 = vperm.xlu0 %3159, %v1899
        %v3161 = vpop.permute.xlu0 %3160
        %3164 = vset.pattern.permute.xlu0 0
        %3165 = vperm.xlu0 %3164, %v1901
        %v3166 = vpop.permute.xlu0 %3165
        %3169 = vset.pattern.permute.xlu0 0
        %3170 = vperm.xlu0 %3169, %v1903
        %v3171 = vpop.permute.xlu0 %3170
        %3174 = vset.pattern.permute.xlu0 0
        %3175 = vperm.xlu0 %3174, %v1905
        %v3176 = vpop.permute.xlu0 %3175
        %3179 = vset.pattern.permute.xlu0 0
        %3180 = vperm.xlu0 %3179, %v1907
        %v3181 = vpop.permute.xlu0 %3180
        %3184 = vset.pattern.permute.xlu0 0
        %3185 = vperm.xlu0 %3184, %v1909
        %v3186 = vpop.permute.xlu0 %3185
        %3189 = vset.pattern.permute.xlu0 0
        %3190 = vperm.xlu0 %3189, %v1911
        %v3191 = vpop.permute.xlu0 %3190
        %3194 = vset.pattern.permute.xlu0 0
        %3195 = vperm.xlu0 %3194, %v1913
        %v3196 = vpop.permute.xlu0 %3195
        %3199 = vset.pattern.permute.xlu0 0
        %3200 = vperm.xlu0 %3199, %v1915
        %v3201 = vpop.permute.xlu0 %3200
        %3204 = vset.pattern.permute.xlu0 0
        %3205 = vperm.xlu0 %3204, %v1917
        %v3206 = vpop.permute.xlu0 %3205
        %3209 = vset.pattern.permute.xlu0 0
        %3210 = vperm.xlu0 %3209, %v1919
        %v3211 = vpop.permute.xlu0 %3210
        %3214 = vset.pattern.permute.xlu0 0
        %3215 = vperm.xlu0 %3214, %v1921
        %v3216 = vpop.permute.xlu0 %3215
        %3219 = vset.pattern.permute.xlu0 0
        %3220 = vperm.xlu0 %3219, %v1923
        %v3221 = vpop.permute.xlu0 %3220
        %3224 = vset.pattern.permute.xlu0 0
        %3225 = vperm.xlu0 %3224, %v1925
        %v3226 = vpop.permute.xlu0 %3225
        %3229 = vset.pattern.permute.xlu0 0
        %3230 = vperm.xlu0 %3229, %v1927
        %v3231 = vpop.permute.xlu0 %3230
        %3234 = vset.pattern.permute.xlu0 0
        %3235 = vperm.xlu0 %3234, %v1929
        %v3236 = vpop.permute.xlu0 %3235
        %3239 = vset.pattern.permute.xlu0 0
        %3240 = vperm.xlu0 %3239, %v1931
        %v3241 = vpop.permute.xlu0 %3240
        %3244 = vset.pattern.permute.xlu0 0
        %3245 = vperm.xlu0 %3244, %v1933
        %v3246 = vpop.permute.xlu0 %3245
        %3249 = vset.pattern.permute.xlu0 0
        %3250 = vperm.xlu0 %3249, %v1935
        %v3251 = vpop.permute.xlu0 %3250
        %3254 = vset.pattern.permute.xlu0 0
        %3255 = vperm.xlu0 %3254, %v1937
        %v3256 = vpop.permute.xlu0 %3255
        %3259 = vset.pattern.permute.xlu0 0
        %3260 = vperm.xlu0 %3259, %v1939
        %v3261 = vpop.permute.xlu0 %3260
        %3264 = vset.pattern.permute.xlu0 0
        %3265 = vperm.xlu0 %3264, %v1941
        %v3266 = vpop.permute.xlu0 %3265
        %3269 = vset.pattern.permute.xlu0 0
        %3270 = vperm.xlu0 %3269, %v1943
        %v3271 = vpop.permute.xlu0 %3270
        %3274 = vset.pattern.permute.xlu0 0
        %3275 = vperm.xlu0 %3274, %v1945
        %v3276 = vpop.permute.xlu0 %3275
        %3279 = vset.pattern.permute.xlu0 0
        %3280 = vperm.xlu0 %3279, %v1947
        %v3281 = vpop.permute.xlu0 %3280
        %3284 = vset.pattern.permute.xlu0 0
        %3285 = vperm.xlu0 %3284, %v1949
        %v3286 = vpop.permute.xlu0 %3285
        %3289 = vset.pattern.permute.xlu0 0
        %3290 = vperm.xlu0 %3289, %v1951
        %v3291 = vpop.permute.xlu0 %3290
        %3294 = vset.pattern.permute.xlu0 0
        %3295 = vperm.xlu0 %3294, %v1953
        %v3296 = vpop.permute.xlu0 %3295
        %3299 = vset.pattern.permute.xlu0 0
        %3300 = vperm.xlu0 %3299, %v1955
        %v3301 = vpop.permute.xlu0 %3300
        %3304 = vset.pattern.permute.xlu0 0
        %3305 = vperm.xlu0 %3304, %v1957
        %v3306 = vpop.permute.xlu0 %3305
        %3309 = vset.pattern.permute.xlu0 0
        %3310 = vperm.xlu0 %3309, %v1959
        %v3311 = vpop.permute.xlu0 %3310
        %3314 = vset.pattern.permute.xlu0 0
        %3315 = vperm.xlu0 %3314, %v1961
        %v3316 = vpop.permute.xlu0 %3315
        %3319 = vset.pattern.permute.xlu0 0
        %3320 = vperm.xlu0 %3319, %v1963
        %v3321 = vpop.permute.xlu0 %3320
        %3324 = vset.pattern.permute.xlu0 0
        %3325 = vperm.xlu0 %3324, %v1965
        %v3326 = vpop.permute.xlu0 %3325
        %3329 = vset.pattern.permute.xlu0 0
        %3330 = vperm.xlu0 %3329, %v1967
        %v3331 = vpop.permute.xlu0 %3330
        %3334 = vset.pattern.permute.xlu0 0
        %3335 = vperm.xlu0 %3334, %v1969
        %v3336 = vpop.permute.xlu0 %3335
        %3339 = vset.pattern.permute.xlu0 0
        %3340 = vperm.xlu0 %3339, %v1971
        %v3341 = vpop.permute.xlu0 %3340
        %3344 = vset.pattern.permute.xlu0 0
        %3345 = vperm.xlu0 %3344, %v1973
        %v3346 = vpop.permute.xlu0 %3345
        %3349 = vset.pattern.permute.xlu0 0
        %3350 = vperm.xlu0 %3349, %v1975
        %v3351 = vpop.permute.xlu0 %3350
        %3354 = vset.pattern.permute.xlu0 0
        %3355 = vperm.xlu0 %3354, %v1977
        %v3356 = vpop.permute.xlu0 %3355
        %3359 = vset.pattern.permute.xlu0 0
        %3360 = vperm.xlu0 %3359, %v1979
        %v3361 = vpop.permute.xlu0 %3360
        %3364 = vset.pattern.permute.xlu0 0
        %3365 = vperm.xlu0 %3364, %v1981
        %v3366 = vpop.permute.xlu0 %3365
        %3369 = vset.pattern.permute.xlu0 0
        %3370 = vperm.xlu0 %3369, %v1983
        %v3371 = vpop.permute.xlu0 %3370
        %3374 = vset.pattern.permute.xlu0 0
        %3375 = vperm.xlu0 %3374, %v1985
        %v3376 = vpop.permute.xlu0 %3375
        %3379 = vset.pattern.permute.xlu0 0
        %3380 = vperm.xlu0 %3379, %v1987
        %v3381 = vpop.permute.xlu0 %3380
        %3384 = vset.pattern.permute.xlu0 0
        %3385 = vperm.xlu0 %3384, %v1989
        %v3386 = vpop.permute.xlu0 %3385
        %3389 = vset.pattern.permute.xlu0 0
        %3390 = vperm.xlu0 %3389, %v1991
        %v3391 = vpop.permute.xlu0 %3390
        %3394 = vset.pattern.permute.xlu0 0
        %3395 = vperm.xlu0 %3394, %v1993
        %v3396 = vpop.permute.xlu0 %3395
        %3399 = vset.pattern.permute.xlu0 0
        %3400 = vperm.xlu0 %3399, %v1995
        %v3401 = vpop.permute.xlu0 %3400
        %3404 = vset.pattern.permute.xlu0 0
        %3405 = vperm.xlu0 %3404, %v1997
        %v3406 = vpop.permute.xlu0 %3405
        %3409 = vset.pattern.permute.xlu0 0
        %3410 = vperm.xlu0 %3409, %v1999
        %v3411 = vpop.permute.xlu0 %3410
        %3414 = vset.pattern.permute.xlu0 0
        %3415 = vperm.xlu0 %3414, %v2001
        %v3416 = vpop.permute.xlu0 %3415
        %3419 = vset.pattern.permute.xlu0 0
        %3420 = vperm.xlu0 %3419, %v2003
        %v3421 = vpop.permute.xlu0 %3420
        %3424 = vset.pattern.permute.xlu0 0
        %3425 = vperm.xlu0 %3424, %v2005
        %v3426 = vpop.permute.xlu0 %3425
        %3429 = vset.pattern.permute.xlu0 0
        %3430 = vperm.xlu0 %3429, %v2007
        %v3431 = vpop.permute.xlu0 %3430
        %3434 = vset.pattern.permute.xlu0 0
        %3435 = vperm.xlu0 %3434, %v2009
        %v3436 = vpop.permute.xlu0 %3435
        %3439 = vset.pattern.permute.xlu0 0
        %3440 = vperm.xlu0 %3439, %v2011
        %v3441 = vpop.permute.xlu0 %3440
        %3444 = vset.pattern.permute.xlu0 0
        %3445 = vperm.xlu0 %3444, %v2013
        %v3446 = vpop.permute.xlu0 %3445
        %3449 = vset.pattern.permute.xlu0 0
        %3450 = vperm.xlu0 %3449, %v2015
        %v3451 = vpop.permute.xlu0 %3450
        %3454 = vset.pattern.permute.xlu0 0
        %3455 = vperm.xlu0 %3454, %v2017
        %v3456 = vpop.permute.xlu0 %3455
        %3459 = vset.pattern.permute.xlu0 0
        %3460 = vperm.xlu0 %3459, %v2019
        %v3461 = vpop.permute.xlu0 %3460
        %3464 = vset.pattern.permute.xlu0 0
        %3465 = vperm.xlu0 %3464, %v2021
        %v3466 = vpop.permute.xlu0 %3465
        %3469 = vset.pattern.permute.xlu0 0
        %3470 = vperm.xlu0 %3469, %v2023
        %v3471 = vpop.permute.xlu0 %3470
        %3474 = vset.pattern.permute.xlu0 0
        %3475 = vperm.xlu0 %3474, %v2025
        %v3476 = vpop.permute.xlu0 %3475
        %3479 = vset.pattern.permute.xlu0 0
        %3480 = vperm.xlu0 %3479, %v2027
        %v3481 = vpop.permute.xlu0 %3480
        %3484 = vset.pattern.permute.xlu0 0
        %3485 = vperm.xlu0 %3484, %v2029
        %v3486 = vpop.permute.xlu0 %3485
        %3489 = vset.pattern.permute.xlu0 0
        %3490 = vperm.xlu0 %3489, %v2031
        %v3491 = vpop.permute.xlu0 %3490
        %3494 = vset.pattern.permute.xlu0 0
        %3495 = vperm.xlu0 %3494, %v2033
        %v3496 = vpop.permute.xlu0 %3495
        %3499 = vset.pattern.permute.xlu0 0
        %3500 = vperm.xlu0 %3499, %v2035
        %v3501 = vpop.permute.xlu0 %3500
        %3504 = vset.pattern.permute.xlu0 0
        %3505 = vperm.xlu0 %3504, %v2037
        %v3506 = vpop.permute.xlu0 %3505
        %3509 = vset.pattern.permute.xlu0 0
        %3510 = vperm.xlu0 %3509, %v2039
        %v3511 = vpop.permute.xlu0 %3510
        %3514 = vset.pattern.permute.xlu0 0
        %3515 = vperm.xlu0 %3514, %v2041
        %v3516 = vpop.permute.xlu0 %3515
        %3519 = vset.pattern.permute.xlu0 0
        %3520 = vperm.xlu0 %3519, %v2043
        %v3521 = vpop.permute.xlu0 %3520
        %3524 = vset.pattern.permute.xlu0 0
        %3525 = vperm.xlu0 %3524, %v2045
        %v3526 = vpop.permute.xlu0 %3525
        %3529 = vset.pattern.permute.xlu0 0
        %3530 = vperm.xlu0 %3529, %v2047
        %v3531 = vpop.permute.xlu0 %3530
        %3534 = vset.pattern.permute.xlu0 0
        %3535 = vperm.xlu0 %3534, %v2049
        %v3536 = vpop.permute.xlu0 %3535
        %3539 = vset.pattern.permute.xlu0 0
        %3540 = vperm.xlu0 %3539, %v2051
        %v3541 = vpop.permute.xlu0 %3540
        %3544 = vset.pattern.permute.xlu0 0
        %3545 = vperm.xlu0 %3544, %v2053
        %v3546 = vpop.permute.xlu0 %3545
        %3549 = vset.pattern.permute.xlu0 0
        %3550 = vperm.xlu0 %3549, %v2055
        %v3551 = vpop.permute.xlu0 %3550
        %3554 = vset.pattern.permute.xlu0 0
        %3555 = vperm.xlu0 %3554, %v2057
        %v3556 = vpop.permute.xlu0 %3555
        %3559 = vset.pattern.permute.xlu0 0
        %3560 = vperm.xlu0 %3559, %v2059
        %v3561 = vpop.permute.xlu0 %3560
        %3564 = vset.pattern.permute.xlu0 0
        %3565 = vperm.xlu0 %3564, %v2061
        %v3566 = vpop.permute.xlu0 %3565
        %3569 = vset.pattern.permute.xlu0 0
        %3570 = vperm.xlu0 %3569, %v2063
        %v3571 = vpop.permute.xlu0 %3570
        %3574 = vset.pattern.permute.xlu0 0
        %3575 = vperm.xlu0 %3574, %v2065
        %v3576 = vpop.permute.xlu0 %3575
        %3579 = vset.pattern.permute.xlu0 0
        %3580 = vperm.xlu0 %3579, %v2067
        %v3581 = vpop.permute.xlu0 %3580
        %3584 = vset.pattern.permute.xlu0 0
        %3585 = vperm.xlu0 %3584, %v2069
        %v3586 = vpop.permute.xlu0 %3585
        %3589 = vset.pattern.permute.xlu0 0
        %3590 = vperm.xlu0 %3589, %v2071
        %v3591 = vpop.permute.xlu0 %3590
        %3594 = vset.pattern.permute.xlu0 0
        %3595 = vperm.xlu0 %3594, %v2073
        %v3596 = vpop.permute.xlu0 %3595
        %3599 = vset.pattern.permute.xlu0 0
        %3600 = vperm.xlu0 %3599, %v2075
        %v3601 = vpop.permute.xlu0 %3600
        %3604 = vset.pattern.permute.xlu0 0
        %3605 = vperm.xlu0 %3604, %v2077
        %v3606 = vpop.permute.xlu0 %3605
        %3609 = vset.pattern.permute.xlu0 0
        %3610 = vperm.xlu0 %3609, %v2079
        %v3611 = vpop.permute.xlu0 %3610
        %3614 = vset.pattern.permute.xlu0 0
        %3615 = vperm.xlu0 %3614, %v2081
        %v3616 = vpop.permute.xlu0 %3615
        %3619 = vset.pattern.permute.xlu0 0
        %3620 = vperm.xlu0 %3619, %v2083
        %v3621 = vpop.permute.xlu0 %3620
        %3624 = vset.pattern.permute.xlu0 0
        %3625 = vperm.xlu0 %3624, %v2085
        %v3626 = vpop.permute.xlu0 %3625
        %3629 = vset.pattern.permute.xlu0 0
        %3630 = vperm.xlu0 %3629, %v2087
        %v3631 = vpop.permute.xlu0 %3630
        %3634 = vset.pattern.permute.xlu0 0
        %3635 = vperm.xlu0 %3634, %v2089
        %v3636 = vpop.permute.xlu0 %3635
        %3639 = vset.pattern.permute.xlu0 0
        %3640 = vperm.xlu0 %3639, %v2091
        %v3641 = vpop.permute.xlu0 %3640
        %3644 = vset.pattern.permute.xlu0 0
        %3645 = vperm.xlu0 %3644, %v2093
        %v3646 = vpop.permute.xlu0 %3645
        %3649 = vset.pattern.permute.xlu0 0
        %3650 = vperm.xlu0 %3649, %v2095
        %v3651 = vpop.permute.xlu0 %3650
        %3654 = vset.pattern.permute.xlu0 0
        %3655 = vperm.xlu0 %3654, %v2097
        %v3656 = vpop.permute.xlu0 %3655
        %3659 = vset.pattern.permute.xlu0 0
        %3660 = vperm.xlu0 %3659, %v2099
        %v3661 = vpop.permute.xlu0 %3660
        %3664 = vset.pattern.permute.xlu0 0
        %3665 = vperm.xlu0 %3664, %v2101
        %v3666 = vpop.permute.xlu0 %3665
        %3669 = vset.pattern.permute.xlu0 0
        %3670 = vperm.xlu0 %3669, %v2103
        %v3671 = vpop.permute.xlu0 %3670
        %3674 = vset.pattern.permute.xlu0 0
        %3675 = vperm.xlu0 %3674, %v2105
        %v3676 = vpop.permute.xlu0 %3675
        %3679 = vset.pattern.permute.xlu0 0
        %3680 = vperm.xlu0 %3679, %v2107
        %v3681 = vpop.permute.xlu0 %3680
        %3684 = vset.pattern.permute.xlu0 0
        %3685 = vperm.xlu0 %3684, %v2109
        %v3686 = vpop.permute.xlu0 %3685
        %3689 = vset.pattern.permute.xlu0 0
        %3690 = vperm.xlu0 %3689, %v2111
        %v3691 = vpop.permute.xlu0 %3690
        %3694 = vset.pattern.permute.xlu0 0
        %3695 = vperm.xlu0 %3694, %v2113
        %v3696 = vpop.permute.xlu0 %3695
        %3699 = vset.pattern.permute.xlu0 0
        %3700 = vperm.xlu0 %3699, %v2115
        %v3701 = vpop.permute.xlu0 %3700
        %3704 = vset.pattern.permute.xlu0 0
        %3705 = vperm.xlu0 %3704, %v2117
        %v3706 = vpop.permute.xlu0 %3705
        %3709 = vset.pattern.permute.xlu0 0
        %3710 = vperm.xlu0 %3709, %v2119
        %v3711 = vpop.permute.xlu0 %3710
        %3714 = vset.pattern.permute.xlu0 0
        %3715 = vperm.xlu0 %3714, %v2121
        %v3716 = vpop.permute.xlu0 %3715
        %3719 = vset.pattern.permute.xlu0 0
        %3720 = vperm.xlu0 %3719, %v2123
        %v3721 = vpop.permute.xlu0 %3720
        %3724 = vset.pattern.permute.xlu0 0
        %3725 = vperm.xlu0 %3724, %v2125
        %v3726 = vpop.permute.xlu0 %3725
        %3729 = vset.pattern.permute.xlu0 0
        %3730 = vperm.xlu0 %3729, %v2127
        %v3731 = vpop.permute.xlu0 %3730
        %3734 = vset.pattern.permute.xlu0 0
        %3735 = vperm.xlu0 %3734, %v2129
        %v3736 = vpop.permute.xlu0 %3735
        %3739 = vset.pattern.permute.xlu0 0
        %3740 = vperm.xlu0 %3739, %v2131
        %v3741 = vpop.permute.xlu0 %3740
        %3744 = vset.pattern.permute.xlu0 0
        %3745 = vperm.xlu0 %3744, %v2133
        %v3746 = vpop.permute.xlu0 %3745
        %3749 = vset.pattern.permute.xlu0 0
        %3750 = vperm.xlu0 %3749, %v2135
        %v3751 = vpop.permute.xlu0 %3750
        %3754 = vset.pattern.permute.xlu0 0
        %3755 = vperm.xlu0 %3754, %v2137
        %v3756 = vpop.permute.xlu0 %3755
        %3759 = vset.pattern.permute.xlu0 0
        %3760 = vperm.xlu0 %3759, %v2139
        %v3761 = vpop.permute.xlu0 %3760
        %3764 = vset.pattern.permute.xlu0 0
        %3765 = vperm.xlu0 %3764, %v2141
        %v3766 = vpop.permute.xlu0 %3765
        %3769 = vset.pattern.permute.xlu0 0
        %3770 = vperm.xlu0 %3769, %v2143
        %v3771 = vpop.permute.xlu0 %3770
        %3774 = vset.pattern.permute.xlu0 0
        %3775 = vperm.xlu0 %3774, %v2145
        %v3776 = vpop.permute.xlu0 %3775
        %3779 = vset.pattern.permute.xlu0 0
        %3780 = vperm.xlu0 %3779, %v2147
        %v3781 = vpop.permute.xlu0 %3780
        %3784 = vset.pattern.permute.xlu0 0
        %3785 = vperm.xlu0 %3784, %v2149
        %v3786 = vpop.permute.xlu0 %3785
        %3789 = vset.pattern.permute.xlu0 0
        %3790 = vperm.xlu0 %3789, %v2151
        %v3791 = vpop.permute.xlu0 %3790
        %3794 = vset.pattern.permute.xlu0 0
        %3795 = vperm.xlu0 %3794, %v2153
        %v3796 = vpop.permute.xlu0 %3795
        %3799 = vset.pattern.permute.xlu0 0
        %3800 = vperm.xlu0 %3799, %v2155
        %v3801 = vpop.permute.xlu0 %3800
        %3804 = vset.pattern.permute.xlu0 0
        %3805 = vperm.xlu0 %3804, %v2157
        %v3806 = vpop.permute.xlu0 %3805
        %3809 = vset.pattern.permute.xlu0 0
        %3810 = vperm.xlu0 %3809, %v2159
        %v3811 = vpop.permute.xlu0 %3810
        %3814 = vset.pattern.permute.xlu0 0
        %3815 = vperm.xlu0 %3814, %v2161
        %v3816 = vpop.permute.xlu0 %3815
        %3819 = vset.pattern.permute.xlu0 0
        %3820 = vperm.xlu0 %3819, %v2163
        %v3821 = vpop.permute.xlu0 %3820
        %3824 = vset.pattern.permute.xlu0 0
        %3825 = vperm.xlu0 %3824, %v2165
        %v3826 = vpop.permute.xlu0 %3825
        %3829 = vset.pattern.permute.xlu0 0
        %3830 = vperm.xlu0 %3829, %v2167
        %v3831 = vpop.permute.xlu0 %3830
        %3834 = vset.pattern.permute.xlu0 0
        %3835 = vperm.xlu0 %3834, %v2169
        %v3836 = vpop.permute.xlu0 %3835
        %3839 = vset.pattern.permute.xlu0 0
        %3840 = vperm.xlu0 %3839, %v2171
        %v3841 = vpop.permute.xlu0 %3840
        %3844 = vset.pattern.permute.xlu0 0
        %3845 = vperm.xlu0 %3844, %v2173
        %v3846 = vpop.permute.xlu0 %3845
        %3849 = vset.pattern.permute.xlu0 0
        %3850 = vperm.xlu0 %3849, %v2175
        %v3851 = vpop.permute.xlu0 %3850
        %3854 = vset.pattern.permute.xlu0 0
        %3855 = vperm.xlu0 %3854, %v2177
        %v3856 = vpop.permute.xlu0 %3855
        %3859 = vset.pattern.permute.xlu0 0
        %3860 = vperm.xlu0 %3859, %v2179
        %v3861 = vpop.permute.xlu0 %3860
        %3864 = vset.pattern.permute.xlu0 0
        %3865 = vperm.xlu0 %3864, %v2181
        %v3866 = vpop.permute.xlu0 %3865
        %3869 = vset.pattern.permute.xlu0 0
        %3870 = vperm.xlu0 %3869, %v2183
        %v3871 = vpop.permute.xlu0 %3870
        %3874 = vset.pattern.permute.xlu0 0
        %3875 = vperm.xlu0 %3874, %v2185
        %v3876 = vpop.permute.xlu0 %3875
        %3879 = vset.pattern.permute.xlu0 0
        %3880 = vperm.xlu0 %3879, %v2187
        %v3881 = vpop.permute.xlu0 %3880
        %3884 = vset.pattern.permute.xlu0 0
        %3885 = vperm.xlu0 %3884, %v2189
        %v3886 = vpop.permute.xlu0 %3885
        %3889 = vset.pattern.permute.xlu0 0
        %3890 = vperm.xlu0 %3889, %v2191
        %v3891 = vpop.permute.xlu0 %3890
        %3894 = vset.pattern.permute.xlu0 0
        %3895 = vperm.xlu0 %3894, %v2193
        %v3896 = vpop.permute.xlu0 %3895
        %3899 = vset.pattern.permute.xlu0 0
        %3900 = vperm.xlu0 %3899, %v2195
        %v3901 = vpop.permute.xlu0 %3900
        %3904 = vset.pattern.permute.xlu0 0
        %3905 = vperm.xlu0 %3904, %v2197
        %v3906 = vpop.permute.xlu0 %3905
        %3909 = vset.pattern.permute.xlu0 0
        %3910 = vperm.xlu0 %3909, %v2199
        %v3911 = vpop.permute.xlu0 %3910
        %3914 = vset.pattern.permute.xlu0 0
        %3915 = vperm.xlu0 %3914, %v2201
        %v3916 = vpop.permute.xlu0 %3915
        %3919 = vset.pattern.permute.xlu0 0
        %3920 = vperm.xlu0 %3919, %v2203
        %v3921 = vpop.permute.xlu0 %3920
        %3924 = vset.pattern.permute.xlu0 0
        %3925 = vperm.xlu0 %3924, %v2205
        %v3926 = vpop.permute.xlu0 %3925
        %3929 = vset.pattern.permute.xlu0 0
        %3930 = vperm.xlu0 %3929, %v2207
        %v3931 = vpop.permute.xlu0 %3930
        %3934 = vset.pattern.permute.xlu0 0
        %3935 = vperm.xlu0 %3934, %v2209
        %v3936 = vpop.permute.xlu0 %3935
        %v3938 = vmul.f32 %v2210, %v2501
        %v3939 = vmul.f32 %v2211, %v2506
        %v3940 = vmul.f32 %v2212, %v2511
        %v3941 = vmul.f32 %v2213, %v2516
        %v3942 = vmul.f32 %v2214, %v2521
        %v3943 = vmul.f32 %v2215, %v2526
        %v3944 = vmul.f32 %v2216, %v2531
        %v3945 = vmul.f32 %v2217, %v2536
        %v3946 = vmul.f32 %v2218, %v2541
        %v3947 = vmul.f32 %v2219, %v2546
        %v3948 = vmul.f32 %v2220, %v2551
        %v3949 = vmul.f32 %v2221, %v2556
        %v3950 = vmul.f32 %v2222, %v2561
        %v3951 = vmul.f32 %v2223, %v2566
        %v3952 = vmul.f32 %v2224, %v2571
        %v3953 = vmul.f32 %v2225, %v2576
        %v3954 = vmul.f32 %v2226, %v2581
        %v3955 = vmul.f32 %v2227, %v2586
        %v3956 = vmul.f32 %v2228, %v2591
        %v3957 = vmul.f32 %v2229, %v2596
        %v3958 = vmul.f32 %v2230, %v2601
        %v3959 = vmul.f32 %v2231, %v2606
        %v3960 = vmul.f32 %v2232, %v2611
        %v3961 = vmul.f32 %v2233, %v2616
        %v3962 = vmul.f32 %v2234, %v2621
        %v3963 = vmul.f32 %v2235, %v2626
        %v3964 = vmul.f32 %v2236, %v2631
        %v3965 = vmul.f32 %v2237, %v2636
        %v3966 = vmul.f32 %v2238, %v2641
        %v3967 = vmul.f32 %v2239, %v2646
        %v3968 = vmul.f32 %v2240, %v2651
        %v3969 = vmul.f32 %v2241, %v2656
        %v3970 = vmul.f32 %v2242, %v2661
        %v3971 = vmul.f32 %v2243, %v2666
        %v3972 = vmul.f32 %v2244, %v2671
        %v3973 = vmul.f32 %v2245, %v2676
        %v3974 = vmul.f32 %v2246, %v2681
        %v3975 = vmul.f32 %v2247, %v2686
        %v3976 = vmul.f32 %v2248, %v2691
        %v3977 = vmul.f32 %v2249, %v2696
        %v3978 = vmul.f32 %v2250, %v2701
        %v3979 = vmul.f32 %v2251, %v2706
        %v3980 = vmul.f32 %v2252, %v2711
        %v3981 = vmul.f32 %v2253, %v2716
        %v3982 = vmul.f32 %v2254, %v2721
        %v3983 = vmul.f32 %v2255, %v2726
        %v3984 = vmul.f32 %v2256, %v2731
        %v3985 = vmul.f32 %v2257, %v2736
        %v3986 = vmul.f32 %v2258, %v2741
        %v3987 = vmul.f32 %v2259, %v2746
        %v3988 = vmul.f32 %v2260, %v2751
        %v3989 = vmul.f32 %v2261, %v2756
        %v3990 = vmul.f32 %v2262, %v2761
        %v3991 = vmul.f32 %v2263, %v2766
        %v3992 = vmul.f32 %v2264, %v2771
        %v3993 = vmul.f32 %v2265, %v2776
        %v3994 = vmul.f32 %v2266, %v2781
        %v3995 = vmul.f32 %v2267, %v2786
        %v3996 = vmul.f32 %v2268, %v2791
        %v3997 = vmul.f32 %v2269, %v2796
        %v3998 = vmul.f32 %v2270, %v2801
        %v3999 = vmul.f32 %v2271, %v2806
        %v4000 = vmul.f32 %v2272, %v2811
        %v4001 = vmul.f32 %v2273, %v2816
        %v4002 = vmul.f32 %v2274, %v2821
        %v4003 = vmul.f32 %v2275, %v2826
        %v4004 = vmul.f32 %v2276, %v2831
        %v4005 = vmul.f32 %v2277, %v2836
        %v4006 = vmul.f32 %v2278, %v2841
        %v4007 = vmul.f32 %v2279, %v2846
        %v4008 = vmul.f32 %v2280, %v2851
        %v4009 = vmul.f32 %v2281, %v2856
        %v4010 = vmul.f32 %v2282, %v2861
        %v4011 = vmul.f32 %v2283, %v2866
        %v4012 = vmul.f32 %v2284, %v2871
        %v4013 = vmul.f32 %v2285, %v2876
        %v4014 = vmul.f32 %v2286, %v2881
        %v4015 = vmul.f32 %v2287, %v2886
        %v4016 = vmul.f32 %v2288, %v2891
        %v4017 = vmul.f32 %v2289, %v2896
        %v4018 = vmul.f32 %v2290, %v2901
        %v4019 = vmul.f32 %v2291, %v2906
        %v4020 = vmul.f32 %v2292, %v2911
        %v4021 = vmul.f32 %v2293, %v2916
        %v4022 = vmul.f32 %v2294, %v2921
        %v4023 = vmul.f32 %v2295, %v2926
        %v4024 = vmul.f32 %v2296, %v2931
        %v4025 = vmul.f32 %v2297, %v2936
        %v4026 = vmul.f32 %v2298, %v2941
        %v4027 = vmul.f32 %v2299, %v2946
        %v4028 = vmul.f32 %v2300, %v2951
        %v4029 = vmul.f32 %v2301, %v2956
        %v4030 = vmul.f32 %v2302, %v2961
        %v4031 = vmul.f32 %v2303, %v2966
        %v4032 = vmul.f32 %v2304, %v2971
        %v4033 = vmul.f32 %v2305, %v2976
        %v4034 = vmul.f32 %v2306, %v2981
        %v4035 = vmul.f32 %v2307, %v2986
        %v4036 = vmul.f32 %v2308, %v2991
        %v4037 = vmul.f32 %v2309, %v2996
        %v4038 = vmul.f32 %v2310, %v3001
        %v4039 = vmul.f32 %v2311, %v3006
        %v4040 = vmul.f32 %v2312, %v3011
        %v4041 = vmul.f32 %v2313, %v3016
        %v4042 = vmul.f32 %v2314, %v3021
        %v4043 = vmul.f32 %v2315, %v3026
        %v4044 = vmul.f32 %v2316, %v3031
        %v4045 = vmul.f32 %v2317, %v3036
        %v4046 = vmul.f32 %v2318, %v3041
        %v4047 = vmul.f32 %v2319, %v3046
        %v4048 = vmul.f32 %v2320, %v3051
        %v4049 = vmul.f32 %v2321, %v3056
        %v4050 = vmul.f32 %v2322, %v3061
        %v4051 = vmul.f32 %v2323, %v3066
        %v4052 = vmul.f32 %v2324, %v3071
        %v4053 = vmul.f32 %v2325, %v3076
        %v4054 = vmul.f32 %v2326, %v3081
        %v4055 = vmul.f32 %v2327, %v3086
        %v4056 = vmul.f32 %v2328, %v3091
        %v4057 = vmul.f32 %v2329, %v3096
        %v4058 = vmul.f32 %v2330, %v3101
        %v4059 = vmul.f32 %v2331, %v3106
        %v4060 = vmul.f32 %v2332, %v3111
        %v4061 = vmul.f32 %v2333, %v3116
        %v4062 = vmul.f32 %v2334, %v3121
        %v4063 = vmul.f32 %v2335, %v3126
        %v4064 = vmul.f32 %v2336, %v3131
        %v4065 = vmul.f32 %v2337, %v3136
        %v4066 = vmul.f32 %v2338, %v3141
        %v4067 = vmul.f32 %v2339, %v3146
        %v4068 = vmul.f32 %v2340, %v3151
        %v4069 = vmul.f32 %v2341, %v3156
        %v4070 = vmul.f32 %v2342, %v3161
        %v4071 = vmul.f32 %v2343, %v3166
        %v4072 = vmul.f32 %v2344, %v3171
        %v4073 = vmul.f32 %v2345, %v3176
        %v4074 = vmul.f32 %v2346, %v3181
        %v4075 = vmul.f32 %v2347, %v3186
        %v4076 = vmul.f32 %v2348, %v3191
        %v4077 = vmul.f32 %v2349, %v3196
        %v4078 = vmul.f32 %v2350, %v3201
        %v4079 = vmul.f32 %v2351, %v3206
        %v4080 = vmul.f32 %v2352, %v3211
        %v4081 = vmul.f32 %v2353, %v3216
        %v4082 = vmul.f32 %v2354, %v3221
        %v4083 = vmul.f32 %v2355, %v3226
        %v4084 = vmul.f32 %v2356, %v3231
        %v4085 = vmul.f32 %v2357, %v3236
        %v4086 = vmul.f32 %v2358, %v3241
        %v4087 = vmul.f32 %v2359, %v3246
        %v4088 = vmul.f32 %v2360, %v3251
        %v4089 = vmul.f32 %v2361, %v3256
        %v4090 = vmul.f32 %v2362, %v3261
        %v4091 = vmul.f32 %v2363, %v3266
        %v4092 = vmul.f32 %v2364, %v3271
        %v4093 = vmul.f32 %v2365, %v3276
        %v4094 = vmul.f32 %v2366, %v3281
        %v4095 = vmul.f32 %v2367, %v3286
        %v4096 = vmul.f32 %v2368, %v3291
        %v4097 = vmul.f32 %v2369, %v3296
        %v4098 = vmul.f32 %v2370, %v3301
        %v4099 = vmul.f32 %v2371, %v3306
        %v4100 = vmul.f32 %v2372, %v3311
        %v4101 = vmul.f32 %v2373, %v3316
        %v4102 = vmul.f32 %v2374, %v3321
        %v4103 = vmul.f32 %v2375, %v3326
        %v4104 = vmul.f32 %v2376, %v3331
        %v4105 = vmul.f32 %v2377, %v3336
        %v4106 = vmul.f32 %v2378, %v3341
        %v4107 = vmul.f32 %v2379, %v3346
        %v4108 = vmul.f32 %v2380, %v3351
        %v4109 = vmul.f32 %v2381, %v3356
        %v4110 = vmul.f32 %v2382, %v3361
        %v4111 = vmul.f32 %v2383, %v3366
        %v4112 = vmul.f32 %v2384, %v3371
        %v4113 = vmul.f32 %v2385, %v3376
        %v4114 = vmul.f32 %v2386, %v3381
        %v4115 = vmul.f32 %v2387, %v3386
        %v4116 = vmul.f32 %v2388, %v3391
        %v4117 = vmul.f32 %v2389, %v3396
        %v4118 = vmul.f32 %v2390, %v3401
        %v4119 = vmul.f32 %v2391, %v3406
        %v4120 = vmul.f32 %v2392, %v3411
        %v4121 = vmul.f32 %v2393, %v3416
        %v4122 = vmul.f32 %v2394, %v3421
        %v4123 = vmul.f32 %v2395, %v3426
        %v4124 = vmul.f32 %v2396, %v3431
        %v4125 = vmul.f32 %v2397, %v3436
        %v4126 = vmul.f32 %v2398, %v3441
        %v4127 = vmul.f32 %v2399, %v3446
        %v4128 = vmul.f32 %v2400, %v3451
        %v4129 = vmul.f32 %v2401, %v3456
        %v4130 = vmul.f32 %v2402, %v3461
        %v4131 = vmul.f32 %v2403, %v3466
        %v4132 = vmul.f32 %v2404, %v3471
        %v4133 = vmul.f32 %v2405, %v3476
        %v4134 = vmul.f32 %v2406, %v3481
        %v4135 = vmul.f32 %v2407, %v3486
        %v4136 = vmul.f32 %v2408, %v3491
        %v4137 = vmul.f32 %v2409, %v3496
        %v4138 = vmul.f32 %v2410, %v3501
        %v4139 = vmul.f32 %v2411, %v3506
        %v4140 = vmul.f32 %v2412, %v3511
        %v4141 = vmul.f32 %v2413, %v3516
        %v4142 = vmul.f32 %v2414, %v3521
        %v4143 = vmul.f32 %v2415, %v3526
        %v4144 = vmul.f32 %v2416, %v3531
        %v4145 = vmul.f32 %v2417, %v3536
        %v4146 = vmul.f32 %v2418, %v3541
        %v4147 = vmul.f32 %v2419, %v3546
        %v4148 = vmul.f32 %v2420, %v3551
        %v4149 = vmul.f32 %v2421, %v3556
        %v4150 = vmul.f32 %v2422, %v3561
        %v4151 = vmul.f32 %v2423, %v3566
        %v4152 = vmul.f32 %v2424, %v3571
        %v4153 = vmul.f32 %v2425, %v3576
        %v4154 = vmul.f32 %v2426, %v3581
        %v4155 = vmul.f32 %v2427, %v3586
        %v4156 = vmul.f32 %v2428, %v3591
        %v4157 = vmul.f32 %v2429, %v3596
        %v4158 = vmul.f32 %v2430, %v3601
        %v4159 = vmul.f32 %v2431, %v3606
        %v4160 = vmul.f32 %v2432, %v3611
        %v4161 = vmul.f32 %v2433, %v3616
        %v4162 = vmul.f32 %v2434, %v3621
        %v4163 = vmul.f32 %v2435, %v3626
        %v4164 = vmul.f32 %v2436, %v3631
        %v4165 = vmul.f32 %v2437, %v3636
        %v4166 = vmul.f32 %v2438, %v3641
        %v4167 = vmul.f32 %v2439, %v3646
        %v4168 = vmul.f32 %v2440, %v3651
        %v4169 = vmul.f32 %v2441, %v3656
        %v4170 = vmul.f32 %v2442, %v3661
        %v4171 = vmul.f32 %v2443, %v3666
        %v4172 = vmul.f32 %v2444, %v3671
        %v4173 = vmul.f32 %v2445, %v3676
        %v4174 = vmul.f32 %v2446, %v3681
        %v4175 = vmul.f32 %v2447, %v3686
        %v4176 = vmul.f32 %v2448, %v3691
        %v4177 = vmul.f32 %v2449, %v3696
        %v4178 = vmul.f32 %v2450, %v3701
        %v4179 = vmul.f32 %v2451, %v3706
        %v4180 = vmul.f32 %v2452, %v3711
        %v4181 = vmul.f32 %v2453, %v3716
        %v4182 = vmul.f32 %v2454, %v3721
        %v4183 = vmul.f32 %v2455, %v3726
        %v4184 = vmul.f32 %v2456, %v3731
        %v4185 = vmul.f32 %v2457, %v3736
        %v4186 = vmul.f32 %v2458, %v3741
        %v4187 = vmul.f32 %v2459, %v3746
        %v4188 = vmul.f32 %v2460, %v3751
        %v4189 = vmul.f32 %v2461, %v3756
        %v4190 = vmul.f32 %v2462, %v3761
        %v4191 = vmul.f32 %v2463, %v3766
        %v4192 = vmul.f32 %v2464, %v3771
        %v4193 = vmul.f32 %v2465, %v3776
        %v4194 = vmul.f32 %v2466, %v3781
        %v4195 = vmul.f32 %v2467, %v3786
        %v4196 = vmul.f32 %v2468, %v3791
        %v4197 = vmul.f32 %v2469, %v3796
        %v4198 = vmul.f32 %v2470, %v3801
        %v4199 = vmul.f32 %v2471, %v3806
        %v4200 = vmul.f32 %v2472, %v3811
        %v4201 = vmul.f32 %v2473, %v3816
        %v4202 = vmul.f32 %v2474, %v3821
        %v4203 = vmul.f32 %v2475, %v3826
        %v4204 = vmul.f32 %v2476, %v3831
        %v4205 = vmul.f32 %v2477, %v3836
        %v4206 = vmul.f32 %v2478, %v3841
        %v4207 = vmul.f32 %v2479, %v3846
        %v4208 = vmul.f32 %v2480, %v3851
        %v4209 = vmul.f32 %v2481, %v3856
        %v4210 = vmul.f32 %v2482, %v3861
        %v4211 = vmul.f32 %v2483, %v3866
        %v4212 = vmul.f32 %v2484, %v3871
        %v4213 = vmul.f32 %v2485, %v3876
        %v4214 = vmul.f32 %v2486, %v3881
        %v4215 = vmul.f32 %v2487, %v3886
        %v4216 = vmul.f32 %v2488, %v3891
        %v4217 = vmul.f32 %v2489, %v3896
        %v4218 = vmul.f32 %v2490, %v3901
        %v4219 = vmul.f32 %v2491, %v3906
        %v4220 = vmul.f32 %v2492, %v3911
        %v4221 = vmul.f32 %v2493, %v3916
        %v4222 = vmul.f32 %v2494, %v3921
        %v4223 = vmul.f32 %v2495, %v3926
        %v4224 = vmul.f32 %v2496, %v3931
        %v4225 = vmul.f32 %v2497, %v3936
        %v4226 = vld [vmem:[%s164] sm:$0xff]
        %v4227 = vld [vmem:[%s164 + $0x8] sm:$0xff]
        %v4228 = vld [vmem:[%s164 + $0x10] sm:$0xff]
        %v4229 = vld [vmem:[%s164 + $0x18] sm:$0xff]
        %v4230 = vld [vmem:[%s164 + $0x20] sm:$0xff]
        %v4231 = vld [vmem:[%s164 + $0x28] sm:$0xff]
        %v4232 = vld [vmem:[%s164 + $0x30] sm:$0xff]
        %v4233 = vld [vmem:[%s164 + $0x38] sm:$0xff]
        %v4234 = vld [vmem:[%s164 + $0x40] sm:$0xff]
        %v4235 = vld [vmem:[%s164 + $0x48] sm:$0xff]
        %v4236 = vld [vmem:[%s164 + $0x50] sm:$0xff]
        %v4237 = vld [vmem:[%s164 + $0x58] sm:$0xff]
        %v4238 = vld [vmem:[%s164 + $0x60] sm:$0xff]
        %v4239 = vld [vmem:[%s164 + $0x68] sm:$0xff]
        %v4240 = vld [vmem:[%s164 + $0x70] sm:$0xff]
        %v4241 = vld [vmem:[%s164 + $0x78] sm:$0xff]
        %v4242 = vld [vmem:[%s164 + $0x80] sm:$0xff]
        %v4243 = vld [vmem:[%s164 + $0x88] sm:$0xff]
        %v4244 = vld [vmem:[%s164 + $0x90] sm:$0xff]
        %v4245 = vld [vmem:[%s164 + $0x98] sm:$0xff]
        %v4246 = vld [vmem:[%s164 + $0xa0] sm:$0xff]
        %v4247 = vld [vmem:[%s164 + $0xa8] sm:$0xff]
        %v4248 = vld [vmem:[%s164 + $0xb0] sm:$0xff]
        %v4249 = vld [vmem:[%s164 + $0xb8] sm:$0xff]
        %v4250 = vld [vmem:[%s164 + $0xc0] sm:$0xff]
        %v4251 = vld [vmem:[%s164 + $0xc8] sm:$0xff]
        %v4252 = vld [vmem:[%s164 + $0xd0] sm:$0xff]
        %v4253 = vld [vmem:[%s164 + $0xd8] sm:$0xff]
        %v4254 = vld [vmem:[%s164 + $0xe0] sm:$0xff]
        %v4255 = vld [vmem:[%s164 + $0xe8] sm:$0xff]
        %v4256 = vld [vmem:[%s164 + $0xf0] sm:$0xff]
        %v4257 = vld [vmem:[%s164 + $0xf8] sm:$0xff]
        %v4258 = vld [vmem:[%s164 + $0x100] sm:$0xff]
        %v4259 = vld [vmem:[%s164 + $0x108] sm:$0xff]
        %v4260 = vld [vmem:[%s164 + $0x110] sm:$0xff]
        %v4261 = vld [vmem:[%s164 + $0x118] sm:$0xff]
        %v4262 = vld [vmem:[%s164 + $0x120] sm:$0xff]
        %v4263 = vld [vmem:[%s164 + $0x128] sm:$0xff]
        %v4264 = vld [vmem:[%s164 + $0x130] sm:$0xff]
        %v4265 = vld [vmem:[%s164 + $0x138] sm:$0xff]
        %v4266 = vld [vmem:[%s164 + $0x140] sm:$0xff]
        %v4267 = vld [vmem:[%s164 + $0x148] sm:$0xff]
        %v4268 = vld [vmem:[%s164 + $0x150] sm:$0xff]
        %v4269 = vld [vmem:[%s164 + $0x158] sm:$0xff]
        %v4270 = vld [vmem:[%s164 + $0x160] sm:$0xff]
        %v4271 = vld [vmem:[%s164 + $0x168] sm:$0xff]
        %v4272 = vld [vmem:[%s164 + $0x170] sm:$0xff]
        %v4273 = vld [vmem:[%s164 + $0x178] sm:$0xff]
        %v4274 = vld [vmem:[%s164 + $0x180] sm:$0xff]
        %v4275 = vld [vmem:[%s164 + $0x188] sm:$0xff]
        %v4276 = vld [vmem:[%s164 + $0x190] sm:$0xff]
        %v4277 = vld [vmem:[%s164 + $0x198] sm:$0xff]
        %v4278 = vld [vmem:[%s164 + $0x1a0] sm:$0xff]
        %v4279 = vld [vmem:[%s164 + $0x1a8] sm:$0xff]
        %v4280 = vld [vmem:[%s164 + $0x1b0] sm:$0xff]
        %v4281 = vld [vmem:[%s164 + $0x1b8] sm:$0xff]
        %v4282 = vld [vmem:[%s164 + $0x1c0] sm:$0xff]
        %v4283 = vld [vmem:[%s164 + $0x1c8] sm:$0xff]
        %v4284 = vld [vmem:[%s164 + $0x1d0] sm:$0xff]
        %v4285 = vld [vmem:[%s164 + $0x1d8] sm:$0xff]
        %v4286 = vld [vmem:[%s164 + $0x1e0] sm:$0xff]
        %v4287 = vld [vmem:[%s164 + $0x1e8] sm:$0xff]
        %v4288 = vld [vmem:[%s164 + $0x1f0] sm:$0xff]
        %v4289 = vld [vmem:[%s164 + $0x1f8] sm:$0xff]
        %v4290 = vld [vmem:[%s164 + $0x200] sm:$0xff]
        %v4291 = vld [vmem:[%s164 + $0x208] sm:$0xff]
        %v4292 = vld [vmem:[%s164 + $0x210] sm:$0xff]
        %v4293 = vld [vmem:[%s164 + $0x218] sm:$0xff]
        %v4294 = vld [vmem:[%s164 + $0x220] sm:$0xff]
        %v4295 = vld [vmem:[%s164 + $0x228] sm:$0xff]
        %v4296 = vld [vmem:[%s164 + $0x230] sm:$0xff]
        %v4297 = vld [vmem:[%s164 + $0x238] sm:$0xff]
        %v4298 = vld [vmem:[%s164 + $0x240] sm:$0xff]
        %v4299 = vld [vmem:[%s164 + $0x248] sm:$0xff]
        %v4300 = vld [vmem:[%s164 + $0x250] sm:$0xff]
        %v4301 = vld [vmem:[%s164 + $0x258] sm:$0xff]
        %v4302 = vld [vmem:[%s164 + $0x260] sm:$0xff]
        %v4303 = vld [vmem:[%s164 + $0x268] sm:$0xff]
        %v4304 = vld [vmem:[%s164 + $0x270] sm:$0xff]
        %v4305 = vld [vmem:[%s164 + $0x278] sm:$0xff]
        %v4306 = vld [vmem:[%s164 + $0x280] sm:$0xff]
        %v4307 = vld [vmem:[%s164 + $0x288] sm:$0xff]
        %v4308 = vld [vmem:[%s164 + $0x290] sm:$0xff]
        %v4309 = vld [vmem:[%s164 + $0x298] sm:$0xff]
        %v4310 = vld [vmem:[%s164 + $0x2a0] sm:$0xff]
        %v4311 = vld [vmem:[%s164 + $0x2a8] sm:$0xff]
        %v4312 = vld [vmem:[%s164 + $0x2b0] sm:$0xff]
        %v4313 = vld [vmem:[%s164 + $0x2b8] sm:$0xff]
        %v4314 = vld [vmem:[%s164 + $0x2c0] sm:$0xff]
        %v4315 = vld [vmem:[%s164 + $0x2c8] sm:$0xff]
        %v4316 = vld [vmem:[%s164 + $0x2d0] sm:$0xff]
        %v4317 = vld [vmem:[%s164 + $0x2d8] sm:$0xff]
        %v4318 = vld [vmem:[%s164 + $0x2e0] sm:$0xff]
        %v4319 = vld [vmem:[%s164 + $0x2e8] sm:$0xff]
        %v4320 = vld [vmem:[%s164 + $0x2f0] sm:$0xff]
        %v4321 = vld [vmem:[%s164 + $0x2f8] sm:$0xff]
        %v4322 = vld [vmem:[%s164 + $0x300] sm:$0xff]
        %v4323 = vld [vmem:[%s164 + $0x308] sm:$0xff]
        %v4324 = vld [vmem:[%s164 + $0x310] sm:$0xff]
        %v4325 = vld [vmem:[%s164 + $0x318] sm:$0xff]
        %v4326 = vld [vmem:[%s164 + $0x320] sm:$0xff]
        %v4327 = vld [vmem:[%s164 + $0x328] sm:$0xff]
        %v4328 = vld [vmem:[%s164 + $0x330] sm:$0xff]
        %v4329 = vld [vmem:[%s164 + $0x338] sm:$0xff]
        %v4330 = vld [vmem:[%s164 + $0x340] sm:$0xff]
        %v4331 = vld [vmem:[%s164 + $0x348] sm:$0xff]
        %v4332 = vld [vmem:[%s164 + $0x350] sm:$0xff]
        %v4333 = vld [vmem:[%s164 + $0x358] sm:$0xff]
        %v4334 = vld [vmem:[%s164 + $0x360] sm:$0xff]
        %v4335 = vld [vmem:[%s164 + $0x368] sm:$0xff]
        %v4336 = vld [vmem:[%s164 + $0x370] sm:$0xff]
        %v4337 = vld [vmem:[%s164 + $0x378] sm:$0xff]
        %v4338 = vld [vmem:[%s164 + $0x380] sm:$0xff]
        %v4339 = vld [vmem:[%s164 + $0x388] sm:$0xff]
        %v4340 = vld [vmem:[%s164 + $0x390] sm:$0xff]
        %v4341 = vld [vmem:[%s164 + $0x398] sm:$0xff]
        %v4342 = vld [vmem:[%s164 + $0x3a0] sm:$0xff]
        %v4343 = vld [vmem:[%s164 + $0x3a8] sm:$0xff]
        %v4344 = vld [vmem:[%s164 + $0x3b0] sm:$0xff]
        %v4345 = vld [vmem:[%s164 + $0x3b8] sm:$0xff]
        %v4346 = vld [vmem:[%s164 + $0x3c0] sm:$0xff]
        %v4347 = vld [vmem:[%s164 + $0x3c8] sm:$0xff]
        %v4348 = vld [vmem:[%s164 + $0x3d0] sm:$0xff]
        %v4349 = vld [vmem:[%s164 + $0x3d8] sm:$0xff]
        %v4350 = vld [vmem:[%s164 + $0x3e0] sm:$0xff]
        %v4351 = vld [vmem:[%s164 + $0x3e8] sm:$0xff]
        %v4352 = vld [vmem:[%s164 + $0x3f0] sm:$0xff]
        %v4353 = vld [vmem:[%s164 + $0x3f8] sm:$0xff]
        %v4354 = vld [vmem:[%s164 + $0x400] sm:$0xff]
        %v4355 = vld [vmem:[%s164 + $0x408] sm:$0xff]
        %v4356 = vld [vmem:[%s164 + $0x410] sm:$0xff]
        %v4357 = vld [vmem:[%s164 + $0x418] sm:$0xff]
        %v4358 = vld [vmem:[%s164 + $0x420] sm:$0xff]
        %v4359 = vld [vmem:[%s164 + $0x428] sm:$0xff]
        %v4360 = vld [vmem:[%s164 + $0x430] sm:$0xff]
        %v4361 = vld [vmem:[%s164 + $0x438] sm:$0xff]
        %v4362 = vld [vmem:[%s164 + $0x440] sm:$0xff]
        %v4363 = vld [vmem:[%s164 + $0x448] sm:$0xff]
        %v4364 = vld [vmem:[%s164 + $0x450] sm:$0xff]
        %v4365 = vld [vmem:[%s164 + $0x458] sm:$0xff]
        %v4366 = vld [vmem:[%s164 + $0x460] sm:$0xff]
        %v4367 = vld [vmem:[%s164 + $0x468] sm:$0xff]
        %v4368 = vld [vmem:[%s164 + $0x470] sm:$0xff]
        %v4369 = vld [vmem:[%s164 + $0x478] sm:$0xff]
        %v4370 = vld [vmem:[%s164 + $0x480] sm:$0xff]
        %v4371 = vld [vmem:[%s164 + $0x488] sm:$0xff]
        %v4372 = vld [vmem:[%s164 + $0x490] sm:$0xff]
        %v4373 = vld [vmem:[%s164 + $0x498] sm:$0xff]
        %v4374 = vld [vmem:[%s164 + $0x4a0] sm:$0xff]
        %v4375 = vld [vmem:[%s164 + $0x4a8] sm:$0xff]
        %v4376 = vld [vmem:[%s164 + $0x4b0] sm:$0xff]
        %v4377 = vld [vmem:[%s164 + $0x4b8] sm:$0xff]
        %v4378 = vld [vmem:[%s164 + $0x4c0] sm:$0xff]
        %v4379 = vld [vmem:[%s164 + $0x4c8] sm:$0xff]
        %v4380 = vld [vmem:[%s164 + $0x4d0] sm:$0xff]
        %v4381 = vld [vmem:[%s164 + $0x4d8] sm:$0xff]
        %v4382 = vld [vmem:[%s164 + $0x4e0] sm:$0xff]
        %v4383 = vld [vmem:[%s164 + $0x4e8] sm:$0xff]
        %v4384 = vld [vmem:[%s164 + $0x4f0] sm:$0xff]
        %v4385 = vld [vmem:[%s164 + $0x4f8] sm:$0xff]
        %v4386 = vld [vmem:[%s164 + $0x500] sm:$0xff]
        %v4387 = vld [vmem:[%s164 + $0x508] sm:$0xff]
        %v4388 = vld [vmem:[%s164 + $0x510] sm:$0xff]
        %v4389 = vld [vmem:[%s164 + $0x518] sm:$0xff]
        %v4390 = vld [vmem:[%s164 + $0x520] sm:$0xff]
        %v4391 = vld [vmem:[%s164 + $0x528] sm:$0xff]
        %v4392 = vld [vmem:[%s164 + $0x530] sm:$0xff]
        %v4393 = vld [vmem:[%s164 + $0x538] sm:$0xff]
        %v4394 = vld [vmem:[%s164 + $0x540] sm:$0xff]
        %v4395 = vld [vmem:[%s164 + $0x548] sm:$0xff]
        %v4396 = vld [vmem:[%s164 + $0x550] sm:$0xff]
        %v4397 = vld [vmem:[%s164 + $0x558] sm:$0xff]
        %v4398 = vld [vmem:[%s164 + $0x560] sm:$0xff]
        %v4399 = vld [vmem:[%s164 + $0x568] sm:$0xff]
        %v4400 = vld [vmem:[%s164 + $0x570] sm:$0xff]
        %v4401 = vld [vmem:[%s164 + $0x578] sm:$0xff]
        %v4402 = vld [vmem:[%s164 + $0x580] sm:$0xff]
        %v4403 = vld [vmem:[%s164 + $0x588] sm:$0xff]
        %v4404 = vld [vmem:[%s164 + $0x590] sm:$0xff]
        %v4405 = vld [vmem:[%s164 + $0x598] sm:$0xff]
        %v4406 = vld [vmem:[%s164 + $0x5a0] sm:$0xff]
        %v4407 = vld [vmem:[%s164 + $0x5a8] sm:$0xff]
        %v4408 = vld [vmem:[%s164 + $0x5b0] sm:$0xff]
        %v4409 = vld [vmem:[%s164 + $0x5b8] sm:$0xff]
        %v4410 = vld [vmem:[%s164 + $0x5c0] sm:$0xff]
        %v4411 = vld [vmem:[%s164 + $0x5c8] sm:$0xff]
        %v4412 = vld [vmem:[%s164 + $0x5d0] sm:$0xff]
        %v4413 = vld [vmem:[%s164 + $0x5d8] sm:$0xff]
        %v4414 = vld [vmem:[%s164 + $0x5e0] sm:$0xff]
        %v4415 = vld [vmem:[%s164 + $0x5e8] sm:$0xff]
        %v4416 = vld [vmem:[%s164 + $0x5f0] sm:$0xff]
        %v4417 = vld [vmem:[%s164 + $0x5f8] sm:$0xff]
        %v4418 = vld [vmem:[%s164 + $0x600] sm:$0xff]
        %v4419 = vld [vmem:[%s164 + $0x608] sm:$0xff]
        %v4420 = vld [vmem:[%s164 + $0x610] sm:$0xff]
        %v4421 = vld [vmem:[%s164 + $0x618] sm:$0xff]
        %v4422 = vld [vmem:[%s164 + $0x620] sm:$0xff]
        %v4423 = vld [vmem:[%s164 + $0x628] sm:$0xff]
        %v4424 = vld [vmem:[%s164 + $0x630] sm:$0xff]
        %v4425 = vld [vmem:[%s164 + $0x638] sm:$0xff]
        %v4426 = vld [vmem:[%s164 + $0x640] sm:$0xff]
        %v4427 = vld [vmem:[%s164 + $0x648] sm:$0xff]
        %v4428 = vld [vmem:[%s164 + $0x650] sm:$0xff]
        %v4429 = vld [vmem:[%s164 + $0x658] sm:$0xff]
        %v4430 = vld [vmem:[%s164 + $0x660] sm:$0xff]
        %v4431 = vld [vmem:[%s164 + $0x668] sm:$0xff]
        %v4432 = vld [vmem:[%s164 + $0x670] sm:$0xff]
        %v4433 = vld [vmem:[%s164 + $0x678] sm:$0xff]
        %v4434 = vld [vmem:[%s164 + $0x680] sm:$0xff]
        %v4435 = vld [vmem:[%s164 + $0x688] sm:$0xff]
        %v4436 = vld [vmem:[%s164 + $0x690] sm:$0xff]
        %v4437 = vld [vmem:[%s164 + $0x698] sm:$0xff]
        %v4438 = vld [vmem:[%s164 + $0x6a0] sm:$0xff]
        %v4439 = vld [vmem:[%s164 + $0x6a8] sm:$0xff]
        %v4440 = vld [vmem:[%s164 + $0x6b0] sm:$0xff]
        %v4441 = vld [vmem:[%s164 + $0x6b8] sm:$0xff]
        %v4442 = vld [vmem:[%s164 + $0x6c0] sm:$0xff]
        %v4443 = vld [vmem:[%s164 + $0x6c8] sm:$0xff]
        %v4444 = vld [vmem:[%s164 + $0x6d0] sm:$0xff]
        %v4445 = vld [vmem:[%s164 + $0x6d8] sm:$0xff]
        %v4446 = vld [vmem:[%s164 + $0x6e0] sm:$0xff]
        %v4447 = vld [vmem:[%s164 + $0x6e8] sm:$0xff]
        %v4448 = vld [vmem:[%s164 + $0x6f0] sm:$0xff]
        %v4449 = vld [vmem:[%s164 + $0x6f8] sm:$0xff]
        %v4450 = vld [vmem:[%s164 + $0x700] sm:$0xff]
        %v4451 = vld [vmem:[%s164 + $0x708] sm:$0xff]
        %v4452 = vld [vmem:[%s164 + $0x710] sm:$0xff]
        %v4453 = vld [vmem:[%s164 + $0x718] sm:$0xff]
        %v4454 = vld [vmem:[%s164 + $0x720] sm:$0xff]
        %v4455 = vld [vmem:[%s164 + $0x728] sm:$0xff]
        %v4456 = vld [vmem:[%s164 + $0x730] sm:$0xff]
        %v4457 = vld [vmem:[%s164 + $0x738] sm:$0xff]
        %v4458 = vld [vmem:[%s164 + $0x740] sm:$0xff]
        %v4459 = vld [vmem:[%s164 + $0x748] sm:$0xff]
        %v4460 = vld [vmem:[%s164 + $0x750] sm:$0xff]
        %v4461 = vld [vmem:[%s164 + $0x758] sm:$0xff]
        %v4462 = vld [vmem:[%s164 + $0x760] sm:$0xff]
        %v4463 = vld [vmem:[%s164 + $0x768] sm:$0xff]
        %v4464 = vld [vmem:[%s164 + $0x770] sm:$0xff]
        %v4465 = vld [vmem:[%s164 + $0x778] sm:$0xff]
        %v4466 = vld [vmem:[%s164 + $0x780] sm:$0xff]
        %v4467 = vld [vmem:[%s164 + $0x788] sm:$0xff]
        %v4468 = vld [vmem:[%s164 + $0x790] sm:$0xff]
        %v4469 = vld [vmem:[%s164 + $0x798] sm:$0xff]
        %v4470 = vld [vmem:[%s164 + $0x7a0] sm:$0xff]
        %v4471 = vld [vmem:[%s164 + $0x7a8] sm:$0xff]
        %v4472 = vld [vmem:[%s164 + $0x7b0] sm:$0xff]
        %v4473 = vld [vmem:[%s164 + $0x7b8] sm:$0xff]
        %v4474 = vld [vmem:[%s164 + $0x7c0] sm:$0xff]
        %v4475 = vld [vmem:[%s164 + $0x7c8] sm:$0xff]
        %v4476 = vld [vmem:[%s164 + $0x7d0] sm:$0xff]
        %v4477 = vld [vmem:[%s164 + $0x7d8] sm:$0xff]
        %v4478 = vld [vmem:[%s164 + $0x7e0] sm:$0xff]
        %v4479 = vld [vmem:[%s164 + $0x7e8] sm:$0xff]
        %v4480 = vld [vmem:[%s164 + $0x7f0] sm:$0xff]
        %v4481 = vld [vmem:[%s164 + $0x7f8] sm:$0xff]
        %v4482 = vld [vmem:[%s164 + $0x800] sm:$0xff]
        %v4483 = vld [vmem:[%s164 + $0x808] sm:$0xff]
        %v4484 = vld [vmem:[%s164 + $0x810] sm:$0xff]
        %v4485 = vld [vmem:[%s164 + $0x818] sm:$0xff]
        %v4486 = vld [vmem:[%s164 + $0x820] sm:$0xff]
        %v4487 = vld [vmem:[%s164 + $0x828] sm:$0xff]
        %v4488 = vld [vmem:[%s164 + $0x830] sm:$0xff]
        %v4489 = vld [vmem:[%s164 + $0x838] sm:$0xff]
        %v4490 = vld [vmem:[%s164 + $0x840] sm:$0xff]
        %v4491 = vld [vmem:[%s164 + $0x848] sm:$0xff]
        %v4492 = vld [vmem:[%s164 + $0x850] sm:$0xff]
        %v4493 = vld [vmem:[%s164 + $0x858] sm:$0xff]
        %v4494 = vld [vmem:[%s164 + $0x860] sm:$0xff]
        %v4495 = vld [vmem:[%s164 + $0x868] sm:$0xff]
        %v4496 = vld [vmem:[%s164 + $0x870] sm:$0xff]
        %v4497 = vld [vmem:[%s164 + $0x878] sm:$0xff]
        %v4498 = vld [vmem:[%s164 + $0x880] sm:$0xff]
        %v4499 = vld [vmem:[%s164 + $0x888] sm:$0xff]
        %v4500 = vld [vmem:[%s164 + $0x890] sm:$0xff]
        %v4501 = vld [vmem:[%s164 + $0x898] sm:$0xff]
        %v4502 = vld [vmem:[%s164 + $0x8a0] sm:$0xff]
        %v4503 = vld [vmem:[%s164 + $0x8a8] sm:$0xff]
        %v4504 = vld [vmem:[%s164 + $0x8b0] sm:$0xff]
        %v4505 = vld [vmem:[%s164 + $0x8b8] sm:$0xff]
        %v4506 = vld [vmem:[%s164 + $0x8c0] sm:$0xff]
        %v4507 = vld [vmem:[%s164 + $0x8c8] sm:$0xff]
        %v4508 = vld [vmem:[%s164 + $0x8d0] sm:$0xff]
        %v4509 = vld [vmem:[%s164 + $0x8d8] sm:$0xff]
        %v4510 = vld [vmem:[%s164 + $0x8e0] sm:$0xff]
        %v4511 = vld [vmem:[%s164 + $0x8e8] sm:$0xff]
        %v4512 = vld [vmem:[%s164 + $0x8f0] sm:$0xff]
        %v4513 = vld [vmem:[%s164 + $0x8f8] sm:$0xff]
        %v4514 = vld [vmem:[%s164 + $0x900] sm:$0xff]
        %v4515 = vld [vmem:[%s164 + $0x908] sm:$0xff]
        %v4516 = vld [vmem:[%s164 + $0x910] sm:$0xff]
        %v4517 = vld [vmem:[%s164 + $0x918] sm:$0xff]
        %v4518 = vld [vmem:[%s164 + $0x920] sm:$0xff]
        %v4519 = vld [vmem:[%s164 + $0x928] sm:$0xff]
        %v4520 = vld [vmem:[%s164 + $0x930] sm:$0xff]
        %v4521 = vld [vmem:[%s164 + $0x938] sm:$0xff]
        %v4522 = vld [vmem:[%s164 + $0x940] sm:$0xff]
        %v4523 = vld [vmem:[%s164 + $0x948] sm:$0xff]
        %v4524 = vld [vmem:[%s164 + $0x950] sm:$0xff]
        %v4525 = vld [vmem:[%s164 + $0x958] sm:$0xff]
        %v4526 = vld [vmem:[%s164 + $0x960] sm:$0xff]
        %v4527 = vld [vmem:[%s164 + $0x968] sm:$0xff]
        %v4528 = vld [vmem:[%s164 + $0x970] sm:$0xff]
        %v4529 = vld [vmem:[%s164 + $0x978] sm:$0xff]
        %v4530 = vld [vmem:[%s164 + $0x980] sm:$0xff]
        %v4531 = vld [vmem:[%s164 + $0x988] sm:$0xff]
        %v4532 = vld [vmem:[%s164 + $0x990] sm:$0xff]
        %v4533 = vld [vmem:[%s164 + $0x998] sm:$0xff]
        %v4534 = vld [vmem:[%s164 + $0x9a0] sm:$0xff]
        %v4535 = vld [vmem:[%s164 + $0x9a8] sm:$0xff]
        %v4536 = vld [vmem:[%s164 + $0x9b0] sm:$0xff]
        %v4537 = vld [vmem:[%s164 + $0x9b8] sm:$0xff]
        %v4538 = vld [vmem:[%s164 + $0x9c0] sm:$0xff]
        %v4539 = vld [vmem:[%s164 + $0x9c8] sm:$0xff]
        %v4540 = vld [vmem:[%s164 + $0x9d0] sm:$0xff]
        %v4541 = vld [vmem:[%s164 + $0x9d8] sm:$0xff]
        %v4542 = vld [vmem:[%s164 + $0x9e0] sm:$0xff]
        %v4543 = vld [vmem:[%s164 + $0x9e8] sm:$0xff]
        %v4544 = vld [vmem:[%s164 + $0x9f0] sm:$0xff]
        %v4545 = vld [vmem:[%s164 + $0x9f8] sm:$0xff]
        %v4546 = vld [vmem:[%s164 + $0xa00] sm:$0xff]
        %v4547 = vld [vmem:[%s164 + $0xa08] sm:$0xff]
        %v4548 = vld [vmem:[%s164 + $0xa10] sm:$0xff]
        %v4549 = vld [vmem:[%s164 + $0xa18] sm:$0xff]
        %v4550 = vld [vmem:[%s164 + $0xa20] sm:$0xff]
        %v4551 = vld [vmem:[%s164 + $0xa28] sm:$0xff]
        %v4552 = vld [vmem:[%s164 + $0xa30] sm:$0xff]
        %v4553 = vld [vmem:[%s164 + $0xa38] sm:$0xff]
        %v4554 = vld [vmem:[%s164 + $0xa40] sm:$0xff]
        %v4555 = vld [vmem:[%s164 + $0xa48] sm:$0xff]
        %v4556 = vld [vmem:[%s164 + $0xa50] sm:$0xff]
        %v4557 = vld [vmem:[%s164 + $0xa58] sm:$0xff]
        %v4558 = vld [vmem:[%s164 + $0xa60] sm:$0xff]
        %v4559 = vld [vmem:[%s164 + $0xa68] sm:$0xff]
        %v4560 = vld [vmem:[%s164 + $0xa70] sm:$0xff]
        %v4561 = vld [vmem:[%s164 + $0xa78] sm:$0xff]
        %v4562 = vld [vmem:[%s164 + $0xa80] sm:$0xff]
        %v4563 = vld [vmem:[%s164 + $0xa88] sm:$0xff]
        %v4564 = vld [vmem:[%s164 + $0xa90] sm:$0xff]
        %v4565 = vld [vmem:[%s164 + $0xa98] sm:$0xff]
        %v4566 = vld [vmem:[%s164 + $0xaa0] sm:$0xff]
        %v4567 = vld [vmem:[%s164 + $0xaa8] sm:$0xff]
        %v4568 = vld [vmem:[%s164 + $0xab0] sm:$0xff]
        %v4569 = vld [vmem:[%s164 + $0xab8] sm:$0xff]
        %v4570 = vld [vmem:[%s164 + $0xac0] sm:$0xff]
        %v4571 = vld [vmem:[%s164 + $0xac8] sm:$0xff]
        %v4572 = vld [vmem:[%s164 + $0xad0] sm:$0xff]
        %v4573 = vld [vmem:[%s164 + $0xad8] sm:$0xff]
        %v4574 = vld [vmem:[%s164 + $0xae0] sm:$0xff]
        %v4575 = vld [vmem:[%s164 + $0xae8] sm:$0xff]
        %v4576 = vld [vmem:[%s164 + $0xaf0] sm:$0xff]
        %v4577 = vld [vmem:[%s164 + $0xaf8] sm:$0xff]
        %v4578 = vld [vmem:[%s164 + $0xb00] sm:$0xff]
        %v4579 = vld [vmem:[%s164 + $0xb08] sm:$0xff]
        %v4580 = vld [vmem:[%s164 + $0xb10] sm:$0xff]
        %v4581 = vld [vmem:[%s164 + $0xb18] sm:$0xff]
        %v4582 = vld [vmem:[%s164 + $0xb20] sm:$0xff]
        %v4583 = vld [vmem:[%s164 + $0xb28] sm:$0xff]
        %v4584 = vld [vmem:[%s164 + $0xb30] sm:$0xff]
        %v4585 = vld [vmem:[%s164 + $0xb38] sm:$0xff]
        %v4586 = vld [vmem:[%s164 + $0xb40] sm:$0xff]
        %v4587 = vld [vmem:[%s164 + $0xb48] sm:$0xff]
        %v4588 = vld [vmem:[%s164 + $0xb50] sm:$0xff]
        %v4589 = vld [vmem:[%s164 + $0xb58] sm:$0xff]
        %v4590 = vld [vmem:[%s164 + $0xb60] sm:$0xff]
        %v4591 = vld [vmem:[%s164 + $0xb68] sm:$0xff]
        %v4592 = vld [vmem:[%s164 + $0xb70] sm:$0xff]
        %v4593 = vld [vmem:[%s164 + $0xb78] sm:$0xff]
        %v4594 = vld [vmem:[%s164 + $0xb80] sm:$0xff]
        %v4595 = vld [vmem:[%s164 + $0xb88] sm:$0xff]
        %v4596 = vld [vmem:[%s164 + $0xb90] sm:$0xff]
        %v4597 = vld [vmem:[%s164 + $0xb98] sm:$0xff]
        %v4598 = vld [vmem:[%s164 + $0xba0] sm:$0xff]
        %v4599 = vld [vmem:[%s164 + $0xba8] sm:$0xff]
        %v4600 = vld [vmem:[%s164 + $0xbb0] sm:$0xff]
        %v4601 = vld [vmem:[%s164 + $0xbb8] sm:$0xff]
        %v4602 = vld [vmem:[%s164 + $0xbc0] sm:$0xff]
        %v4603 = vld [vmem:[%s164 + $0xbc8] sm:$0xff]
        %v4604 = vld [vmem:[%s164 + $0xbd0] sm:$0xff]
        %v4605 = vld [vmem:[%s164 + $0xbd8] sm:$0xff]
        %v4606 = vld [vmem:[%s164 + $0xbe0] sm:$0xff]
        %v4607 = vld [vmem:[%s164 + $0xbe8] sm:$0xff]
        %v4608 = vld [vmem:[%s164 + $0xbf0] sm:$0xff]
        %v4609 = vld [vmem:[%s164 + $0xbf8] sm:$0xff]
        %v4610 = vld [vmem:[%s164 + $0xc00] sm:$0xff]
        %v4611 = vld [vmem:[%s164 + $0xc08] sm:$0xff]
        %v4612 = vld [vmem:[%s164 + $0xc10] sm:$0xff]
        %v4613 = vld [vmem:[%s164 + $0xc18] sm:$0xff]
        %v4614 = vld [vmem:[%s164 + $0xc20] sm:$0xff]
        %v4615 = vld [vmem:[%s164 + $0xc28] sm:$0xff]
        %v4616 = vld [vmem:[%s164 + $0xc30] sm:$0xff]
        %v4617 = vld [vmem:[%s164 + $0xc38] sm:$0xff]
        %v4618 = vld [vmem:[%s164 + $0xc40] sm:$0xff]
        %v4619 = vld [vmem:[%s164 + $0xc48] sm:$0xff]
        %v4620 = vld [vmem:[%s164 + $0xc50] sm:$0xff]
        %v4621 = vld [vmem:[%s164 + $0xc58] sm:$0xff]
        %v4622 = vld [vmem:[%s164 + $0xc60] sm:$0xff]
        %v4623 = vld [vmem:[%s164 + $0xc68] sm:$0xff]
        %v4624 = vld [vmem:[%s164 + $0xc70] sm:$0xff]
        %v4625 = vld [vmem:[%s164 + $0xc78] sm:$0xff]
        %v4626 = vld [vmem:[%s164 + $0xc80] sm:$0xff]
        %v4627 = vld [vmem:[%s164 + $0xc88] sm:$0xff]
        %v4628 = vld [vmem:[%s164 + $0xc90] sm:$0xff]
        %v4629 = vld [vmem:[%s164 + $0xc98] sm:$0xff]
        %v4630 = vld [vmem:[%s164 + $0xca0] sm:$0xff]
        %v4631 = vld [vmem:[%s164 + $0xca8] sm:$0xff]
        %v4632 = vld [vmem:[%s164 + $0xcb0] sm:$0xff]
        %v4633 = vld [vmem:[%s164 + $0xcb8] sm:$0xff]
        %v4634 = vld [vmem:[%s164 + $0xcc0] sm:$0xff]
        %v4635 = vld [vmem:[%s164 + $0xcc8] sm:$0xff]
        %v4636 = vld [vmem:[%s164 + $0xcd0] sm:$0xff]
        %v4637 = vld [vmem:[%s164 + $0xcd8] sm:$0xff]
        %v4638 = vld [vmem:[%s164 + $0xce0] sm:$0xff]
        %v4639 = vld [vmem:[%s164 + $0xce8] sm:$0xff]
        %v4640 = vld [vmem:[%s164 + $0xcf0] sm:$0xff]
        %v4641 = vld [vmem:[%s164 + $0xcf8] sm:$0xff]
        %v4642 = vld [vmem:[%s164 + $0xd00] sm:$0xff]
        %v4643 = vld [vmem:[%s164 + $0xd08] sm:$0xff]
        %v4644 = vld [vmem:[%s164 + $0xd10] sm:$0xff]
        %v4645 = vld [vmem:[%s164 + $0xd18] sm:$0xff]
        %v4646 = vld [vmem:[%s164 + $0xd20] sm:$0xff]
        %v4647 = vld [vmem:[%s164 + $0xd28] sm:$0xff]
        %v4648 = vld [vmem:[%s164 + $0xd30] sm:$0xff]
        %v4649 = vld [vmem:[%s164 + $0xd38] sm:$0xff]
        %v4650 = vld [vmem:[%s164 + $0xd40] sm:$0xff]
        %v4651 = vld [vmem:[%s164 + $0xd48] sm:$0xff]
        %v4652 = vld [vmem:[%s164 + $0xd50] sm:$0xff]
        %v4653 = vld [vmem:[%s164 + $0xd58] sm:$0xff]
        %v4654 = vld [vmem:[%s164 + $0xd60] sm:$0xff]
        %v4655 = vld [vmem:[%s164 + $0xd68] sm:$0xff]
        %v4656 = vld [vmem:[%s164 + $0xd70] sm:$0xff]
        %v4657 = vld [vmem:[%s164 + $0xd78] sm:$0xff]
        %v4658 = vld [vmem:[%s164 + $0xd80] sm:$0xff]
        %v4659 = vld [vmem:[%s164 + $0xd88] sm:$0xff]
        %v4660 = vld [vmem:[%s164 + $0xd90] sm:$0xff]
        %v4661 = vld [vmem:[%s164 + $0xd98] sm:$0xff]
        %v4662 = vld [vmem:[%s164 + $0xda0] sm:$0xff]
        %v4663 = vld [vmem:[%s164 + $0xda8] sm:$0xff]
        %v4664 = vld [vmem:[%s164 + $0xdb0] sm:$0xff]
        %v4665 = vld [vmem:[%s164 + $0xdb8] sm:$0xff]
        %v4666 = vld [vmem:[%s164 + $0xdc0] sm:$0xff]
        %v4667 = vld [vmem:[%s164 + $0xdc8] sm:$0xff]
        %v4668 = vld [vmem:[%s164 + $0xdd0] sm:$0xff]
        %v4669 = vld [vmem:[%s164 + $0xdd8] sm:$0xff]
        %v4670 = vld [vmem:[%s164 + $0xde0] sm:$0xff]
        %v4671 = vld [vmem:[%s164 + $0xde8] sm:$0xff]
        %v4672 = vld [vmem:[%s164 + $0xdf0] sm:$0xff]
        %v4673 = vld [vmem:[%s164 + $0xdf8] sm:$0xff]
        %v4674 = vld [vmem:[%s164 + $0xe00] sm:$0xff]
        %v4675 = vld [vmem:[%s164 + $0xe08] sm:$0xff]
        %v4676 = vld [vmem:[%s164 + $0xe10] sm:$0xff]
        %v4677 = vld [vmem:[%s164 + $0xe18] sm:$0xff]
        %v4678 = vld [vmem:[%s164 + $0xe20] sm:$0xff]
        %v4679 = vld [vmem:[%s164 + $0xe28] sm:$0xff]
        %v4680 = vld [vmem:[%s164 + $0xe30] sm:$0xff]
        %v4681 = vld [vmem:[%s164 + $0xe38] sm:$0xff]
        %v4682 = vld [vmem:[%s164 + $0xe40] sm:$0xff]
        %v4683 = vld [vmem:[%s164 + $0xe48] sm:$0xff]
        %v4684 = vld [vmem:[%s164 + $0xe50] sm:$0xff]
        %v4685 = vld [vmem:[%s164 + $0xe58] sm:$0xff]
        %v4686 = vld [vmem:[%s164 + $0xe60] sm:$0xff]
        %v4687 = vld [vmem:[%s164 + $0xe68] sm:$0xff]
        %v4688 = vld [vmem:[%s164 + $0xe70] sm:$0xff]
        %v4689 = vld [vmem:[%s164 + $0xe78] sm:$0xff]
        %v4690 = vld [vmem:[%s164 + $0xe80] sm:$0xff]
        %v4691 = vld [vmem:[%s164 + $0xe88] sm:$0xff]
        %v4692 = vld [vmem:[%s164 + $0xe90] sm:$0xff]
        %v4693 = vld [vmem:[%s164 + $0xe98] sm:$0xff]
        %v4694 = vld [vmem:[%s164 + $0xea0] sm:$0xff]
        %v4695 = vld [vmem:[%s164 + $0xea8] sm:$0xff]
        %v4696 = vld [vmem:[%s164 + $0xeb0] sm:$0xff]
        %v4697 = vld [vmem:[%s164 + $0xeb8] sm:$0xff]
        %v4698 = vld [vmem:[%s164 + $0xec0] sm:$0xff]
        %v4699 = vld [vmem:[%s164 + $0xec8] sm:$0xff]
        %v4700 = vld [vmem:[%s164 + $0xed0] sm:$0xff]
        %v4701 = vld [vmem:[%s164 + $0xed8] sm:$0xff]
        %v4702 = vld [vmem:[%s164 + $0xee0] sm:$0xff]
        %v4703 = vld [vmem:[%s164 + $0xee8] sm:$0xff]
        %v4704 = vld [vmem:[%s164 + $0xef0] sm:$0xff]
        %v4705 = vld [vmem:[%s164 + $0xef8] sm:$0xff]
        %v4706 = vld [vmem:[%s164 + $0xf00] sm:$0xff]
        %v4707 = vld [vmem:[%s164 + $0xf08] sm:$0xff]
        %v4708 = vld [vmem:[%s164 + $0xf10] sm:$0xff]
        %v4709 = vld [vmem:[%s164 + $0xf18] sm:$0xff]
        %v4710 = vld [vmem:[%s164 + $0xf20] sm:$0xff]
        %v4711 = vld [vmem:[%s164 + $0xf28] sm:$0xff]
        %v4712 = vld [vmem:[%s164 + $0xf30] sm:$0xff]
        %v4713 = vld [vmem:[%s164 + $0xf38] sm:$0xff]
        %v4714 = vld [vmem:[%s164 + $0xf40] sm:$0xff]
        %v4715 = vld [vmem:[%s164 + $0xf48] sm:$0xff]
        %v4716 = vld [vmem:[%s164 + $0xf50] sm:$0xff]
        %v4717 = vld [vmem:[%s164 + $0xf58] sm:$0xff]
        %v4718 = vld [vmem:[%s164 + $0xf60] sm:$0xff]
        %v4719 = vld [vmem:[%s164 + $0xf68] sm:$0xff]
        %v4720 = vld [vmem:[%s164 + $0xf70] sm:$0xff]
        %v4721 = vld [vmem:[%s164 + $0xf78] sm:$0xff]
        %v4722 = vld [vmem:[%s164 + $0xf80] sm:$0xff]
        %v4723 = vld [vmem:[%s164 + $0xf88] sm:$0xff]
        %v4724 = vld [vmem:[%s164 + $0xf90] sm:$0xff]
        %v4725 = vld [vmem:[%s164 + $0xf98] sm:$0xff]
        %v4726 = vld [vmem:[%s164 + $0xfa0] sm:$0xff]
        %v4727 = vld [vmem:[%s164 + $0xfa8] sm:$0xff]
        %v4728 = vld [vmem:[%s164 + $0xfb0] sm:$0xff]
        %v4729 = vld [vmem:[%s164 + $0xfb8] sm:$0xff]
        %v4730 = vld [vmem:[%s164 + $0xfc0] sm:$0xff]
        %v4731 = vld [vmem:[%s164 + $0xfc8] sm:$0xff]
        %v4732 = vld [vmem:[%s164 + $0xfd0] sm:$0xff]
        %v4733 = vld [vmem:[%s164 + $0xfd8] sm:$0xff]
        %v4734 = vld [vmem:[%s164 + $0xfe0] sm:$0xff]
        %v4735 = vld [vmem:[%s164 + $0xfe8] sm:$0xff]
        %v4736 = vld [vmem:[%s164 + $0xff0] sm:$0xff]
        %v4737 = vld [vmem:[%s164 + $0xff8] sm:$0xff]
        %v4738 = vld [vmem:[%s164 + $0x1000] sm:$0xff]
        %v4739 = vld [vmem:[%s164 + $0x1008] sm:$0xff]
        %v4740 = vld [vmem:[%s164 + $0x1010] sm:$0xff]
        %v4741 = vld [vmem:[%s164 + $0x1018] sm:$0xff]
        %v4742 = vld [vmem:[%s164 + $0x1020] sm:$0xff]
        %v4743 = vld [vmem:[%s164 + $0x1028] sm:$0xff]
        %v4744 = vld [vmem:[%s164 + $0x1030] sm:$0xff]
        %v4745 = vld [vmem:[%s164 + $0x1038] sm:$0xff]
        %v4746 = vld [vmem:[%s164 + $0x1040] sm:$0xff]
        %v4747 = vld [vmem:[%s164 + $0x1048] sm:$0xff]
        %v4748 = vld [vmem:[%s164 + $0x1050] sm:$0xff]
        %v4749 = vld [vmem:[%s164 + $0x1058] sm:$0xff]
        %v4750 = vld [vmem:[%s164 + $0x1060] sm:$0xff]
        %v4751 = vld [vmem:[%s164 + $0x1068] sm:$0xff]
        %v4752 = vld [vmem:[%s164 + $0x1070] sm:$0xff]
        %v4753 = vld [vmem:[%s164 + $0x1078] sm:$0xff]
        %v4754 = vld [vmem:[%s164 + $0x1080] sm:$0xff]
        %v4755 = vld [vmem:[%s164 + $0x1088] sm:$0xff]
        %v4756 = vld [vmem:[%s164 + $0x1090] sm:$0xff]
        %v4757 = vld [vmem:[%s164 + $0x1098] sm:$0xff]
        %v4758 = vld [vmem:[%s164 + $0x10a0] sm:$0xff]
        %v4759 = vld [vmem:[%s164 + $0x10a8] sm:$0xff]
        %v4760 = vld [vmem:[%s164 + $0x10b0] sm:$0xff]
        %v4761 = vld [vmem:[%s164 + $0x10b8] sm:$0xff]
        %v4762 = vld [vmem:[%s164 + $0x10c0] sm:$0xff]
        %v4763 = vld [vmem:[%s164 + $0x10c8] sm:$0xff]
        %v4764 = vld [vmem:[%s164 + $0x10d0] sm:$0xff]
        %v4765 = vld [vmem:[%s164 + $0x10d8] sm:$0xff]
        %v4766 = vld [vmem:[%s164 + $0x10e0] sm:$0xff]
        %v4767 = vld [vmem:[%s164 + $0x10e8] sm:$0xff]
        %v4768 = vld [vmem:[%s164 + $0x10f0] sm:$0xff]
        %v4769 = vld [vmem:[%s164 + $0x10f8] sm:$0xff]
        %v4770 = vld [vmem:[%s164 + $0x1100] sm:$0xff]
        %v4771 = vld [vmem:[%s164 + $0x1108] sm:$0xff]
        %v4772 = vld [vmem:[%s164 + $0x1110] sm:$0xff]
        %v4773 = vld [vmem:[%s164 + $0x1118] sm:$0xff]
        %v4774 = vld [vmem:[%s164 + $0x1120] sm:$0xff]
        %v4775 = vld [vmem:[%s164 + $0x1128] sm:$0xff]
        %v4776 = vld [vmem:[%s164 + $0x1130] sm:$0xff]
        %v4777 = vld [vmem:[%s164 + $0x1138] sm:$0xff]
        %v4778 = vld [vmem:[%s164 + $0x1140] sm:$0xff]
        %v4779 = vld [vmem:[%s164 + $0x1148] sm:$0xff]
        %v4780 = vld [vmem:[%s164 + $0x1150] sm:$0xff]
        %v4781 = vld [vmem:[%s164 + $0x1158] sm:$0xff]
        %v4782 = vld [vmem:[%s164 + $0x1160] sm:$0xff]
        %v4783 = vld [vmem:[%s164 + $0x1168] sm:$0xff]
        %v4784 = vld [vmem:[%s164 + $0x1170] sm:$0xff]
        %v4785 = vld [vmem:[%s164 + $0x1178] sm:$0xff]
        %v4786 = vld [vmem:[%s164 + $0x1180] sm:$0xff]
        %v4787 = vld [vmem:[%s164 + $0x1188] sm:$0xff]
        %v4788 = vld [vmem:[%s164 + $0x1190] sm:$0xff]
        %v4789 = vld [vmem:[%s164 + $0x1198] sm:$0xff]
        %v4790 = vld [vmem:[%s164 + $0x11a0] sm:$0xff]
        %v4791 = vld [vmem:[%s164 + $0x11a8] sm:$0xff]
        %v4792 = vld [vmem:[%s164 + $0x11b0] sm:$0xff]
        %v4793 = vld [vmem:[%s164 + $0x11b8] sm:$0xff]
        %v4794 = vld [vmem:[%s164 + $0x11c0] sm:$0xff]
        %v4795 = vld [vmem:[%s164 + $0x11c8] sm:$0xff]
        %v4796 = vld [vmem:[%s164 + $0x11d0] sm:$0xff]
        %v4797 = vld [vmem:[%s164 + $0x11d8] sm:$0xff]
        %v4798 = vld [vmem:[%s164 + $0x11e0] sm:$0xff]
        %v4799 = vld [vmem:[%s164 + $0x11e8] sm:$0xff]
        %v4800 = vld [vmem:[%s164 + $0x11f0] sm:$0xff]
        %v4801 = vld [vmem:[%s164 + $0x11f8] sm:$0xff]
        %v4802 = vld [vmem:[%s164 + $0x1200] sm:$0xff]
        %v4803 = vld [vmem:[%s164 + $0x1208] sm:$0xff]
        %v4804 = vld [vmem:[%s164 + $0x1210] sm:$0xff]
        %v4805 = vld [vmem:[%s164 + $0x1218] sm:$0xff]
        %v4806 = vld [vmem:[%s164 + $0x1220] sm:$0xff]
        %v4807 = vld [vmem:[%s164 + $0x1228] sm:$0xff]
        %v4808 = vld [vmem:[%s164 + $0x1230] sm:$0xff]
        %v4809 = vld [vmem:[%s164 + $0x1238] sm:$0xff]
        %v4810 = vld [vmem:[%s164 + $0x1240] sm:$0xff]
        %v4811 = vld [vmem:[%s164 + $0x1248] sm:$0xff]
        %v4812 = vld [vmem:[%s164 + $0x1250] sm:$0xff]
        %v4813 = vld [vmem:[%s164 + $0x1258] sm:$0xff]
        %v4814 = vld [vmem:[%s164 + $0x1260] sm:$0xff]
        %v4815 = vld [vmem:[%s164 + $0x1268] sm:$0xff]
        %v4816 = vld [vmem:[%s164 + $0x1270] sm:$0xff]
        %v4817 = vld [vmem:[%s164 + $0x1278] sm:$0xff]
        %v4818 = vld [vmem:[%s164 + $0x1280] sm:$0xff]
        %v4819 = vld [vmem:[%s164 + $0x1288] sm:$0xff]
        %v4820 = vld [vmem:[%s164 + $0x1290] sm:$0xff]
        %v4821 = vld [vmem:[%s164 + $0x1298] sm:$0xff]
        %v4822 = vld [vmem:[%s164 + $0x12a0] sm:$0xff]
        %v4823 = vld [vmem:[%s164 + $0x12a8] sm:$0xff]
        %v4824 = vld [vmem:[%s164 + $0x12b0] sm:$0xff]
        %v4825 = vld [vmem:[%s164 + $0x12b8] sm:$0xff]
        %v4826 = vld [vmem:[%s164 + $0x12c0] sm:$0xff]
        %v4827 = vld [vmem:[%s164 + $0x12c8] sm:$0xff]
        %v4828 = vld [vmem:[%s164 + $0x12d0] sm:$0xff]
        %v4829 = vld [vmem:[%s164 + $0x12d8] sm:$0xff]
        %v4830 = vld [vmem:[%s164 + $0x12e0] sm:$0xff]
        %v4831 = vld [vmem:[%s164 + $0x12e8] sm:$0xff]
        %v4832 = vld [vmem:[%s164 + $0x12f0] sm:$0xff]
        %v4833 = vld [vmem:[%s164 + $0x12f8] sm:$0xff]
        %v4834 = vld [vmem:[%s164 + $0x1300] sm:$0xff]
        %v4835 = vld [vmem:[%s164 + $0x1308] sm:$0xff]
        %v4836 = vld [vmem:[%s164 + $0x1310] sm:$0xff]
        %v4837 = vld [vmem:[%s164 + $0x1318] sm:$0xff]
        %v4838 = vld [vmem:[%s164 + $0x1320] sm:$0xff]
        %v4839 = vld [vmem:[%s164 + $0x1328] sm:$0xff]
        %v4840 = vld [vmem:[%s164 + $0x1330] sm:$0xff]
        %v4841 = vld [vmem:[%s164 + $0x1338] sm:$0xff]
        %v4842 = vld [vmem:[%s164 + $0x1340] sm:$0xff]
        %v4843 = vld [vmem:[%s164 + $0x1348] sm:$0xff]
        %v4844 = vld [vmem:[%s164 + $0x1350] sm:$0xff]
        %v4845 = vld [vmem:[%s164 + $0x1358] sm:$0xff]
        %v4846 = vld [vmem:[%s164 + $0x1360] sm:$0xff]
        %v4847 = vld [vmem:[%s164 + $0x1368] sm:$0xff]
        %v4848 = vld [vmem:[%s164 + $0x1370] sm:$0xff]
        %v4849 = vld [vmem:[%s164 + $0x1378] sm:$0xff]
        %v4850 = vld [vmem:[%s164 + $0x1380] sm:$0xff]
        %v4851 = vld [vmem:[%s164 + $0x1388] sm:$0xff]
        %v4852 = vld [vmem:[%s164 + $0x1390] sm:$0xff]
        %v4853 = vld [vmem:[%s164 + $0x1398] sm:$0xff]
        %v4854 = vld [vmem:[%s164 + $0x13a0] sm:$0xff]
        %v4855 = vld [vmem:[%s164 + $0x13a8] sm:$0xff]
        %v4856 = vld [vmem:[%s164 + $0x13b0] sm:$0xff]
        %v4857 = vld [vmem:[%s164 + $0x13b8] sm:$0xff]
        %v4858 = vld [vmem:[%s164 + $0x13c0] sm:$0xff]
        %v4859 = vld [vmem:[%s164 + $0x13c8] sm:$0xff]
        %v4860 = vld [vmem:[%s164 + $0x13d0] sm:$0xff]
        %v4861 = vld [vmem:[%s164 + $0x13d8] sm:$0xff]
        %v4862 = vld [vmem:[%s164 + $0x13e0] sm:$0xff]
        %v4863 = vld [vmem:[%s164 + $0x13e8] sm:$0xff]
        %v4864 = vld [vmem:[%s164 + $0x13f0] sm:$0xff]
        %v4865 = vld [vmem:[%s164 + $0x13f8] sm:$0xff]
        %v4866 = vld [vmem:[%s164 + $0x1400] sm:$0xff]
        %v4867 = vld [vmem:[%s164 + $0x1408] sm:$0xff]
        %v4868 = vld [vmem:[%s164 + $0x1410] sm:$0xff]
        %v4869 = vld [vmem:[%s164 + $0x1418] sm:$0xff]
        %v4870 = vld [vmem:[%s164 + $0x1420] sm:$0xff]
        %v4871 = vld [vmem:[%s164 + $0x1428] sm:$0xff]
        %v4872 = vld [vmem:[%s164 + $0x1430] sm:$0xff]
        %v4873 = vld [vmem:[%s164 + $0x1438] sm:$0xff]
        %v4874 = vld [vmem:[%s164 + $0x1440] sm:$0xff]
        %v4875 = vld [vmem:[%s164 + $0x1448] sm:$0xff]
        %v4876 = vld [vmem:[%s164 + $0x1450] sm:$0xff]
        %v4877 = vld [vmem:[%s164 + $0x1458] sm:$0xff]
        %v4878 = vld [vmem:[%s164 + $0x1460] sm:$0xff]
        %v4879 = vld [vmem:[%s164 + $0x1468] sm:$0xff]
        %v4880 = vld [vmem:[%s164 + $0x1470] sm:$0xff]
        %v4881 = vld [vmem:[%s164 + $0x1478] sm:$0xff]
        %v4882 = vld [vmem:[%s164 + $0x1480] sm:$0xff]
        %v4883 = vld [vmem:[%s164 + $0x1488] sm:$0xff]
        %v4884 = vld [vmem:[%s164 + $0x1490] sm:$0xff]
        %v4885 = vld [vmem:[%s164 + $0x1498] sm:$0xff]
        %v4886 = vld [vmem:[%s164 + $0x14a0] sm:$0xff]
        %v4887 = vld [vmem:[%s164 + $0x14a8] sm:$0xff]
        %v4888 = vld [vmem:[%s164 + $0x14b0] sm:$0xff]
        %v4889 = vld [vmem:[%s164 + $0x14b8] sm:$0xff]
        %v4890 = vld [vmem:[%s164 + $0x14c0] sm:$0xff]
        %v4891 = vld [vmem:[%s164 + $0x14c8] sm:$0xff]
        %v4892 = vld [vmem:[%s164 + $0x14d0] sm:$0xff]
        %v4893 = vld [vmem:[%s164 + $0x14d8] sm:$0xff]
        %v4894 = vld [vmem:[%s164 + $0x14e0] sm:$0xff]
        %v4895 = vld [vmem:[%s164 + $0x14e8] sm:$0xff]
        %v4896 = vld [vmem:[%s164 + $0x14f0] sm:$0xff]
        %v4897 = vld [vmem:[%s164 + $0x14f8] sm:$0xff]
        %v4898 = vld [vmem:[%s164 + $0x1500] sm:$0xff]
        %v4899 = vld [vmem:[%s164 + $0x1508] sm:$0xff]
        %v4900 = vld [vmem:[%s164 + $0x1510] sm:$0xff]
        %v4901 = vld [vmem:[%s164 + $0x1518] sm:$0xff]
        %v4902 = vld [vmem:[%s164 + $0x1520] sm:$0xff]
        %v4903 = vld [vmem:[%s164 + $0x1528] sm:$0xff]
        %v4904 = vld [vmem:[%s164 + $0x1530] sm:$0xff]
        %v4905 = vld [vmem:[%s164 + $0x1538] sm:$0xff]
        %v4906 = vld [vmem:[%s164 + $0x1540] sm:$0xff]
        %v4907 = vld [vmem:[%s164 + $0x1548] sm:$0xff]
        %v4908 = vld [vmem:[%s164 + $0x1550] sm:$0xff]
        %v4909 = vld [vmem:[%s164 + $0x1558] sm:$0xff]
        %v4910 = vld [vmem:[%s164 + $0x1560] sm:$0xff]
        %v4911 = vld [vmem:[%s164 + $0x1568] sm:$0xff]
        %v4912 = vld [vmem:[%s164 + $0x1570] sm:$0xff]
        %v4913 = vld [vmem:[%s164 + $0x1578] sm:$0xff]
        %v4914 = vld [vmem:[%s164 + $0x1580] sm:$0xff]
        %v4915 = vld [vmem:[%s164 + $0x1588] sm:$0xff]
        %v4916 = vld [vmem:[%s164 + $0x1590] sm:$0xff]
        %v4917 = vld [vmem:[%s164 + $0x1598] sm:$0xff]
        %v4918 = vld [vmem:[%s164 + $0x15a0] sm:$0xff]
        %v4919 = vld [vmem:[%s164 + $0x15a8] sm:$0xff]
        %v4920 = vld [vmem:[%s164 + $0x15b0] sm:$0xff]
        %v4921 = vld [vmem:[%s164 + $0x15b8] sm:$0xff]
        %v4922 = vld [vmem:[%s164 + $0x15c0] sm:$0xff]
        %v4923 = vld [vmem:[%s164 + $0x15c8] sm:$0xff]
        %v4924 = vld [vmem:[%s164 + $0x15d0] sm:$0xff]
        %v4925 = vld [vmem:[%s164 + $0x15d8] sm:$0xff]
        %v4926 = vld [vmem:[%s164 + $0x15e0] sm:$0xff]
        %v4927 = vld [vmem:[%s164 + $0x15e8] sm:$0xff]
        %v4928 = vld [vmem:[%s164 + $0x15f0] sm:$0xff]
        %v4929 = vld [vmem:[%s164 + $0x15f8] sm:$0xff]
        %v4930 = vld [vmem:[%s164 + $0x1600] sm:$0xff]
        %v4931 = vld [vmem:[%s164 + $0x1608] sm:$0xff]
        %v4932 = vld [vmem:[%s164 + $0x1610] sm:$0xff]
        %v4933 = vld [vmem:[%s164 + $0x1618] sm:$0xff]
        %v4934 = vld [vmem:[%s164 + $0x1620] sm:$0xff]
        %v4935 = vld [vmem:[%s164 + $0x1628] sm:$0xff]
        %v4936 = vld [vmem:[%s164 + $0x1630] sm:$0xff]
        %v4937 = vld [vmem:[%s164 + $0x1638] sm:$0xff]
        %v4938 = vld [vmem:[%s164 + $0x1640] sm:$0xff]
        %v4939 = vld [vmem:[%s164 + $0x1648] sm:$0xff]
        %v4940 = vld [vmem:[%s164 + $0x1650] sm:$0xff]
        %v4941 = vld [vmem:[%s164 + $0x1658] sm:$0xff]
        %v4942 = vld [vmem:[%s164 + $0x1660] sm:$0xff]
        %v4943 = vld [vmem:[%s164 + $0x1668] sm:$0xff]
        %v4944 = vld [vmem:[%s164 + $0x1670] sm:$0xff]
        %v4945 = vld [vmem:[%s164 + $0x1678] sm:$0xff]
        %4946 = vmatprep.subr.mxu0 0.0
        %4947 = vmatpush1.msra.mxu0 %v3938
        %4948 = vmatprep.subr.mxu0 0.0
        %4949 = vmatpush1.msra.mxu0 %v3939
        %4950 = vmatprep.subr.mxu0 0.0
        %4951 = vmatpush1.msra.mxu0 %v3940
        %4952 = vmatprep.subr.mxu0 0.0
        %4953 = vmatpush1.msra.mxu0 %v3941
        %4954 = vmatprep.subr.mxu0 0.0
        %4955 = vmatpush1.msra.mxu0 %v3942
        %4956 = vmatprep.subr.mxu0 0.0
        %4957 = vmatpush1.msra.mxu0 %v3943
        %4958 = vmatprep.subr.mxu0 0.0
        %4959 = vmatpush1.msra.mxu0 %v3944
        %4960 = vmatprep.subr.mxu0 0.0
        %4961 = vmatpush1.msra.mxu0 %v3945
        %4962 = vmatprep.subr.mxu0 0.0
        %4963 = vmatpush1.msra.mxu0 %v3946
        %4964 = vmatprep.subr.mxu0 0.0
        %4965 = vmatpush1.msra.mxu0 %v3947
        %4966 = vmatprep.subr.mxu0 0.0
        %4967 = vmatpush1.msra.mxu0 %v3948
        %4968 = vmatprep.subr.mxu0 0.0
        %4969 = vmatpush1.msra.mxu0 %v3949
        %4970 = vmatprep.subr.mxu0 0.0
        %4971 = vmatpush1.msra.mxu0 %v3950
        %4972 = vmatprep.subr.mxu0 0.0
        %4973 = vmatpush1.msra.mxu0 %v3951
        %4974 = vmatprep.subr.mxu0 0.0
        %4975 = vmatpush1.msra.mxu0 %v3952
        %4976 = vmatprep.subr.mxu0 0.0
        %4977 = vmatpush1.msra.mxu0 %v3953
        %4978 = vmatprep.subr.mxu0 0.0
        %4979 = vmatpush1.msra.mxu0 %v3954
        %4980 = vmatprep.subr.mxu0 0.0
        %4981 = vmatpush1.msra.mxu0 %v3955
        %4982 = vmatprep.subr.mxu0 0.0
        %4983 = vmatpush1.msra.mxu0 %v3956
        %4984 = vmatprep.subr.mxu0 0.0
        %4985 = vmatpush1.msra.mxu0 %v3957
        %4986 = vmatprep.subr.mxu0 0.0
        %4987 = vmatpush1.msra.mxu0 %v3958
        %4988 = vmatprep.subr.mxu0 0.0
        %4989 = vmatpush1.msra.mxu0 %v3959
        %4990 = vmatprep.subr.mxu0 0.0
        %4991 = vmatpush1.msra.mxu0 %v3960
        %4992 = vmatprep.subr.mxu0 0.0
        %4993 = vmatpush1.msra.mxu0 %v3961
        %4994 = vmatprep.subr.mxu0 0.0
        %4995 = vmatpush1.msra.mxu0 %v3962
        %4996 = vmatprep.subr.mxu0 0.0
        %4997 = vmatpush1.msra.mxu0 %v3963
        %4998 = vmatprep.subr.mxu0 0.0
        %4999 = vmatpush1.msra.mxu0 %v3964
        %5000 = vmatprep.subr.mxu0 0.0
        %5001 = vmatpush1.msra.mxu0 %v3965
        %5002 = vmatprep.subr.mxu0 0.0
        %5003 = vmatpush1.msra.mxu0 %v3966
        %5004 = vmatprep.subr.mxu0 0.0
        %5005 = vmatpush1.msra.mxu0 %v3967
        %5006 = vmatprep.subr.mxu0 0.0
        %5007 = vmatpush1.msra.mxu0 %v3968
        %5008 = vmatprep.subr.mxu0 0.0
        %5009 = vmatpush1.msra.mxu0 %v3969
        %5010 = vmatprep.mubr.f32.mxu0 %v4227
        %5011 = vmatmul.mubr.f32.gmra.mrb[0].mxu0 %v4226
        %v5012 = vpop.f32.mrb[0].mxu0
        %v5013 = vadd.f32 0.0, %v5012
        %v5014 = vpop.f32.mrb[0].mxu0
        %5015 = vmatprep.mubr.f32.mxu0 %v4245
        %5016 = vmatmul.mubr.f32.gmra.mrb[0].mxu0 %v4244
        %v5017 = vpop.f32.mrb[0].mxu0
        %v5018 = vadd.f32 0.0, %v5017
        %v5019 = vpop.f32.mrb[0].mxu0
        %5020 = vmatprep.mubr.f32.mxu0 %v4263
        %5021 = vmatmul.mubr.f32.gmra.mrb[0].mxu0 %v4262
        %v5022 = vpop.f32.mrb[0].mxu0
        %v5023 = vadd.f32 0.0, %v5022
        %v5024 = vpop.f32.mrb[0].mxu0
        %5025 = vmatprep.mubr.f32.mxu0 %v4281
        %5026 = vmatmul.mubr.f32.gmra.mrb[0].mxu0 %v4280
        %v5027 = vpop.f32.mrb[0].mxu0
        %v5028 = vadd.f32 0.0, %v5027
        %v5029 = vpop.f32.mrb[0].mxu0
        %5030 = vmatprep.mubr.f32.mxu0 %v4299
        %5031 = vmatmul.mubr.f32.gmra.mrb[0].mxu0 %v4298
        %v5032 = vpop.f32.mrb[0].mxu0
        %v5033 = vadd.f32 0.0, %v5032
        %v5034 = vpop.f32.mrb[0].mxu0
        %5035 = vmatprep.mubr.f32.mxu0 %v4317
        %5036 = vmatmul.mubr.f32.gmra.mrb[0].mxu0 %v4316
        %v5037 = vpop.f32.mrb[0].mxu0
        %v5038 = vadd.f32 0.0, %v5037
        %v5039 = vpop.f32.mrb[0].mxu0
        %5040 = vmatprep.mubr.f32.mxu0 %v4335
        %5041 = vmatmul.mubr.f32.gmra.mrb[0].mxu0 %v4334
        %v5042 = vpop.f32.mrb[0].mxu0
        %v5043 = vadd.f32 0.0, %v5042
        %v5044 = vpop.f32.mrb[0].mxu0
        %5045 = vmatprep.mubr.f32.mxu0 %v4353
        %5046 = vmatmul.mubr.f32.gmra.mrb[0].mxu0 %v4352
        %v5047 = vpop.f32.mrb[0].mxu0
        %v5048 = vadd.f32 0.0, %v5047
        %v5049 = vpop.f32.mrb[0].mxu0
        %5050 = vmatprep.mubr.f32.mxu0 %v4371
        %5051 = vmatmul.mubr.f32.gmra.mrb[0].mxu0 %v4370
        %v5052 = vpop.f32.mrb[0].mxu0
        %v5053 = vadd.f32 0.0, %v5052
        %v5054 = vpop.f32.mrb[0].mxu0
        %5055 = vmatprep.mubr.f32.mxu0 %v4389
        %5056 = vmatmul.mubr.f32.gmra.mrb[0].mxu0 %v4388
        %v5057 = vpop.f32.mrb[0].mxu0
        %v5058 = vadd.f32 0.0, %v5057
        %v5059 = vpop.f32.mrb[0].mxu0
        %5060 = vmatprep.mubr.f32.mxu0 %v4407
        %5061 = vmatmul.mubr.f32.gmra.mrb[0].mxu0 %v4406
        %v5062 = vpop.f32.mrb[0].mxu0
        %v5063 = vadd.f32 0.0, %v5062
        %v5064 = vpop.f32.mrb[0].mxu0
        %5065 = vmatprep.mubr.f32.mxu0 %v4425
        %5066 = vmatmul.mubr.f32.gmra.mrb[0].mxu0 %v4424
        %v5067 = vpop.f32.mrb[0].mxu0
        %v5068 = vadd.f32 0.0, %v5067
        %v5069 = vpop.f32.mrb[0].mxu0
        %5070 = vmatprep.mubr.f32.mxu0 %v4443
        %5071 = vmatmul.mubr.f32.gmra.mrb[0].mxu0 %v4442
        %v5072 = vpop.f32.mrb[0].mxu0
        %v5073 = vadd.f32 0.0, %v5072
        %v5074 = vpop.f32.mrb[0].mxu0
        %5075 = vmatprep.mubr.f32.mxu0 %v4461
        %5076 = vmatmul.mubr.f32.gmra.mrb[0].mxu0 %v4460
        %v5077 = vpop.f32.mrb[0].mxu0
        %v5078 = vadd.f32 0.0, %v5077
        %v5079 = vpop.f32.mrb[0].mxu0
        %5080 = vmatprep.mubr.f32.mxu0 %v4479
        %5081 = vmatmul.mubr.f32.gmra.mrb[0].mxu0 %v4478
        %v5082 = vpop.f32.mrb[0].mxu0
        %v5083 = vadd.f32 0.0, %v5082
        %v5084 = vpop.f32.mrb[0].mxu0
        %5085 = vmatprep.mubr.f32.mxu0 %v4497
        %5086 = vmatmul.mubr.f32.gmra.mrb[0].mxu0 %v4496
        %v5087 = vpop.f32.mrb[0].mxu0
        %v5088 = vadd.f32 0.0, %v5087
        %v5089 = vpop.f32.mrb[0].mxu0
        %5090 = vmatprep.mubr.f32.mxu0 %v4515
        %5091 = vmatmul.mubr.f32.gmra.mrb[0].mxu0 %v4514
        %v5092 = vpop.f32.mrb[0].mxu0
        %v5093 = vadd.f32 0.0, %v5092
        %v5094 = vpop.f32.mrb[0].mxu0
        %5095 = vmatprep.mubr.f32.mxu0 %v4533
        %5096 = vmatmul.mubr.f32.gmra.mrb[0].mxu0 %v4532
        %v5097 = vpop.f32.mrb[0].mxu0
        %v5098 = vadd.f32 0.0, %v5097
        %v5099 = vpop.f32.mrb[0].mxu0
        %5100 = vmatprep.mubr.f32.mxu0 %v4551
        %5101 = vmatmul.mubr.f32.gmra.mrb[0].mxu0 %v4550
        %v5102 = vpop.f32.mrb[0].mxu0
        %v5103 = vadd.f32 0.0, %v5102
        %v5104 = vpop.f32.mrb[0].mxu0
        %5105 = vmatprep.mubr.f32.mxu0 %v4569
        %5106 = vmatmul.mubr.f32.gmra.mrb[0].mxu0 %v4568
        %v5107 = vpop.f32.mrb[0].mxu0
        %v5108 = vadd.f32 0.0, %v5107
        %v5109 = vpop.f32.mrb[0].mxu0
        %5110 = vmatprep.mubr.f32.mxu0 %v4587
        %5111 = vmatmul.mubr.f32.gmra.mrb[0].mxu0 %v4586
        %v5112 = vpop.f32.mrb[0].mxu0
        %v5113 = vadd.f32 0.0, %v5112
        %v5114 = vpop.f32.mrb[0].mxu0
        %5115 = vmatprep.mubr.f32.mxu0 %v4605
        %5116 = vmatmul.mubr.f32.gmra.mrb[0].mxu0 %v4604
        %v5117 = vpop.f32.mrb[0].mxu0
        %v5118 = vadd.f32 0.0, %v5117
        %v5119 = vpop.f32.mrb[0].mxu0
        %5120 = vmatprep.mubr.f32.mxu0 %v4623
        %5121 = vmatmul.mubr.f32.gmra.mrb[0].mxu0 %v4622
        %v5122 = vpop.f32.mrb[0].mxu0
        %v5123 = vadd.f32 0.0, %v5122
        %v5124 = vpop.f32.mrb[0].mxu0
        %5125 = vmatprep.mubr.f32.mxu0 %v4641
        %5126 = vmatmul.mubr.f32.gmra.mrb[0].mxu0 %v4640
        %v5127 = vpop.f32.mrb[0].mxu0
        %v5128 = vadd.f32 0.0, %v5127
        %v5129 = vpop.f32.mrb[0].mxu0
        %5130 = vmatprep.mubr.f32.mxu0 %v4659
        %5131 = vmatmul.mubr.f32.gmra.mrb[0].mxu0 %v4658
        %v5132 = vpop.f32.mrb[0].mxu0
        %v5133 = vadd.f32 0.0, %v5132
        %v5134 = vpop.f32.mrb[0].mxu0
        %5135 = vmatprep.mubr.f32.mxu0 %v4677
        %5136 = vmatmul.mubr.f32.gmra.mrb[0].mxu0 %v4676
        %v5137 = vpop.f32.mrb[0].mxu0
        %v5138 = vadd.f32 0.0, %v5137
        %v5139 = vpop.f32.mrb[0].mxu0
        %5140 = vmatprep.mubr.f32.mxu0 %v4695
        %5141 = vmatmul.mubr.f32.gmra.mrb[0].mxu0 %v4694
        %v5142 = vpop.f32.mrb[0].mxu0
        %v5143 = vadd.f32 0.0, %v5142
        %v5144 = vpop.f32.mrb[0].mxu0
        %5145 = vmatprep.mubr.f32.mxu0 %v4713
        %5146 = vmatmul.mubr.f32.gmra.mrb[0].mxu0 %v4712
        %v5147 = vpop.f32.mrb[0].mxu0
        %v5148 = vadd.f32 0.0, %v5147
        %v5149 = vpop.f32.mrb[0].mxu0
        %5150 = vmatprep.mubr.f32.mxu0 %v4731
        %5151 = vmatmul.mubr.f32.gmra.mrb[0].mxu0 %v4730
        %v5152 = vpop.f32.mrb[0].mxu0
        %v5153 = vadd.f32 0.0, %v5152
        %v5154 = vpop.f32.mrb[0].mxu0
        %5155 = vmatprep.mubr.f32.mxu0 %v4749
        %5156 = vmatmul.mubr.f32.gmra.mrb[0].mxu0 %v4748
        %v5157 = vpop.f32.mrb[0].mxu0
        %v5158 = vadd.f32 0.0, %v5157
        %v5159 = vpop.f32.mrb[0].mxu0
        %5160 = vmatprep.mubr.f32.mxu0 %v4767
        %5161 = vmatmul.mubr.f32.gmra.mrb[0].mxu0 %v4766
        %v5162 = vpop.f32.mrb[0].mxu0
        %v5163 = vadd.f32 0.0, %v5162
        %v5164 = vpop.f32.mrb[0].mxu0
        %5165 = vmatprep.mubr.f32.mxu0 %v4785
        %5166 = vmatmul.mubr.f32.gmra.mrb[0].mxu0 %v4784
        %v5167 = vpop.f32.mrb[0].mxu0
        %v5168 = vadd.f32 0.0, %v5167
        %v5169 = vpop.f32.mrb[0].mxu0
        %5170 = vmatprep.mubr.f32.mxu0 %v4803
        %5171 = vmatmul.mubr.f32.gmra.mrb[0].mxu0 %v4802
        %v5172 = vpop.f32.mrb[0].mxu0
        %v5173 = vadd.f32 0.0, %v5172
        %v5174 = vpop.f32.mrb[0].mxu0
        %5175 = vmatprep.mubr.f32.mxu0 %v4821
        %5176 = vmatmul.mubr.f32.gmra.mrb[0].mxu0 %v4820
        %v5177 = vpop.f32.mrb[0].mxu0
        %v5178 = vadd.f32 0.0, %v5177
        %v5179 = vpop.f32.mrb[0].mxu0
        %5180 = vmatprep.mubr.f32.mxu0 %v4839
        %5181 = vmatmul.mubr.f32.gmra.mrb[0].mxu0 %v4838
        %v5182 = vpop.f32.mrb[0].mxu0
        %v5183 = vadd.f32 0.0, %v5182
        %v5184 = vpop.f32.mrb[0].mxu0
        %5185 = vmatprep.mubr.f32.mxu0 %v4857
        %5186 = vmatmul.mubr.f32.gmra.mrb[0].mxu0 %v4856
        %v5187 = vpop.f32.mrb[0].mxu0
        %v5188 = vadd.f32 0.0, %v5187
        %v5189 = vpop.f32.mrb[0].mxu0
        %5190 = vmatprep.mubr.f32.mxu0 %v4875
        %5191 = vmatmul.mubr.f32.gmra.mrb[0].mxu0 %v4874
        %v5192 = vpop.f32.mrb[0].mxu0
        %v5193 = vadd.f32 0.0, %v5192
        %v5194 = vpop.f32.mrb[0].mxu0
        %5195 = vmatprep.mubr.f32.mxu0 %v4893
        %5196 = vmatmul.mubr.f32.gmra.mrb[0].mxu0 %v4892
        %v5197 = vpop.f32.mrb[0].mxu0
        %v5198 = vadd.f32 0.0, %v5197
        %v5199 = vpop.f32.mrb[0].mxu0
        %5200 = vmatprep.mubr.f32.mxu0 %v4911
        %5201 = vmatmul.mubr.f32.gmra.mrb[0].mxu0 %v4910
        %v5202 = vpop.f32.mrb[0].mxu0
        %v5203 = vadd.f32 0.0, %v5202
        %v5204 = vpop.f32.mrb[0].mxu0
        %5205 = vmatprep.mubr.f32.mxu0 %v4929
        %5206 = vmatmul.mubr.f32.gmra.mrb[0].mxu0 %v4928
        %v5207 = vpop.f32.mrb[0].mxu0
        %v5208 = vadd.f32 0.0, %v5207
        %v5209 = vpop.f32.mrb[0].mxu0
        %5210 = vdwg.mxu0
        %5211 = vmatprep.subr.mxu0 0.0
        %5212 = vmatpush1.msra.mxu0 %v3970
        %5213 = vmatprep.subr.mxu0 0.0
        %5214 = vmatpush1.msra.mxu0 %v3971
        %5215 = vmatprep.subr.mxu0 0.0
        %5216 = vmatpush1.msra.mxu0 %v3972
        %5217 = vmatprep.subr.mxu0 0.0
        %5218 = vmatpush1.msra.mxu0 %v3973
        %5219 = vmatprep.subr.mxu0 0.0
        %5220 = vmatpush1.msra.mxu0 %v3974
        %5221 = vmatprep.subr.mxu0 0.0
        %5222 = vmatpush1.msra.mxu0 %v3975
        %5223 = vmatprep.subr.mxu0 0.0
        %5224 = vmatpush1.msra.mxu0 %v3976
        %5225 = vmatprep.subr.mxu0 0.0
        %5226 = vmatpush1.msra.mxu0 %v3977
        %5227 = vmatprep.subr.mxu0 0.0
        %5228 = vmatpush1.msra.mxu0 %v3978
        %5229 = vmatprep.subr.mxu0 0.0
        %5230 = vmatpush1.msra.mxu0 %v3979
        %5231 = vmatprep.subr.mxu0 0.0
        %5232 = vmatpush1.msra.mxu0 %v3980
        %5233 = vmatprep.subr.mxu0 0.0
        %5234 = vmatpush1.msra.mxu0 %v3981
        %5235 = vmatprep.subr.mxu0 0.0
        %5236 = vmatpush1.msra.mxu0 %v3982
        %5237 = vmatprep.subr.mxu0 0.0
        %5238 = vmatpush1.msra.mxu0 %v3983
        %5239 = vmatprep.subr.mxu0 0.0
        %5240 = vmatpush1.msra.mxu0 %v3984
        %5241 = vmatprep.subr.mxu0 0.0
        %5242 = vmatpush1.msra.mxu0 %v3985
        %5243 = vmatprep.subr.mxu0 0.0
        %5244 = vmatpush1.msra.mxu0 %v3986
        %5245 = vmatprep.subr.mxu0 0.0
        %5246 = vmatpush1.msra.mxu0 %v3987
        %5247 = vmatprep.subr.mxu0 0.0
        %5248 = vmatpush1.msra.mxu0 %v3988
        %5249 = vmatprep.subr.mxu0 0.0
        %5250 = vmatpush1.msra.mxu0 %v3989
        %5251 = vmatprep.subr.mxu0 0.0
        %5252 = vmatpush1.msra.mxu0 %v3990
        %5253 = vmatprep.subr.mxu0 0.0
        %5254 = vmatpush1.msra.mxu0 %v3991
        %5255 = vmatprep.subr.mxu0 0.0
        %5256 = vmatpush1.msra.mxu0 %v3992
        %5257 = vmatprep.subr.mxu0 0.0
        %5258 = vmatpush1.msra.mxu0 %v3993
        %5259 = vmatprep.subr.mxu0 0.0
        %5260 = vmatpush1.msra.mxu0 %v3994
        %5261 = vmatprep.subr.mxu0 0.0
        %5262 = vmatpush1.msra.mxu0 %v3995
        %5263 = vmatprep.subr.mxu0 0.0
        %5264 = vmatpush1.msra.mxu0 %v3996
        %5265 = vmatprep.subr.mxu0 0.0
        %5266 = vmatpush1.msra.mxu0 %v3997
        %5267 = vmatprep.subr.mxu0 0.0
        %5268 = vmatpush1.msra.mxu0 %v3998
        %5269 = vmatprep.subr.mxu0 0.0
        %5270 = vmatpush1.msra.mxu0 %v3999
        %5271 = vmatprep.subr.mxu0 0.0
        %5272 = vmatpush1.msra.mxu0 %v4000
        %5273 = vmatprep.subr.mxu0 0.0
        %5274 = vmatpush1.msra.mxu0 %v4001
        %5275 = vmatprep.mubr.f32.mxu0 %v4229
        %5276 = vmatmul.mubr.f32.gmra.mrb[0].mxu0 %v4228
        %v5277 = vpop.f32.mrb[0].mxu0
        %v5278 = vadd.f32 %v5013, %v5277
        %v5279 = vpop.f32.mrb[0].mxu0
        %5280 = vmatprep.mubr.f32.mxu0 %v4247
        %5281 = vmatmul.mubr.f32.gmra.mrb[0].mxu0 %v4246
        %v5282 = vpop.f32.mrb[0].mxu0
        %v5283 = vadd.f32 %v5018, %v5282
        %v5284 = vpop.f32.mrb[0].mxu0
        %5285 = vmatprep.mubr.f32.mxu0 %v4265
        %5286 = vmatmul.mubr.f32.gmra.mrb[0].mxu0 %v4264
        %v5287 = vpop.f32.mrb[0].mxu0
        %v5288 = vadd.f32 %v5023, %v5287
        %v5289 = vpop.f32.mrb[0].mxu0
        %5290 = vmatprep.mubr.f32.mxu0 %v4283
        %5291 = vmatmul.mubr.f32.gmra.mrb[0].mxu0 %v4282
        %v5292 = vpop.f32.mrb[0].mxu0
        %v5293 = vadd.f32 %v5028, %v5292
        %v5294 = vpop.f32.mrb[0].mxu0
        %5295 = vmatprep.mubr.f32.mxu0 %v4301
        %5296 = vmatmul.mubr.f32.gmra.mrb[0].mxu0 %v4300
        %v5297 = vpop.f32.mrb[0].mxu0
        %v5298 = vadd.f32 %v5033, %v5297
        %v5299 = vpop.f32.mrb[0].mxu0
        %5300 = vmatprep.mubr.f32.mxu0 %v4319
        %5301 = vmatmul.mubr.f32.gmra.mrb[0].mxu0 %v4318
        %v5302 = vpop.f32.mrb[0].mxu0
        %v5303 = vadd.f32 %v5038, %v5302
        %v5304 = vpop.f32.mrb[0].mxu0
        %5305 = vmatprep.mubr.f32.mxu0 %v4337
        %5306 = vmatmul.mubr.f32.gmra.mrb[0].mxu0 %v4336
        %v5307 = vpop.f32.mrb[0].mxu0
        %v5308 = vadd.f32 %v5043, %v5307
        %v5309 = vpop.f32.mrb[0].mxu0
        %5310 = vmatprep.mubr.f32.mxu0 %v4355
        %5311 = vmatmul.mubr.f32.gmra.mrb[0].mxu0 %v4354
        %v5312 = vpop.f32.mrb[0].mxu0
        %v5313 = vadd.f32 %v5048, %v5312
        %v5314 = vpop.f32.mrb[0].mxu0
        %5315 = vmatprep.mubr.f32.mxu0 %v4373
        %5316 = vmatmul.mubr.f32.gmra.mrb[0].mxu0 %v4372
        %v5317 = vpop.f32.mrb[0].mxu0
        %v5318 = vadd.f32 %v5053, %v5317
        %v5319 = vpop.f32.mrb[0].mxu0
        %5320 = vmatprep.mubr.f32.mxu0 %v4391
        %5321 = vmatmul.mubr.f32.gmra.mrb[0].mxu0 %v4390
        %v5322 = vpop.f32.mrb[0].mxu0
        %v5323 = vadd.f32 %v5058, %v5322
        %v5324 = vpop.f32.mrb[0].mxu0
        %5325 = vmatprep.mubr.f32.mxu0 %v4409
        %5326 = vmatmul.mubr.f32.gmra.mrb[0].mxu0 %v4408
        %v5327 = vpop.f32.mrb[0].mxu0
        %v5328 = vadd.f32 %v5063, %v5327
        %v5329 = vpop.f32.mrb[0].mxu0
        %5330 = vmatprep.mubr.f32.mxu0 %v4427
        %5331 = vmatmul.mubr.f32.gmra.mrb[0].mxu0 %v4426
        %v5332 = vpop.f32.mrb[0].mxu0
        %v5333 = vadd.f32 %v5068, %v5332
        %v5334 = vpop.f32.mrb[0].mxu0
        %5335 = vmatprep.mubr.f32.mxu0 %v4445
        %5336 = vmatmul.mubr.f32.gmra.mrb[0].mxu0 %v4444
        %v5337 = vpop.f32.mrb[0].mxu0
        %v5338 = vadd.f32 %v5073, %v5337
        %v5339 = vpop.f32.mrb[0].mxu0
        %5340 = vmatprep.mubr.f32.mxu0 %v4463
        %5341 = vmatmul.mubr.f32.gmra.mrb[0].mxu0 %v4462
        %v5342 = vpop.f32.mrb[0].mxu0
        %v5343 = vadd.f32 %v5078, %v5342
        %v5344 = vpop.f32.mrb[0].mxu0
        %5345 = vmatprep.mubr.f32.mxu0 %v4481
        %5346 = vmatmul.mubr.f32.gmra.mrb[0].mxu0 %v4480
        %v5347 = vpop.f32.mrb[0].mxu0
        %v5348 = vadd.f32 %v5083, %v5347
        %v5349 = vpop.f32.mrb[0].mxu0
        %5350 = vmatprep.mubr.f32.mxu0 %v4499
        %5351 = vmatmul.mubr.f32.gmra.mrb[0].mxu0 %v4498
        %v5352 = vpop.f32.mrb[0].mxu0
        %v5353 = vadd.f32 %v5088, %v5352
        %v5354 = vpop.f32.mrb[0].mxu0
        %5355 = vmatprep.mubr.f32.mxu0 %v4517
        %5356 = vmatmul.mubr.f32.gmra.mrb[0].mxu0 %v4516
        %v5357 = vpop.f32.mrb[0].mxu0
        %v5358 = vadd.f32 %v5093, %v5357
        %v5359 = vpop.f32.mrb[0].mxu0
        %5360 = vmatprep.mubr.f32.mxu0 %v4535
        %5361 = vmatmul.mubr.f32.gmra.mrb[0].mxu0 %v4534
        %v5362 = vpop.f32.mrb[0].mxu0
        %v5363 = vadd.f32 %v5098, %v5362
        %v5364 = vpop.f32.mrb[0].mxu0
        %5365 = vmatprep.mubr.f32.mxu0 %v4553
        %5366 = vmatmul.mubr.f32.gmra.mrb[0].mxu0 %v4552
        %v5367 = vpop.f32.mrb[0].mxu0
        %v5368 = vadd.f32 %v5103, %v5367
        %v5369 = vpop.f32.mrb[0].mxu0
        %5370 = vmatprep.mubr.f32.mxu0 %v4571
        %5371 = vmatmul.mubr.f32.gmra.mrb[0].mxu0 %v4570
        %v5372 = vpop.f32.mrb[0].mxu0
        %v5373 = vadd.f32 %v5108, %v5372
        %v5374 = vpop.f32.mrb[0].mxu0
        %5375 = vmatprep.mubr.f32.mxu0 %v4589
        %5376 = vmatmul.mubr.f32.gmra.mrb[0].mxu0 %v4588
        %v5377 = vpop.f32.mrb[0].mxu0
        %v5378 = vadd.f32 %v5113, %v5377
        %v5379 = vpop.f32.mrb[0].mxu0
        %5380 = vmatprep.mubr.f32.mxu0 %v4607
        %5381 = vmatmul.mubr.f32.gmra.mrb[0].mxu0 %v4606
        %v5382 = vpop.f32.mrb[0].mxu0
        %v5383 = vadd.f32 %v5118, %v5382
        %v5384 = vpop.f32.mrb[0].mxu0
        %5385 = vmatprep.mubr.f32.mxu0 %v4625
        %5386 = vmatmul.mubr.f32.gmra.mrb[0].mxu0 %v4624
        %v5387 = vpop.f32.mrb[0].mxu0
        %v5388 = vadd.f32 %v5123, %v5387
        %v5389 = vpop.f32.mrb[0].mxu0
        %5390 = vmatprep.mubr.f32.mxu0 %v4643
        %5391 = vmatmul.mubr.f32.gmra.mrb[0].mxu0 %v4642
        %v5392 = vpop.f32.mrb[0].mxu0
        %v5393 = vadd.f32 %v5128, %v5392
        %v5394 = vpop.f32.mrb[0].mxu0
        %5395 = vmatprep.mubr.f32.mxu0 %v4661
        %5396 = vmatmul.mubr.f32.gmra.mrb[0].mxu0 %v4660
        %v5397 = vpop.f32.mrb[0].mxu0
        %v5398 = vadd.f32 %v5133, %v5397
        %v5399 = vpop.f32.mrb[0].mxu0
        %5400 = vmatprep.mubr.f32.mxu0 %v4679
        %5401 = vmatmul.mubr.f32.gmra.mrb[0].mxu0 %v4678
        %v5402 = vpop.f32.mrb[0].mxu0
        %v5403 = vadd.f32 %v5138, %v5402
        %v5404 = vpop.f32.mrb[0].mxu0
        %5405 = vmatprep.mubr.f32.mxu0 %v4697
        %5406 = vmatmul.mubr.f32.gmra.mrb[0].mxu0 %v4696
        %v5407 = vpop.f32.mrb[0].mxu0
        %v5408 = vadd.f32 %v5143, %v5407
        %v5409 = vpop.f32.mrb[0].mxu0
        %5410 = vmatprep.mubr.f32.mxu0 %v4715
        %5411 = vmatmul.mubr.f32.gmra.mrb[0].mxu0 %v4714
        %v5412 = vpop.f32.mrb[0].mxu0
        %v5413 = vadd.f32 %v5148, %v5412
        %v5414 = vpop.f32.mrb[0].mxu0
        %5415 = vmatprep.mubr.f32.mxu0 %v4733
        %5416 = vmatmul.mubr.f32.gmra.mrb[0].mxu0 %v4732
        %v5417 = vpop.f32.mrb[0].mxu0
        %v5418 = vadd.f32 %v5153, %v5417
        %v5419 = vpop.f32.mrb[0].mxu0
        %5420 = vmatprep.mubr.f32.mxu0 %v4751
        %5421 = vmatmul.mubr.f32.gmra.mrb[0].mxu0 %v4750
        %v5422 = vpop.f32.mrb[0].mxu0
        %v5423 = vadd.f32 %v5158, %v5422
        %v5424 = vpop.f32.mrb[0].mxu0
        %5425 = vmatprep.mubr.f32.mxu0 %v4769
        %5426 = vmatmul.mubr.f32.gmra.mrb[0].mxu0 %v4768
        %v5427 = vpop.f32.mrb[0].mxu0
        %v5428 = vadd.f32 %v5163, %v5427
        %v5429 = vpop.f32.mrb[0].mxu0
        %5430 = vmatprep.mubr.f32.mxu0 %v4787
        %5431 = vmatmul.mubr.f32.gmra.mrb[0].mxu0 %v4786
        %v5432 = vpop.f32.mrb[0].mxu0
        %v5433 = vadd.f32 %v5168, %v5432
        %v5434 = vpop.f32.mrb[0].mxu0
        %5435 = vmatprep.mubr.f32.mxu0 %v4805
        %5436 = vmatmul.mubr.f32.gmra.mrb[0].mxu0 %v4804
        %v5437 = vpop.f32.mrb[0].mxu0
        %v5438 = vadd.f32 %v5173, %v5437
        %v5439 = vpop.f32.mrb[0].mxu0
        %5440 = vmatprep.mubr.f32.mxu0 %v4823
        %5441 = vmatmul.mubr.f32.gmra.mrb[0].mxu0 %v4822
        %v5442 = vpop.f32.mrb[0].mxu0
        %v5443 = vadd.f32 %v5178, %v5442
        %v5444 = vpop.f32.mrb[0].mxu0
        %5445 = vmatprep.mubr.f32.mxu0 %v4841
        %5446 = vmatmul.mubr.f32.gmra.mrb[0].mxu0 %v4840
        %v5447 = vpop.f32.mrb[0].mxu0
        %v5448 = vadd.f32 %v5183, %v5447
        %v5449 = vpop.f32.mrb[0].mxu0
        %5450 = vmatprep.mubr.f32.mxu0 %v4859
        %5451 = vmatmul.mubr.f32.gmra.mrb[0].mxu0 %v4858
        %v5452 = vpop.f32.mrb[0].mxu0
        %v5453 = vadd.f32 %v5188, %v5452
        %v5454 = vpop.f32.mrb[0].mxu0
        %5455 = vmatprep.mubr.f32.mxu0 %v4877
        %5456 = vmatmul.mubr.f32.gmra.mrb[0].mxu0 %v4876
        %v5457 = vpop.f32.mrb[0].mxu0
        %v5458 = vadd.f32 %v5193, %v5457
        %v5459 = vpop.f32.mrb[0].mxu0
        %5460 = vmatprep.mubr.f32.mxu0 %v4895
        %5461 = vmatmul.mubr.f32.gmra.mrb[0].mxu0 %v4894
        %v5462 = vpop.f32.mrb[0].mxu0
        %v5463 = vadd.f32 %v5198, %v5462
        %v5464 = vpop.f32.mrb[0].mxu0
        %5465 = vmatprep.mubr.f32.mxu0 %v4913
        %5466 = vmatmul.mubr.f32.gmra.mrb[0].mxu0 %v4912
        %v5467 = vpop.f32.mrb[0].mxu0
        %v5468 = vadd.f32 %v5203, %v5467
        %v5469 = vpop.f32.mrb[0].mxu0
        %5470 = vmatprep.mubr.f32.mxu0 %v4931
        %5471 = vmatmul.mubr.f32.gmra.mrb[0].mxu0 %v4930
        %v5472 = vpop.f32.mrb[0].mxu0
        %v5473 = vadd.f32 %v5208, %v5472
        %v5474 = vpop.f32.mrb[0].mxu0
        %5475 = vdwg.mxu0
        %5476 = vmatprep.subr.mxu0 0.0
        %5477 = vmatpush1.msra.mxu0 %v4002
        %5478 = vmatprep.subr.mxu0 0.0
        %5479 = vmatpush1.msra.mxu0 %v4003
        %5480 = vmatprep.subr.mxu0 0.0
        %5481 = vmatpush1.msra.mxu0 %v4004
        %5482 = vmatprep.subr.mxu0 0.0
        %5483 = vmatpush1.msra.mxu0 %v4005
        %5484 = vmatprep.subr.mxu0 0.0
        %5485 = vmatpush1.msra.mxu0 %v4006
        %5486 = vmatprep.subr.mxu0 0.0
        %5487 = vmatpush1.msra.mxu0 %v4007
        %5488 = vmatprep.subr.mxu0 0.0
        %5489 = vmatpush1.msra.mxu0 %v4008
        %5490 = vmatprep.subr.mxu0 0.0
        %5491 = vmatpush1.msra.mxu0 %v4009
        %5492 = vmatprep.subr.mxu0 0.0
        %5493 = vmatpush1.msra.mxu0 %v4010
        %5494 = vmatprep.subr.mxu0 0.0
        %5495 = vmatpush1.msra.mxu0 %v4011
        %5496 = vmatprep.subr.mxu0 0.0
        %5497 = vmatpush1.msra.mxu0 %v4012
        %5498 = vmatprep.subr.mxu0 0.0
        %5499 = vmatpush1.msra.mxu0 %v4013
        %5500 = vmatprep.subr.mxu0 0.0
        %5501 = vmatpush1.msra.mxu0 %v4014
        %5502 = vmatprep.subr.mxu0 0.0
        %5503 = vmatpush1.msra.mxu0 %v4015
        %5504 = vmatprep.subr.mxu0 0.0
        %5505 = vmatpush1.msra.mxu0 %v4016
        %5506 = vmatprep.subr.mxu0 0.0
        %5507 = vmatpush1.msra.mxu0 %v4017
        %5508 = vmatprep.subr.mxu0 0.0
        %5509 = vmatpush1.msra.mxu0 %v4018
        %5510 = vmatprep.subr.mxu0 0.0
        %5511 = vmatpush1.msra.mxu0 %v4019
        %5512 = vmatprep.subr.mxu0 0.0
        %5513 = vmatpush1.msra.mxu0 %v4020
        %5514 = vmatprep.subr.mxu0 0.0
        %5515 = vmatpush1.msra.mxu0 %v4021
        %5516 = vmatprep.subr.mxu0 0.0
        %5517 = vmatpush1.msra.mxu0 %v4022
        %5518 = vmatprep.subr.mxu0 0.0
        %5519 = vmatpush1.msra.mxu0 %v4023
        %5520 = vmatprep.subr.mxu0 0.0
        %5521 = vmatpush1.msra.mxu0 %v4024
        %5522 = vmatprep.subr.mxu0 0.0
        %5523 = vmatpush1.msra.mxu0 %v4025
        %5524 = vmatprep.subr.mxu0 0.0
        %5525 = vmatpush1.msra.mxu0 %v4026
        %5526 = vmatprep.subr.mxu0 0.0
        %5527 = vmatpush1.msra.mxu0 %v4027
        %5528 = vmatprep.subr.mxu0 0.0
        %5529 = vmatpush1.msra.mxu0 %v4028
        %5530 = vmatprep.subr.mxu0 0.0
        %5531 = vmatpush1.msra.mxu0 %v4029
        %5532 = vmatprep.subr.mxu0 0.0
        %5533 = vmatpush1.msra.mxu0 %v4030
        %5534 = vmatprep.subr.mxu0 0.0
        %5535 = vmatpush1.msra.mxu0 %v4031
        %5536 = vmatprep.subr.mxu0 0.0
        %5537 = vmatpush1.msra.mxu0 %v4032
        %5538 = vmatprep.subr.mxu0 0.0
        %5539 = vmatpush1.msra.mxu0 %v4033
        %5540 = vmatprep.mubr.f32.mxu0 %v4231
        %5541 = vmatmul.mubr.f32.gmra.mrb[0].mxu0 %v4230
        %v5542 = vpop.f32.mrb[0].mxu0
        %v5543 = vadd.f32 %v5278, %v5542
        %v5544 = vpop.f32.mrb[0].mxu0
        %5545 = vmatprep.mubr.f32.mxu0 %v4249
        %5546 = vmatmul.mubr.f32.gmra.mrb[0].mxu0 %v4248
        %v5547 = vpop.f32.mrb[0].mxu0
        %v5548 = vadd.f32 %v5283, %v5547
        %v5549 = vpop.f32.mrb[0].mxu0
        %5550 = vmatprep.mubr.f32.mxu0 %v4267
        %5551 = vmatmul.mubr.f32.gmra.mrb[0].mxu0 %v4266
        %v5552 = vpop.f32.mrb[0].mxu0
        %v5553 = vadd.f32 %v5288, %v5552
        %v5554 = vpop.f32.mrb[0].mxu0
        %5555 = vmatprep.mubr.f32.mxu0 %v4285
        %5556 = vmatmul.mubr.f32.gmra.mrb[0].mxu0 %v4284
        %v5557 = vpop.f32.mrb[0].mxu0
        %v5558 = vadd.f32 %v5293, %v5557
        %v5559 = vpop.f32.mrb[0].mxu0
        %5560 = vmatprep.mubr.f32.mxu0 %v4303
        %5561 = vmatmul.mubr.f32.gmra.mrb[0].mxu0 %v4302
        %v5562 = vpop.f32.mrb[0].mxu0
        %v5563 = vadd.f32 %v5298, %v5562
        %v5564 = vpop.f32.mrb[0].mxu0
        %5565 = vmatprep.mubr.f32.mxu0 %v4321
        %5566 = vmatmul.mubr.f32.gmra.mrb[0].mxu0 %v4320
        %v5567 = vpop.f32.mrb[0].mxu0
        %v5568 = vadd.f32 %v5303, %v5567
        %v5569 = vpop.f32.mrb[0].mxu0
        %5570 = vmatprep.mubr.f32.mxu0 %v4339
        %5571 = vmatmul.mubr.f32.gmra.mrb[0].mxu0 %v4338
        %v5572 = vpop.f32.mrb[0].mxu0
        %v5573 = vadd.f32 %v5308, %v5572
        %v5574 = vpop.f32.mrb[0].mxu0
        %5575 = vmatprep.mubr.f32.mxu0 %v4357
        %5576 = vmatmul.mubr.f32.gmra.mrb[0].mxu0 %v4356
        %v5577 = vpop.f32.mrb[0].mxu0
        %v5578 = vadd.f32 %v5313, %v5577
        %v5579 = vpop.f32.mrb[0].mxu0
        %5580 = vmatprep.mubr.f32.mxu0 %v4375
        %5581 = vmatmul.mubr.f32.gmra.mrb[0].mxu0 %v4374
        %v5582 = vpop.f32.mrb[0].mxu0
        %v5583 = vadd.f32 %v5318, %v5582
        %v5584 = vpop.f32.mrb[0].mxu0
        %5585 = vmatprep.mubr.f32.mxu0 %v4393
        %5586 = vmatmul.mubr.f32.gmra.mrb[0].mxu0 %v4392
        %v5587 = vpop.f32.mrb[0].mxu0
        %v5588 = vadd.f32 %v5323, %v5587
        %v5589 = vpop.f32.mrb[0].mxu0
        %5590 = vmatprep.mubr.f32.mxu0 %v4411
        %5591 = vmatmul.mubr.f32.gmra.mrb[0].mxu0 %v4410
        %v5592 = vpop.f32.mrb[0].mxu0
        %v5593 = vadd.f32 %v5328, %v5592
        %v5594 = vpop.f32.mrb[0].mxu0
        %5595 = vmatprep.mubr.f32.mxu0 %v4429
        %5596 = vmatmul.mubr.f32.gmra.mrb[0].mxu0 %v4428
        %v5597 = vpop.f32.mrb[0].mxu0
        %v5598 = vadd.f32 %v5333, %v5597
        %v5599 = vpop.f32.mrb[0].mxu0
        %5600 = vmatprep.mubr.f32.mxu0 %v4447
        %5601 = vmatmul.mubr.f32.gmra.mrb[0].mxu0 %v4446
        %v5602 = vpop.f32.mrb[0].mxu0
        %v5603 = vadd.f32 %v5338, %v5602
        %v5604 = vpop.f32.mrb[0].mxu0
        %5605 = vmatprep.mubr.f32.mxu0 %v4465
        %5606 = vmatmul.mubr.f32.gmra.mrb[0].mxu0 %v4464
        %v5607 = vpop.f32.mrb[0].mxu0
        %v5608 = vadd.f32 %v5343, %v5607
        %v5609 = vpop.f32.mrb[0].mxu0
        %5610 = vmatprep.mubr.f32.mxu0 %v4483
        %5611 = vmatmul.mubr.f32.gmra.mrb[0].mxu0 %v4482
        %v5612 = vpop.f32.mrb[0].mxu0
        %v5613 = vadd.f32 %v5348, %v5612
        %v5614 = vpop.f32.mrb[0].mxu0
        %5615 = vmatprep.mubr.f32.mxu0 %v4501
        %5616 = vmatmul.mubr.f32.gmra.mrb[0].mxu0 %v4500
        %v5617 = vpop.f32.mrb[0].mxu0
        %v5618 = vadd.f32 %v5353, %v5617
        %v5619 = vpop.f32.mrb[0].mxu0
        %5620 = vmatprep.mubr.f32.mxu0 %v4519
        %5621 = vmatmul.mubr.f32.gmra.mrb[0].mxu0 %v4518
        %v5622 = vpop.f32.mrb[0].mxu0
        %v5623 = vadd.f32 %v5358, %v5622
        %v5624 = vpop.f32.mrb[0].mxu0
        %5625 = vmatprep.mubr.f32.mxu0 %v4537
        %5626 = vmatmul.mubr.f32.gmra.mrb[0].mxu0 %v4536
        %v5627 = vpop.f32.mrb[0].mxu0
        %v5628 = vadd.f32 %v5363, %v5627
        %v5629 = vpop.f32.mrb[0].mxu0
        %5630 = vmatprep.mubr.f32.mxu0 %v4555
        %5631 = vmatmul.mubr.f32.gmra.mrb[0].mxu0 %v4554
        %v5632 = vpop.f32.mrb[0].mxu0
        %v5633 = vadd.f32 %v5368, %v5632
        %v5634 = vpop.f32.mrb[0].mxu0
        %5635 = vmatprep.mubr.f32.mxu0 %v4573
        %5636 = vmatmul.mubr.f32.gmra.mrb[0].mxu0 %v4572
        %v5637 = vpop.f32.mrb[0].mxu0
        %v5638 = vadd.f32 %v5373, %v5637
        %v5639 = vpop.f32.mrb[0].mxu0
        %5640 = vmatprep.mubr.f32.mxu0 %v4591
        %5641 = vmatmul.mubr.f32.gmra.mrb[0].mxu0 %v4590
        %v5642 = vpop.f32.mrb[0].mxu0
        %v5643 = vadd.f32 %v5378, %v5642
        %v5644 = vpop.f32.mrb[0].mxu0
        %5645 = vmatprep.mubr.f32.mxu0 %v4609
        %5646 = vmatmul.mubr.f32.gmra.mrb[0].mxu0 %v4608
        %v5647 = vpop.f32.mrb[0].mxu0
        %v5648 = vadd.f32 %v5383, %v5647
        %v5649 = vpop.f32.mrb[0].mxu0
        %5650 = vmatprep.mubr.f32.mxu0 %v4627
        %5651 = vmatmul.mubr.f32.gmra.mrb[0].mxu0 %v4626
        %v5652 = vpop.f32.mrb[0].mxu0
        %v5653 = vadd.f32 %v5388, %v5652
        %v5654 = vpop.f32.mrb[0].mxu0
        %5655 = vmatprep.mubr.f32.mxu0 %v4645
        %5656 = vmatmul.mubr.f32.gmra.mrb[0].mxu0 %v4644
        %v5657 = vpop.f32.mrb[0].mxu0
        %v5658 = vadd.f32 %v5393, %v5657
        %v5659 = vpop.f32.mrb[0].mxu0
        %5660 = vmatprep.mubr.f32.mxu0 %v4663
        %5661 = vmatmul.mubr.f32.gmra.mrb[0].mxu0 %v4662
        %v5662 = vpop.f32.mrb[0].mxu0
        %v5663 = vadd.f32 %v5398, %v5662
        %v5664 = vpop.f32.mrb[0].mxu0
        %5665 = vmatprep.mubr.f32.mxu0 %v4681
        %5666 = vmatmul.mubr.f32.gmra.mrb[0].mxu0 %v4680
        %v5667 = vpop.f32.mrb[0].mxu0
        %v5668 = vadd.f32 %v5403, %v5667
        %v5669 = vpop.f32.mrb[0].mxu0
        %5670 = vmatprep.mubr.f32.mxu0 %v4699
        %5671 = vmatmul.mubr.f32.gmra.mrb[0].mxu0 %v4698
        %v5672 = vpop.f32.mrb[0].mxu0
        %v5673 = vadd.f32 %v5408, %v5672
        %v5674 = vpop.f32.mrb[0].mxu0
        %5675 = vmatprep.mubr.f32.mxu0 %v4717
        %5676 = vmatmul.mubr.f32.gmra.mrb[0].mxu0 %v4716
        %v5677 = vpop.f32.mrb[0].mxu0
        %v5678 = vadd.f32 %v5413, %v5677
        %v5679 = vpop.f32.mrb[0].mxu0
        %5680 = vmatprep.mubr.f32.mxu0 %v4735
        %5681 = vmatmul.mubr.f32.gmra.mrb[0].mxu0 %v4734
        %v5682 = vpop.f32.mrb[0].mxu0
        %v5683 = vadd.f32 %v5418, %v5682
        %v5684 = vpop.f32.mrb[0].mxu0
        %5685 = vmatprep.mubr.f32.mxu0 %v4753
        %5686 = vmatmul.mubr.f32.gmra.mrb[0].mxu0 %v4752
        %v5687 = vpop.f32.mrb[0].mxu0
        %v5688 = vadd.f32 %v5423, %v5687
        %v5689 = vpop.f32.mrb[0].mxu0
        %5690 = vmatprep.mubr.f32.mxu0 %v4771
        %5691 = vmatmul.mubr.f32.gmra.mrb[0].mxu0 %v4770
        %v5692 = vpop.f32.mrb[0].mxu0
        %v5693 = vadd.f32 %v5428, %v5692
        %v5694 = vpop.f32.mrb[0].mxu0
        %5695 = vmatprep.mubr.f32.mxu0 %v4789
        %5696 = vmatmul.mubr.f32.gmra.mrb[0].mxu0 %v4788
        %v5697 = vpop.f32.mrb[0].mxu0
        %v5698 = vadd.f32 %v5433, %v5697
        %v5699 = vpop.f32.mrb[0].mxu0
        %5700 = vmatprep.mubr.f32.mxu0 %v4807
        %5701 = vmatmul.mubr.f32.gmra.mrb[0].mxu0 %v4806
        %v5702 = vpop.f32.mrb[0].mxu0
        %v5703 = vadd.f32 %v5438, %v5702
        %v5704 = vpop.f32.mrb[0].mxu0
        %5705 = vmatprep.mubr.f32.mxu0 %v4825
        %5706 = vmatmul.mubr.f32.gmra.mrb[0].mxu0 %v4824
        %v5707 = vpop.f32.mrb[0].mxu0
        %v5708 = vadd.f32 %v5443, %v5707
        %v5709 = vpop.f32.mrb[0].mxu0
        %5710 = vmatprep.mubr.f32.mxu0 %v4843
        %5711 = vmatmul.mubr.f32.gmra.mrb[0].mxu0 %v4842
        %v5712 = vpop.f32.mrb[0].mxu0
        %v5713 = vadd.f32 %v5448, %v5712
        %v5714 = vpop.f32.mrb[0].mxu0
        %5715 = vmatprep.mubr.f32.mxu0 %v4861
        %5716 = vmatmul.mubr.f32.gmra.mrb[0].mxu0 %v4860
        %v5717 = vpop.f32.mrb[0].mxu0
        %v5718 = vadd.f32 %v5453, %v5717
        %v5719 = vpop.f32.mrb[0].mxu0
        %5720 = vmatprep.mubr.f32.mxu0 %v4879
        %5721 = vmatmul.mubr.f32.gmra.mrb[0].mxu0 %v4878
        %v5722 = vpop.f32.mrb[0].mxu0
        %v5723 = vadd.f32 %v5458, %v5722
        %v5724 = vpop.f32.mrb[0].mxu0
        %5725 = vmatprep.mubr.f32.mxu0 %v4897
        %5726 = vmatmul.mubr.f32.gmra.mrb[0].mxu0 %v4896
        %v5727 = vpop.f32.mrb[0].mxu0
        %v5728 = vadd.f32 %v5463, %v5727
        %v5729 = vpop.f32.mrb[0].mxu0
        %5730 = vmatprep.mubr.f32.mxu0 %v4915
        %5731 = vmatmul.mubr.f32.gmra.mrb[0].mxu0 %v4914
        %v5732 = vpop.f32.mrb[0].mxu0
        %v5733 = vadd.f32 %v5468, %v5732
        %v5734 = vpop.f32.mrb[0].mxu0
        %5735 = vmatprep.mubr.f32.mxu0 %v4933
        %5736 = vmatmul.mubr.f32.gmra.mrb[0].mxu0 %v4932
        %v5737 = vpop.f32.mrb[0].mxu0
        %v5738 = vadd.f32 %v5473, %v5737
        %v5739 = vpop.f32.mrb[0].mxu0
        %5740 = vdwg.mxu0
        %5741 = vmatprep.subr.mxu0 0.0
        %5742 = vmatpush1.msra.mxu0 %v4034
        %5743 = vmatprep.subr.mxu0 0.0
        %5744 = vmatpush1.msra.mxu0 %v4035
        %5745 = vmatprep.subr.mxu0 0.0
        %5746 = vmatpush1.msra.mxu0 %v4036
        %5747 = vmatprep.subr.mxu0 0.0
        %5748 = vmatpush1.msra.mxu0 %v4037
        %5749 = vmatprep.subr.mxu0 0.0
        %5750 = vmatpush1.msra.mxu0 %v4038
        %5751 = vmatprep.subr.mxu0 0.0
        %5752 = vmatpush1.msra.mxu0 %v4039
        %5753 = vmatprep.subr.mxu0 0.0
        %5754 = vmatpush1.msra.mxu0 %v4040
        %5755 = vmatprep.subr.mxu0 0.0
        %5756 = vmatpush1.msra.mxu0 %v4041
        %5757 = vmatprep.subr.mxu0 0.0
        %5758 = vmatpush1.msra.mxu0 %v4042
        %5759 = vmatprep.subr.mxu0 0.0
        %5760 = vmatpush1.msra.mxu0 %v4043
        %5761 = vmatprep.subr.mxu0 0.0
        %5762 = vmatpush1.msra.mxu0 %v4044
        %5763 = vmatprep.subr.mxu0 0.0
        %5764 = vmatpush1.msra.mxu0 %v4045
        %5765 = vmatprep.subr.mxu0 0.0
        %5766 = vmatpush1.msra.mxu0 %v4046
        %5767 = vmatprep.subr.mxu0 0.0
        %5768 = vmatpush1.msra.mxu0 %v4047
        %5769 = vmatprep.subr.mxu0 0.0
        %5770 = vmatpush1.msra.mxu0 %v4048
        %5771 = vmatprep.subr.mxu0 0.0
        %5772 = vmatpush1.msra.mxu0 %v4049
        %5773 = vmatprep.subr.mxu0 0.0
        %5774 = vmatpush1.msra.mxu0 %v4050
        %5775 = vmatprep.subr.mxu0 0.0
        %5776 = vmatpush1.msra.mxu0 %v4051
        %5777 = vmatprep.subr.mxu0 0.0
        %5778 = vmatpush1.msra.mxu0 %v4052
        %5779 = vmatprep.subr.mxu0 0.0
        %5780 = vmatpush1.msra.mxu0 %v4053
        %5781 = vmatprep.subr.mxu0 0.0
        %5782 = vmatpush1.msra.mxu0 %v4054
        %5783 = vmatprep.subr.mxu0 0.0
        %5784 = vmatpush1.msra.mxu0 %v4055
        %5785 = vmatprep.subr.mxu0 0.0
        %5786 = vmatpush1.msra.mxu0 %v4056
        %5787 = vmatprep.subr.mxu0 0.0
        %5788 = vmatpush1.msra.mxu0 %v4057
        %5789 = vmatprep.subr.mxu0 0.0
        %5790 = vmatpush1.msra.mxu0 %v4058
        %5791 = vmatprep.subr.mxu0 0.0
        %5792 = vmatpush1.msra.mxu0 %v4059
        %5793 = vmatprep.subr.mxu0 0.0
        %5794 = vmatpush1.msra.mxu0 %v4060
        %5795 = vmatprep.subr.mxu0 0.0
        %5796 = vmatpush1.msra.mxu0 %v4061
        %5797 = vmatprep.subr.mxu0 0.0
        %5798 = vmatpush1.msra.mxu0 %v4062
        %5799 = vmatprep.subr.mxu0 0.0
        %5800 = vmatpush1.msra.mxu0 %v4063
        %5801 = vmatprep.subr.mxu0 0.0
        %5802 = vmatpush1.msra.mxu0 %v4064
        %5803 = vmatprep.subr.mxu0 0.0
        %5804 = vmatpush1.msra.mxu0 %v4065
        %5805 = vmatprep.mubr.f32.mxu0 %v4233
        %5806 = vmatmul.mubr.f32.gmra.mrb[0].mxu0 %v4232
        %v5807 = vpop.f32.mrb[0].mxu0
        %v5808 = vadd.f32 %v5543, %v5807
        %v5809 = vpop.f32.mrb[0].mxu0
        %5810 = vmatprep.mubr.f32.mxu0 %v4251
        %5811 = vmatmul.mubr.f32.gmra.mrb[0].mxu0 %v4250
        %v5812 = vpop.f32.mrb[0].mxu0
        %v5813 = vadd.f32 %v5548, %v5812
        %v5814 = vpop.f32.mrb[0].mxu0
        %5815 = vmatprep.mubr.f32.mxu0 %v4269
        %5816 = vmatmul.mubr.f32.gmra.mrb[0].mxu0 %v4268
        %v5817 = vpop.f32.mrb[0].mxu0
        %v5818 = vadd.f32 %v5553, %v5817
        %v5819 = vpop.f32.mrb[0].mxu0
        %5820 = vmatprep.mubr.f32.mxu0 %v4287
        %5821 = vmatmul.mubr.f32.gmra.mrb[0].mxu0 %v4286
        %v5822 = vpop.f32.mrb[0].mxu0
        %v5823 = vadd.f32 %v5558, %v5822
        %v5824 = vpop.f32.mrb[0].mxu0
        %5825 = vmatprep.mubr.f32.mxu0 %v4305
        %5826 = vmatmul.mubr.f32.gmra.mrb[0].mxu0 %v4304
        %v5827 = vpop.f32.mrb[0].mxu0
        %v5828 = vadd.f32 %v5563, %v5827
        %v5829 = vpop.f32.mrb[0].mxu0
        %5830 = vmatprep.mubr.f32.mxu0 %v4323
        %5831 = vmatmul.mubr.f32.gmra.mrb[0].mxu0 %v4322
        %v5832 = vpop.f32.mrb[0].mxu0
        %v5833 = vadd.f32 %v5568, %v5832
        %v5834 = vpop.f32.mrb[0].mxu0
        %5835 = vmatprep.mubr.f32.mxu0 %v4341
        %5836 = vmatmul.mubr.f32.gmra.mrb[0].mxu0 %v4340
        %v5837 = vpop.f32.mrb[0].mxu0
        %v5838 = vadd.f32 %v5573, %v5837
        %v5839 = vpop.f32.mrb[0].mxu0
        %5840 = vmatprep.mubr.f32.mxu0 %v4359
        %5841 = vmatmul.mubr.f32.gmra.mrb[0].mxu0 %v4358
        %v5842 = vpop.f32.mrb[0].mxu0
        %v5843 = vadd.f32 %v5578, %v5842
        %v5844 = vpop.f32.mrb[0].mxu0
        %5845 = vmatprep.mubr.f32.mxu0 %v4377
        %5846 = vmatmul.mubr.f32.gmra.mrb[0].mxu0 %v4376
        %v5847 = vpop.f32.mrb[0].mxu0
        %v5848 = vadd.f32 %v5583, %v5847
        %v5849 = vpop.f32.mrb[0].mxu0
        %5850 = vmatprep.mubr.f32.mxu0 %v4395
        %5851 = vmatmul.mubr.f32.gmra.mrb[0].mxu0 %v4394
        %v5852 = vpop.f32.mrb[0].mxu0
        %v5853 = vadd.f32 %v5588, %v5852
        %v5854 = vpop.f32.mrb[0].mxu0
        %5855 = vmatprep.mubr.f32.mxu0 %v4413
        %5856 = vmatmul.mubr.f32.gmra.mrb[0].mxu0 %v4412
        %v5857 = vpop.f32.mrb[0].mxu0
        %v5858 = vadd.f32 %v5593, %v5857
        %v5859 = vpop.f32.mrb[0].mxu0
        %5860 = vmatprep.mubr.f32.mxu0 %v4431
        %5861 = vmatmul.mubr.f32.gmra.mrb[0].mxu0 %v4430
        %v5862 = vpop.f32.mrb[0].mxu0
        %v5863 = vadd.f32 %v5598, %v5862
        %v5864 = vpop.f32.mrb[0].mxu0
        %5865 = vmatprep.mubr.f32.mxu0 %v4449
        %5866 = vmatmul.mubr.f32.gmra.mrb[0].mxu0 %v4448
        %v5867 = vpop.f32.mrb[0].mxu0
        %v5868 = vadd.f32 %v5603, %v5867
        %v5869 = vpop.f32.mrb[0].mxu0
        %5870 = vmatprep.mubr.f32.mxu0 %v4467
        %5871 = vmatmul.mubr.f32.gmra.mrb[0].mxu0 %v4466
        %v5872 = vpop.f32.mrb[0].mxu0
        %v5873 = vadd.f32 %v5608, %v5872
        %v5874 = vpop.f32.mrb[0].mxu0
        %5875 = vmatprep.mubr.f32.mxu0 %v4485
        %5876 = vmatmul.mubr.f32.gmra.mrb[0].mxu0 %v4484
        %v5877 = vpop.f32.mrb[0].mxu0
        %v5878 = vadd.f32 %v5613, %v5877
        %v5879 = vpop.f32.mrb[0].mxu0
        %5880 = vmatprep.mubr.f32.mxu0 %v4503
        %5881 = vmatmul.mubr.f32.gmra.mrb[0].mxu0 %v4502
        %v5882 = vpop.f32.mrb[0].mxu0
        %v5883 = vadd.f32 %v5618, %v5882
        %v5884 = vpop.f32.mrb[0].mxu0
        %5885 = vmatprep.mubr.f32.mxu0 %v4521
        %5886 = vmatmul.mubr.f32.gmra.mrb[0].mxu0 %v4520
        %v5887 = vpop.f32.mrb[0].mxu0
        %v5888 = vadd.f32 %v5623, %v5887
        %v5889 = vpop.f32.mrb[0].mxu0
        %5890 = vmatprep.mubr.f32.mxu0 %v4539
        %5891 = vmatmul.mubr.f32.gmra.mrb[0].mxu0 %v4538
        %v5892 = vpop.f32.mrb[0].mxu0
        %v5893 = vadd.f32 %v5628, %v5892
        %v5894 = vpop.f32.mrb[0].mxu0
        %5895 = vmatprep.mubr.f32.mxu0 %v4557
        %5896 = vmatmul.mubr.f32.gmra.mrb[0].mxu0 %v4556
        %v5897 = vpop.f32.mrb[0].mxu0
        %v5898 = vadd.f32 %v5633, %v5897
        %v5899 = vpop.f32.mrb[0].mxu0
        %5900 = vmatprep.mubr.f32.mxu0 %v4575
        %5901 = vmatmul.mubr.f32.gmra.mrb[0].mxu0 %v4574
        %v5902 = vpop.f32.mrb[0].mxu0
        %v5903 = vadd.f32 %v5638, %v5902
        %v5904 = vpop.f32.mrb[0].mxu0
        %5905 = vmatprep.mubr.f32.mxu0 %v4593
        %5906 = vmatmul.mubr.f32.gmra.mrb[0].mxu0 %v4592
        %v5907 = vpop.f32.mrb[0].mxu0
        %v5908 = vadd.f32 %v5643, %v5907
        %v5909 = vpop.f32.mrb[0].mxu0
        %5910 = vmatprep.mubr.f32.mxu0 %v4611
        %5911 = vmatmul.mubr.f32.gmra.mrb[0].mxu0 %v4610
        %v5912 = vpop.f32.mrb[0].mxu0
        %v5913 = vadd.f32 %v5648, %v5912
        %v5914 = vpop.f32.mrb[0].mxu0
        %5915 = vmatprep.mubr.f32.mxu0 %v4629
        %5916 = vmatmul.mubr.f32.gmra.mrb[0].mxu0 %v4628
        %v5917 = vpop.f32.mrb[0].mxu0
        %v5918 = vadd.f32 %v5653, %v5917
        %v5919 = vpop.f32.mrb[0].mxu0
        %5920 = vmatprep.mubr.f32.mxu0 %v4647
        %5921 = vmatmul.mubr.f32.gmra.mrb[0].mxu0 %v4646
        %v5922 = vpop.f32.mrb[0].mxu0
        %v5923 = vadd.f32 %v5658, %v5922
        %v5924 = vpop.f32.mrb[0].mxu0
        %5925 = vmatprep.mubr.f32.mxu0 %v4665
        %5926 = vmatmul.mubr.f32.gmra.mrb[0].mxu0 %v4664
        %v5927 = vpop.f32.mrb[0].mxu0
        %v5928 = vadd.f32 %v5663, %v5927
        %v5929 = vpop.f32.mrb[0].mxu0
        %5930 = vmatprep.mubr.f32.mxu0 %v4683
        %5931 = vmatmul.mubr.f32.gmra.mrb[0].mxu0 %v4682
        %v5932 = vpop.f32.mrb[0].mxu0
        %v5933 = vadd.f32 %v5668, %v5932
        %v5934 = vpop.f32.mrb[0].mxu0
        %5935 = vmatprep.mubr.f32.mxu0 %v4701
        %5936 = vmatmul.mubr.f32.gmra.mrb[0].mxu0 %v4700
        %v5937 = vpop.f32.mrb[0].mxu0
        %v5938 = vadd.f32 %v5673, %v5937
        %v5939 = vpop.f32.mrb[0].mxu0
        %5940 = vmatprep.mubr.f32.mxu0 %v4719
        %5941 = vmatmul.mubr.f32.gmra.mrb[0].mxu0 %v4718
        %v5942 = vpop.f32.mrb[0].mxu0
        %v5943 = vadd.f32 %v5678, %v5942
        %v5944 = vpop.f32.mrb[0].mxu0
        %5945 = vmatprep.mubr.f32.mxu0 %v4737
        %5946 = vmatmul.mubr.f32.gmra.mrb[0].mxu0 %v4736
        %v5947 = vpop.f32.mrb[0].mxu0
        %v5948 = vadd.f32 %v5683, %v5947
        %v5949 = vpop.f32.mrb[0].mxu0
        %5950 = vmatprep.mubr.f32.mxu0 %v4755
        %5951 = vmatmul.mubr.f32.gmra.mrb[0].mxu0 %v4754
        %v5952 = vpop.f32.mrb[0].mxu0
        %v5953 = vadd.f32 %v5688, %v5952
        %v5954 = vpop.f32.mrb[0].mxu0
        %5955 = vmatprep.mubr.f32.mxu0 %v4773
        %5956 = vmatmul.mubr.f32.gmra.mrb[0].mxu0 %v4772
        %v5957 = vpop.f32.mrb[0].mxu0
        %v5958 = vadd.f32 %v5693, %v5957
        %v5959 = vpop.f32.mrb[0].mxu0
        %5960 = vmatprep.mubr.f32.mxu0 %v4791
        %5961 = vmatmul.mubr.f32.gmra.mrb[0].mxu0 %v4790
        %v5962 = vpop.f32.mrb[0].mxu0
        %v5963 = vadd.f32 %v5698, %v5962
        %v5964 = vpop.f32.mrb[0].mxu0
        %5965 = vmatprep.mubr.f32.mxu0 %v4809
        %5966 = vmatmul.mubr.f32.gmra.mrb[0].mxu0 %v4808
        %v5967 = vpop.f32.mrb[0].mxu0
        %v5968 = vadd.f32 %v5703, %v5967
        %v5969 = vpop.f32.mrb[0].mxu0
        %5970 = vmatprep.mubr.f32.mxu0 %v4827
        %5971 = vmatmul.mubr.f32.gmra.mrb[0].mxu0 %v4826
        %v5972 = vpop.f32.mrb[0].mxu0
        %v5973 = vadd.f32 %v5708, %v5972
        %v5974 = vpop.f32.mrb[0].mxu0
        %5975 = vmatprep.mubr.f32.mxu0 %v4845
        %5976 = vmatmul.mubr.f32.gmra.mrb[0].mxu0 %v4844
        %v5977 = vpop.f32.mrb[0].mxu0
        %v5978 = vadd.f32 %v5713, %v5977
        %v5979 = vpop.f32.mrb[0].mxu0
        %5980 = vmatprep.mubr.f32.mxu0 %v4863
        %5981 = vmatmul.mubr.f32.gmra.mrb[0].mxu0 %v4862
        %v5982 = vpop.f32.mrb[0].mxu0
        %v5983 = vadd.f32 %v5718, %v5982
        %v5984 = vpop.f32.mrb[0].mxu0
        %5985 = vmatprep.mubr.f32.mxu0 %v4881
        %5986 = vmatmul.mubr.f32.gmra.mrb[0].mxu0 %v4880
        %v5987 = vpop.f32.mrb[0].mxu0
        %v5988 = vadd.f32 %v5723, %v5987
        %v5989 = vpop.f32.mrb[0].mxu0
        %5990 = vmatprep.mubr.f32.mxu0 %v4899
        %5991 = vmatmul.mubr.f32.gmra.mrb[0].mxu0 %v4898
        %v5992 = vpop.f32.mrb[0].mxu0
        %v5993 = vadd.f32 %v5728, %v5992
        %v5994 = vpop.f32.mrb[0].mxu0
        %5995 = vmatprep.mubr.f32.mxu0 %v4917
        %5996 = vmatmul.mubr.f32.gmra.mrb[0].mxu0 %v4916
        %v5997 = vpop.f32.mrb[0].mxu0
        %v5998 = vadd.f32 %v5733, %v5997
        %v5999 = vpop.f32.mrb[0].mxu0
        %6000 = vmatprep.mubr.f32.mxu0 %v4935
        %6001 = vmatmul.mubr.f32.gmra.mrb[0].mxu0 %v4934
        %v6002 = vpop.f32.mrb[0].mxu0
        %v6003 = vadd.f32 %v5738, %v6002
        %v6004 = vpop.f32.mrb[0].mxu0
        %6005 = vdwg.mxu0
        %6006 = vmatprep.subr.mxu0 0.0
        %6007 = vmatpush1.msra.mxu0 %v4066
        %6008 = vmatprep.subr.mxu0 0.0
        %6009 = vmatpush1.msra.mxu0 %v4067
        %6010 = vmatprep.subr.mxu0 0.0
        %6011 = vmatpush1.msra.mxu0 %v4068
        %6012 = vmatprep.subr.mxu0 0.0
        %6013 = vmatpush1.msra.mxu0 %v4069
        %6014 = vmatprep.subr.mxu0 0.0
        %6015 = vmatpush1.msra.mxu0 %v4070
        %6016 = vmatprep.subr.mxu0 0.0
        %6017 = vmatpush1.msra.mxu0 %v4071
        %6018 = vmatprep.subr.mxu0 0.0
        %6019 = vmatpush1.msra.mxu0 %v4072
        %6020 = vmatprep.subr.mxu0 0.0
        %6021 = vmatpush1.msra.mxu0 %v4073
        %6022 = vmatprep.subr.mxu0 0.0
        %6023 = vmatpush1.msra.mxu0 %v4074
        %6024 = vmatprep.subr.mxu0 0.0
        %6025 = vmatpush1.msra.mxu0 %v4075
        %6026 = vmatprep.subr.mxu0 0.0
        %6027 = vmatpush1.msra.mxu0 %v4076
        %6028 = vmatprep.subr.mxu0 0.0
        %6029 = vmatpush1.msra.mxu0 %v4077
        %6030 = vmatprep.subr.mxu0 0.0
        %6031 = vmatpush1.msra.mxu0 %v4078
        %6032 = vmatprep.subr.mxu0 0.0
        %6033 = vmatpush1.msra.mxu0 %v4079
        %6034 = vmatprep.subr.mxu0 0.0
        %6035 = vmatpush1.msra.mxu0 %v4080
        %6036 = vmatprep.subr.mxu0 0.0
        %6037 = vmatpush1.msra.mxu0 %v4081
        %6038 = vmatprep.subr.mxu0 0.0
        %6039 = vmatpush1.msra.mxu0 %v4082
        %6040 = vmatprep.subr.mxu0 0.0
        %6041 = vmatpush1.msra.mxu0 %v4083
        %6042 = vmatprep.subr.mxu0 0.0
        %6043 = vmatpush1.msra.mxu0 %v4084
        %6044 = vmatprep.subr.mxu0 0.0
        %6045 = vmatpush1.msra.mxu0 %v4085
        %6046 = vmatprep.subr.mxu0 0.0
        %6047 = vmatpush1.msra.mxu0 %v4086
        %6048 = vmatprep.subr.mxu0 0.0
        %6049 = vmatpush1.msra.mxu0 %v4087
        %6050 = vmatprep.subr.mxu0 0.0
        %6051 = vmatpush1.msra.mxu0 %v4088
        %6052 = vmatprep.subr.mxu0 0.0
        %6053 = vmatpush1.msra.mxu0 %v4089
        %6054 = vmatprep.subr.mxu0 0.0
        %6055 = vmatpush1.msra.mxu0 %v4090
        %6056 = vmatprep.subr.mxu0 0.0
        %6057 = vmatpush1.msra.mxu0 %v4091
        %6058 = vmatprep.subr.mxu0 0.0
        %6059 = vmatpush1.msra.mxu0 %v4092
        %6060 = vmatprep.subr.mxu0 0.0
        %6061 = vmatpush1.msra.mxu0 %v4093
        %6062 = vmatprep.subr.mxu0 0.0
        %6063 = vmatpush1.msra.mxu0 %v4094
        %6064 = vmatprep.subr.mxu0 0.0
        %6065 = vmatpush1.msra.mxu0 %v4095
        %6066 = vmatprep.subr.mxu0 0.0
        %6067 = vmatpush1.msra.mxu0 %v4096
        %6068 = vmatprep.subr.mxu0 0.0
        %6069 = vmatpush1.msra.mxu0 %v4097
        %6070 = vmatprep.mubr.f32.mxu0 %v4235
        %6071 = vmatmul.mubr.f32.gmra.mrb[0].mxu0 %v4234
        %v6072 = vpop.f32.mrb[0].mxu0
        %v6073 = vadd.f32 %v5808, %v6072
        %v6074 = vpop.f32.mrb[0].mxu0
        %6075 = vmatprep.mubr.f32.mxu0 %v4253
        %6076 = vmatmul.mubr.f32.gmra.mrb[0].mxu0 %v4252
        %v6077 = vpop.f32.mrb[0].mxu0
        %v6078 = vadd.f32 %v5813, %v6077
        %v6079 = vpop.f32.mrb[0].mxu0
        %6080 = vmatprep.mubr.f32.mxu0 %v4271
        %6081 = vmatmul.mubr.f32.gmra.mrb[0].mxu0 %v4270
        %v6082 = vpop.f32.mrb[0].mxu0
        %v6083 = vadd.f32 %v5818, %v6082
        %v6084 = vpop.f32.mrb[0].mxu0
        %6085 = vmatprep.mubr.f32.mxu0 %v4289
        %6086 = vmatmul.mubr.f32.gmra.mrb[0].mxu0 %v4288
        %v6087 = vpop.f32.mrb[0].mxu0
        %v6088 = vadd.f32 %v5823, %v6087
        %v6089 = vpop.f32.mrb[0].mxu0
        %6090 = vmatprep.mubr.f32.mxu0 %v4307
        %6091 = vmatmul.mubr.f32.gmra.mrb[0].mxu0 %v4306
        %v6092 = vpop.f32.mrb[0].mxu0
        %v6093 = vadd.f32 %v5828, %v6092
        %v6094 = vpop.f32.mrb[0].mxu0
        %6095 = vmatprep.mubr.f32.mxu0 %v4325
        %6096 = vmatmul.mubr.f32.gmra.mrb[0].mxu0 %v4324
        %v6097 = vpop.f32.mrb[0].mxu0
        %v6098 = vadd.f32 %v5833, %v6097
        %v6099 = vpop.f32.mrb[0].mxu0
        %6100 = vmatprep.mubr.f32.mxu0 %v4343
        %6101 = vmatmul.mubr.f32.gmra.mrb[0].mxu0 %v4342
        %v6102 = vpop.f32.mrb[0].mxu0
        %v6103 = vadd.f32 %v5838, %v6102
        %v6104 = vpop.f32.mrb[0].mxu0
        %6105 = vmatprep.mubr.f32.mxu0 %v4361
        %6106 = vmatmul.mubr.f32.gmra.mrb[0].mxu0 %v4360
        %v6107 = vpop.f32.mrb[0].mxu0
        %v6108 = vadd.f32 %v5843, %v6107
        %v6109 = vpop.f32.mrb[0].mxu0
        %6110 = vmatprep.mubr.f32.mxu0 %v4379
        %6111 = vmatmul.mubr.f32.gmra.mrb[0].mxu0 %v4378
        %v6112 = vpop.f32.mrb[0].mxu0
        %v6113 = vadd.f32 %v5848, %v6112
        %v6114 = vpop.f32.mrb[0].mxu0
        %6115 = vmatprep.mubr.f32.mxu0 %v4397
        %6116 = vmatmul.mubr.f32.gmra.mrb[0].mxu0 %v4396
        %v6117 = vpop.f32.mrb[0].mxu0
        %v6118 = vadd.f32 %v5853, %v6117
        %v6119 = vpop.f32.mrb[0].mxu0
        %6120 = vmatprep.mubr.f32.mxu0 %v4415
        %6121 = vmatmul.mubr.f32.gmra.mrb[0].mxu0 %v4414
        %v6122 = vpop.f32.mrb[0].mxu0
        %v6123 = vadd.f32 %v5858, %v6122
        %v6124 = vpop.f32.mrb[0].mxu0
        %6125 = vmatprep.mubr.f32.mxu0 %v4433
        %6126 = vmatmul.mubr.f32.gmra.mrb[0].mxu0 %v4432
        %v6127 = vpop.f32.mrb[0].mxu0
        %v6128 = vadd.f32 %v5863, %v6127
        %v6129 = vpop.f32.mrb[0].mxu0
        %6130 = vmatprep.mubr.f32.mxu0 %v4451
        %6131 = vmatmul.mubr.f32.gmra.mrb[0].mxu0 %v4450
        %v6132 = vpop.f32.mrb[0].mxu0
        %v6133 = vadd.f32 %v5868, %v6132
        %v6134 = vpop.f32.mrb[0].mxu0
        %6135 = vmatprep.mubr.f32.mxu0 %v4469
        %6136 = vmatmul.mubr.f32.gmra.mrb[0].mxu0 %v4468
        %v6137 = vpop.f32.mrb[0].mxu0
        %v6138 = vadd.f32 %v5873, %v6137
        %v6139 = vpop.f32.mrb[0].mxu0
        %6140 = vmatprep.mubr.f32.mxu0 %v4487
        %6141 = vmatmul.mubr.f32.gmra.mrb[0].mxu0 %v4486
        %v6142 = vpop.f32.mrb[0].mxu0
        %v6143 = vadd.f32 %v5878, %v6142
        %v6144 = vpop.f32.mrb[0].mxu0
        %6145 = vmatprep.mubr.f32.mxu0 %v4505
        %6146 = vmatmul.mubr.f32.gmra.mrb[0].mxu0 %v4504
        %v6147 = vpop.f32.mrb[0].mxu0
        %v6148 = vadd.f32 %v5883, %v6147
        %v6149 = vpop.f32.mrb[0].mxu0
        %6150 = vmatprep.mubr.f32.mxu0 %v4523
        %6151 = vmatmul.mubr.f32.gmra.mrb[0].mxu0 %v4522
        %v6152 = vpop.f32.mrb[0].mxu0
        %v6153 = vadd.f32 %v5888, %v6152
        %v6154 = vpop.f32.mrb[0].mxu0
        %6155 = vmatprep.mubr.f32.mxu0 %v4541
        %6156 = vmatmul.mubr.f32.gmra.mrb[0].mxu0 %v4540
        %v6157 = vpop.f32.mrb[0].mxu0
        %v6158 = vadd.f32 %v5893, %v6157
        %v6159 = vpop.f32.mrb[0].mxu0
        %6160 = vmatprep.mubr.f32.mxu0 %v4559
        %6161 = vmatmul.mubr.f32.gmra.mrb[0].mxu0 %v4558
        %v6162 = vpop.f32.mrb[0].mxu0
        %v6163 = vadd.f32 %v5898, %v6162
        %v6164 = vpop.f32.mrb[0].mxu0
        %6165 = vmatprep.mubr.f32.mxu0 %v4577
        %6166 = vmatmul.mubr.f32.gmra.mrb[0].mxu0 %v4576
        %v6167 = vpop.f32.mrb[0].mxu0
        %v6168 = vadd.f32 %v5903, %v6167
        %v6169 = vpop.f32.mrb[0].mxu0
        %6170 = vmatprep.mubr.f32.mxu0 %v4595
        %6171 = vmatmul.mubr.f32.gmra.mrb[0].mxu0 %v4594
        %v6172 = vpop.f32.mrb[0].mxu0
        %v6173 = vadd.f32 %v5908, %v6172
        %v6174 = vpop.f32.mrb[0].mxu0
        %6175 = vmatprep.mubr.f32.mxu0 %v4613
        %6176 = vmatmul.mubr.f32.gmra.mrb[0].mxu0 %v4612
        %v6177 = vpop.f32.mrb[0].mxu0
        %v6178 = vadd.f32 %v5913, %v6177
        %v6179 = vpop.f32.mrb[0].mxu0
        %6180 = vmatprep.mubr.f32.mxu0 %v4631
        %6181 = vmatmul.mubr.f32.gmra.mrb[0].mxu0 %v4630
        %v6182 = vpop.f32.mrb[0].mxu0
        %v6183 = vadd.f32 %v5918, %v6182
        %v6184 = vpop.f32.mrb[0].mxu0
        %6185 = vmatprep.mubr.f32.mxu0 %v4649
        %6186 = vmatmul.mubr.f32.gmra.mrb[0].mxu0 %v4648
        %v6187 = vpop.f32.mrb[0].mxu0
        %v6188 = vadd.f32 %v5923, %v6187
        %v6189 = vpop.f32.mrb[0].mxu0
        %6190 = vmatprep.mubr.f32.mxu0 %v4667
        %6191 = vmatmul.mubr.f32.gmra.mrb[0].mxu0 %v4666
        %v6192 = vpop.f32.mrb[0].mxu0
        %v6193 = vadd.f32 %v5928, %v6192
        %v6194 = vpop.f32.mrb[0].mxu0
        %6195 = vmatprep.mubr.f32.mxu0 %v4685
        %6196 = vmatmul.mubr.f32.gmra.mrb[0].mxu0 %v4684
        %v6197 = vpop.f32.mrb[0].mxu0
        %v6198 = vadd.f32 %v5933, %v6197
        %v6199 = vpop.f32.mrb[0].mxu0
        %6200 = vmatprep.mubr.f32.mxu0 %v4703
        %6201 = vmatmul.mubr.f32.gmra.mrb[0].mxu0 %v4702
        %v6202 = vpop.f32.mrb[0].mxu0
        %v6203 = vadd.f32 %v5938, %v6202
        %v6204 = vpop.f32.mrb[0].mxu0
        %6205 = vmatprep.mubr.f32.mxu0 %v4721
        %6206 = vmatmul.mubr.f32.gmra.mrb[0].mxu0 %v4720
        %v6207 = vpop.f32.mrb[0].mxu0
        %v6208 = vadd.f32 %v5943, %v6207
        %v6209 = vpop.f32.mrb[0].mxu0
        %6210 = vmatprep.mubr.f32.mxu0 %v4739
        %6211 = vmatmul.mubr.f32.gmra.mrb[0].mxu0 %v4738
        %v6212 = vpop.f32.mrb[0].mxu0
        %v6213 = vadd.f32 %v5948, %v6212
        %v6214 = vpop.f32.mrb[0].mxu0
        %6215 = vmatprep.mubr.f32.mxu0 %v4757
        %6216 = vmatmul.mubr.f32.gmra.mrb[0].mxu0 %v4756
        %v6217 = vpop.f32.mrb[0].mxu0
        %v6218 = vadd.f32 %v5953, %v6217
        %v6219 = vpop.f32.mrb[0].mxu0
        %6220 = vmatprep.mubr.f32.mxu0 %v4775
        %6221 = vmatmul.mubr.f32.gmra.mrb[0].mxu0 %v4774
        %v6222 = vpop.f32.mrb[0].mxu0
        %v6223 = vadd.f32 %v5958, %v6222
        %v6224 = vpop.f32.mrb[0].mxu0
        %6225 = vmatprep.mubr.f32.mxu0 %v4793
        %6226 = vmatmul.mubr.f32.gmra.mrb[0].mxu0 %v4792
        %v6227 = vpop.f32.mrb[0].mxu0
        %v6228 = vadd.f32 %v5963, %v6227
        %v6229 = vpop.f32.mrb[0].mxu0
        %6230 = vmatprep.mubr.f32.mxu0 %v4811
        %6231 = vmatmul.mubr.f32.gmra.mrb[0].mxu0 %v4810
        %v6232 = vpop.f32.mrb[0].mxu0
        %v6233 = vadd.f32 %v5968, %v6232
        %v6234 = vpop.f32.mrb[0].mxu0
        %6235 = vmatprep.mubr.f32.mxu0 %v4829
        %6236 = vmatmul.mubr.f32.gmra.mrb[0].mxu0 %v4828
        %v6237 = vpop.f32.mrb[0].mxu0
        %v6238 = vadd.f32 %v5973, %v6237
        %v6239 = vpop.f32.mrb[0].mxu0
        %6240 = vmatprep.mubr.f32.mxu0 %v4847
        %6241 = vmatmul.mubr.f32.gmra.mrb[0].mxu0 %v4846
        %v6242 = vpop.f32.mrb[0].mxu0
        %v6243 = vadd.f32 %v5978, %v6242
        %v6244 = vpop.f32.mrb[0].mxu0
        %6245 = vmatprep.mubr.f32.mxu0 %v4865
        %6246 = vmatmul.mubr.f32.gmra.mrb[0].mxu0 %v4864
        %v6247 = vpop.f32.mrb[0].mxu0
        %v6248 = vadd.f32 %v5983, %v6247
        %v6249 = vpop.f32.mrb[0].mxu0
        %6250 = vmatprep.mubr.f32.mxu0 %v4883
        %6251 = vmatmul.mubr.f32.gmra.mrb[0].mxu0 %v4882
        %v6252 = vpop.f32.mrb[0].mxu0
        %v6253 = vadd.f32 %v5988, %v6252
        %v6254 = vpop.f32.mrb[0].mxu0
        %6255 = vmatprep.mubr.f32.mxu0 %v4901
        %6256 = vmatmul.mubr.f32.gmra.mrb[0].mxu0 %v4900
        %v6257 = vpop.f32.mrb[0].mxu0
        %v6258 = vadd.f32 %v5993, %v6257
        %v6259 = vpop.f32.mrb[0].mxu0
        %6260 = vmatprep.mubr.f32.mxu0 %v4919
        %6261 = vmatmul.mubr.f32.gmra.mrb[0].mxu0 %v4918
        %v6262 = vpop.f32.mrb[0].mxu0
        %v6263 = vadd.f32 %v5998, %v6262
        %v6264 = vpop.f32.mrb[0].mxu0
        %6265 = vmatprep.mubr.f32.mxu0 %v4937
        %6266 = vmatmul.mubr.f32.gmra.mrb[0].mxu0 %v4936
        %v6267 = vpop.f32.mrb[0].mxu0
        %v6268 = vadd.f32 %v6003, %v6267
        %v6269 = vpop.f32.mrb[0].mxu0
        %6270 = vdwg.mxu0
        %6271 = vmatprep.subr.mxu0 0.0
        %6272 = vmatpush1.msra.mxu0 %v4098
        %6273 = vmatprep.subr.mxu0 0.0
        %6274 = vmatpush1.msra.mxu0 %v4099
        %6275 = vmatprep.subr.mxu0 0.0
        %6276 = vmatpush1.msra.mxu0 %v4100
        %6277 = vmatprep.subr.mxu0 0.0
        %6278 = vmatpush1.msra.mxu0 %v4101
        %6279 = vmatprep.subr.mxu0 0.0
        %6280 = vmatpush1.msra.mxu0 %v4102
        %6281 = vmatprep.subr.mxu0 0.0
        %6282 = vmatpush1.msra.mxu0 %v4103
        %6283 = vmatprep.subr.mxu0 0.0
        %6284 = vmatpush1.msra.mxu0 %v4104
        %6285 = vmatprep.subr.mxu0 0.0
        %6286 = vmatpush1.msra.mxu0 %v4105
        %6287 = vmatprep.subr.mxu0 0.0
        %6288 = vmatpush1.msra.mxu0 %v4106
        %6289 = vmatprep.subr.mxu0 0.0
        %6290 = vmatpush1.msra.mxu0 %v4107
        %6291 = vmatprep.subr.mxu0 0.0
        %6292 = vmatpush1.msra.mxu0 %v4108
        %6293 = vmatprep.subr.mxu0 0.0
        %6294 = vmatpush1.msra.mxu0 %v4109
        %6295 = vmatprep.subr.mxu0 0.0
        %6296 = vmatpush1.msra.mxu0 %v4110
        %6297 = vmatprep.subr.mxu0 0.0
        %6298 = vmatpush1.msra.mxu0 %v4111
        %6299 = vmatprep.subr.mxu0 0.0
        %6300 = vmatpush1.msra.mxu0 %v4112
        %6301 = vmatprep.subr.mxu0 0.0
        %6302 = vmatpush1.msra.mxu0 %v4113
        %6303 = vmatprep.subr.mxu0 0.0
        %6304 = vmatpush1.msra.mxu0 %v4114
        %6305 = vmatprep.subr.mxu0 0.0
        %6306 = vmatpush1.msra.mxu0 %v4115
        %6307 = vmatprep.subr.mxu0 0.0
        %6308 = vmatpush1.msra.mxu0 %v4116
        %6309 = vmatprep.subr.mxu0 0.0
        %6310 = vmatpush1.msra.mxu0 %v4117
        %6311 = vmatprep.subr.mxu0 0.0
        %6312 = vmatpush1.msra.mxu0 %v4118
        %6313 = vmatprep.subr.mxu0 0.0
        %6314 = vmatpush1.msra.mxu0 %v4119
        %6315 = vmatprep.subr.mxu0 0.0
        %6316 = vmatpush1.msra.mxu0 %v4120
        %6317 = vmatprep.subr.mxu0 0.0
        %6318 = vmatpush1.msra.mxu0 %v4121
        %6319 = vmatprep.subr.mxu0 0.0
        %6320 = vmatpush1.msra.mxu0 %v4122
        %6321 = vmatprep.subr.mxu0 0.0
        %6322 = vmatpush1.msra.mxu0 %v4123
        %6323 = vmatprep.subr.mxu0 0.0
        %6324 = vmatpush1.msra.mxu0 %v4124
        %6325 = vmatprep.subr.mxu0 0.0
        %6326 = vmatpush1.msra.mxu0 %v4125
        %6327 = vmatprep.subr.mxu0 0.0
        %6328 = vmatpush1.msra.mxu0 %v4126
        %6329 = vmatprep.subr.mxu0 0.0
        %6330 = vmatpush1.msra.mxu0 %v4127
        %6331 = vmatprep.subr.mxu0 0.0
        %6332 = vmatpush1.msra.mxu0 %v4128
        %6333 = vmatprep.subr.mxu0 0.0
        %6334 = vmatpush1.msra.mxu0 %v4129
        %6335 = vmatprep.mubr.f32.mxu0 %v4237
        %6336 = vmatmul.mubr.f32.gmra.mrb[0].mxu0 %v4236
        %v6337 = vpop.f32.mrb[0].mxu0
        %v6338 = vadd.f32 %v6073, %v6337
        %v6339 = vpop.f32.mrb[0].mxu0
        %6340 = vmatprep.mubr.f32.mxu0 %v4255
        %6341 = vmatmul.mubr.f32.gmra.mrb[0].mxu0 %v4254
        %v6342 = vpop.f32.mrb[0].mxu0
        %v6343 = vadd.f32 %v6078, %v6342
        %v6344 = vpop.f32.mrb[0].mxu0
        %6345 = vmatprep.mubr.f32.mxu0 %v4273
        %6346 = vmatmul.mubr.f32.gmra.mrb[0].mxu0 %v4272
        %v6347 = vpop.f32.mrb[0].mxu0
        %v6348 = vadd.f32 %v6083, %v6347
        %v6349 = vpop.f32.mrb[0].mxu0
        %6350 = vmatprep.mubr.f32.mxu0 %v4291
        %6351 = vmatmul.mubr.f32.gmra.mrb[0].mxu0 %v4290
        %v6352 = vpop.f32.mrb[0].mxu0
        %v6353 = vadd.f32 %v6088, %v6352
        %v6354 = vpop.f32.mrb[0].mxu0
        %6355 = vmatprep.mubr.f32.mxu0 %v4309
        %6356 = vmatmul.mubr.f32.gmra.mrb[0].mxu0 %v4308
        %v6357 = vpop.f32.mrb[0].mxu0
        %v6358 = vadd.f32 %v6093, %v6357
        %v6359 = vpop.f32.mrb[0].mxu0
        %6360 = vmatprep.mubr.f32.mxu0 %v4327
        %6361 = vmatmul.mubr.f32.gmra.mrb[0].mxu0 %v4326
        %v6362 = vpop.f32.mrb[0].mxu0
        %v6363 = vadd.f32 %v6098, %v6362
        %v6364 = vpop.f32.mrb[0].mxu0
        %6365 = vmatprep.mubr.f32.mxu0 %v4345
        %6366 = vmatmul.mubr.f32.gmra.mrb[0].mxu0 %v4344
        %v6367 = vpop.f32.mrb[0].mxu0
        %v6368 = vadd.f32 %v6103, %v6367
        %v6369 = vpop.f32.mrb[0].mxu0
        %6370 = vmatprep.mubr.f32.mxu0 %v4363
        %6371 = vmatmul.mubr.f32.gmra.mrb[0].mxu0 %v4362
        %v6372 = vpop.f32.mrb[0].mxu0
        %v6373 = vadd.f32 %v6108, %v6372
        %v6374 = vpop.f32.mrb[0].mxu0
        %6375 = vmatprep.mubr.f32.mxu0 %v4381
        %6376 = vmatmul.mubr.f32.gmra.mrb[0].mxu0 %v4380
        %v6377 = vpop.f32.mrb[0].mxu0
        %v6378 = vadd.f32 %v6113, %v6377
        %v6379 = vpop.f32.mrb[0].mxu0
        %6380 = vmatprep.mubr.f32.mxu0 %v4399
        %6381 = vmatmul.mubr.f32.gmra.mrb[0].mxu0 %v4398
        %v6382 = vpop.f32.mrb[0].mxu0
        %v6383 = vadd.f32 %v6118, %v6382
        %v6384 = vpop.f32.mrb[0].mxu0
        %6385 = vmatprep.mubr.f32.mxu0 %v4417
        %6386 = vmatmul.mubr.f32.gmra.mrb[0].mxu0 %v4416
        %v6387 = vpop.f32.mrb[0].mxu0
        %v6388 = vadd.f32 %v6123, %v6387
        %v6389 = vpop.f32.mrb[0].mxu0
        %6390 = vmatprep.mubr.f32.mxu0 %v4435
        %6391 = vmatmul.mubr.f32.gmra.mrb[0].mxu0 %v4434
        %v6392 = vpop.f32.mrb[0].mxu0
        %v6393 = vadd.f32 %v6128, %v6392
        %v6394 = vpop.f32.mrb[0].mxu0
        %6395 = vmatprep.mubr.f32.mxu0 %v4453
        %6396 = vmatmul.mubr.f32.gmra.mrb[0].mxu0 %v4452
        %v6397 = vpop.f32.mrb[0].mxu0
        %v6398 = vadd.f32 %v6133, %v6397
        %v6399 = vpop.f32.mrb[0].mxu0
        %6400 = vmatprep.mubr.f32.mxu0 %v4471
        %6401 = vmatmul.mubr.f32.gmra.mrb[0].mxu0 %v4470
        %v6402 = vpop.f32.mrb[0].mxu0
        %v6403 = vadd.f32 %v6138, %v6402
        %v6404 = vpop.f32.mrb[0].mxu0
        %6405 = vmatprep.mubr.f32.mxu0 %v4489
        %6406 = vmatmul.mubr.f32.gmra.mrb[0].mxu0 %v4488
        %v6407 = vpop.f32.mrb[0].mxu0
        %v6408 = vadd.f32 %v6143, %v6407
        %v6409 = vpop.f32.mrb[0].mxu0
        %6410 = vmatprep.mubr.f32.mxu0 %v4507
        %6411 = vmatmul.mubr.f32.gmra.mrb[0].mxu0 %v4506
        %v6412 = vpop.f32.mrb[0].mxu0
        %v6413 = vadd.f32 %v6148, %v6412
        %v6414 = vpop.f32.mrb[0].mxu0
        %6415 = vmatprep.mubr.f32.mxu0 %v4525
        %6416 = vmatmul.mubr.f32.gmra.mrb[0].mxu0 %v4524
        %v6417 = vpop.f32.mrb[0].mxu0
        %v6418 = vadd.f32 %v6153, %v6417
        %v6419 = vpop.f32.mrb[0].mxu0
        %6420 = vmatprep.mubr.f32.mxu0 %v4543
        %6421 = vmatmul.mubr.f32.gmra.mrb[0].mxu0 %v4542
        %v6422 = vpop.f32.mrb[0].mxu0
        %v6423 = vadd.f32 %v6158, %v6422
        %v6424 = vpop.f32.mrb[0].mxu0
        %6425 = vmatprep.mubr.f32.mxu0 %v4561
        %6426 = vmatmul.mubr.f32.gmra.mrb[0].mxu0 %v4560
        %v6427 = vpop.f32.mrb[0].mxu0
        %v6428 = vadd.f32 %v6163, %v6427
        %v6429 = vpop.f32.mrb[0].mxu0
        %6430 = vmatprep.mubr.f32.mxu0 %v4579
        %6431 = vmatmul.mubr.f32.gmra.mrb[0].mxu0 %v4578
        %v6432 = vpop.f32.mrb[0].mxu0
        %v6433 = vadd.f32 %v6168, %v6432
        %v6434 = vpop.f32.mrb[0].mxu0
        %6435 = vmatprep.mubr.f32.mxu0 %v4597
        %6436 = vmatmul.mubr.f32.gmra.mrb[0].mxu0 %v4596
        %v6437 = vpop.f32.mrb[0].mxu0
        %v6438 = vadd.f32 %v6173, %v6437
        %v6439 = vpop.f32.mrb[0].mxu0
        %6440 = vmatprep.mubr.f32.mxu0 %v4615
        %6441 = vmatmul.mubr.f32.gmra.mrb[0].mxu0 %v4614
        %v6442 = vpop.f32.mrb[0].mxu0
        %v6443 = vadd.f32 %v6178, %v6442
        %v6444 = vpop.f32.mrb[0].mxu0
        %6445 = vmatprep.mubr.f32.mxu0 %v4633
        %6446 = vmatmul.mubr.f32.gmra.mrb[0].mxu0 %v4632
        %v6447 = vpop.f32.mrb[0].mxu0
        %v6448 = vadd.f32 %v6183, %v6447
        %v6449 = vpop.f32.mrb[0].mxu0
        %6450 = vmatprep.mubr.f32.mxu0 %v4651
        %6451 = vmatmul.mubr.f32.gmra.mrb[0].mxu0 %v4650
        %v6452 = vpop.f32.mrb[0].mxu0
        %v6453 = vadd.f32 %v6188, %v6452
        %v6454 = vpop.f32.mrb[0].mxu0
        %6455 = vmatprep.mubr.f32.mxu0 %v4669
        %6456 = vmatmul.mubr.f32.gmra.mrb[0].mxu0 %v4668
        %v6457 = vpop.f32.mrb[0].mxu0
        %v6458 = vadd.f32 %v6193, %v6457
        %v6459 = vpop.f32.mrb[0].mxu0
        %6460 = vmatprep.mubr.f32.mxu0 %v4687
        %6461 = vmatmul.mubr.f32.gmra.mrb[0].mxu0 %v4686
        %v6462 = vpop.f32.mrb[0].mxu0
        %v6463 = vadd.f32 %v6198, %v6462
        %v6464 = vpop.f32.mrb[0].mxu0
        %6465 = vmatprep.mubr.f32.mxu0 %v4705
        %6466 = vmatmul.mubr.f32.gmra.mrb[0].mxu0 %v4704
        %v6467 = vpop.f32.mrb[0].mxu0
        %v6468 = vadd.f32 %v6203, %v6467
        %v6469 = vpop.f32.mrb[0].mxu0
        %6470 = vmatprep.mubr.f32.mxu0 %v4723
        %6471 = vmatmul.mubr.f32.gmra.mrb[0].mxu0 %v4722
        %v6472 = vpop.f32.mrb[0].mxu0
        %v6473 = vadd.f32 %v6208, %v6472
        %v6474 = vpop.f32.mrb[0].mxu0
        %6475 = vmatprep.mubr.f32.mxu0 %v4741
        %6476 = vmatmul.mubr.f32.gmra.mrb[0].mxu0 %v4740
        %v6477 = vpop.f32.mrb[0].mxu0
        %v6478 = vadd.f32 %v6213, %v6477
        %v6479 = vpop.f32.mrb[0].mxu0
        %6480 = vmatprep.mubr.f32.mxu0 %v4759
        %6481 = vmatmul.mubr.f32.gmra.mrb[0].mxu0 %v4758
        %v6482 = vpop.f32.mrb[0].mxu0
        %v6483 = vadd.f32 %v6218, %v6482
        %v6484 = vpop.f32.mrb[0].mxu0
        %6485 = vmatprep.mubr.f32.mxu0 %v4777
        %6486 = vmatmul.mubr.f32.gmra.mrb[0].mxu0 %v4776
        %v6487 = vpop.f32.mrb[0].mxu0
        %v6488 = vadd.f32 %v6223, %v6487
        %v6489 = vpop.f32.mrb[0].mxu0
        %6490 = vmatprep.mubr.f32.mxu0 %v4795
        %6491 = vmatmul.mubr.f32.gmra.mrb[0].mxu0 %v4794
        %v6492 = vpop.f32.mrb[0].mxu0
        %v6493 = vadd.f32 %v6228, %v6492
        %v6494 = vpop.f32.mrb[0].mxu0
        %6495 = vmatprep.mubr.f32.mxu0 %v4813
        %6496 = vmatmul.mubr.f32.gmra.mrb[0].mxu0 %v4812
        %v6497 = vpop.f32.mrb[0].mxu0
        %v6498 = vadd.f32 %v6233, %v6497
        %v6499 = vpop.f32.mrb[0].mxu0
        %6500 = vmatprep.mubr.f32.mxu0 %v4831
        %6501 = vmatmul.mubr.f32.gmra.mrb[0].mxu0 %v4830
        %v6502 = vpop.f32.mrb[0].mxu0
        %v6503 = vadd.f32 %v6238, %v6502
        %v6504 = vpop.f32.mrb[0].mxu0
        %6505 = vmatprep.mubr.f32.mxu0 %v4849
        %6506 = vmatmul.mubr.f32.gmra.mrb[0].mxu0 %v4848
        %v6507 = vpop.f32.mrb[0].mxu0
        %v6508 = vadd.f32 %v6243, %v6507
        %v6509 = vpop.f32.mrb[0].mxu0
        %6510 = vmatprep.mubr.f32.mxu0 %v4867
        %6511 = vmatmul.mubr.f32.gmra.mrb[0].mxu0 %v4866
        %v6512 = vpop.f32.mrb[0].mxu0
        %v6513 = vadd.f32 %v6248, %v6512
        %v6514 = vpop.f32.mrb[0].mxu0
        %6515 = vmatprep.mubr.f32.mxu0 %v4885
        %6516 = vmatmul.mubr.f32.gmra.mrb[0].mxu0 %v4884
        %v6517 = vpop.f32.mrb[0].mxu0
        %v6518 = vadd.f32 %v6253, %v6517
        %v6519 = vpop.f32.mrb[0].mxu0
        %6520 = vmatprep.mubr.f32.mxu0 %v4903
        %6521 = vmatmul.mubr.f32.gmra.mrb[0].mxu0 %v4902
        %v6522 = vpop.f32.mrb[0].mxu0
        %v6523 = vadd.f32 %v6258, %v6522
        %v6524 = vpop.f32.mrb[0].mxu0
        %6525 = vmatprep.mubr.f32.mxu0 %v4921
        %6526 = vmatmul.mubr.f32.gmra.mrb[0].mxu0 %v4920
        %v6527 = vpop.f32.mrb[0].mxu0
        %v6528 = vadd.f32 %v6263, %v6527
        %v6529 = vpop.f32.mrb[0].mxu0
        %6530 = vmatprep.mubr.f32.mxu0 %v4939
        %6531 = vmatmul.mubr.f32.gmra.mrb[0].mxu0 %v4938
        %v6532 = vpop.f32.mrb[0].mxu0
        %v6533 = vadd.f32 %v6268, %v6532
        %v6534 = vpop.f32.mrb[0].mxu0
        %6535 = vdwg.mxu0
        %6536 = vmatprep.subr.mxu0 0.0
        %6537 = vmatpush1.msra.mxu0 %v4130
        %6538 = vmatprep.subr.mxu0 0.0
        %6539 = vmatpush1.msra.mxu0 %v4131
        %6540 = vmatprep.subr.mxu0 0.0
        %6541 = vmatpush1.msra.mxu0 %v4132
        %6542 = vmatprep.subr.mxu0 0.0
        %6543 = vmatpush1.msra.mxu0 %v4133
        %6544 = vmatprep.subr.mxu0 0.0
        %6545 = vmatpush1.msra.mxu0 %v4134
        %6546 = vmatprep.subr.mxu0 0.0
        %6547 = vmatpush1.msra.mxu0 %v4135
        %6548 = vmatprep.subr.mxu0 0.0
        %6549 = vmatpush1.msra.mxu0 %v4136
        %6550 = vmatprep.subr.mxu0 0.0
        %6551 = vmatpush1.msra.mxu0 %v4137
        %6552 = vmatprep.subr.mxu0 0.0
        %6553 = vmatpush1.msra.mxu0 %v4138
        %6554 = vmatprep.subr.mxu0 0.0
        %6555 = vmatpush1.msra.mxu0 %v4139
        %6556 = vmatprep.subr.mxu0 0.0
        %6557 = vmatpush1.msra.mxu0 %v4140
        %6558 = vmatprep.subr.mxu0 0.0
        %6559 = vmatpush1.msra.mxu0 %v4141
        %6560 = vmatprep.subr.mxu0 0.0
        %6561 = vmatpush1.msra.mxu0 %v4142
        %6562 = vmatprep.subr.mxu0 0.0
        %6563 = vmatpush1.msra.mxu0 %v4143
        %6564 = vmatprep.subr.mxu0 0.0
        %6565 = vmatpush1.msra.mxu0 %v4144
        %6566 = vmatprep.subr.mxu0 0.0
        %6567 = vmatpush1.msra.mxu0 %v4145
        %6568 = vmatprep.subr.mxu0 0.0
        %6569 = vmatpush1.msra.mxu0 %v4146
        %6570 = vmatprep.subr.mxu0 0.0
        %6571 = vmatpush1.msra.mxu0 %v4147
        %6572 = vmatprep.subr.mxu0 0.0
        %6573 = vmatpush1.msra.mxu0 %v4148
        %6574 = vmatprep.subr.mxu0 0.0
        %6575 = vmatpush1.msra.mxu0 %v4149
        %6576 = vmatprep.subr.mxu0 0.0
        %6577 = vmatpush1.msra.mxu0 %v4150
        %6578 = vmatprep.subr.mxu0 0.0
        %6579 = vmatpush1.msra.mxu0 %v4151
        %6580 = vmatprep.subr.mxu0 0.0
        %6581 = vmatpush1.msra.mxu0 %v4152
        %6582 = vmatprep.subr.mxu0 0.0
        %6583 = vmatpush1.msra.mxu0 %v4153
        %6584 = vmatprep.subr.mxu0 0.0
        %6585 = vmatpush1.msra.mxu0 %v4154
        %6586 = vmatprep.subr.mxu0 0.0
        %6587 = vmatpush1.msra.mxu0 %v4155
        %6588 = vmatprep.subr.mxu0 0.0
        %6589 = vmatpush1.msra.mxu0 %v4156
        %6590 = vmatprep.subr.mxu0 0.0
        %6591 = vmatpush1.msra.mxu0 %v4157
        %6592 = vmatprep.subr.mxu0 0.0
        %6593 = vmatpush1.msra.mxu0 %v4158
        %6594 = vmatprep.subr.mxu0 0.0
        %6595 = vmatpush1.msra.mxu0 %v4159
        %6596 = vmatprep.subr.mxu0 0.0
        %6597 = vmatpush1.msra.mxu0 %v4160
        %6598 = vmatprep.subr.mxu0 0.0
        %6599 = vmatpush1.msra.mxu0 %v4161
        %6600 = vmatprep.mubr.f32.mxu0 %v4239
        %6601 = vmatmul.mubr.f32.gmra.mrb[0].mxu0 %v4238
        %v6602 = vpop.f32.mrb[0].mxu0
        %v6603 = vadd.f32 %v6338, %v6602
        %v6604 = vpop.f32.mrb[0].mxu0
        %6605 = vmatprep.mubr.f32.mxu0 %v4257
        %6606 = vmatmul.mubr.f32.gmra.mrb[0].mxu0 %v4256
        %v6607 = vpop.f32.mrb[0].mxu0
        %v6608 = vadd.f32 %v6343, %v6607
        %v6609 = vpop.f32.mrb[0].mxu0
        %6610 = vmatprep.mubr.f32.mxu0 %v4275
        %6611 = vmatmul.mubr.f32.gmra.mrb[0].mxu0 %v4274
        %v6612 = vpop.f32.mrb[0].mxu0
        %v6613 = vadd.f32 %v6348, %v6612
        %v6614 = vpop.f32.mrb[0].mxu0
        %6615 = vmatprep.mubr.f32.mxu0 %v4293
        %6616 = vmatmul.mubr.f32.gmra.mrb[0].mxu0 %v4292
        %v6617 = vpop.f32.mrb[0].mxu0
        %v6618 = vadd.f32 %v6353, %v6617
        %v6619 = vpop.f32.mrb[0].mxu0
        %6620 = vmatprep.mubr.f32.mxu0 %v4311
        %6621 = vmatmul.mubr.f32.gmra.mrb[0].mxu0 %v4310
        %v6622 = vpop.f32.mrb[0].mxu0
        %v6623 = vadd.f32 %v6358, %v6622
        %v6624 = vpop.f32.mrb[0].mxu0
        %6625 = vmatprep.mubr.f32.mxu0 %v4329
        %6626 = vmatmul.mubr.f32.gmra.mrb[0].mxu0 %v4328
        %v6627 = vpop.f32.mrb[0].mxu0
        %v6628 = vadd.f32 %v6363, %v6627
        %v6629 = vpop.f32.mrb[0].mxu0
        %6630 = vmatprep.mubr.f32.mxu0 %v4347
        %6631 = vmatmul.mubr.f32.gmra.mrb[0].mxu0 %v4346
        %v6632 = vpop.f32.mrb[0].mxu0
        %v6633 = vadd.f32 %v6368, %v6632
        %v6634 = vpop.f32.mrb[0].mxu0
        %6635 = vmatprep.mubr.f32.mxu0 %v4365
        %6636 = vmatmul.mubr.f32.gmra.mrb[0].mxu0 %v4364
        %v6637 = vpop.f32.mrb[0].mxu0
        %v6638 = vadd.f32 %v6373, %v6637
        %v6639 = vpop.f32.mrb[0].mxu0
        %6640 = vmatprep.mubr.f32.mxu0 %v4383
        %6641 = vmatmul.mubr.f32.gmra.mrb[0].mxu0 %v4382
        %v6642 = vpop.f32.mrb[0].mxu0
        %v6643 = vadd.f32 %v6378, %v6642
        %v6644 = vpop.f32.mrb[0].mxu0
        %6645 = vmatprep.mubr.f32.mxu0 %v4401
        %6646 = vmatmul.mubr.f32.gmra.mrb[0].mxu0 %v4400
        %v6647 = vpop.f32.mrb[0].mxu0
        %v6648 = vadd.f32 %v6383, %v6647
        %v6649 = vpop.f32.mrb[0].mxu0
        %6650 = vmatprep.mubr.f32.mxu0 %v4419
        %6651 = vmatmul.mubr.f32.gmra.mrb[0].mxu0 %v4418
        %v6652 = vpop.f32.mrb[0].mxu0
        %v6653 = vadd.f32 %v6388, %v6652
        %v6654 = vpop.f32.mrb[0].mxu0
        %6655 = vmatprep.mubr.f32.mxu0 %v4437
        %6656 = vmatmul.mubr.f32.gmra.mrb[0].mxu0 %v4436
        %v6657 = vpop.f32.mrb[0].mxu0
        %v6658 = vadd.f32 %v6393, %v6657
        %v6659 = vpop.f32.mrb[0].mxu0
        %6660 = vmatprep.mubr.f32.mxu0 %v4455
        %6661 = vmatmul.mubr.f32.gmra.mrb[0].mxu0 %v4454
        %v6662 = vpop.f32.mrb[0].mxu0
        %v6663 = vadd.f32 %v6398, %v6662
        %v6664 = vpop.f32.mrb[0].mxu0
        %6665 = vmatprep.mubr.f32.mxu0 %v4473
        %6666 = vmatmul.mubr.f32.gmra.mrb[0].mxu0 %v4472
        %v6667 = vpop.f32.mrb[0].mxu0
        %v6668 = vadd.f32 %v6403, %v6667
        %v6669 = vpop.f32.mrb[0].mxu0
        %6670 = vmatprep.mubr.f32.mxu0 %v4491
        %6671 = vmatmul.mubr.f32.gmra.mrb[0].mxu0 %v4490
        %v6672 = vpop.f32.mrb[0].mxu0
        %v6673 = vadd.f32 %v6408, %v6672
        %v6674 = vpop.f32.mrb[0].mxu0
        %6675 = vmatprep.mubr.f32.mxu0 %v4509
        %6676 = vmatmul.mubr.f32.gmra.mrb[0].mxu0 %v4508
        %v6677 = vpop.f32.mrb[0].mxu0
        %v6678 = vadd.f32 %v6413, %v6677
        %v6679 = vpop.f32.mrb[0].mxu0
        %6680 = vmatprep.mubr.f32.mxu0 %v4527
        %6681 = vmatmul.mubr.f32.gmra.mrb[0].mxu0 %v4526
        %v6682 = vpop.f32.mrb[0].mxu0
        %v6683 = vadd.f32 %v6418, %v6682
        %v6684 = vpop.f32.mrb[0].mxu0
        %6685 = vmatprep.mubr.f32.mxu0 %v4545
        %6686 = vmatmul.mubr.f32.gmra.mrb[0].mxu0 %v4544
        %v6687 = vpop.f32.mrb[0].mxu0
        %v6688 = vadd.f32 %v6423, %v6687
        %v6689 = vpop.f32.mrb[0].mxu0
        %6690 = vmatprep.mubr.f32.mxu0 %v4563
        %6691 = vmatmul.mubr.f32.gmra.mrb[0].mxu0 %v4562
        %v6692 = vpop.f32.mrb[0].mxu0
        %v6693 = vadd.f32 %v6428, %v6692
        %v6694 = vpop.f32.mrb[0].mxu0
        %6695 = vmatprep.mubr.f32.mxu0 %v4581
        %6696 = vmatmul.mubr.f32.gmra.mrb[0].mxu0 %v4580
        %v6697 = vpop.f32.mrb[0].mxu0
        %v6698 = vadd.f32 %v6433, %v6697
        %v6699 = vpop.f32.mrb[0].mxu0
        %6700 = vmatprep.mubr.f32.mxu0 %v4599
        %6701 = vmatmul.mubr.f32.gmra.mrb[0].mxu0 %v4598
        %v6702 = vpop.f32.mrb[0].mxu0
        %v6703 = vadd.f32 %v6438, %v6702
        %v6704 = vpop.f32.mrb[0].mxu0
        %6705 = vmatprep.mubr.f32.mxu0 %v4617
        %6706 = vmatmul.mubr.f32.gmra.mrb[0].mxu0 %v4616
        %v6707 = vpop.f32.mrb[0].mxu0
        %v6708 = vadd.f32 %v6443, %v6707
        %v6709 = vpop.f32.mrb[0].mxu0
        %6710 = vmatprep.mubr.f32.mxu0 %v4635
        %6711 = vmatmul.mubr.f32.gmra.mrb[0].mxu0 %v4634
        %v6712 = vpop.f32.mrb[0].mxu0
        %v6713 = vadd.f32 %v6448, %v6712
        %v6714 = vpop.f32.mrb[0].mxu0
        %6715 = vmatprep.mubr.f32.mxu0 %v4653
        %6716 = vmatmul.mubr.f32.gmra.mrb[0].mxu0 %v4652
        %v6717 = vpop.f32.mrb[0].mxu0
        %v6718 = vadd.f32 %v6453, %v6717
        %v6719 = vpop.f32.mrb[0].mxu0
        %6720 = vmatprep.mubr.f32.mxu0 %v4671
        %6721 = vmatmul.mubr.f32.gmra.mrb[0].mxu0 %v4670
        %v6722 = vpop.f32.mrb[0].mxu0
        %v6723 = vadd.f32 %v6458, %v6722
        %v6724 = vpop.f32.mrb[0].mxu0
        %6725 = vmatprep.mubr.f32.mxu0 %v4689
        %6726 = vmatmul.mubr.f32.gmra.mrb[0].mxu0 %v4688
        %v6727 = vpop.f32.mrb[0].mxu0
        %v6728 = vadd.f32 %v6463, %v6727
        %v6729 = vpop.f32.mrb[0].mxu0
        %6730 = vmatprep.mubr.f32.mxu0 %v4707
        %6731 = vmatmul.mubr.f32.gmra.mrb[0].mxu0 %v4706
        %v6732 = vpop.f32.mrb[0].mxu0
        %v6733 = vadd.f32 %v6468, %v6732
        %v6734 = vpop.f32.mrb[0].mxu0
        %6735 = vmatprep.mubr.f32.mxu0 %v4725
        %6736 = vmatmul.mubr.f32.gmra.mrb[0].mxu0 %v4724
        %v6737 = vpop.f32.mrb[0].mxu0
        %v6738 = vadd.f32 %v6473, %v6737
        %v6739 = vpop.f32.mrb[0].mxu0
        %6740 = vmatprep.mubr.f32.mxu0 %v4743
        %6741 = vmatmul.mubr.f32.gmra.mrb[0].mxu0 %v4742
        %v6742 = vpop.f32.mrb[0].mxu0
        %v6743 = vadd.f32 %v6478, %v6742
        %v6744 = vpop.f32.mrb[0].mxu0
        %6745 = vmatprep.mubr.f32.mxu0 %v4761
        %6746 = vmatmul.mubr.f32.gmra.mrb[0].mxu0 %v4760
        %v6747 = vpop.f32.mrb[0].mxu0
        %v6748 = vadd.f32 %v6483, %v6747
        %v6749 = vpop.f32.mrb[0].mxu0
        %6750 = vmatprep.mubr.f32.mxu0 %v4779
        %6751 = vmatmul.mubr.f32.gmra.mrb[0].mxu0 %v4778
        %v6752 = vpop.f32.mrb[0].mxu0
        %v6753 = vadd.f32 %v6488, %v6752
        %v6754 = vpop.f32.mrb[0].mxu0
        %6755 = vmatprep.mubr.f32.mxu0 %v4797
        %6756 = vmatmul.mubr.f32.gmra.mrb[0].mxu0 %v4796
        %v6757 = vpop.f32.mrb[0].mxu0
        %v6758 = vadd.f32 %v6493, %v6757
        %v6759 = vpop.f32.mrb[0].mxu0
        %6760 = vmatprep.mubr.f32.mxu0 %v4815
        %6761 = vmatmul.mubr.f32.gmra.mrb[0].mxu0 %v4814
        %v6762 = vpop.f32.mrb[0].mxu0
        %v6763 = vadd.f32 %v6498, %v6762
        %v6764 = vpop.f32.mrb[0].mxu0
        %6765 = vmatprep.mubr.f32.mxu0 %v4833
        %6766 = vmatmul.mubr.f32.gmra.mrb[0].mxu0 %v4832
        %v6767 = vpop.f32.mrb[0].mxu0
        %v6768 = vadd.f32 %v6503, %v6767
        %v6769 = vpop.f32.mrb[0].mxu0
        %6770 = vmatprep.mubr.f32.mxu0 %v4851
        %6771 = vmatmul.mubr.f32.gmra.mrb[0].mxu0 %v4850
        %v6772 = vpop.f32.mrb[0].mxu0
        %v6773 = vadd.f32 %v6508, %v6772
        %v6774 = vpop.f32.mrb[0].mxu0
        %6775 = vmatprep.mubr.f32.mxu0 %v4869
        %6776 = vmatmul.mubr.f32.gmra.mrb[0].mxu0 %v4868
        %v6777 = vpop.f32.mrb[0].mxu0
        %v6778 = vadd.f32 %v6513, %v6777
        %v6779 = vpop.f32.mrb[0].mxu0
        %6780 = vmatprep.mubr.f32.mxu0 %v4887
        %6781 = vmatmul.mubr.f32.gmra.mrb[0].mxu0 %v4886
        %v6782 = vpop.f32.mrb[0].mxu0
        %v6783 = vadd.f32 %v6518, %v6782
        %v6784 = vpop.f32.mrb[0].mxu0
        %6785 = vmatprep.mubr.f32.mxu0 %v4905
        %6786 = vmatmul.mubr.f32.gmra.mrb[0].mxu0 %v4904
        %v6787 = vpop.f32.mrb[0].mxu0
        %v6788 = vadd.f32 %v6523, %v6787
        %v6789 = vpop.f32.mrb[0].mxu0
        %6790 = vmatprep.mubr.f32.mxu0 %v4923
        %6791 = vmatmul.mubr.f32.gmra.mrb[0].mxu0 %v4922
        %v6792 = vpop.f32.mrb[0].mxu0
        %v6793 = vadd.f32 %v6528, %v6792
        %v6794 = vpop.f32.mrb[0].mxu0
        %6795 = vmatprep.mubr.f32.mxu0 %v4941
        %6796 = vmatmul.mubr.f32.gmra.mrb[0].mxu0 %v4940
        %v6797 = vpop.f32.mrb[0].mxu0
        %v6798 = vadd.f32 %v6533, %v6797
        %v6799 = vpop.f32.mrb[0].mxu0
        %6800 = vdwg.mxu0
        %6801 = vmatprep.subr.mxu0 0.0
        %6802 = vmatpush1.msra.mxu0 %v4162
        %6803 = vmatprep.subr.mxu0 0.0
        %6804 = vmatpush1.msra.mxu0 %v4163
        %6805 = vmatprep.subr.mxu0 0.0
        %6806 = vmatpush1.msra.mxu0 %v4164
        %6807 = vmatprep.subr.mxu0 0.0
        %6808 = vmatpush1.msra.mxu0 %v4165
        %6809 = vmatprep.subr.mxu0 0.0
        %6810 = vmatpush1.msra.mxu0 %v4166
        %6811 = vmatprep.subr.mxu0 0.0
        %6812 = vmatpush1.msra.mxu0 %v4167
        %6813 = vmatprep.subr.mxu0 0.0
        %6814 = vmatpush1.msra.mxu0 %v4168
        %6815 = vmatprep.subr.mxu0 0.0
        %6816 = vmatpush1.msra.mxu0 %v4169
        %6817 = vmatprep.subr.mxu0 0.0
        %6818 = vmatpush1.msra.mxu0 %v4170
        %6819 = vmatprep.subr.mxu0 0.0
        %6820 = vmatpush1.msra.mxu0 %v4171
        %6821 = vmatprep.subr.mxu0 0.0
        %6822 = vmatpush1.msra.mxu0 %v4172
        %6823 = vmatprep.subr.mxu0 0.0
        %6824 = vmatpush1.msra.mxu0 %v4173
        %6825 = vmatprep.subr.mxu0 0.0
        %6826 = vmatpush1.msra.mxu0 %v4174
        %6827 = vmatprep.subr.mxu0 0.0
        %6828 = vmatpush1.msra.mxu0 %v4175
        %6829 = vmatprep.subr.mxu0 0.0
        %6830 = vmatpush1.msra.mxu0 %v4176
        %6831 = vmatprep.subr.mxu0 0.0
        %6832 = vmatpush1.msra.mxu0 %v4177
        %6833 = vmatprep.subr.mxu0 0.0
        %6834 = vmatpush1.msra.mxu0 %v4178
        %6835 = vmatprep.subr.mxu0 0.0
        %6836 = vmatpush1.msra.mxu0 %v4179
        %6837 = vmatprep.subr.mxu0 0.0
        %6838 = vmatpush1.msra.mxu0 %v4180
        %6839 = vmatprep.subr.mxu0 0.0
        %6840 = vmatpush1.msra.mxu0 %v4181
        %6841 = vmatprep.subr.mxu0 0.0
        %6842 = vmatpush1.msra.mxu0 %v4182
        %6843 = vmatprep.subr.mxu0 0.0
        %6844 = vmatpush1.msra.mxu0 %v4183
        %6845 = vmatprep.subr.mxu0 0.0
        %6846 = vmatpush1.msra.mxu0 %v4184
        %6847 = vmatprep.subr.mxu0 0.0
        %6848 = vmatpush1.msra.mxu0 %v4185
        %6849 = vmatprep.subr.mxu0 0.0
        %6850 = vmatpush1.msra.mxu0 %v4186
        %6851 = vmatprep.subr.mxu0 0.0
        %6852 = vmatpush1.msra.mxu0 %v4187
        %6853 = vmatprep.subr.mxu0 0.0
        %6854 = vmatpush1.msra.mxu0 %v4188
        %6855 = vmatprep.subr.mxu0 0.0
        %6856 = vmatpush1.msra.mxu0 %v4189
        %6857 = vmatprep.subr.mxu0 0.0
        %6858 = vmatpush1.msra.mxu0 %v4190
        %6859 = vmatprep.subr.mxu0 0.0
        %6860 = vmatpush1.msra.mxu0 %v4191
        %6861 = vmatprep.subr.mxu0 0.0
        %6862 = vmatpush1.msra.mxu0 %v4192
        %6863 = vmatprep.subr.mxu0 0.0
        %6864 = vmatpush1.msra.mxu0 %v4193
        %6865 = vmatprep.mubr.f32.mxu0 %v4241
        %6866 = vmatmul.mubr.f32.gmra.mrb[0].mxu0 %v4240
        %v6867 = vpop.f32.mrb[0].mxu0
        %v6868 = vadd.f32 %v6603, %v6867
        %v6869 = vpop.f32.mrb[0].mxu0
        %6870 = vmatprep.mubr.f32.mxu0 %v4259
        %6871 = vmatmul.mubr.f32.gmra.mrb[0].mxu0 %v4258
        %v6872 = vpop.f32.mrb[0].mxu0
        %v6873 = vadd.f32 %v6608, %v6872
        %v6874 = vpop.f32.mrb[0].mxu0
        %6875 = vmatprep.mubr.f32.mxu0 %v4277
        %6876 = vmatmul.mubr.f32.gmra.mrb[0].mxu0 %v4276
        %v6877 = vpop.f32.mrb[0].mxu0
        %v6878 = vadd.f32 %v6613, %v6877
        %v6879 = vpop.f32.mrb[0].mxu0
        %6880 = vmatprep.mubr.f32.mxu0 %v4295
        %6881 = vmatmul.mubr.f32.gmra.mrb[0].mxu0 %v4294
        %v6882 = vpop.f32.mrb[0].mxu0
        %v6883 = vadd.f32 %v6618, %v6882
        %v6884 = vpop.f32.mrb[0].mxu0
        %6885 = vmatprep.mubr.f32.mxu0 %v4313
        %6886 = vmatmul.mubr.f32.gmra.mrb[0].mxu0 %v4312
        %v6887 = vpop.f32.mrb[0].mxu0
        %v6888 = vadd.f32 %v6623, %v6887
        %v6889 = vpop.f32.mrb[0].mxu0
        %6890 = vmatprep.mubr.f32.mxu0 %v4331
        %6891 = vmatmul.mubr.f32.gmra.mrb[0].mxu0 %v4330
        %v6892 = vpop.f32.mrb[0].mxu0
        %v6893 = vadd.f32 %v6628, %v6892
        %v6894 = vpop.f32.mrb[0].mxu0
        %6895 = vmatprep.mubr.f32.mxu0 %v4349
        %6896 = vmatmul.mubr.f32.gmra.mrb[0].mxu0 %v4348
        %v6897 = vpop.f32.mrb[0].mxu0
        %v6898 = vadd.f32 %v6633, %v6897
        %v6899 = vpop.f32.mrb[0].mxu0
        %6900 = vmatprep.mubr.f32.mxu0 %v4367
        %6901 = vmatmul.mubr.f32.gmra.mrb[0].mxu0 %v4366
        %v6902 = vpop.f32.mrb[0].mxu0
        %v6903 = vadd.f32 %v6638, %v6902
        %v6904 = vpop.f32.mrb[0].mxu0
        %6905 = vmatprep.mubr.f32.mxu0 %v4385
        %6906 = vmatmul.mubr.f32.gmra.mrb[0].mxu0 %v4384
        %v6907 = vpop.f32.mrb[0].mxu0
        %v6908 = vadd.f32 %v6643, %v6907
        %v6909 = vpop.f32.mrb[0].mxu0
        %6910 = vmatprep.mubr.f32.mxu0 %v4403
        %6911 = vmatmul.mubr.f32.gmra.mrb[0].mxu0 %v4402
        %v6912 = vpop.f32.mrb[0].mxu0
        %v6913 = vadd.f32 %v6648, %v6912
        %v6914 = vpop.f32.mrb[0].mxu0
        %6915 = vmatprep.mubr.f32.mxu0 %v4421
        %6916 = vmatmul.mubr.f32.gmra.mrb[0].mxu0 %v4420
        %v6917 = vpop.f32.mrb[0].mxu0
        %v6918 = vadd.f32 %v6653, %v6917
        %v6919 = vpop.f32.mrb[0].mxu0
        %6920 = vmatprep.mubr.f32.mxu0 %v4439
        %6921 = vmatmul.mubr.f32.gmra.mrb[0].mxu0 %v4438
        %v6922 = vpop.f32.mrb[0].mxu0
        %v6923 = vadd.f32 %v6658, %v6922
        %v6924 = vpop.f32.mrb[0].mxu0
        %6925 = vmatprep.mubr.f32.mxu0 %v4457
        %6926 = vmatmul.mubr.f32.gmra.mrb[0].mxu0 %v4456
        %v6927 = vpop.f32.mrb[0].mxu0
        %v6928 = vadd.f32 %v6663, %v6927
        %v6929 = vpop.f32.mrb[0].mxu0
        %6930 = vmatprep.mubr.f32.mxu0 %v4475
        %6931 = vmatmul.mubr.f32.gmra.mrb[0].mxu0 %v4474
        %v6932 = vpop.f32.mrb[0].mxu0
        %v6933 = vadd.f32 %v6668, %v6932
        %v6934 = vpop.f32.mrb[0].mxu0
        %6935 = vmatprep.mubr.f32.mxu0 %v4493
        %6936 = vmatmul.mubr.f32.gmra.mrb[0].mxu0 %v4492
        %v6937 = vpop.f32.mrb[0].mxu0
        %v6938 = vadd.f32 %v6673, %v6937
        %v6939 = vpop.f32.mrb[0].mxu0
        %6940 = vmatprep.mubr.f32.mxu0 %v4511
        %6941 = vmatmul.mubr.f32.gmra.mrb[0].mxu0 %v4510
        %v6942 = vpop.f32.mrb[0].mxu0
        %v6943 = vadd.f32 %v6678, %v6942
        %v6944 = vpop.f32.mrb[0].mxu0
        %6945 = vmatprep.mubr.f32.mxu0 %v4529
        %6946 = vmatmul.mubr.f32.gmra.mrb[0].mxu0 %v4528
        %v6947 = vpop.f32.mrb[0].mxu0
        %v6948 = vadd.f32 %v6683, %v6947
        %v6949 = vpop.f32.mrb[0].mxu0
        %6950 = vmatprep.mubr.f32.mxu0 %v4547
        %6951 = vmatmul.mubr.f32.gmra.mrb[0].mxu0 %v4546
        %v6952 = vpop.f32.mrb[0].mxu0
        %v6953 = vadd.f32 %v6688, %v6952
        %v6954 = vpop.f32.mrb[0].mxu0
        %6955 = vmatprep.mubr.f32.mxu0 %v4565
        %6956 = vmatmul.mubr.f32.gmra.mrb[0].mxu0 %v4564
        %v6957 = vpop.f32.mrb[0].mxu0
        %v6958 = vadd.f32 %v6693, %v6957
        %v6959 = vpop.f32.mrb[0].mxu0
        %6960 = vmatprep.mubr.f32.mxu0 %v4583
        %6961 = vmatmul.mubr.f32.gmra.mrb[0].mxu0 %v4582
        %v6962 = vpop.f32.mrb[0].mxu0
        %v6963 = vadd.f32 %v6698, %v6962
        %v6964 = vpop.f32.mrb[0].mxu0
        %6965 = vmatprep.mubr.f32.mxu0 %v4601
        %6966 = vmatmul.mubr.f32.gmra.mrb[0].mxu0 %v4600
        %v6967 = vpop.f32.mrb[0].mxu0
        %v6968 = vadd.f32 %v6703, %v6967
        %v6969 = vpop.f32.mrb[0].mxu0
        %6970 = vmatprep.mubr.f32.mxu0 %v4619
        %6971 = vmatmul.mubr.f32.gmra.mrb[0].mxu0 %v4618
        %v6972 = vpop.f32.mrb[0].mxu0
        %v6973 = vadd.f32 %v6708, %v6972
        %v6974 = vpop.f32.mrb[0].mxu0
        %6975 = vmatprep.mubr.f32.mxu0 %v4637
        %6976 = vmatmul.mubr.f32.gmra.mrb[0].mxu0 %v4636
        %v6977 = vpop.f32.mrb[0].mxu0
        %v6978 = vadd.f32 %v6713, %v6977
        %v6979 = vpop.f32.mrb[0].mxu0
        %6980 = vmatprep.mubr.f32.mxu0 %v4655
        %6981 = vmatmul.mubr.f32.gmra.mrb[0].mxu0 %v4654
        %v6982 = vpop.f32.mrb[0].mxu0
        %v6983 = vadd.f32 %v6718, %v6982
        %v6984 = vpop.f32.mrb[0].mxu0
        %6985 = vmatprep.mubr.f32.mxu0 %v4673
        %6986 = vmatmul.mubr.f32.gmra.mrb[0].mxu0 %v4672
        %v6987 = vpop.f32.mrb[0].mxu0
        %v6988 = vadd.f32 %v6723, %v6987
        %v6989 = vpop.f32.mrb[0].mxu0
        %6990 = vmatprep.mubr.f32.mxu0 %v4691
        %6991 = vmatmul.mubr.f32.gmra.mrb[0].mxu0 %v4690
        %v6992 = vpop.f32.mrb[0].mxu0
        %v6993 = vadd.f32 %v6728, %v6992
        %v6994 = vpop.f32.mrb[0].mxu0
        %6995 = vmatprep.mubr.f32.mxu0 %v4709
        %6996 = vmatmul.mubr.f32.gmra.mrb[0].mxu0 %v4708
        %v6997 = vpop.f32.mrb[0].mxu0
        %v6998 = vadd.f32 %v6733, %v6997
        %v6999 = vpop.f32.mrb[0].mxu0
        %7000 = vmatprep.mubr.f32.mxu0 %v4727
        %7001 = vmatmul.mubr.f32.gmra.mrb[0].mxu0 %v4726
        %v7002 = vpop.f32.mrb[0].mxu0
        %v7003 = vadd.f32 %v6738, %v7002
        %v7004 = vpop.f32.mrb[0].mxu0
        %7005 = vmatprep.mubr.f32.mxu0 %v4745
        %7006 = vmatmul.mubr.f32.gmra.mrb[0].mxu0 %v4744
        %v7007 = vpop.f32.mrb[0].mxu0
        %v7008 = vadd.f32 %v6743, %v7007
        %v7009 = vpop.f32.mrb[0].mxu0
        %7010 = vmatprep.mubr.f32.mxu0 %v4763
        %7011 = vmatmul.mubr.f32.gmra.mrb[0].mxu0 %v4762
        %v7012 = vpop.f32.mrb[0].mxu0
        %v7013 = vadd.f32 %v6748, %v7012
        %v7014 = vpop.f32.mrb[0].mxu0
        %7015 = vmatprep.mubr.f32.mxu0 %v4781
        %7016 = vmatmul.mubr.f32.gmra.mrb[0].mxu0 %v4780
        %v7017 = vpop.f32.mrb[0].mxu0
        %v7018 = vadd.f32 %v6753, %v7017
        %v7019 = vpop.f32.mrb[0].mxu0
        %7020 = vmatprep.mubr.f32.mxu0 %v4799
        %7021 = vmatmul.mubr.f32.gmra.mrb[0].mxu0 %v4798
        %v7022 = vpop.f32.mrb[0].mxu0
        %v7023 = vadd.f32 %v6758, %v7022
        %v7024 = vpop.f32.mrb[0].mxu0
        %7025 = vmatprep.mubr.f32.mxu0 %v4817
        %7026 = vmatmul.mubr.f32.gmra.mrb[0].mxu0 %v4816
        %v7027 = vpop.f32.mrb[0].mxu0
        %v7028 = vadd.f32 %v6763, %v7027
        %v7029 = vpop.f32.mrb[0].mxu0
        %7030 = vmatprep.mubr.f32.mxu0 %v4835
        %7031 = vmatmul.mubr.f32.gmra.mrb[0].mxu0 %v4834
        %v7032 = vpop.f32.mrb[0].mxu0
        %v7033 = vadd.f32 %v6768, %v7032
        %v7034 = vpop.f32.mrb[0].mxu0
        %7035 = vmatprep.mubr.f32.mxu0 %v4853
        %7036 = vmatmul.mubr.f32.gmra.mrb[0].mxu0 %v4852
        %v7037 = vpop.f32.mrb[0].mxu0
        %v7038 = vadd.f32 %v6773, %v7037
        %v7039 = vpop.f32.mrb[0].mxu0
        %7040 = vmatprep.mubr.f32.mxu0 %v4871
        %7041 = vmatmul.mubr.f32.gmra.mrb[0].mxu0 %v4870
        %v7042 = vpop.f32.mrb[0].mxu0
        %v7043 = vadd.f32 %v6778, %v7042
        %v7044 = vpop.f32.mrb[0].mxu0
        %7045 = vmatprep.mubr.f32.mxu0 %v4889
        %7046 = vmatmul.mubr.f32.gmra.mrb[0].mxu0 %v4888
        %v7047 = vpop.f32.mrb[0].mxu0
        %v7048 = vadd.f32 %v6783, %v7047
        %v7049 = vpop.f32.mrb[0].mxu0
        %7050 = vmatprep.mubr.f32.mxu0 %v4907
        %7051 = vmatmul.mubr.f32.gmra.mrb[0].mxu0 %v4906
        %v7052 = vpop.f32.mrb[0].mxu0
        %v7053 = vadd.f32 %v6788, %v7052
        %v7054 = vpop.f32.mrb[0].mxu0
        %7055 = vmatprep.mubr.f32.mxu0 %v4925
        %7056 = vmatmul.mubr.f32.gmra.mrb[0].mxu0 %v4924
        %v7057 = vpop.f32.mrb[0].mxu0
        %v7058 = vadd.f32 %v6793, %v7057
        %v7059 = vpop.f32.mrb[0].mxu0
        %7060 = vmatprep.mubr.f32.mxu0 %v4943
        %7061 = vmatmul.mubr.f32.gmra.mrb[0].mxu0 %v4942
        %v7062 = vpop.f32.mrb[0].mxu0
        %v7063 = vadd.f32 %v6798, %v7062
        %v7064 = vpop.f32.mrb[0].mxu0
        %7065 = vdwg.mxu0
        %7066 = vmatprep.subr.mxu0 0.0
        %7067 = vmatpush1.msra.mxu0 %v4194
        %7068 = vmatprep.subr.mxu0 0.0
        %7069 = vmatpush1.msra.mxu0 %v4195
        %7070 = vmatprep.subr.mxu0 0.0
        %7071 = vmatpush1.msra.mxu0 %v4196
        %7072 = vmatprep.subr.mxu0 0.0
        %7073 = vmatpush1.msra.mxu0 %v4197
        %7074 = vmatprep.subr.mxu0 0.0
        %7075 = vmatpush1.msra.mxu0 %v4198
        %7076 = vmatprep.subr.mxu0 0.0
        %7077 = vmatpush1.msra.mxu0 %v4199
        %7078 = vmatprep.subr.mxu0 0.0
        %7079 = vmatpush1.msra.mxu0 %v4200
        %7080 = vmatprep.subr.mxu0 0.0
        %7081 = vmatpush1.msra.mxu0 %v4201
        %7082 = vmatprep.subr.mxu0 0.0
        %7083 = vmatpush1.msra.mxu0 %v4202
        %7084 = vmatprep.subr.mxu0 0.0
        %7085 = vmatpush1.msra.mxu0 %v4203
        %7086 = vmatprep.subr.mxu0 0.0
        %7087 = vmatpush1.msra.mxu0 %v4204
        %7088 = vmatprep.subr.mxu0 0.0
        %7089 = vmatpush1.msra.mxu0 %v4205
        %7090 = vmatprep.subr.mxu0 0.0
        %7091 = vmatpush1.msra.mxu0 %v4206
        %7092 = vmatprep.subr.mxu0 0.0
        %7093 = vmatpush1.msra.mxu0 %v4207
        %7094 = vmatprep.subr.mxu0 0.0
        %7095 = vmatpush1.msra.mxu0 %v4208
        %7096 = vmatprep.subr.mxu0 0.0
        %7097 = vmatpush1.msra.mxu0 %v4209
        %7098 = vmatprep.subr.mxu0 0.0
        %7099 = vmatpush1.msra.mxu0 %v4210
        %7100 = vmatprep.subr.mxu0 0.0
        %7101 = vmatpush1.msra.mxu0 %v4211
        %7102 = vmatprep.subr.mxu0 0.0
        %7103 = vmatpush1.msra.mxu0 %v4212
        %7104 = vmatprep.subr.mxu0 0.0
        %7105 = vmatpush1.msra.mxu0 %v4213
        %7106 = vmatprep.subr.mxu0 0.0
        %7107 = vmatpush1.msra.mxu0 %v4214
        %7108 = vmatprep.subr.mxu0 0.0
        %7109 = vmatpush1.msra.mxu0 %v4215
        %7110 = vmatprep.subr.mxu0 0.0
        %7111 = vmatpush1.msra.mxu0 %v4216
        %7112 = vmatprep.subr.mxu0 0.0
        %7113 = vmatpush1.msra.mxu0 %v4217
        %7114 = vmatprep.subr.mxu0 0.0
        %7115 = vmatpush1.msra.mxu0 %v4218
        %7116 = vmatprep.subr.mxu0 0.0
        %7117 = vmatpush1.msra.mxu0 %v4219
        %7118 = vmatprep.subr.mxu0 0.0
        %7119 = vmatpush1.msra.mxu0 %v4220
        %7120 = vmatprep.subr.mxu0 0.0
        %7121 = vmatpush1.msra.mxu0 %v4221
        %7122 = vmatprep.subr.mxu0 0.0
        %7123 = vmatpush1.msra.mxu0 %v4222
        %7124 = vmatprep.subr.mxu0 0.0
        %7125 = vmatpush1.msra.mxu0 %v4223
        %7126 = vmatprep.subr.mxu0 0.0
        %7127 = vmatpush1.msra.mxu0 %v4224
        %7128 = vmatprep.subr.mxu0 0.0
        %7129 = vmatpush1.msra.mxu0 %v4225
        %7130 = vmatprep.mubr.f32.mxu0 %v4243
        %7131 = vmatmul.mubr.f32.gmra.mrb[0].mxu0 %v4242
        %v7132 = vpop.f32.mrb[0].mxu0
        %v7133 = vadd.f32 %v6868, %v7132
        %v7134 = vpop.f32.mrb[0].mxu0
        %7135 = vmatprep.mubr.f32.mxu0 %v4261
        %7136 = vmatmul.mubr.f32.gmra.mrb[0].mxu0 %v4260
        %v7137 = vpop.f32.mrb[0].mxu0
        %v7138 = vadd.f32 %v6873, %v7137
        %v7139 = vpop.f32.mrb[0].mxu0
        %7140 = vmatprep.mubr.f32.mxu0 %v4279
        %7141 = vmatmul.mubr.f32.gmra.mrb[0].mxu0 %v4278
        %v7142 = vpop.f32.mrb[0].mxu0
        %v7143 = vadd.f32 %v6878, %v7142
        %v7144 = vpop.f32.mrb[0].mxu0
        %7145 = vmatprep.mubr.f32.mxu0 %v4297
        %7146 = vmatmul.mubr.f32.gmra.mrb[0].mxu0 %v4296
        %v7147 = vpop.f32.mrb[0].mxu0
        %v7148 = vadd.f32 %v6883, %v7147
        %v7149 = vpop.f32.mrb[0].mxu0
        %7150 = vmatprep.mubr.f32.mxu0 %v4315
        %7151 = vmatmul.mubr.f32.gmra.mrb[0].mxu0 %v4314
        %v7152 = vpop.f32.mrb[0].mxu0
        %v7153 = vadd.f32 %v6888, %v7152
        %v7154 = vpop.f32.mrb[0].mxu0
        %7155 = vmatprep.mubr.f32.mxu0 %v4333
        %7156 = vmatmul.mubr.f32.gmra.mrb[0].mxu0 %v4332
        %v7157 = vpop.f32.mrb[0].mxu0
        %v7158 = vadd.f32 %v6893, %v7157
        %v7159 = vpop.f32.mrb[0].mxu0
        %7160 = vmatprep.mubr.f32.mxu0 %v4351
        %7161 = vmatmul.mubr.f32.gmra.mrb[0].mxu0 %v4350
        %v7162 = vpop.f32.mrb[0].mxu0
        %v7163 = vadd.f32 %v6898, %v7162
        %v7164 = vpop.f32.mrb[0].mxu0
        %7165 = vmatprep.mubr.f32.mxu0 %v4369
        %7166 = vmatmul.mubr.f32.gmra.mrb[0].mxu0 %v4368
        %v7167 = vpop.f32.mrb[0].mxu0
        %v7168 = vadd.f32 %v6903, %v7167
        %v7169 = vpop.f32.mrb[0].mxu0
        %7170 = vmatprep.mubr.f32.mxu0 %v4387
        %7171 = vmatmul.mubr.f32.gmra.mrb[0].mxu0 %v4386
        %v7172 = vpop.f32.mrb[0].mxu0
        %v7173 = vadd.f32 %v6908, %v7172
        %v7174 = vpop.f32.mrb[0].mxu0
        %7175 = vmatprep.mubr.f32.mxu0 %v4405
        %7176 = vmatmul.mubr.f32.gmra.mrb[0].mxu0 %v4404
        %v7177 = vpop.f32.mrb[0].mxu0
        %v7178 = vadd.f32 %v6913, %v7177
        %v7179 = vpop.f32.mrb[0].mxu0
        %7180 = vmatprep.mubr.f32.mxu0 %v4423
        %7181 = vmatmul.mubr.f32.gmra.mrb[0].mxu0 %v4422
        %v7182 = vpop.f32.mrb[0].mxu0
        %v7183 = vadd.f32 %v6918, %v7182
        %v7184 = vpop.f32.mrb[0].mxu0
        %7185 = vmatprep.mubr.f32.mxu0 %v4441
        %7186 = vmatmul.mubr.f32.gmra.mrb[0].mxu0 %v4440
        %v7187 = vpop.f32.mrb[0].mxu0
        %v7188 = vadd.f32 %v6923, %v7187
        %v7189 = vpop.f32.mrb[0].mxu0
        %7190 = vmatprep.mubr.f32.mxu0 %v4459
        %7191 = vmatmul.mubr.f32.gmra.mrb[0].mxu0 %v4458
        %v7192 = vpop.f32.mrb[0].mxu0
        %v7193 = vadd.f32 %v6928, %v7192
        %v7194 = vpop.f32.mrb[0].mxu0
        %7195 = vmatprep.mubr.f32.mxu0 %v4477
        %7196 = vmatmul.mubr.f32.gmra.mrb[0].mxu0 %v4476
        %v7197 = vpop.f32.mrb[0].mxu0
        %v7198 = vadd.f32 %v6933, %v7197
        %v7199 = vpop.f32.mrb[0].mxu0
        %7200 = vmatprep.mubr.f32.mxu0 %v4495
        %7201 = vmatmul.mubr.f32.gmra.mrb[0].mxu0 %v4494
        %v7202 = vpop.f32.mrb[0].mxu0
        %v7203 = vadd.f32 %v6938, %v7202
        %v7204 = vpop.f32.mrb[0].mxu0
        %7205 = vmatprep.mubr.f32.mxu0 %v4513
        %7206 = vmatmul.mubr.f32.gmra.mrb[0].mxu0 %v4512
        %v7207 = vpop.f32.mrb[0].mxu0
        %v7208 = vadd.f32 %v6943, %v7207
        %v7209 = vpop.f32.mrb[0].mxu0
        %7210 = vmatprep.mubr.f32.mxu0 %v4531
        %7211 = vmatmul.mubr.f32.gmra.mrb[0].mxu0 %v4530
        %v7212 = vpop.f32.mrb[0].mxu0
        %v7213 = vadd.f32 %v6948, %v7212
        %v7214 = vpop.f32.mrb[0].mxu0
        %7215 = vmatprep.mubr.f32.mxu0 %v4549
        %7216 = vmatmul.mubr.f32.gmra.mrb[0].mxu0 %v4548
        %v7217 = vpop.f32.mrb[0].mxu0
        %v7218 = vadd.f32 %v6953, %v7217
        %v7219 = vpop.f32.mrb[0].mxu0
        %7220 = vmatprep.mubr.f32.mxu0 %v4567
        %7221 = vmatmul.mubr.f32.gmra.mrb[0].mxu0 %v4566
        %v7222 = vpop.f32.mrb[0].mxu0
        %v7223 = vadd.f32 %v6958, %v7222
        %v7224 = vpop.f32.mrb[0].mxu0
        %7225 = vmatprep.mubr.f32.mxu0 %v4585
        %7226 = vmatmul.mubr.f32.gmra.mrb[0].mxu0 %v4584
        %v7227 = vpop.f32.mrb[0].mxu0
        %v7228 = vadd.f32 %v6963, %v7227
        %v7229 = vpop.f32.mrb[0].mxu0
        %7230 = vmatprep.mubr.f32.mxu0 %v4603
        %7231 = vmatmul.mubr.f32.gmra.mrb[0].mxu0 %v4602
        %v7232 = vpop.f32.mrb[0].mxu0
        %v7233 = vadd.f32 %v6968, %v7232
        %v7234 = vpop.f32.mrb[0].mxu0
        %7235 = vmatprep.mubr.f32.mxu0 %v4621
        %7236 = vmatmul.mubr.f32.gmra.mrb[0].mxu0 %v4620
        %v7237 = vpop.f32.mrb[0].mxu0
        %v7238 = vadd.f32 %v6973, %v7237
        %v7239 = vpop.f32.mrb[0].mxu0
        %7240 = vmatprep.mubr.f32.mxu0 %v4639
        %7241 = vmatmul.mubr.f32.gmra.mrb[0].mxu0 %v4638
        %v7242 = vpop.f32.mrb[0].mxu0
        %v7243 = vadd.f32 %v6978, %v7242
        %v7244 = vpop.f32.mrb[0].mxu0
        %7245 = vmatprep.mubr.f32.mxu0 %v4657
        %7246 = vmatmul.mubr.f32.gmra.mrb[0].mxu0 %v4656
        %v7247 = vpop.f32.mrb[0].mxu0
        %v7248 = vadd.f32 %v6983, %v7247
        %v7249 = vpop.f32.mrb[0].mxu0
        %7250 = vmatprep.mubr.f32.mxu0 %v4675
        %7251 = vmatmul.mubr.f32.gmra.mrb[0].mxu0 %v4674
        %v7252 = vpop.f32.mrb[0].mxu0
        %v7253 = vadd.f32 %v6988, %v7252
        %v7254 = vpop.f32.mrb[0].mxu0
        %7255 = vmatprep.mubr.f32.mxu0 %v4693
        %7256 = vmatmul.mubr.f32.gmra.mrb[0].mxu0 %v4692
        %v7257 = vpop.f32.mrb[0].mxu0
        %v7258 = vadd.f32 %v6993, %v7257
        %v7259 = vpop.f32.mrb[0].mxu0
        %7260 = vmatprep.mubr.f32.mxu0 %v4711
        %7261 = vmatmul.mubr.f32.gmra.mrb[0].mxu0 %v4710
        %v7262 = vpop.f32.mrb[0].mxu0
        %v7263 = vadd.f32 %v6998, %v7262
        %v7264 = vpop.f32.mrb[0].mxu0
        %7265 = vmatprep.mubr.f32.mxu0 %v4729
        %7266 = vmatmul.mubr.f32.gmra.mrb[0].mxu0 %v4728
        %v7267 = vpop.f32.mrb[0].mxu0
        %v7268 = vadd.f32 %v7003, %v7267
        %v7269 = vpop.f32.mrb[0].mxu0
        %7270 = vmatprep.mubr.f32.mxu0 %v4747
        %7271 = vmatmul.mubr.f32.gmra.mrb[0].mxu0 %v4746
        %v7272 = vpop.f32.mrb[0].mxu0
        %v7273 = vadd.f32 %v7008, %v7272
        %v7274 = vpop.f32.mrb[0].mxu0
        %7275 = vmatprep.mubr.f32.mxu0 %v4765
        %7276 = vmatmul.mubr.f32.gmra.mrb[0].mxu0 %v4764
        %v7277 = vpop.f32.mrb[0].mxu0
        %v7278 = vadd.f32 %v7013, %v7277
        %v7279 = vpop.f32.mrb[0].mxu0
        %7280 = vmatprep.mubr.f32.mxu0 %v4783
        %7281 = vmatmul.mubr.f32.gmra.mrb[0].mxu0 %v4782
        %v7282 = vpop.f32.mrb[0].mxu0
        %v7283 = vadd.f32 %v7018, %v7282
        %v7284 = vpop.f32.mrb[0].mxu0
        %7285 = vmatprep.mubr.f32.mxu0 %v4801
        %7286 = vmatmul.mubr.f32.gmra.mrb[0].mxu0 %v4800
        %v7287 = vpop.f32.mrb[0].mxu0
        %v7288 = vadd.f32 %v7023, %v7287
        %v7289 = vpop.f32.mrb[0].mxu0
        %7290 = vmatprep.mubr.f32.mxu0 %v4819
        %7291 = vmatmul.mubr.f32.gmra.mrb[0].mxu0 %v4818
        %v7292 = vpop.f32.mrb[0].mxu0
        %v7293 = vadd.f32 %v7028, %v7292
        %v7294 = vpop.f32.mrb[0].mxu0
        %7295 = vmatprep.mubr.f32.mxu0 %v4837
        %7296 = vmatmul.mubr.f32.gmra.mrb[0].mxu0 %v4836
        %v7297 = vpop.f32.mrb[0].mxu0
        %v7298 = vadd.f32 %v7033, %v7297
        %v7299 = vpop.f32.mrb[0].mxu0
        %7300 = vmatprep.mubr.f32.mxu0 %v4855
        %7301 = vmatmul.mubr.f32.gmra.mrb[0].mxu0 %v4854
        %v7302 = vpop.f32.mrb[0].mxu0
        %v7303 = vadd.f32 %v7038, %v7302
        %v7304 = vpop.f32.mrb[0].mxu0
        %7305 = vmatprep.mubr.f32.mxu0 %v4873
        %7306 = vmatmul.mubr.f32.gmra.mrb[0].mxu0 %v4872
        %v7307 = vpop.f32.mrb[0].mxu0
        %v7308 = vadd.f32 %v7043, %v7307
        %v7309 = vpop.f32.mrb[0].mxu0
        %7310 = vmatprep.mubr.f32.mxu0 %v4891
        %7311 = vmatmul.mubr.f32.gmra.mrb[0].mxu0 %v4890
        %v7312 = vpop.f32.mrb[0].mxu0
        %v7313 = vadd.f32 %v7048, %v7312
        %v7314 = vpop.f32.mrb[0].mxu0
        %7315 = vmatprep.mubr.f32.mxu0 %v4909
        %7316 = vmatmul.mubr.f32.gmra.mrb[0].mxu0 %v4908
        %v7317 = vpop.f32.mrb[0].mxu0
        %v7318 = vadd.f32 %v7053, %v7317
        %v7319 = vpop.f32.mrb[0].mxu0
        %7320 = vmatprep.mubr.f32.mxu0 %v4927
        %7321 = vmatmul.mubr.f32.gmra.mrb[0].mxu0 %v4926
        %v7322 = vpop.f32.mrb[0].mxu0
        %v7323 = vadd.f32 %v7058, %v7322
        %v7324 = vpop.f32.mrb[0].mxu0
        %7325 = vmatprep.mubr.f32.mxu0 %v4945
        %7326 = vmatmul.mubr.f32.gmra.mrb[0].mxu0 %v4944
        %v7327 = vpop.f32.mrb[0].mxu0
        %v7328 = vadd.f32 %v7063, %v7327
        %v7329 = vpop.f32.mrb[0].mxu0
        %7330 = vdwg.mxu0
        %vm7331 = vcmask 400384
        %7332 = vst.msk [vmem:[%s192] sm:$0xff] %vm7331, %v7133
        %7333 = vst.msk [vmem:[%s192 + $0x8] sm:$0xff] %vm7331, %v7138
        %7334 = vst.msk [vmem:[%s192 + $0x10] sm:$0xff] %vm7331, %v7143
        %7335 = vst.msk [vmem:[%s192 + $0x18] sm:$0xff] %vm7331, %v7148
        %7336 = vst.msk [vmem:[%s192 + $0x20] sm:$0xff] %vm7331, %v7153
        %7337 = vst.msk [vmem:[%s192 + $0x28] sm:$0xff] %vm7331, %v7158
        %7338 = vst.msk [vmem:[%s192 + $0x30] sm:$0xff] %vm7331, %v7163
        %7339 = vst.msk [vmem:[%s192 + $0x38] sm:$0xff] %vm7331, %v7168
        %7340 = vst.msk [vmem:[%s192 + $0x40] sm:$0xff] %vm7331, %v7173
        %7341 = vst.msk [vmem:[%s192 + $0x48] sm:$0xff] %vm7331, %v7178
        %7342 = vst.msk [vmem:[%s192 + $0x50] sm:$0xff] %vm7331, %v7183
        %7343 = vst.msk [vmem:[%s192 + $0x58] sm:$0xff] %vm7331, %v7188
        %7344 = vst.msk [vmem:[%s192 + $0x60] sm:$0xff] %vm7331, %v7193
        %7345 = vst.msk [vmem:[%s192 + $0x68] sm:$0xff] %vm7331, %v7198
        %7346 = vst.msk [vmem:[%s192 + $0x70] sm:$0xff] %vm7331, %v7203
        %7347 = vst.msk [vmem:[%s192 + $0x78] sm:$0xff] %vm7331, %v7208
        %7348 = vst.msk [vmem:[%s192 + $0x80] sm:$0xff] %vm7331, %v7213
        %7349 = vst.msk [vmem:[%s192 + $0x88] sm:$0xff] %vm7331, %v7218
        %7350 = vst.msk [vmem:[%s192 + $0x90] sm:$0xff] %vm7331, %v7223
        %7351 = vst.msk [vmem:[%s192 + $0x98] sm:$0xff] %vm7331, %v7228
        %7352 = vst.msk [vmem:[%s192 + $0xa0] sm:$0xff] %vm7331, %v7233
        %7353 = vst.msk [vmem:[%s192 + $0xa8] sm:$0xff] %vm7331, %v7238
        %7354 = vst.msk [vmem:[%s192 + $0xb0] sm:$0xff] %vm7331, %v7243
        %7355 = vst.msk [vmem:[%s192 + $0xb8] sm:$0xff] %vm7331, %v7248
        %7356 = vst.msk [vmem:[%s192 + $0xc0] sm:$0xff] %vm7331, %v7253
        %7357 = vst.msk [vmem:[%s192 + $0xc8] sm:$0xff] %vm7331, %v7258
        %7358 = vst.msk [vmem:[%s192 + $0xd0] sm:$0xff] %vm7331, %v7263
        %7359 = vst.msk [vmem:[%s192 + $0xd8] sm:$0xff] %vm7331, %v7268
        %7360 = vst.msk [vmem:[%s192 + $0xe0] sm:$0xff] %vm7331, %v7273
        %7361 = vst.msk [vmem:[%s192 + $0xe8] sm:$0xff] %vm7331, %v7278
        %7362 = vst.msk [vmem:[%s192 + $0xf0] sm:$0xff] %vm7331, %v7283
        %7363 = vst.msk [vmem:[%s192 + $0xf8] sm:$0xff] %vm7331, %v7288
        %7364 = vst.msk [vmem:[%s192 + $0x100] sm:$0xff] %vm7331, %v7293
        %7365 = vst.msk [vmem:[%s192 + $0x108] sm:$0xff] %vm7331, %v7298
        %7366 = vst.msk [vmem:[%s192 + $0x110] sm:$0xff] %vm7331, %v7303
        %7367 = vst.msk [vmem:[%s192 + $0x118] sm:$0xff] %vm7331, %v7308
        %7368 = vst.msk [vmem:[%s192 + $0x120] sm:$0xff] %vm7331, %v7313
        %7369 = vst.msk [vmem:[%s192 + $0x128] sm:$0xff] %vm7331, %v7318
        %7370 = vst.msk [vmem:[%s192 + $0x130] sm:$0xff] %vm7331, %v7323
        %7371 = vst.msk [vmem:[%s192 + $0x138] sm:$0xff] %vm7331, %v7328
        %s7372 = smul.u32 40, %s17
        %p7373 = scmp.lt.s32.totalorder %s7372, 79
        %s7374 = scalar_select %p7373, %s7372, 79
        %s7375 = smul.addr %s7374, 8
        %s7376 = scalar_lea.vmem %s3, %s7375
        // Predicated region
        $region37: #{tpu_custom_call.1} parent=31 // pred_check
          %p7377 = pneg %p103
        $region38: #{tpu_custom_call.1} parent=31 // pred_check_branch
          %7379 = sbr.rel (%p7377) target = $region40
        $region39: #{tpu_custom_call.1} parent=31 // pred_region
          %s7380 = smul.u32 40, %s17
        $region40: #{tpu_custom_call.1} parent=31 // pred_fallthru
          _
      $region32: #{tpu_custom_call.1} parent=5 // pred_fallthru
        _
      %p7381 = scmp.le.s32.totalorder 2, %s12
      // Predicated region
      $region41: #{tpu_custom_call.1} parent=5 // pred_check
        %p7382 = pneg %p7381
      $region42: #{tpu_custom_call.1} parent=5 // pred_check_branch
        %7384 = sbr.rel (%p7382) target = $region44
      $region43: #{tpu_custom_call.1} parent=5 // pred_region
        %s7385 = ssub.s32 %s12, 2
        // Predicated region
        $region45: #{tpu_custom_call.1} parent=43 // pred_check
          %p7386 = pneg %p109
        $region46: #{tpu_custom_call.1} parent=43 // pred_check_branch
          %7388 = sbr.rel (%p7386) target = $region48
        $region47: #{tpu_custom_call.1} parent=43 // pred_region
          %s7389 = smul.u32 40, %s18
          %p7390 = scmp.lt.s32.totalorder %s7389, 79
          %s7391 = scalar_select %p7390, %s7389, 79
          %s7392 = smul.addr %s7391, 8
          %s7393 = scalar_lea.vmem %s3, %s7392
        $region48: #{tpu_custom_call.1} parent=43 // pred_fallthru
          _
      $region44: #{tpu_custom_call.1} parent=5 // pred_fallthru
        _
    $region6: #{tpu_custom_call.1} parent=1 // loop_footer
      %s16 = sadd.s32 1, %s12
    $region7: #{tpu_custom_call.1} parent=1 // loop_footer_branch
      %11 = sbr.rel target = $region3
    $region8: #{tpu_custom_call.1} parent=1 // loop_exit
      _
    %7394 = vsyncpa [#allocation3], 1
    %s7395 = scalar_lea.sflag [#allocation3], 1
    %7396 = vsyncpa %s7395, 1

</llo_original>
